<compile_context>
chip_gen: v5e
topology: v5e:2x2
jax: 0.10.0
libtpu: 0.0.40
codegen_flags: <defaults>
</compile_context>

<pallas_src>
import jax
import jax.numpy as jnp
from jax.experimental import pallas as pl
from jax.experimental.pallas import tpu as pltpu

ACTION_NUM = 4
STATE_SIZE = 4

_TM = 512    # target row-tile (multiple of 8) for the conv matmul grids
_TN4 = 256   # conv4 output-feature chunk width (streams w4 in ~1.6 MB pieces)


def _row_tile(m, target):
    """Even row tile: near-equal tiles, multiple of 8, full block if it fits."""
    if m <= target:
        return m
    n_tiles = -(-m // target)          # ceil-div
    tm = -(-m // n_tiles)
    return -(-tm // 8) * 8


# ----------------------------- Pallas kernels ------------------------------


def _matmul_bias_relu_kernel(a_ref, w_ref, b_ref, o_ref):
    # a: (TM, K) bf16, w: (K, N) bf16, b: (1, N) f32 -> o = relu(a @ w + b)
    acc = jnp.dot(a_ref[...], w_ref[...], preferred_element_type=jnp.float32)
    o_ref[...] = jnp.maximum(acc + b_ref[...], 0.0).astype(o_ref.dtype)


def matmul_bias_relu(a, w, b, *, out_dtype=jnp.bfloat16, tm_target=_TM):
    """relu(a @ w + b), tiled over rows of `a` with a parallel grid axis."""
    M, K = a.shape
    K2, N = w.shape
    assert K == K2
    tm = _row_tile(M, tm_target)
    grid = (pl.cdiv(M, tm),)
    return pl.pallas_call(
        _matmul_bias_relu_kernel,
        out_shape=jax.ShapeDtypeStruct((M, N), out_dtype),
        grid=grid,
        in_specs=[
            pl.BlockSpec((tm, K), lambda i: (i, 0)),
            pl.BlockSpec((K, N), lambda i: (0, 0)),
            pl.BlockSpec((1, N), lambda i: (0, 0)),
        ],
        out_specs=pl.BlockSpec((tm, N), lambda i: (i, 0)),
        compiler_params=pltpu.CompilerParams(
            dimension_semantics=("parallel",)),
    )(a, w, b)


def _conv4_head_kernel(p_ref, w4_ref, b4_ref, wh_ref, o_ref):
    # One conv4 feature chunk: relu(patches @ W4[:, chunk] + b4[chunk]) of
    # shape (tm, TN4) never leaves VMEM -- it is immediately folded through
    # the matching slice of the dueling-head weight, producing a (tm, A)
    # partial Q contribution.  Partials over chunks are summed outside.
    feats = jnp.maximum(
        jnp.dot(p_ref[...], w4_ref[...], preferred_element_type=jnp.float32)
        + b4_ref[...], 0.0)
    o_ref[0] = jnp.dot(feats.astype(jnp.bfloat16), wh_ref[...],
                       preferred_element_type=jnp.float32)


def conv4_dueling_head(patches, w4, b4, w_head, b_head, *, tn=_TN4,
                       tm_target=256):
    """Fused conv4 (as matmul) + ReLU + folded dueling head, streaming w4."""
    M, K = patches.shape
    N4 = w4.shape[1]
    A = w_head.shape[1]
    assert N4 % tn == 0
    n_chunks = N4 // tn
    tm = _row_tile(M, tm_target)
    grid = (pl.cdiv(M, tm), n_chunks)   # both axes independent -> 'parallel'
    partials = pl.pallas_call(
        _conv4_head_kernel,
        out_shape=jax.ShapeDtypeStruct((n_chunks, M, A), jnp.float32),
        grid=grid,
        in_specs=[
            pl.BlockSpec((tm, K), lambda i, j: (i, 0)),     # patches (resident)
            pl.BlockSpec((K, tn), lambda i, j: (0, j)),     # w4 chunk (streamed)
            pl.BlockSpec((1, tn), lambda i, j: (0, j)),     # b4 chunk
            pl.BlockSpec((tn, A), lambda i, j: (j, 0)),     # head-weight chunk
        ],
        out_specs=pl.BlockSpec((1, tm, A), lambda i, j: (j, i, 0)),
        compiler_params=pltpu.CompilerParams(
            dimension_semantics=("parallel", "parallel")),
    )(patches, w4, b4, w_head)
    # Tiny (n_chunks, M, A) reduction + bias; linearity makes this exact.
    return jnp.sum(partials, axis=0) + b_head


# ------------------------------ JAX glue ------------------------------------


def im2col_nhwc(x, k, stride):
    """x: (B, H, W, C) -> patches (B*Ho*Wo, k*k*C), column order (kh, kw, c)."""
    B, H, W, C = x.shape
    Ho = (H - k) // stride + 1
    Wo = (W - k) // stride + 1
    cols = []
    for di in range(k):
        for dj in range(k):
            cols.append(
                x[:, di:di + stride * Ho:stride, dj:dj + stride * Wo:stride, :])
    p = jnp.stack(cols, axis=3)                      # (B, Ho, Wo, k*k, C)
    return p.reshape(B * Ho * Wo, k * k * C), Ho, Wo


def conv_relu(x_nhwc, w_km, b, *, k, stride):
    """NHWC conv (valid padding) + ReLU via im2col matmul; returns NHWC bf16."""
    B = x_nhwc.shape[0]
    patches, Ho, Wo = im2col_nhwc(x_nhwc, k, stride)
    Cout = w_km.shape[1]
    out = matmul_bias_relu(patches, w_km, b)         # (B*Ho*Wo, Cout) bf16
    return out.reshape(B, Ho, Wo, Cout)


def init_params(key):
    """PyTorch-layout parameters (OIHW conv weights, (out,in) fc weights)."""
    ks = jax.random.split(key, 8)

    def kaiming(k, shape, fan_in):
        return jax.random.normal(k, shape, jnp.float32) * jnp.sqrt(2.0 / fan_in)

    p = {}
    p["conv1_w"] = kaiming(ks[0], (32, STATE_SIZE, 8, 8), STATE_SIZE * 8 * 8)
    p["conv1_b"] = jnp.zeros((32,), jnp.float32)
    p["conv2_w"] = kaiming(ks[1], (64, 32, 4, 4), 32 * 4 * 4)
    p["conv2_b"] = jnp.zeros((64,), jnp.float32)
    p["conv3_w"] = kaiming(ks[2], (64, 64, 3, 3), 64 * 3 * 3)
    p["conv3_b"] = jnp.zeros((64,), jnp.float32)
    p["conv4_w"] = kaiming(ks[3], (1024, 64, 7, 7), 64 * 7 * 7)
    p["conv4_b"] = jnp.zeros((1024,), jnp.float32)
    p["fcv_w"] = kaiming(ks[4], (1, 512), 512)
    p["fcv_b"] = jax.random.uniform(ks[5], (1,), jnp.float32,
                                    -1.0 / jnp.sqrt(512.0), 1.0 / jnp.sqrt(512.0))
    p["fca_w"] = kaiming(ks[6], (ACTION_NUM, 512), 512)
    p["fca_b"] = jax.random.uniform(ks[7], (ACTION_NUM,), jnp.float32,
                                    -1.0 / jnp.sqrt(512.0), 1.0 / jnp.sqrt(512.0))
    return p


def prepare_params(p):
    """One-time conversion to kernel layouts/dtypes (outside the per-call path)."""

    def conv_w(w):  # (Cout, Cin, kh, kw) -> (kh*kw*Cin, Cout) to match im2col
        Cout, Cin, kh, kw = w.shape
        return jnp.transpose(w, (2, 3, 1, 0)).reshape(kh * kw * Cin, Cout)

    q = {}
    # Fold the /255 input scale into conv1's weight (bias is unaffected).
    q["w1"] = (conv_w(p["conv1_w"]) / 255.0).astype(jnp.bfloat16)
    q["b1"] = p["conv1_b"].reshape(1, -1).astype(jnp.float32)
    q["w2"] = conv_w(p["conv2_w"]).astype(jnp.bfloat16)
    q["b2"] = p["conv2_b"].reshape(1, -1).astype(jnp.float32)
    q["w3"] = conv_w(p["conv3_w"]).astype(jnp.bfloat16)
    q["b3"] = p["conv3_b"].reshape(1, -1).astype(jnp.float32)
    q["w4"] = conv_w(p["conv4_w"]).astype(jnp.bfloat16)
    q["b4"] = p["conv4_b"].reshape(1, -1).astype(jnp.float32)

    # Fold the dueling combine (v + a - mean(a)) into one (1024, A) matmul.
    # PyTorch takes value = feats[:, :512], advantage = feats[:, 512:]; the
    # NHWC pipeline preserves conv4's output-channel order, so the same split
    # applies here:
    #   W_eff[:512, j] = wv ;  W_eff[512:, j] = wa[j] - mean_k wa[k]
    #   b_eff[j]       = bv + ba[j] - mean(ba)
    wv = p["fcv_w"]                                     # (1, 512)
    wa = p["fca_w"]                                     # (A, 512)
    wa_c = wa - jnp.mean(wa, axis=0, keepdims=True)     # (A, 512)
    w_eff = jnp.concatenate(
        [jnp.broadcast_to(wv, (ACTION_NUM, 512)), wa_c], axis=1).T  # (1024, A)
    b_eff = p["fcv_b"][0] + p["fca_b"] - jnp.mean(p["fca_b"])       # (A,)
    q["w_head"] = w_eff.astype(jnp.bfloat16)            # bf16 MXU path
    q["b_head"] = b_eff.reshape(1, ACTION_NUM).astype(jnp.float32)
    return q


@jax.jit
def dueling_dqn_forward(x, kp):
    """x: (B, 4, 84, 84) NCHW float in [0, 255]; returns q-values (B, A) f32."""
    # Single layout/dtype conversion at the model boundary; NHWC bf16 inside.
    h = jnp.transpose(x, (0, 2, 3, 1)).astype(jnp.bfloat16)
    h = conv_relu(h, kp["w1"], kp["b1"], k=8, stride=4)   # (B, 20, 20, 32)
    h = conv_relu(h, kp["w2"], kp["b2"], k=4, stride=2)   # (B,  9,  9, 64)
    h = conv_relu(h, kp["w3"], kp["b3"], k=3, stride=1)   # (B,  7,  7, 64)
    B, Ho, Wo, C = h.shape
    # conv4 (7x7, stride 2) collapses to 1x1 spatial, matching the PyTorch
    # .view(-1, 512) semantics; im2col therefore degenerates to a reshape.
    assert (Ho, Wo, C) == (7, 7, 64)
    patches4 = h.reshape(B, Ho * Wo * C)                  # (B, 3136), (kh,kw,c)
    return conv4_dueling_head(patches4, kp["w4"], kp["b4"],
                              kp["w_head"], kp["b_head"])


def reference_forward(x, p):
    """Pure-JAX/XLA f32 reference (mirrors the PyTorch forward) for validation."""
    h = x / 255.0
    dn = ("NCHW", "OIHW", "NCHW")
    for wname, bname, s in [("conv1_w", "conv1_b", 4), ("conv2_w", "conv2_b", 2),
                            ("conv3_w", "conv3_b", 1), ("conv4_w", "conv4_b", 2)]:
        h = jax.lax.conv_general_dilated(h, p[wname], (s, s), "VALID",
                                         dimension_numbers=dn)
        h = jax.nn.relu(h + p[bname][None, :, None, None])
    B = h.shape[0]
    feats = h.reshape(B, 1024)
    v = feats[:, :512] @ p["fcv_w"].T + p["fcv_b"]
    a = feats[:, 512:] @ p["fca_w"].T + p["fca_b"]
    return v + (a - jnp.mean(a, axis=1, keepdims=True))


if __name__ == "__main__":
    key = jax.random.PRNGKey(0)
    kparam, kx = jax.random.split(key)
    params = init_params(kparam)
    kernel_params = prepare_params(params)   # one-time layout/dtype prep

    # 84x84 is the smallest spatial size the conv stack admits (84->20->9->7->1)
    # and the only one consistent with the PyTorch .view(-1, 512).
    x = jax.random.uniform(kx, (2, STATE_SIZE, 84, 84), jnp.float32, 0.0, 255.0)

    q = dueling_dqn_forward(x, kernel_params)
    q = jax.block_until_ready(q)
    assert q.shape == (2, ACTION_NUM)

    q_ref = reference_forward(x, params)
    # bf16 weights/activations (f32 accumulation) vs the f32 reference.
    assert jnp.allclose(q, q_ref, rtol=5e-2, atol=1.5e-1), (q, q_ref)

    print("KERNEL_OK")
</pallas_src>

<mosaic_0001>
module attributes {stable_mosaic.version = 11 : i64} {
  func.func @_matmul_bias_relu_kernel(%arg0: i32, %arg1: memref<400x256xbf16, #tpu.memory_space<vmem>>, %arg2: memref<256x32xbf16, #tpu.memory_space<vmem>>, %arg3: memref<1x32xf32, #tpu.memory_space<vmem>>, %arg4: memref<400x32xbf16, #tpu.memory_space<vmem>>) attributes {dimension_semantics = [#tpu.dimension_semantics<parallel>], iteration_bounds = array<i64: 2>, scalar_prefetch = 0 : i64, scratch_operands = 0 : i64, tpu.core_type = #tpu.core_type<tc>, window_params = [{transform_indices = @transform_0, window_bounds = array<i64: 400, 256>}, {pipeline_mode = #tpu.pipeline_mode<synchronous>, transform_indices = @transform_1, window_bounds = array<i64: 256, 32>}, {pipeline_mode = #tpu.pipeline_mode<synchronous>, transform_indices = @transform_2, window_bounds = array<i64: 1, 32>}, {transform_indices = @transform_3, window_bounds = array<i64: 400, 32>}]} {
    %c0 = arith.constant 0 : index
    %c0_0 = arith.constant 0 : index
    %0 = vector.load %arg1[%c0, %c0_0] : memref<400x256xbf16, #tpu.memory_space<vmem>>, vector<400x256xbf16>
    %c0_1 = arith.constant 0 : index
    %c0_2 = arith.constant 0 : index
    %1 = vector.load %arg2[%c0_1, %c0_2] : memref<256x32xbf16, #tpu.memory_space<vmem>>, vector<256x32xbf16>
    %cst = arith.constant dense<0.000000e+00> : vector<400x32xf32>
    %2 = tpu.matmul %0, %1, %cst {dimension_numbers = #tpu.dot_dimension_numbers<[1], [0], [0], [1], [0, 0, 1, 1], [], []>} : vector<400x256xbf16>, vector<256x32xbf16>, vector<400x32xf32> -> vector<400x32xf32>
    %c0_3 = arith.constant 0 : index
    %c0_4 = arith.constant 0 : index
    %3 = vector.load %arg3[%c0_3, %c0_4] : memref<1x32xf32, #tpu.memory_space<vmem>>, vector<1x32xf32>
    %4 = vector.broadcast %3 : vector<1x32xf32> to vector<400x32xf32>
    %5 = arith.addf %2, %4 : vector<400x32xf32>
    %cst_5 = arith.constant 0.000000e+00 : f32
    %6 = vector.broadcast %cst_5 : f32 to vector<400x32xf32>
    %7 = arith.maximumf %5, %6 : vector<400x32xf32>
    %8 = arith.truncf %7 : vector<400x32xf32> to vector<400x32xbf16>
    %c0_6 = arith.constant 0 : index
    %c0_7 = arith.constant 0 : index
    %9 = vector.load %arg4[%c0_6, %c0_7] : memref<400x32xbf16, #tpu.memory_space<vmem>>, vector<400x32xbf16>
    tpu.vector_store %arg4[%c0_6, %c0_7], %8 {strides = array<i32>} : memref<400x32xbf16, #tpu.memory_space<vmem>>, vector<400x32xbf16>,
    return
  }
  func.func @transform_0(%arg0: i32) -> (i32, i32) {
    %c0_i32 = arith.constant 0 : i32
    %c0_i32_0 = arith.constant 0 : i32
    return %arg0, %c0_i32 : i32, i32
  }
  func.func @transform_1(%arg0: i32) -> (i32, i32) {
    %c0_i32 = arith.constant 0 : i32
    %c0_i32_0 = arith.constant 0 : i32
    %c0_i32_1 = arith.constant 0 : i32
    return %c0_i32, %c0_i32_0 : i32, i32
  }
  func.func @transform_2(%arg0: i32) -> (i32, i32) {
    %c0_i32 = arith.constant 0 : i32
    %c0_i32_0 = arith.constant 0 : i32
    %c0_i32_1 = arith.constant 0 : i32
    return %c0_i32, %c0_i32_0 : i32, i32
  }
  func.func @transform_3(%arg0: i32) -> (i32, i32) {
    %c0_i32 = arith.constant 0 : i32
    %c0_i32_0 = arith.constant 0 : i32
    return %arg0, %c0_i32 : i32, i32
  }
}

module attributes {stable_mosaic.version = 11 : i64} {
  func.func @_matmul_bias_relu_kernel(%arg0: i32, %arg1: memref<162x512xbf16, #tpu.memory_space<vmem>>, %arg2: memref<512x64xbf16, #tpu.memory_space<vmem>>, %arg3: memref<1x64xf32, #tpu.memory_space<vmem>>, %arg4: memref<162x64xbf16, #tpu.memory_space<vmem>>) attributes {dimension_semantics = [#tpu.dimension_semantics<parallel>], iteration_bounds = array<i64: 1>, scalar_prefetch = 0 : i64, scratch_operands = 0 : i64, tpu.core_type = #tpu.core_type<tc>, window_params = [{transform_indices = @transform_0, window_bounds = array<i64: 162, 512>}, {pipeline_mode = #tpu.pipeline_mode<synchronous>, transform_indices = @transform_1, window_bounds = array<i64: 512, 64>}, {pipeline_mode = #tpu.pipeline_mode<synchronous>, transform_indices = @transform_2, window_bounds = array<i64: 1, 64>}, {transform_indices = @transform_3, window_bounds = array<i64: 162, 64>}]} {
    %c0 = arith.constant 0 : index
    %c0_0 = arith.constant 0 : index
    %0 = vector.load %arg1[%c0, %c0_0] : memref<162x512xbf16, #tpu.memory_space<vmem>>, vector<162x512xbf16>
    %c0_1 = arith.constant 0 : index
    %c0_2 = arith.constant 0 : index
    %1 = vector.load %arg2[%c0_1, %c0_2] : memref<512x64xbf16, #tpu.memory_space<vmem>>, vector<512x64xbf16>
    %cst = arith.constant dense<0.000000e+00> : vector<162x64xf32>
    %2 = tpu.matmul %0, %1, %cst {dimension_numbers = #tpu.dot_dimension_numbers<[1], [0], [0], [1], [0, 0, 1, 1], [], []>} : vector<162x512xbf16>, vector<512x64xbf16>, vector<162x64xf32> -> vector<162x64xf32>
    %c0_3 = arith.constant 0 : index
    %c0_4 = arith.constant 0 : index
    %3 = vector.load %arg3[%c0_3, %c0_4] : memref<1x64xf32, #tpu.memory_space<vmem>>, vector<1x64xf32>
    %4 = vector.broadcast %3 : vector<1x64xf32> to vector<162x64xf32>
    %5 = arith.addf %2, %4 : vector<162x64xf32>
    %cst_5 = arith.constant 0.000000e+00 : f32
    %6 = vector.broadcast %cst_5 : f32 to vector<162x64xf32>
    %7 = arith.maximumf %5, %6 : vector<162x64xf32>
    %8 = arith.truncf %7 : vector<162x64xf32> to vector<162x64xbf16>
    %c0_6 = arith.constant 0 : index
    %c0_7 = arith.constant 0 : index
    %9 = vector.load %arg4[%c0_6, %c0_7] : memref<162x64xbf16, #tpu.memory_space<vmem>>, vector<162x64xbf16>
    tpu.vector_store %arg4[%c0_6, %c0_7], %8 {strides = array<i32>} : memref<162x64xbf16, #tpu.memory_space<vmem>>, vector<162x64xbf16>,
    return
  }
  func.func @transform_0(%arg0: i32) -> (i32, i32) {
    %c0_i32 = arith.constant 0 : i32
    %c0_i32_0 = arith.constant 0 : i32
    return %arg0, %c0_i32 : i32, i32
  }
  func.func @transform_1(%arg0: i32) -> (i32, i32) {
    %c0_i32 = arith.constant 0 : i32
    %c0_i32_0 = arith.constant 0 : i32
    %c0_i32_1 = arith.constant 0 : i32
    return %c0_i32, %c0_i32_0 : i32, i32
  }
  func.func @transform_2(%arg0: i32) -> (i32, i32) {
    %c0_i32 = arith.constant 0 : i32
    %c0_i32_0 = arith.constant 0 : i32
    %c0_i32_1 = arith.constant 0 : i32
    return %c0_i32, %c0_i32_0 : i32, i32
  }
  func.func @transform_3(%arg0: i32) -> (i32, i32) {
    %c0_i32 = arith.constant 0 : i32
    %c0_i32_0 = arith.constant 0 : i32
    return %arg0, %c0_i32 : i32, i32
  }
}

module attributes {stable_mosaic.version = 11 : i64} {
  func.func @_matmul_bias_relu_kernel(%arg0: i32, %arg1: memref<98x576xbf16, #tpu.memory_space<vmem>>, %arg2: memref<576x64xbf16, #tpu.memory_space<vmem>>, %arg3: memref<1x64xf32, #tpu.memory_space<vmem>>, %arg4: memref<98x64xbf16, #tpu.memory_space<vmem>>) attributes {dimension_semantics = [#tpu.dimension_semantics<parallel>], iteration_bounds = array<i64: 1>, scalar_prefetch = 0 : i64, scratch_operands = 0 : i64, tpu.core_type = #tpu.core_type<tc>, window_params = [{transform_indices = @transform_0, window_bounds = array<i64: 98, 576>}, {pipeline_mode = #tpu.pipeline_mode<synchronous>, transform_indices = @transform_1, window_bounds = array<i64: 576, 64>}, {pipeline_mode = #tpu.pipeline_mode<synchronous>, transform_indices = @transform_2, window_bounds = array<i64: 1, 64>}, {transform_indices = @transform_3, window_bounds = array<i64: 98, 64>}]} {
    %c0 = arith.constant 0 : index
    %c0_0 = arith.constant 0 : index
    %0 = vector.load %arg1[%c0, %c0_0] : memref<98x576xbf16, #tpu.memory_space<vmem>>, vector<98x576xbf16>
    %c0_1 = arith.constant 0 : index
    %c0_2 = arith.constant 0 : index
    %1 = vector.load %arg2[%c0_1, %c0_2] : memref<576x64xbf16, #tpu.memory_space<vmem>>, vector<576x64xbf16>
    %cst = arith.constant dense<0.000000e+00> : vector<98x64xf32>
    %2 = tpu.matmul %0, %1, %cst {dimension_numbers = #tpu.dot_dimension_numbers<[1], [0], [0], [1], [0, 0, 1, 1], [], []>} : vector<98x576xbf16>, vector<576x64xbf16>, vector<98x64xf32> -> vector<98x64xf32>
    %c0_3 = arith.constant 0 : index
    %c0_4 = arith.constant 0 : index
    %3 = vector.load %arg3[%c0_3, %c0_4] : memref<1x64xf32, #tpu.memory_space<vmem>>, vector<1x64xf32>
    %4 = vector.broadcast %3 : vector<1x64xf32> to vector<98x64xf32>
    %5 = arith.addf %2, %4 : vector<98x64xf32>
    %cst_5 = arith.constant 0.000000e+00 : f32
    %6 = vector.broadcast %cst_5 : f32 to vector<98x64xf32>
    %7 = arith.maximumf %5, %6 : vector<98x64xf32>
    %8 = arith.truncf %7 : vector<98x64xf32> to vector<98x64xbf16>
    %c0_6 = arith.constant 0 : index
    %c0_7 = arith.constant 0 : index
    %9 = vector.load %arg4[%c0_6, %c0_7] : memref<98x64xbf16, #tpu.memory_space<vmem>>, vector<98x64xbf16>
    tpu.vector_store %arg4[%c0_6, %c0_7], %8 {strides = array<i32>} : memref<98x64xbf16, #tpu.memory_space<vmem>>, vector<98x64xbf16>,
    return
  }
  func.func @transform_0(%arg0: i32) -> (i32, i32) {
    %c0_i32 = arith.constant 0 : i32
    %c0_i32_0 = arith.constant 0 : i32
    return %arg0, %c0_i32 : i32, i32
  }
  func.func @transform_1(%arg0: i32) -> (i32, i32) {
    %c0_i32 = arith.constant 0 : i32
    %c0_i32_0 = arith.constant 0 : i32
    %c0_i32_1 = arith.constant 0 : i32
    return %c0_i32, %c0_i32_0 : i32, i32
  }
  func.func @transform_2(%arg0: i32) -> (i32, i32) {
    %c0_i32 = arith.constant 0 : i32
    %c0_i32_0 = arith.constant 0 : i32
    %c0_i32_1 = arith.constant 0 : i32
    return %c0_i32, %c0_i32_0 : i32, i32
  }
  func.func @transform_3(%arg0: i32) -> (i32, i32) {
    %c0_i32 = arith.constant 0 : i32
    %c0_i32_0 = arith.constant 0 : i32
    return %arg0, %c0_i32 : i32, i32
  }
}

module attributes {stable_mosaic.version = 11 : i64} {
  func.func @_conv4_head_kernel(%arg0: i32, %arg1: i32, %arg2: memref<2x3136xbf16, #tpu.memory_space<vmem>>, %arg3: memref<3136x256xbf16, #tpu.memory_space<vmem>>, %arg4: memref<1x256xf32, #tpu.memory_space<vmem>>, %arg5: memref<256x4xbf16, #tpu.memory_space<vmem>>, %arg6: memref<1x2x4xf32, #tpu.memory_space<vmem>>) attributes {dimension_semantics = [#tpu.dimension_semantics<parallel>, #tpu.dimension_semantics<parallel>], iteration_bounds = array<i64: 1, 4>, scalar_prefetch = 0 : i64, scratch_operands = 0 : i64, tpu.core_type = #tpu.core_type<tc>, window_params = [{transform_indices = @transform_0, window_bounds = array<i64: 2, 3136>}, {transform_indices = @transform_1, window_bounds = array<i64: 3136, 256>}, {transform_indices = @transform_2, window_bounds = array<i64: 1, 256>}, {transform_indices = @transform_3, window_bounds = array<i64: 256, 4>}, {transform_indices = @transform_4, window_bounds = array<i64: 1, 2, 4>}]} {
    %c0 = arith.constant 0 : index
    %c0_0 = arith.constant 0 : index
    %0 = vector.load %arg2[%c0, %c0_0] : memref<2x3136xbf16, #tpu.memory_space<vmem>>, vector<2x3136xbf16>
    %c0_1 = arith.constant 0 : index
    %c0_2 = arith.constant 0 : index
    %1 = vector.load %arg3[%c0_1, %c0_2] : memref<3136x256xbf16, #tpu.memory_space<vmem>>, vector<3136x256xbf16>
    %cst = arith.constant dense<0.000000e+00> : vector<2x256xf32>
    %2 = tpu.matmul %0, %1, %cst {dimension_numbers = #tpu.dot_dimension_numbers<[1], [0], [0], [1], [0, 0, 1, 1], [], []>} : vector<2x3136xbf16>, vector<3136x256xbf16>, vector<2x256xf32> -> vector<2x256xf32>
    %c0_3 = arith.constant 0 : index
    %c0_4 = arith.constant 0 : index
    %3 = vector.load %arg4[%c0_3, %c0_4] : memref<1x256xf32, #tpu.memory_space<vmem>>, vector<1x256xf32>
    %4 = vector.broadcast %3 : vector<1x256xf32> to vector<2x256xf32>
    %5 = arith.addf %2, %4 : vector<2x256xf32>
    %cst_5 = arith.constant 0.000000e+00 : f32
    %6 = vector.broadcast %cst_5 : f32 to vector<2x256xf32>
    %7 = arith.maximumf %5, %6 : vector<2x256xf32>
    %8 = arith.truncf %7 : vector<2x256xf32> to vector<2x256xbf16>
    %c0_6 = arith.constant 0 : index
    %c0_7 = arith.constant 0 : index
    %9 = vector.load %arg5[%c0_6, %c0_7] : memref<256x4xbf16, #tpu.memory_space<vmem>>, vector<256x4xbf16>
    %cst_8 = arith.constant dense<0.000000e+00> : vector<2x4xf32>
    %10 = tpu.matmul %8, %9, %cst_8 {dimension_numbers = #tpu.dot_dimension_numbers<[1], [0], [0], [1], [0, 0, 1, 1], [], []>} : vector<2x256xbf16>, vector<256x4xbf16>, vector<2x4xf32> -> vector<2x4xf32>
    %c0_9 = arith.constant 0 : index
    %c0_10 = arith.constant 0 : index
    %c0_11 = arith.constant 0 : index
    %11 = vector.load %arg6[%c0_9, %c0_10, %c0_11] : memref<1x2x4xf32, #tpu.memory_space<vmem>>, vector<1x2x4xf32>
    %12 = vector.shape_cast %11 : vector<1x2x4xf32> to vector<2x4xf32>
    %13 = vector.shape_cast %10 : vector<2x4xf32> to vector<1x2x4xf32>
    tpu.vector_store %arg6[%c0_9, %c0_10, %c0_11], %13 {strides = array<i32>} : memref<1x2x4xf32, #tpu.memory_space<vmem>>, vector<1x2x4xf32>,
    return
  }
  func.func @transform_0(%arg0: i32, %arg1: i32) -> (i32, i32) {
    %c0_i32 = arith.constant 0 : i32
    %c0_i32_0 = arith.constant 0 : i32
    return %arg0, %c0_i32 : i32, i32
  }
  func.func @transform_1(%arg0: i32, %arg1: i32) -> (i32, i32) {
    %c0_i32 = arith.constant 0 : i32
    %c0_i32_0 = arith.constant 0 : i32
    return %c0_i32, %arg1 : i32, i32
  }
  func.func @transform_2(%arg0: i32, %arg1: i32) -> (i32, i32) {
    %c0_i32 = arith.constant 0 : i32
    %c0_i32_0 = arith.constant 0 : i32
    return %c0_i32, %arg1 : i32, i32
  }
  func.func @transform_3(%arg0: i32, %arg1: i32) -> (i32, i32) {
    %c0_i32 = arith.constant 0 : i32
    %c0_i32_0 = arith.constant 0 : i32
    return %arg1, %c0_i32 : i32, i32
  }
  func.func @transform_4(%arg0: i32, %arg1: i32) -> (i32, i32, i32) {
    %c0_i32 = arith.constant 0 : i32
    %c0_i32_0 = arith.constant 0 : i32
    return %arg1, %arg0, %c0_i32 : i32, i32, i32
  }
}

</mosaic_0001>

<llo_original>
// kernel: dueling_dqn_forward.4
$region0: #{dueling_dqn_forward.4}
  #allocation0 [shape = 'u32[]', space=smem, size = 0x4, offset = 0x4, fixed_abs, tag = 'smem constant byte address 0x4 - core index']
  #allocation1 [shape = 'u32[72,128]{1,0:T(1,128)}', space=vmem, size = 0x9000, scoped, tag = 'internal scratch']
  %s0 = inlined_call_operand.vmem [shape: bf16[800,256], index: 0, kind: input, shape index: {}]
  %s1 = inlined_call_operand.vmem [shape: bf16[256,32], index: 1, kind: input, shape index: {}]
  %s2 = inlined_call_operand.vmem [shape: f32[1,32], index: 2, kind: input, shape index: {}]
  %s3 = inlined_call_operand.vmem [shape: bf16[800,32], index: 3, kind: output, shape index: {}]
  %s4 = sld [smem:[#allocation0]]
  $region45: #{dueling_dqn_forward.4} parent=0
    _
  %s6 = ssub.s32 1, %s4
  %s7 = scalar_select 0, %s6, %s4
  loop: start=0, step=1, limit=4
  $region2: #{dueling_dqn_forward.4} parent=0 // loop_pre_header
    _
  $region3: #{dueling_dqn_forward.4} parent=0 // loop_header
    %s9 = sphi 0, %s13
    %p10 = scmp.ge.s32.totalorder %s9, 4
    %s19 = sphi 0, %s21
    %s22 = sphi 0, %s19
    %s23 = sphi 0, %s22
    %s39 = sphi 0, %s23
    %s43 = sphi 0, %s43
    %s45 = sphi 0, %s43
    %s46 = sphi 0, %s45
    %s60 = sphi 0, %s46
    %s64 = sphi 0, %s64
    %s66 = sphi 0, %s64
    %s67 = sphi 0, %s66
    %s81 = sphi 0, %s67
    %s87 = sphi 0, %s89
    %s90 = sphi 0, %s87
    %s91 = sphi 0, %s90
    %s107 = sphi 0, %s91
  $region4: #{dueling_dqn_forward.4} parent=0 // loop_header_branch
    %12 = sbr.rel (%p10) target = $region8
  $region5: #{dueling_dqn_forward.4} parent=0 // loop_body
    %s14 = ssub.s32 %s9, 1
    %s15 = ssub.s32 %s9, 2
    %s16 = sadd.s32 %s9, 1
    %s17 = ssub.s32 %s9, %s16
    %p18 = scmp.eq.s32.totalorder %s17, 0
    %s20 = sadd.s32 %s19, 1
    %s21 = scalar_select %p18, %s19, %s20
    %p24 = pneg %p18
    %p25 = scmp.eq.s32.totalorder %s9, 1
    %p26 = por %p24, %p25
    %p27 = scmp.ne.s32.totalorder %s19, %s22
    %p28 = scmp.eq.s32.totalorder %s9, 0
    %p29 = por %p27, %p28
    %p30 = scmp.ne.s32.totalorder %s19, %s22
    %p31 = scmp.eq.s32.totalorder %s14, 1
    %p32 = por %p30, %p31
    %p33 = scmp.ne.s32.totalorder %s22, %s23
    %p34 = scmp.eq.s32.totalorder %s14, 0
    %p35 = por %p33, %p34
    %p36 = scmp.ne.s32.totalorder %s22, %s23
    %p37 = scmp.eq.s32.totalorder %s15, 1
    %p38 = por %p36, %p37
    %p40 = scmp.ne.s32.totalorder %s23, %s39
    %p41 = scmp.eq.s32.totalorder %s15, 0
    %p42 = por %p40, %p41
    %s44 = sadd.s32 %s43, 1
    %p47 = scmp.eq.s32.totalorder %s9, 1
    %p48 = scmp.ne.s32.totalorder %s43, %s45
    %p49 = scmp.eq.s32.totalorder %s9, 0
    %p50 = por %p48, %p49
    %p51 = scmp.ne.s32.totalorder %s43, %s45
    %p52 = scmp.eq.s32.totalorder %s14, 1
    %p53 = por %p51, %p52
    %p54 = scmp.ne.s32.totalorder %s45, %s46
    %p55 = scmp.eq.s32.totalorder %s14, 0
    %p56 = por %p54, %p55
    %p57 = scmp.ne.s32.totalorder %s45, %s46
    %p58 = scmp.eq.s32.totalorder %s15, 1
    %p59 = por %p57, %p58
    %p61 = scmp.ne.s32.totalorder %s46, %s60
    %p62 = scmp.eq.s32.totalorder %s15, 0
    %p63 = por %p61, %p62
    %s65 = sadd.s32 %s64, 1
    %p68 = scmp.eq.s32.totalorder %s9, 1
    %p69 = scmp.ne.s32.totalorder %s64, %s66
    %p70 = scmp.eq.s32.totalorder %s9, 0
    %p71 = por %p69, %p70
    %p72 = scmp.ne.s32.totalorder %s64, %s66
    %p73 = scmp.eq.s32.totalorder %s14, 1
    %p74 = por %p72, %p73
    %p75 = scmp.ne.s32.totalorder %s66, %s67
    %p76 = scmp.eq.s32.totalorder %s14, 0
    %p77 = por %p75, %p76
    %p78 = scmp.ne.s32.totalorder %s66, %s67
    %p79 = scmp.eq.s32.totalorder %s15, 1
    %p80 = por %p78, %p79
    %p82 = scmp.ne.s32.totalorder %s67, %s81
    %p83 = scmp.eq.s32.totalorder %s15, 0
    %p84 = por %p82, %p83
    %s85 = ssub.s32 %s9, %s16
    %p86 = scmp.eq.s32.totalorder %s85, 0
    %s88 = sadd.s32 %s87, 1
    %s89 = scalar_select %p86, %s87, %s88
    %p92 = pneg %p86
    %p93 = scmp.eq.s32.totalorder %s9, 1
    %p94 = por %p92, %p93
    %p95 = scmp.ne.s32.totalorder %s87, %s90
    %p96 = scmp.eq.s32.totalorder %s9, 0
    %p97 = por %p95, %p96
    %p98 = scmp.ne.s32.totalorder %s87, %s90
    %p99 = scmp.eq.s32.totalorder %s14, 1
    %p100 = por %p98, %p99
    %p101 = scmp.ne.s32.totalorder %s90, %s91
    %p102 = scmp.eq.s32.totalorder %s14, 0
    %p103 = por %p101, %p102
    %p104 = scmp.ne.s32.totalorder %s90, %s91
    %p105 = scmp.eq.s32.totalorder %s15, 1
    %p106 = por %p104, %p105
    %p108 = scmp.ne.s32.totalorder %s91, %s107
    %p109 = scmp.eq.s32.totalorder %s15, 0
    %p110 = por %p108, %p109
    %p111 = scmp.le.s32.totalorder 1, %s9
    %p112 = scmp.lt.s32.totalorder %s9, 3
    %p113 = pnand %p111, %p112
    %p114 = pneg %p113
    // Predicated region
    $region9: #{dueling_dqn_forward.4} parent=5 // pred_check
      _
    $region10: #{dueling_dqn_forward.4} parent=5 // pred_check_branch
      %116 = sbr.rel (%p113) target = $region12
    $region11: #{dueling_dqn_forward.4} parent=5 // pred_region
      %s117 = ssub.s32 %s9, 1
      // Predicated region
      $region13: #{dueling_dqn_forward.4} parent=11 // pred_check
        %p118 = pneg %p56
      $region14: #{dueling_dqn_forward.4} parent=11 // pred_check_branch
        %120 = sbr.rel (%p118) target = $region16
      $region15: #{dueling_dqn_forward.4} parent=11 // pred_region
        _
      $region16: #{dueling_dqn_forward.4} parent=11 // pred_fallthru
        _
      // Predicated region
      $region17: #{dueling_dqn_forward.4} parent=11 // pred_check
        %p121 = pneg %p77
      $region18: #{dueling_dqn_forward.4} parent=11 // pred_check_branch
        %123 = sbr.rel (%p121) target = $region20
      $region19: #{dueling_dqn_forward.4} parent=11 // pred_region
        _
      $region20: #{dueling_dqn_forward.4} parent=11 // pred_fallthru
        _
    $region12: #{dueling_dqn_forward.4} parent=5 // pred_fallthru
      _
    %p124 = scmp.lt.s32.totalorder %s9, 2
    // Predicated region
    $region21: #{dueling_dqn_forward.4} parent=5 // pred_check
      %p125 = pneg %p124
    $region22: #{dueling_dqn_forward.4} parent=5 // pred_check_branch
      %127 = sbr.rel (%p125) target = $region24
    $region23: #{dueling_dqn_forward.4} parent=5 // pred_region
      // Predicated region
      $region25: #{dueling_dqn_forward.4} parent=23 // pred_check
        %p128 = pneg %p29
      $region26: #{dueling_dqn_forward.4} parent=23 // pred_check_branch
        %130 = sbr.rel (%p128) target = $region28
      $region27: #{dueling_dqn_forward.4} parent=23 // pred_region
        %s131 = smul.u32 50, %s9
        %p132 = scmp.lt.s32.totalorder %s131, 99
        %s133 = scalar_select %p132, %s131, 99
        %s134 = smul.addr %s133, 2
        %s135 = smul.addr %s134, 4
        %s136 = scalar_lea.vmem %s0, %s135
        %s137 = smul.u32 50, %s9
      $region28: #{dueling_dqn_forward.4} parent=23 // pred_fallthru
        _
    $region24: #{dueling_dqn_forward.4} parent=5 // pred_fallthru
      _
    %p138 = scmp.le.s32.totalorder 1, %s9
    %p139 = scmp.lt.s32.totalorder %s9, 3
    %p140 = pnand %p138, %p139
    %p141 = pneg %p140
    // Predicated region
    $region29: #{dueling_dqn_forward.4} parent=5 // pred_check
      _
    $region30: #{dueling_dqn_forward.4} parent=5 // pred_check_branch
      %143 = sbr.rel (%p140) target = $region32
    $region31: #{dueling_dqn_forward.4} parent=5 // pred_region
      %s144 = ssub.s32 %s9, 1
      %s145 = smul.u32 50, %s14
      %p146 = scmp.lt.s32.totalorder %s145, 99
      %s147 = scalar_select %p146, %s145, 99
      %s148 = smul.addr %s147, 2
      %s149 = smul.addr %s148, 4
      %s150 = scalar_lea.vmem %s0, %s149
      %p151 = pneg %p35
      %p152 = pneg %p32
      %p153 = pneg %p56
      %p154 = pneg %p53
      %p155 = pneg %p77
      %p156 = pneg %p74
      %p157 = pneg %p103
      %p158 = pneg %p100
      %s159 = smul.u32 50, %s14
      %p160 = scmp.lt.s32.totalorder %s159, 99
      %s161 = scalar_select %p160, %s159, 99
      %s162 = smul.addr %s161, 4
      %s163 = scalar_lea.vmem %s3, %s162
      %s164 = smul.u32 50, %s14
      %p165 = scmp.lt.s32.totalorder %s164, 99
      %s166 = scalar_select %p165, %s164, 99
      %s167 = smul.addr %s166, 2
      %s168 = smul.addr %s167, 4
      %s169 = scalar_lea.vmem %s0, %s168
      %s170 = smul.u32 50, %s14
      %s171 = smul.u32 50, %s14
      %p172 = scmp.lt.s32.totalorder %s171, 99
      %s173 = scalar_select %p172, %s171, 99
      %s174 = smul.addr %s173, 4
      %s175 = scalar_lea.vmem %s3, %s174
      %s176 = smul.u32 50, %s14
      %v177 = vld [vmem:[%s169] sm:$0xff]
      %v178 = vld [vmem:[%s169 + $0x8] sm:$0xff]
      %v179 = vld [vmem:[%s169 + $0x10] sm:$0xff]
      %v180 = vld [vmem:[%s169 + $0x18] sm:$0xff]
      %v181 = vld [vmem:[%s169 + $0x20] sm:$0xff]
      %v182 = vld [vmem:[%s169 + $0x28] sm:$0xff]
      %v183 = vld [vmem:[%s169 + $0x30] sm:$0xff]
      %v184 = vld [vmem:[%s169 + $0x38] sm:$0xff]
      %v185 = vld [vmem:[%s169 + $0x40] sm:$0xff]
      %v186 = vld [vmem:[%s169 + $0x48] sm:$0xff]
      %v187 = vld [vmem:[%s169 + $0x50] sm:$0xff]
      %v188 = vld [vmem:[%s169 + $0x58] sm:$0xff]
      %v189 = vld [vmem:[%s169 + $0x60] sm:$0xff]
      %v190 = vld [vmem:[%s169 + $0x68] sm:$0xff]
      %v191 = vld [vmem:[%s169 + $0x70] sm:$0xff]
      %v192 = vld [vmem:[%s169 + $0x78] sm:$0xff]
      %v193 = vld [vmem:[%s169 + $0x80] sm:$0xff]
      %v194 = vld [vmem:[%s169 + $0x88] sm:$0xff]
      %v195 = vld [vmem:[%s169 + $0x90] sm:$0xff]
      %v196 = vld [vmem:[%s169 + $0x98] sm:$0xff]
      %v197 = vld [vmem:[%s169 + $0xa0] sm:$0xff]
      %v198 = vld [vmem:[%s169 + $0xa8] sm:$0xff]
      %v199 = vld [vmem:[%s169 + $0xb0] sm:$0xff]
      %v200 = vld [vmem:[%s169 + $0xb8] sm:$0xff]
      %v201 = vld [vmem:[%s169 + $0xc0] sm:$0xff]
      %v202 = vld [vmem:[%s169 + $0xc8] sm:$0xff]
      %v203 = vld [vmem:[%s169 + $0xd0] sm:$0xff]
      %v204 = vld [vmem:[%s169 + $0xd8] sm:$0xff]
      %v205 = vld [vmem:[%s169 + $0xe0] sm:$0xff]
      %v206 = vld [vmem:[%s169 + $0xe8] sm:$0xff]
      %v207 = vld [vmem:[%s169 + $0xf0] sm:$0xff]
      %v208 = vld [vmem:[%s169 + $0xf8] sm:$0xff]
      %v209 = vld [vmem:[%s169 + $0x100] sm:$0xff]
      %v210 = vld [vmem:[%s169 + $0x108] sm:$0xff]
      %v211 = vld [vmem:[%s169 + $0x110] sm:$0xff]
      %v212 = vld [vmem:[%s169 + $0x118] sm:$0xff]
      %v213 = vld [vmem:[%s169 + $0x120] sm:$0xff]
      %v214 = vld [vmem:[%s169 + $0x128] sm:$0xff]
      %v215 = vld [vmem:[%s169 + $0x130] sm:$0xff]
      %v216 = vld [vmem:[%s169 + $0x138] sm:$0xff]
      %v217 = vld [vmem:[%s169 + $0x140] sm:$0xff]
      %v218 = vld [vmem:[%s169 + $0x148] sm:$0xff]
      %v219 = vld [vmem:[%s169 + $0x150] sm:$0xff]
      %v220 = vld [vmem:[%s169 + $0x158] sm:$0xff]
      %v221 = vld [vmem:[%s169 + $0x160] sm:$0xff]
      %v222 = vld [vmem:[%s169 + $0x168] sm:$0xff]
      %v223 = vld [vmem:[%s169 + $0x170] sm:$0xff]
      %v224 = vld [vmem:[%s169 + $0x178] sm:$0xff]
      %v225 = vld [vmem:[%s169 + $0x180] sm:$0xff]
      %v226 = vld [vmem:[%s169 + $0x188] sm:$0xff]
      %v227 = vld [vmem:[%s1] sm:$0xf]
      %v228 = vld [vmem:[%s1 + $0x4] sm:$0xf]
      %v229 = vld [vmem:[%s1 + $0x8] sm:$0xf]
      %v230 = vld [vmem:[%s1 + $0xc] sm:$0xf]
      %v231 = vld [vmem:[%s1 + $0x10] sm:$0xf]
      %v232 = vld [vmem:[%s1 + $0x14] sm:$0xf]
      %v233 = vld [vmem:[%s1 + $0x18] sm:$0xf]
      %v234 = vld [vmem:[%s1 + $0x1c] sm:$0xf]
      %v235 = vld [vmem:[%s1 + $0x20] sm:$0xf]
      %v236 = vld [vmem:[%s1 + $0x24] sm:$0xf]
      %v237 = vld [vmem:[%s1 + $0x28] sm:$0xf]
      %v238 = vld [vmem:[%s1 + $0x2c] sm:$0xf]
      %v239 = vld [vmem:[%s1 + $0x30] sm:$0xf]
      %v240 = vld [vmem:[%s1 + $0x34] sm:$0xf]
      %v241 = vld [vmem:[%s1 + $0x38] sm:$0xf]
      %v242 = vld [vmem:[%s1 + $0x3c] sm:$0xf]
      %v243 = vld [vmem:[%s1 + $0x40] sm:$0xf]
      %v244 = vld [vmem:[%s1 + $0x44] sm:$0xf]
      %v245 = vld [vmem:[%s1 + $0x48] sm:$0xf]
      %v246 = vld [vmem:[%s1 + $0x4c] sm:$0xf]
      %v247 = vld [vmem:[%s1 + $0x50] sm:$0xf]
      %v248 = vld [vmem:[%s1 + $0x54] sm:$0xf]
      %v249 = vld [vmem:[%s1 + $0x58] sm:$0xf]
      %v250 = vld [vmem:[%s1 + $0x5c] sm:$0xf]
      %v251 = vld [vmem:[%s1 + $0x60] sm:$0xf]
      %v252 = vld [vmem:[%s1 + $0x64] sm:$0xf]
      %v253 = vld [vmem:[%s1 + $0x68] sm:$0xf]
      %v254 = vld [vmem:[%s1 + $0x6c] sm:$0xf]
      %v255 = vld [vmem:[%s1 + $0x70] sm:$0xf]
      %v256 = vld [vmem:[%s1 + $0x74] sm:$0xf]
      %v257 = vld [vmem:[%s1 + $0x78] sm:$0xf]
      %v258 = vld [vmem:[%s1 + $0x7c] sm:$0xf]
      %v259 = vld [vmem:[%s2] sm:$0x1]
      %v261 = vperm.slane %v259, 0
      %v313 = vunpack.c.l.b16 %v177
      %v314 = vunpack.c.h.b16 %v177
      %v315 = vunpack.c.l.b16 %v178
      %v316 = vunpack.c.h.b16 %v178
      %v317 = vunpack.c.l.b16 %v179
      %v318 = vunpack.c.h.b16 %v179
      %v319 = vunpack.c.l.b16 %v180
      %v320 = vunpack.c.h.b16 %v180
      %v321 = vunpack.c.l.b16 %v181
      %v322 = vunpack.c.h.b16 %v181
      %v323 = vunpack.c.l.b16 %v182
      %v324 = vunpack.c.h.b16 %v182
      %v325 = vunpack.c.l.b16 %v183
      %v326 = vunpack.c.h.b16 %v183
      %v327 = vunpack.c.l.b16 %v184
      %v328 = vunpack.c.h.b16 %v184
      %v329 = vunpack.c.l.b16 %v185
      %v330 = vunpack.c.h.b16 %v185
      %v331 = vunpack.c.l.b16 %v186
      %v332 = vunpack.c.h.b16 %v186
      %v333 = vunpack.c.l.b16 %v187
      %v334 = vunpack.c.h.b16 %v187
      %v335 = vunpack.c.l.b16 %v188
      %v336 = vunpack.c.h.b16 %v188
      %v337 = vunpack.c.l.b16 %v189
      %v338 = vunpack.c.h.b16 %v189
      %v339 = vunpack.c.l.b16 %v190
      %v340 = vunpack.c.h.b16 %v190
      %v341 = vunpack.c.l.b16 %v191
      %v342 = vunpack.c.h.b16 %v191
      %v343 = vunpack.c.l.b16 %v192
      %v344 = vunpack.c.h.b16 %v192
      %v345 = vunpack.c.l.b16 %v193
      %v346 = vunpack.c.h.b16 %v193
      %v347 = vunpack.c.l.b16 %v194
      %v348 = vunpack.c.h.b16 %v194
      %v349 = vunpack.c.l.b16 %v195
      %v350 = vunpack.c.h.b16 %v195
      %v351 = vunpack.c.l.b16 %v196
      %v352 = vunpack.c.h.b16 %v196
      %v353 = vunpack.c.l.b16 %v197
      %v354 = vunpack.c.h.b16 %v197
      %v355 = vunpack.c.l.b16 %v198
      %v356 = vunpack.c.h.b16 %v198
      %v357 = vunpack.c.l.b16 %v199
      %v358 = vunpack.c.h.b16 %v199
      %v359 = vunpack.c.l.b16 %v200
      %v360 = vunpack.c.h.b16 %v200
      %v361 = vunpack.c.l.b16 %v201
      %v362 = vunpack.c.h.b16 %v201
      %v363 = vunpack.c.l.b16 %v202
      %v364 = vunpack.c.h.b16 %v202
      %v365 = vunpack.c.l.b16 %v203
      %v366 = vunpack.c.h.b16 %v203
      %v367 = vunpack.c.l.b16 %v204
      %v368 = vunpack.c.h.b16 %v204
      %v369 = vunpack.c.l.b16 %v205
      %v370 = vunpack.c.h.b16 %v205
      %v371 = vunpack.c.l.b16 %v206
      %v372 = vunpack.c.h.b16 %v206
      %v373 = vunpack.c.l.b16 %v207
      %v374 = vunpack.c.h.b16 %v207
      %v375 = vunpack.c.l.b16 %v208
      %v376 = vunpack.c.h.b16 %v208
      %v377 = vunpack.c.l.b16 %v209
      %v378 = vunpack.c.h.b16 %v209
      %v379 = vunpack.c.l.b16 %v210
      %v380 = vunpack.c.h.b16 %v210
      %v381 = vunpack.c.l.b16 %v211
      %v382 = vunpack.c.h.b16 %v211
      %v383 = vunpack.c.l.b16 %v212
      %v384 = vunpack.c.h.b16 %v212
      %v385 = vunpack.c.l.b16 %v213
      %v386 = vunpack.c.h.b16 %v213
      %v387 = vunpack.c.l.b16 %v214
      %v388 = vunpack.c.h.b16 %v214
      %v389 = vunpack.c.l.b16 %v215
      %v390 = vunpack.c.h.b16 %v215
      %v391 = vunpack.c.l.b16 %v216
      %v392 = vunpack.c.h.b16 %v216
      %v393 = vunpack.c.l.b16 %v217
      %v394 = vunpack.c.h.b16 %v217
      %v395 = vunpack.c.l.b16 %v218
      %v396 = vunpack.c.h.b16 %v218
      %v397 = vunpack.c.l.b16 %v219
      %v398 = vunpack.c.h.b16 %v219
      %v399 = vunpack.c.l.b16 %v220
      %v400 = vunpack.c.h.b16 %v220
      %v401 = vunpack.c.l.b16 %v221
      %v402 = vunpack.c.h.b16 %v221
      %v403 = vunpack.c.l.b16 %v222
      %v404 = vunpack.c.h.b16 %v222
      %v405 = vunpack.c.l.b16 %v223
      %v406 = vunpack.c.h.b16 %v223
      %v407 = vunpack.c.l.b16 %v224
      %v408 = vunpack.c.h.b16 %v224
      %v409 = vunpack.c.l.b16 %v225
      %v410 = vunpack.c.h.b16 %v225
      %v411 = vunpack.c.l.b16 %v226
      %v412 = vunpack.c.h.b16 %v226
      %v413 = vpack.c.b16 %v315, %v313
      %v414 = vpack.c.b16 %v316, %v314
      %v415 = vpack.c.b16 %v319, %v317
      %v416 = vpack.c.b16 %v320, %v318
      %v417 = vpack.c.b16 %v323, %v321
      %v418 = vpack.c.b16 %v324, %v322
      %v419 = vpack.c.b16 %v327, %v325
      %v420 = vpack.c.b16 %v328, %v326
      %v421 = vpack.c.b16 %v331, %v329
      %v422 = vpack.c.b16 %v332, %v330
      %v423 = vpack.c.b16 %v335, %v333
      %v424 = vpack.c.b16 %v336, %v334
      %v425 = vpack.c.b16 %v339, %v337
      %v426 = vpack.c.b16 %v340, %v338
      %v427 = vpack.c.b16 %v343, %v341
      %v428 = vpack.c.b16 %v344, %v342
      %v429 = vpack.c.b16 %v347, %v345
      %v430 = vpack.c.b16 %v348, %v346
      %v431 = vpack.c.b16 %v351, %v349
      %v432 = vpack.c.b16 %v352, %v350
      %v433 = vpack.c.b16 %v355, %v353
      %v434 = vpack.c.b16 %v356, %v354
      %v435 = vpack.c.b16 %v359, %v357
      %v436 = vpack.c.b16 %v360, %v358
      %v437 = vpack.c.b16 %v363, %v361
      %v438 = vpack.c.b16 %v364, %v362
      %v439 = vpack.c.b16 %v367, %v365
      %v440 = vpack.c.b16 %v368, %v366
      %v441 = vpack.c.b16 %v371, %v369
      %v442 = vpack.c.b16 %v372, %v370
      %v443 = vpack.c.b16 %v375, %v373
      %v444 = vpack.c.b16 %v376, %v374
      %v445 = vpack.c.b16 %v379, %v377
      %v446 = vpack.c.b16 %v380, %v378
      %v447 = vpack.c.b16 %v383, %v381
      %v448 = vpack.c.b16 %v384, %v382
      %v449 = vpack.c.b16 %v387, %v385
      %v450 = vpack.c.b16 %v388, %v386
      %v451 = vpack.c.b16 %v391, %v389
      %v452 = vpack.c.b16 %v392, %v390
      %v453 = vpack.c.b16 %v395, %v393
      %v454 = vpack.c.b16 %v396, %v394
      %v455 = vpack.c.b16 %v399, %v397
      %v456 = vpack.c.b16 %v400, %v398
      %v457 = vpack.c.b16 %v403, %v401
      %v458 = vpack.c.b16 %v404, %v402
      %v459 = vpack.c.b16 %v407, %v405
      %v460 = vpack.c.b16 %v408, %v406
      %v461 = vpack.c.b16 %v411, %v409
      %v462 = vpack.c.b16 %v412, %v410
      %v545 = vunpack.c.l.b16 %v227
      %v546 = vunpack.c.l.b16 %v228
      %v547 = vunpack.c.l.b16 %v229
      %v548 = vunpack.c.l.b16 %v230
      %v549 = vunpack.c.l.b16 %v231
      %v550 = vunpack.c.l.b16 %v232
      %v551 = vunpack.c.l.b16 %v233
      %v552 = vunpack.c.l.b16 %v234
      %v553 = vunpack.c.l.b16 %v235
      %v554 = vunpack.c.l.b16 %v236
      %v555 = vunpack.c.l.b16 %v237
      %v556 = vunpack.c.l.b16 %v238
      %v557 = vunpack.c.l.b16 %v239
      %v558 = vunpack.c.l.b16 %v240
      %v559 = vunpack.c.l.b16 %v241
      %v560 = vunpack.c.l.b16 %v242
      %v561 = vunpack.c.l.b16 %v243
      %v562 = vunpack.c.l.b16 %v244
      %v563 = vunpack.c.l.b16 %v245
      %v564 = vunpack.c.l.b16 %v246
      %v565 = vunpack.c.l.b16 %v247
      %v566 = vunpack.c.l.b16 %v248
      %v567 = vunpack.c.l.b16 %v249
      %v568 = vunpack.c.l.b16 %v250
      %v569 = vunpack.c.l.b16 %v251
      %v570 = vunpack.c.l.b16 %v252
      %v571 = vunpack.c.l.b16 %v253
      %v572 = vunpack.c.l.b16 %v254
      %v573 = vunpack.c.l.b16 %v255
      %v574 = vunpack.c.l.b16 %v256
      %v575 = vunpack.c.l.b16 %v257
      %v576 = vunpack.c.l.b16 %v258
      %v577 = vpack.c.b16 %v546, %v545
      %v578 = vpack.c.b16 %v548, %v547
      %v579 = vpack.c.b16 %v550, %v549
      %v580 = vpack.c.b16 %v552, %v551
      %v581 = vpack.c.b16 %v554, %v553
      %v582 = vpack.c.b16 %v556, %v555
      %v583 = vpack.c.b16 %v558, %v557
      %v584 = vpack.c.b16 %v560, %v559
      %v585 = vpack.c.b16 %v562, %v561
      %v586 = vpack.c.b16 %v564, %v563
      %v587 = vpack.c.b16 %v566, %v565
      %v588 = vpack.c.b16 %v568, %v567
      %v589 = vpack.c.b16 %v570, %v569
      %v590 = vpack.c.b16 %v572, %v571
      %v591 = vpack.c.b16 %v574, %v573
      %v592 = vpack.c.b16 %v576, %v575
      %609 = vmatpush.bf16.msra.mxu0 %v584
      %610 = vmatpush.bf16.msra.mxu0 %v583
      %611 = vmatpush.bf16.msra.mxu0 %v582
      %612 = vmatpush.bf16.msra.mxu0 %v581
      %613 = vmatpush.bf16.msra.mxu0 %v580
      %614 = vmatpush.bf16.msra.mxu0 %v579
      %615 = vmatpush.bf16.msra.mxu0 %v578
      %616 = vmatpush.bf16.msra.mxu0 %v577
      %617 = vmatmul.bf16.gmra.mxu0 %v413
      %v618 = vpop.f32.mrf.mxu0
      %v619 = vadd.f32 %v261, %v618
      %v620 = vpop.f32.mrf.mxu0
      %v621 = vadd.f32 %v261, %v620
      %622 = vmatmul.bf16.gmra.mxu0 %v415
      %v623 = vpop.f32.mrf.mxu0
      %v624 = vadd.f32 %v261, %v623
      %v625 = vpop.f32.mrf.mxu0
      %v626 = vadd.f32 %v261, %v625
      %627 = vmatmul.bf16.gmra.mxu0 %v417
      %v628 = vpop.f32.mrf.mxu0
      %v629 = vadd.f32 %v261, %v628
      %v630 = vpop.f32.mrf.mxu0
      %v631 = vadd.f32 %v261, %v630
      %632 = vmatmul.bf16.gmra.mxu0 %v419
      %v633 = vpop.f32.mrf.mxu0
      %v634 = vadd.f32 %v261, %v633
      %v635 = vpop.f32.mrf.mxu0
      %v636 = vadd.f32 %v261, %v635
      %637 = vmatmul.bf16.gmra.mxu0 %v421
      %v638 = vpop.f32.mrf.mxu0
      %v639 = vadd.f32 %v261, %v638
      %v640 = vpop.f32.mrf.mxu0
      %v641 = vadd.f32 %v261, %v640
      %642 = vmatmul.bf16.gmra.mxu0 %v423
      %v643 = vpop.f32.mrf.mxu0
      %v644 = vadd.f32 %v261, %v643
      %v645 = vpop.f32.mrf.mxu0
      %v646 = vadd.f32 %v261, %v645
      %647 = vmatmul.bf16.gmra.mxu0 %v425
      %v648 = vpop.f32.mrf.mxu0
      %v649 = vadd.f32 %v261, %v648
      %v650 = vpop.f32.mrf.mxu0
      %v651 = vadd.f32 %v261, %v650
      %652 = vmatmul.bf16.gmra.mxu0 %v427
      %v653 = vpop.f32.mrf.mxu0
      %v654 = vadd.f32 %v261, %v653
      %v655 = vpop.f32.mrf.mxu0
      %v656 = vadd.f32 %v261, %v655
      %657 = vmatmul.bf16.gmra.mxu0 %v429
      %v658 = vpop.f32.mrf.mxu0
      %v659 = vadd.f32 %v261, %v658
      %v660 = vpop.f32.mrf.mxu0
      %v661 = vadd.f32 %v261, %v660
      %662 = vmatmul.bf16.gmra.mxu0 %v431
      %v663 = vpop.f32.mrf.mxu0
      %v664 = vadd.f32 %v261, %v663
      %v665 = vpop.f32.mrf.mxu0
      %v666 = vadd.f32 %v261, %v665
      %667 = vmatmul.bf16.gmra.mxu0 %v433
      %v668 = vpop.f32.mrf.mxu0
      %v669 = vadd.f32 %v261, %v668
      %v670 = vpop.f32.mrf.mxu0
      %v671 = vadd.f32 %v261, %v670
      %672 = vmatmul.bf16.gmra.mxu0 %v435
      %v673 = vpop.f32.mrf.mxu0
      %v674 = vadd.f32 %v261, %v673
      %v675 = vpop.f32.mrf.mxu0
      %v676 = vadd.f32 %v261, %v675
      %677 = vmatmul.bf16.gmra.mxu0 %v437
      %v678 = vpop.f32.mrf.mxu0
      %v679 = vadd.f32 %v261, %v678
      %v680 = vpop.f32.mrf.mxu0
      %v681 = vadd.f32 %v261, %v680
      %682 = vmatmul.bf16.gmra.mxu0 %v439
      %v683 = vpop.f32.mrf.mxu0
      %v684 = vadd.f32 %v261, %v683
      %v685 = vpop.f32.mrf.mxu0
      %v686 = vadd.f32 %v261, %v685
      %687 = vmatmul.bf16.gmra.mxu0 %v441
      %v688 = vpop.f32.mrf.mxu0
      %v689 = vadd.f32 %v261, %v688
      %v690 = vpop.f32.mrf.mxu0
      %v691 = vadd.f32 %v261, %v690
      %692 = vmatmul.bf16.gmra.mxu0 %v443
      %v693 = vpop.f32.mrf.mxu0
      %v694 = vadd.f32 %v261, %v693
      %v695 = vpop.f32.mrf.mxu0
      %v696 = vadd.f32 %v261, %v695
      %697 = vmatmul.bf16.gmra.mxu0 %v445
      %v698 = vpop.f32.mrf.mxu0
      %v699 = vadd.f32 %v261, %v698
      %v700 = vpop.f32.mrf.mxu0
      %v701 = vadd.f32 %v261, %v700
      %702 = vmatmul.bf16.gmra.mxu0 %v447
      %v703 = vpop.f32.mrf.mxu0
      %v704 = vadd.f32 %v261, %v703
      %v705 = vpop.f32.mrf.mxu0
      %v706 = vadd.f32 %v261, %v705
      %707 = vmatmul.bf16.gmra.mxu0 %v449
      %v708 = vpop.f32.mrf.mxu0
      %v709 = vadd.f32 %v261, %v708
      %v710 = vpop.f32.mrf.mxu0
      %v711 = vadd.f32 %v261, %v710
      %712 = vmatmul.bf16.gmra.mxu0 %v451
      %v713 = vpop.f32.mrf.mxu0
      %v714 = vadd.f32 %v261, %v713
      %v715 = vpop.f32.mrf.mxu0
      %v716 = vadd.f32 %v261, %v715
      %717 = vmatmul.bf16.gmra.mxu0 %v453
      %v718 = vpop.f32.mrf.mxu0
      %v719 = vadd.f32 %v261, %v718
      %v720 = vpop.f32.mrf.mxu0
      %v721 = vadd.f32 %v261, %v720
      %722 = vmatmul.bf16.gmra.mxu0 %v455
      %v723 = vpop.f32.mrf.mxu0
      %v724 = vadd.f32 %v261, %v723
      %v725 = vpop.f32.mrf.mxu0
      %v726 = vadd.f32 %v261, %v725
      %727 = vmatmul.bf16.gmra.mxu0 %v457
      %v728 = vpop.f32.mrf.mxu0
      %v729 = vadd.f32 %v261, %v728
      %v730 = vpop.f32.mrf.mxu0
      %v731 = vadd.f32 %v261, %v730
      %732 = vmatmul.bf16.gmra.mxu0 %v459
      %v733 = vpop.f32.mrf.mxu0
      %v734 = vadd.f32 %v261, %v733
      %v735 = vpop.f32.mrf.mxu0
      %v736 = vadd.f32 %v261, %v735
      %737 = vmatmul.bf16.gmra.mxu0 %v461
      %v738 = vpop.f32.mrf.mxu0
      %v739 = vadd.f32 %v261, %v738
      %v740 = vpop.f32.mrf.mxu0
      %v741 = vadd.f32 %v261, %v740
      %742 = vdwg.mxu0
      %743 = vmatpush.bf16.msra.mxu0 %v592
      %744 = vmatpush.bf16.msra.mxu0 %v591
      %745 = vmatpush.bf16.msra.mxu0 %v590
      %746 = vmatpush.bf16.msra.mxu0 %v589
      %747 = vmatpush.bf16.msra.mxu0 %v588
      %748 = vmatpush.bf16.msra.mxu0 %v587
      %749 = vmatpush.bf16.msra.mxu0 %v586
      %750 = vmatpush.bf16.msra.mxu0 %v585
      %751 = vmatmul.bf16.gmra.mxu0 %v414
      %v752 = vpop.f32.mrf.mxu0
      %v753 = vadd.f32 %v619, %v752
      %v754 = vpop.f32.mrf.mxu0
      %v755 = vadd.f32 %v621, %v754
      %756 = vmatmul.bf16.gmra.mxu0 %v416
      %v757 = vpop.f32.mrf.mxu0
      %v758 = vadd.f32 %v624, %v757
      %v759 = vpop.f32.mrf.mxu0
      %v760 = vadd.f32 %v626, %v759
      %761 = vmatmul.bf16.gmra.mxu0 %v418
      %v762 = vpop.f32.mrf.mxu0
      %v763 = vadd.f32 %v629, %v762
      %v764 = vpop.f32.mrf.mxu0
      %v765 = vadd.f32 %v631, %v764
      %766 = vmatmul.bf16.gmra.mxu0 %v420
      %v767 = vpop.f32.mrf.mxu0
      %v768 = vadd.f32 %v634, %v767
      %v769 = vpop.f32.mrf.mxu0
      %v770 = vadd.f32 %v636, %v769
      %771 = vmatmul.bf16.gmra.mxu0 %v422
      %v772 = vpop.f32.mrf.mxu0
      %v773 = vadd.f32 %v639, %v772
      %v774 = vpop.f32.mrf.mxu0
      %v775 = vadd.f32 %v641, %v774
      %776 = vmatmul.bf16.gmra.mxu0 %v424
      %v777 = vpop.f32.mrf.mxu0
      %v778 = vadd.f32 %v644, %v777
      %v779 = vpop.f32.mrf.mxu0
      %v780 = vadd.f32 %v646, %v779
      %781 = vmatmul.bf16.gmra.mxu0 %v426
      %v782 = vpop.f32.mrf.mxu0
      %v783 = vadd.f32 %v649, %v782
      %v784 = vpop.f32.mrf.mxu0
      %v785 = vadd.f32 %v651, %v784
      %786 = vmatmul.bf16.gmra.mxu0 %v428
      %v787 = vpop.f32.mrf.mxu0
      %v788 = vadd.f32 %v654, %v787
      %v789 = vpop.f32.mrf.mxu0
      %v790 = vadd.f32 %v656, %v789
      %791 = vmatmul.bf16.gmra.mxu0 %v430
      %v792 = vpop.f32.mrf.mxu0
      %v793 = vadd.f32 %v659, %v792
      %v794 = vpop.f32.mrf.mxu0
      %v795 = vadd.f32 %v661, %v794
      %796 = vmatmul.bf16.gmra.mxu0 %v432
      %v797 = vpop.f32.mrf.mxu0
      %v798 = vadd.f32 %v664, %v797
      %v799 = vpop.f32.mrf.mxu0
      %v800 = vadd.f32 %v666, %v799
      %801 = vmatmul.bf16.gmra.mxu0 %v434
      %v802 = vpop.f32.mrf.mxu0
      %v803 = vadd.f32 %v669, %v802
      %v804 = vpop.f32.mrf.mxu0
      %v805 = vadd.f32 %v671, %v804
      %806 = vmatmul.bf16.gmra.mxu0 %v436
      %v807 = vpop.f32.mrf.mxu0
      %v808 = vadd.f32 %v674, %v807
      %v809 = vpop.f32.mrf.mxu0
      %v810 = vadd.f32 %v676, %v809
      %811 = vmatmul.bf16.gmra.mxu0 %v438
      %v812 = vpop.f32.mrf.mxu0
      %v813 = vadd.f32 %v679, %v812
      %v814 = vpop.f32.mrf.mxu0
      %v815 = vadd.f32 %v681, %v814
      %816 = vmatmul.bf16.gmra.mxu0 %v440
      %v817 = vpop.f32.mrf.mxu0
      %v818 = vadd.f32 %v684, %v817
      %v819 = vpop.f32.mrf.mxu0
      %v820 = vadd.f32 %v686, %v819
      %821 = vmatmul.bf16.gmra.mxu0 %v442
      %v822 = vpop.f32.mrf.mxu0
      %v823 = vadd.f32 %v689, %v822
      %v824 = vpop.f32.mrf.mxu0
      %v825 = vadd.f32 %v691, %v824
      %826 = vmatmul.bf16.gmra.mxu0 %v444
      %v827 = vpop.f32.mrf.mxu0
      %v828 = vadd.f32 %v694, %v827
      %v829 = vpop.f32.mrf.mxu0
      %v830 = vadd.f32 %v696, %v829
      %831 = vmatmul.bf16.gmra.mxu0 %v446
      %v832 = vpop.f32.mrf.mxu0
      %v833 = vadd.f32 %v699, %v832
      %v834 = vpop.f32.mrf.mxu0
      %v835 = vadd.f32 %v701, %v834
      %836 = vmatmul.bf16.gmra.mxu0 %v448
      %v837 = vpop.f32.mrf.mxu0
      %v838 = vadd.f32 %v704, %v837
      %v839 = vpop.f32.mrf.mxu0
      %v840 = vadd.f32 %v706, %v839
      %841 = vmatmul.bf16.gmra.mxu0 %v450
      %v842 = vpop.f32.mrf.mxu0
      %v843 = vadd.f32 %v709, %v842
      %v844 = vpop.f32.mrf.mxu0
      %v845 = vadd.f32 %v711, %v844
      %846 = vmatmul.bf16.gmra.mxu0 %v452
      %v847 = vpop.f32.mrf.mxu0
      %v848 = vadd.f32 %v714, %v847
      %v849 = vpop.f32.mrf.mxu0
      %v850 = vadd.f32 %v716, %v849
      %851 = vmatmul.bf16.gmra.mxu0 %v454
      %v852 = vpop.f32.mrf.mxu0
      %v853 = vadd.f32 %v719, %v852
      %v854 = vpop.f32.mrf.mxu0
      %v855 = vadd.f32 %v721, %v854
      %856 = vmatmul.bf16.gmra.mxu0 %v456
      %v857 = vpop.f32.mrf.mxu0
      %v858 = vadd.f32 %v724, %v857
      %v859 = vpop.f32.mrf.mxu0
      %v860 = vadd.f32 %v726, %v859
      %861 = vmatmul.bf16.gmra.mxu0 %v458
      %v862 = vpop.f32.mrf.mxu0
      %v863 = vadd.f32 %v729, %v862
      %v864 = vpop.f32.mrf.mxu0
      %v865 = vadd.f32 %v731, %v864
      %866 = vmatmul.bf16.gmra.mxu0 %v460
      %v867 = vpop.f32.mrf.mxu0
      %v868 = vadd.f32 %v734, %v867
      %v869 = vpop.f32.mrf.mxu0
      %v870 = vadd.f32 %v736, %v869
      %871 = vmatmul.bf16.gmra.mxu0 %v462
      %v872 = vpop.f32.mrf.mxu0
      %v873 = vadd.f32 %v739, %v872
      %v874 = vpop.f32.mrf.mxu0
      %v875 = vadd.f32 %v741, %v874
      %876 = vdwg.mxu0
      %v877 = vmax.f32 %v753, 0.0
      %v878 = vmax.f32 %v755, 0.0
      %v879 = vmax.f32 %v758, 0.0
      %v880 = vmax.f32 %v760, 0.0
      %v881 = vmax.f32 %v763, 0.0
      %v882 = vmax.f32 %v765, 0.0
      %v883 = vmax.f32 %v768, 0.0
      %v884 = vmax.f32 %v770, 0.0
      %v885 = vmax.f32 %v773, 0.0
      %v886 = vmax.f32 %v775, 0.0
      %v887 = vmax.f32 %v778, 0.0
      %v888 = vmax.f32 %v780, 0.0
      %v889 = vmax.f32 %v783, 0.0
      %v890 = vmax.f32 %v785, 0.0
      %v891 = vmax.f32 %v788, 0.0
      %v892 = vmax.f32 %v790, 0.0
      %v893 = vmax.f32 %v793, 0.0
      %v894 = vmax.f32 %v795, 0.0
      %v895 = vmax.f32 %v798, 0.0
      %v896 = vmax.f32 %v800, 0.0
      %v897 = vmax.f32 %v803, 0.0
      %v898 = vmax.f32 %v805, 0.0
      %v899 = vmax.f32 %v808, 0.0
      %v900 = vmax.f32 %v810, 0.0
      %v901 = vmax.f32 %v813, 0.0
      %v902 = vmax.f32 %v815, 0.0
      %v903 = vmax.f32 %v818, 0.0
      %v904 = vmax.f32 %v820, 0.0
      %v905 = vmax.f32 %v823, 0.0
      %v906 = vmax.f32 %v825, 0.0
      %v907 = vmax.f32 %v828, 0.0
      %v908 = vmax.f32 %v830, 0.0
      %v909 = vmax.f32 %v833, 0.0
      %v910 = vmax.f32 %v835, 0.0
      %v911 = vmax.f32 %v838, 0.0
      %v912 = vmax.f32 %v840, 0.0
      %v913 = vmax.f32 %v843, 0.0
      %v914 = vmax.f32 %v845, 0.0
      %v915 = vmax.f32 %v848, 0.0
      %v916 = vmax.f32 %v850, 0.0
      %v917 = vmax.f32 %v853, 0.0
      %v918 = vmax.f32 %v855, 0.0
      %v919 = vmax.f32 %v858, 0.0
      %v920 = vmax.f32 %v860, 0.0
      %v921 = vmax.f32 %v863, 0.0
      %v922 = vmax.f32 %v865, 0.0
      %v923 = vmax.f32 %v868, 0.0
      %v924 = vmax.f32 %v870, 0.0
      %v925 = vmax.f32 %v873, 0.0
      %v926 = vmax.f32 %v875, 0.0
      %v927 = vpack.c.bf16 %v877, %v877
      %v928 = vpack.c.bf16 %v878, %v878
      %v929 = vpack.c.bf16 %v879, %v879
      %v930 = vpack.c.bf16 %v880, %v880
      %v931 = vpack.c.bf16 %v881, %v881
      %v932 = vpack.c.bf16 %v882, %v882
      %v933 = vpack.c.bf16 %v883, %v883
      %v934 = vpack.c.bf16 %v884, %v884
      %v935 = vpack.c.bf16 %v885, %v885
      %v936 = vpack.c.bf16 %v886, %v886
      %v937 = vpack.c.bf16 %v887, %v887
      %v938 = vpack.c.bf16 %v888, %v888
      %v939 = vpack.c.bf16 %v889, %v889
      %v940 = vpack.c.bf16 %v890, %v890
      %v941 = vpack.c.bf16 %v891, %v891
      %v942 = vpack.c.bf16 %v892, %v892
      %v943 = vpack.c.bf16 %v893, %v893
      %v944 = vpack.c.bf16 %v894, %v894
      %v945 = vpack.c.bf16 %v895, %v895
      %v946 = vpack.c.bf16 %v896, %v896
      %v947 = vpack.c.bf16 %v897, %v897
      %v948 = vpack.c.bf16 %v898, %v898
      %v949 = vpack.c.bf16 %v899, %v899
      %v950 = vpack.c.bf16 %v900, %v900
      %v951 = vpack.c.bf16 %v901, %v901
      %v952 = vpack.c.bf16 %v902, %v902
      %v953 = vpack.c.bf16 %v903, %v903
      %v954 = vpack.c.bf16 %v904, %v904
      %v955 = vpack.c.bf16 %v905, %v905
      %v956 = vpack.c.bf16 %v906, %v906
      %v957 = vpack.c.bf16 %v907, %v907
      %v958 = vpack.c.bf16 %v908, %v908
      %v959 = vpack.c.bf16 %v909, %v909
      %v960 = vpack.c.bf16 %v910, %v910
      %v961 = vpack.c.bf16 %v911, %v911
      %v962 = vpack.c.bf16 %v912, %v912
      %v963 = vpack.c.bf16 %v913, %v913
      %v964 = vpack.c.bf16 %v914, %v914
      %v965 = vpack.c.bf16 %v915, %v915
      %v966 = vpack.c.bf16 %v916, %v916
      %v967 = vpack.c.bf16 %v917, %v917
      %v968 = vpack.c.bf16 %v918, %v918
      %v969 = vpack.c.bf16 %v919, %v919
      %v970 = vpack.c.bf16 %v920, %v920
      %v971 = vpack.c.bf16 %v921, %v921
      %v972 = vpack.c.bf16 %v922, %v922
      %v973 = vpack.c.bf16 %v923, %v923
      %v974 = vpack.c.bf16 %v924, %v924
      %v975 = vpack.c.bf16 %v925, %v925
      %v976 = vpack.c.bf16 %v926, %v926
      %vm977 = vcmask 257024
      %978 = vst.msk [vmem:[%s175] sm:$0xf] %vm977, %v927
      %979 = vst.msk [vmem:[%s175 + $0x4] sm:$0xf] %vm977, %v928
      %980 = vst.msk [vmem:[%s175 + $0x8] sm:$0xf] %vm977, %v929
      %981 = vst.msk [vmem:[%s175 + $0xc] sm:$0xf] %vm977, %v930
      %982 = vst.msk [vmem:[%s175 + $0x10] sm:$0xf] %vm977, %v931
      %983 = vst.msk [vmem:[%s175 + $0x14] sm:$0xf] %vm977, %v932
      %984 = vst.msk [vmem:[%s175 + $0x18] sm:$0xf] %vm977, %v933
      %985 = vst.msk [vmem:[%s175 + $0x1c] sm:$0xf] %vm977, %v934
      %986 = vst.msk [vmem:[%s175 + $0x20] sm:$0xf] %vm977, %v935
      %987 = vst.msk [vmem:[%s175 + $0x24] sm:$0xf] %vm977, %v936
      %988 = vst.msk [vmem:[%s175 + $0x28] sm:$0xf] %vm977, %v937
      %989 = vst.msk [vmem:[%s175 + $0x2c] sm:$0xf] %vm977, %v938
      %990 = vst.msk [vmem:[%s175 + $0x30] sm:$0xf] %vm977, %v939
      %991 = vst.msk [vmem:[%s175 + $0x34] sm:$0xf] %vm977, %v940
      %992 = vst.msk [vmem:[%s175 + $0x38] sm:$0xf] %vm977, %v941
      %993 = vst.msk [vmem:[%s175 + $0x3c] sm:$0xf] %vm977, %v942
      %994 = vst.msk [vmem:[%s175 + $0x40] sm:$0xf] %vm977, %v943
      %995 = vst.msk [vmem:[%s175 + $0x44] sm:$0xf] %vm977, %v944
      %996 = vst.msk [vmem:[%s175 + $0x48] sm:$0xf] %vm977, %v945
      %997 = vst.msk [vmem:[%s175 + $0x4c] sm:$0xf] %vm977, %v946
      %998 = vst.msk [vmem:[%s175 + $0x50] sm:$0xf] %vm977, %v947
      %999 = vst.msk [vmem:[%s175 + $0x54] sm:$0xf] %vm977, %v948
      %1000 = vst.msk [vmem:[%s175 + $0x58] sm:$0xf] %vm977, %v949
      %1001 = vst.msk [vmem:[%s175 + $0x5c] sm:$0xf] %vm977, %v950
      %1002 = vst.msk [vmem:[%s175 + $0x60] sm:$0xf] %vm977, %v951
      %1003 = vst.msk [vmem:[%s175 + $0x64] sm:$0xf] %vm977, %v952
      %1004 = vst.msk [vmem:[%s175 + $0x68] sm:$0xf] %vm977, %v953
      %1005 = vst.msk [vmem:[%s175 + $0x6c] sm:$0xf] %vm977, %v954
      %1006 = vst.msk [vmem:[%s175 + $0x70] sm:$0xf] %vm977, %v955
      %1007 = vst.msk [vmem:[%s175 + $0x74] sm:$0xf] %vm977, %v956
      %1008 = vst.msk [vmem:[%s175 + $0x78] sm:$0xf] %vm977, %v957
      %1009 = vst.msk [vmem:[%s175 + $0x7c] sm:$0xf] %vm977, %v958
      %1010 = vst.msk [vmem:[%s175 + $0x80] sm:$0xf] %vm977, %v959
      %1011 = vst.msk [vmem:[%s175 + $0x84] sm:$0xf] %vm977, %v960
      %1012 = vst.msk [vmem:[%s175 + $0x88] sm:$0xf] %vm977, %v961
      %1013 = vst.msk [vmem:[%s175 + $0x8c] sm:$0xf] %vm977, %v962
      %1014 = vst.msk [vmem:[%s175 + $0x90] sm:$0xf] %vm977, %v963
      %1015 = vst.msk [vmem:[%s175 + $0x94] sm:$0xf] %vm977, %v964
      %1016 = vst.msk [vmem:[%s175 + $0x98] sm:$0xf] %vm977, %v965
      %1017 = vst.msk [vmem:[%s175 + $0x9c] sm:$0xf] %vm977, %v966
      %1018 = vst.msk [vmem:[%s175 + $0xa0] sm:$0xf] %vm977, %v967
      %1019 = vst.msk [vmem:[%s175 + $0xa4] sm:$0xf] %vm977, %v968
      %1020 = vst.msk [vmem:[%s175 + $0xa8] sm:$0xf] %vm977, %v969
      %1021 = vst.msk [vmem:[%s175 + $0xac] sm:$0xf] %vm977, %v970
      %1022 = vst.msk [vmem:[%s175 + $0xb0] sm:$0xf] %vm977, %v971
      %1023 = vst.msk [vmem:[%s175 + $0xb4] sm:$0xf] %vm977, %v972
      %1024 = vst.msk [vmem:[%s175 + $0xb8] sm:$0xf] %vm977, %v973
      %1025 = vst.msk [vmem:[%s175 + $0xbc] sm:$0xf] %vm977, %v974
      %1026 = vst.msk [vmem:[%s175 + $0xc0] sm:$0xf] %vm977, %v975
      %1027 = vst.msk [vmem:[%s175 + $0xc4] sm:$0xf] %vm977, %v976
      %s1028 = smul.u32 50, %s14
      %p1029 = scmp.lt.s32.totalorder %s1028, 99
      %s1030 = scalar_select %p1029, %s1028, 99
      %s1031 = smul.addr %s1030, 4
      %s1032 = scalar_lea.vmem %s3, %s1031
      // Predicated region
      $region33: #{dueling_dqn_forward.4} parent=31 // pred_check
        %p1033 = pneg %p100
      $region34: #{dueling_dqn_forward.4} parent=31 // pred_check_branch
        %1035 = sbr.rel (%p1033) target = $region36
      $region35: #{dueling_dqn_forward.4} parent=31 // pred_region
        %s1036 = smul.u32 50, %s14
      $region36: #{dueling_dqn_forward.4} parent=31 // pred_fallthru
        _
    $region32: #{dueling_dqn_forward.4} parent=5 // pred_fallthru
      _
    %p1037 = scmp.le.s32.totalorder 2, %s9
    // Predicated region
    $region37: #{dueling_dqn_forward.4} parent=5 // pred_check
      %p1038 = pneg %p1037
    $region38: #{dueling_dqn_forward.4} parent=5 // pred_check_branch
      %1040 = sbr.rel (%p1038) target = $region40
    $region39: #{dueling_dqn_forward.4} parent=5 // pred_region
      %s1041 = ssub.s32 %s9, 2
      // Predicated region
      $region41: #{dueling_dqn_forward.4} parent=39 // pred_check
        %p1042 = pneg %p106
      $region42: #{dueling_dqn_forward.4} parent=39 // pred_check_branch
        %1044 = sbr.rel (%p1042) target = $region44
      $region43: #{dueling_dqn_forward.4} parent=39 // pred_region
        %s1045 = smul.u32 50, %s15
        %p1046 = scmp.lt.s32.totalorder %s1045, 99
        %s1047 = scalar_select %p1046, %s1045, 99
        %s1048 = smul.addr %s1047, 4
        %s1049 = scalar_lea.vmem %s3, %s1048
      $region44: #{dueling_dqn_forward.4} parent=39 // pred_fallthru
        _
    $region40: #{dueling_dqn_forward.4} parent=5 // pred_fallthru
      _
  $region6: #{dueling_dqn_forward.4} parent=0 // loop_footer
    %s13 = sadd.s32 1, %s9
  $region7: #{dueling_dqn_forward.4} parent=0 // loop_footer_branch
    %8 = sbr.rel target = $region3
  $region8: #{dueling_dqn_forward.4} parent=0 // loop_exit
    _

// kernel: dueling_dqn_forward.5
$region0: #{dueling_dqn_forward.5}
  #allocation0 [shape = 'u32[]', space=smem, size = 0x4, offset = 0x4, fixed_abs, tag = 'smem constant byte address 0x4 - core index']
  #allocation1 [shape = 'u32[72,128]{1,0:T(1,128)}', space=vmem, size = 0x9000, scoped, tag = 'internal scratch']
  %s0 = inlined_call_operand.vmem [shape: bf16[162,512], index: 0, kind: input, shape index: {}]
  %s1 = inlined_call_operand.vmem [shape: bf16[512,64], index: 1, kind: input, shape index: {}]
  %s2 = inlined_call_operand.vmem [shape: f32[1,64], index: 2, kind: input, shape index: {}]
  %s3 = inlined_call_operand.vmem [shape: bf16[162,64], index: 3, kind: output, shape index: {}]
  %s4 = sld [smem:[#allocation0]]
  $region22: #{dueling_dqn_forward.5} parent=0
    _
  %s6 = ssub.s32 1, %s4
  %s7 = scalar_select 0, %s6, %s4
  // Predicated region
  $region2: #{dueling_dqn_forward.5} parent=0 // pred_check
    _
  $region3: #{dueling_dqn_forward.5} parent=0 // pred_check_branch
    %9 = sbr.rel (0) target = $region5
  $region4: #{dueling_dqn_forward.5} parent=0 // pred_region
    _
  $region5: #{dueling_dqn_forward.5} parent=0 // pred_fallthru
    _
  // Predicated region
  $region6: #{dueling_dqn_forward.5} parent=0 // pred_check
    _
  $region7: #{dueling_dqn_forward.5} parent=0 // pred_check_branch
    %11 = sbr.rel (0) target = $region9
  $region8: #{dueling_dqn_forward.5} parent=0 // pred_region
    _
  $region9: #{dueling_dqn_forward.5} parent=0 // pred_fallthru
    _
  // Predicated region
  $region10: #{dueling_dqn_forward.5} parent=0 // pred_check
    _
  $region11: #{dueling_dqn_forward.5} parent=0 // pred_check_branch
    %13 = sbr.rel (0) target = $region13
  $region12: #{dueling_dqn_forward.5} parent=0 // pred_region
    _
  $region13: #{dueling_dqn_forward.5} parent=0 // pred_fallthru
    _
  %v14 = vld [vmem:[%s0] sm:$0xff]
  %v15 = vld [vmem:[%s0 + $0x8] sm:$0xff]
  %v16 = vld [vmem:[%s0 + $0x10] sm:$0xff]
  %v17 = vld [vmem:[%s0 + $0x18] sm:$0xff]
  %v18 = vld [vmem:[%s0 + $0x20] sm:$0xff]
  %v19 = vld [vmem:[%s0 + $0x28] sm:$0xff]
  %v20 = vld [vmem:[%s0 + $0x30] sm:$0xff]
  %v21 = vld [vmem:[%s0 + $0x38] sm:$0xff]
  %v22 = vld [vmem:[%s0 + $0x40] sm:$0xff]
  %v23 = vld [vmem:[%s0 + $0x48] sm:$0xff]
  %v24 = vld [vmem:[%s0 + $0x50] sm:$0xff]
  %v25 = vld [vmem:[%s0 + $0x58] sm:$0xff]
  %v26 = vld [vmem:[%s0 + $0x60] sm:$0xff]
  %v27 = vld [vmem:[%s0 + $0x68] sm:$0xff]
  %v28 = vld [vmem:[%s0 + $0x70] sm:$0xff]
  %v29 = vld [vmem:[%s0 + $0x78] sm:$0xff]
  %v30 = vld [vmem:[%s0 + $0x80] sm:$0xff]
  %v31 = vld [vmem:[%s0 + $0x88] sm:$0xff]
  %v32 = vld [vmem:[%s0 + $0x90] sm:$0xff]
  %v33 = vld [vmem:[%s0 + $0x98] sm:$0xff]
  %v34 = vld [vmem:[%s0 + $0xa0] sm:$0xff]
  %v35 = vld [vmem:[%s0 + $0xa8] sm:$0xff]
  %v36 = vld [vmem:[%s0 + $0xb0] sm:$0xff]
  %v37 = vld [vmem:[%s0 + $0xb8] sm:$0xff]
  %v38 = vld [vmem:[%s0 + $0xc0] sm:$0xff]
  %v39 = vld [vmem:[%s0 + $0xc8] sm:$0xff]
  %v40 = vld [vmem:[%s0 + $0xd0] sm:$0xff]
  %v41 = vld [vmem:[%s0 + $0xd8] sm:$0xff]
  %v42 = vld [vmem:[%s0 + $0xe0] sm:$0xff]
  %v43 = vld [vmem:[%s0 + $0xe8] sm:$0xff]
  %v44 = vld [vmem:[%s0 + $0xf0] sm:$0xff]
  %v45 = vld [vmem:[%s0 + $0xf8] sm:$0xff]
  %v46 = vld [vmem:[%s0 + $0x100] sm:$0xff]
  %v47 = vld [vmem:[%s0 + $0x108] sm:$0xff]
  %v48 = vld [vmem:[%s0 + $0x110] sm:$0xff]
  %v49 = vld [vmem:[%s0 + $0x118] sm:$0xff]
  %v50 = vld [vmem:[%s0 + $0x120] sm:$0xff]
  %v51 = vld [vmem:[%s0 + $0x128] sm:$0xff]
  %v52 = vld [vmem:[%s0 + $0x130] sm:$0xff]
  %v53 = vld [vmem:[%s0 + $0x138] sm:$0xff]
  %v54 = vld [vmem:[%s0 + $0x140] sm:$0x11]
  %v55 = vld [vmem:[%s0 + $0x148] sm:$0x11]
  %v56 = vld [vmem:[%s1] sm:$0xf]
  %v57 = vld [vmem:[%s1 + $0x4] sm:$0xf]
  %v58 = vld [vmem:[%s1 + $0x8] sm:$0xf]
  %v59 = vld [vmem:[%s1 + $0xc] sm:$0xf]
  %v60 = vld [vmem:[%s1 + $0x10] sm:$0xf]
  %v61 = vld [vmem:[%s1 + $0x14] sm:$0xf]
  %v62 = vld [vmem:[%s1 + $0x18] sm:$0xf]
  %v63 = vld [vmem:[%s1 + $0x1c] sm:$0xf]
  %v64 = vld [vmem:[%s1 + $0x20] sm:$0xf]
  %v65 = vld [vmem:[%s1 + $0x24] sm:$0xf]
  %v66 = vld [vmem:[%s1 + $0x28] sm:$0xf]
  %v67 = vld [vmem:[%s1 + $0x2c] sm:$0xf]
  %v68 = vld [vmem:[%s1 + $0x30] sm:$0xf]
  %v69 = vld [vmem:[%s1 + $0x34] sm:$0xf]
  %v70 = vld [vmem:[%s1 + $0x38] sm:$0xf]
  %v71 = vld [vmem:[%s1 + $0x3c] sm:$0xf]
  %v72 = vld [vmem:[%s1 + $0x40] sm:$0xf]
  %v73 = vld [vmem:[%s1 + $0x44] sm:$0xf]
  %v74 = vld [vmem:[%s1 + $0x48] sm:$0xf]
  %v75 = vld [vmem:[%s1 + $0x4c] sm:$0xf]
  %v76 = vld [vmem:[%s1 + $0x50] sm:$0xf]
  %v77 = vld [vmem:[%s1 + $0x54] sm:$0xf]
  %v78 = vld [vmem:[%s1 + $0x58] sm:$0xf]
  %v79 = vld [vmem:[%s1 + $0x5c] sm:$0xf]
  %v80 = vld [vmem:[%s1 + $0x60] sm:$0xf]
  %v81 = vld [vmem:[%s1 + $0x64] sm:$0xf]
  %v82 = vld [vmem:[%s1 + $0x68] sm:$0xf]
  %v83 = vld [vmem:[%s1 + $0x6c] sm:$0xf]
  %v84 = vld [vmem:[%s1 + $0x70] sm:$0xf]
  %v85 = vld [vmem:[%s1 + $0x74] sm:$0xf]
  %v86 = vld [vmem:[%s1 + $0x78] sm:$0xf]
  %v87 = vld [vmem:[%s1 + $0x7c] sm:$0xf]
  %v88 = vld [vmem:[%s1 + $0x80] sm:$0xf]
  %v89 = vld [vmem:[%s1 + $0x84] sm:$0xf]
  %v90 = vld [vmem:[%s1 + $0x88] sm:$0xf]
  %v91 = vld [vmem:[%s1 + $0x8c] sm:$0xf]
  %v92 = vld [vmem:[%s1 + $0x90] sm:$0xf]
  %v93 = vld [vmem:[%s1 + $0x94] sm:$0xf]
  %v94 = vld [vmem:[%s1 + $0x98] sm:$0xf]
  %v95 = vld [vmem:[%s1 + $0x9c] sm:$0xf]
  %v96 = vld [vmem:[%s1 + $0xa0] sm:$0xf]
  %v97 = vld [vmem:[%s1 + $0xa4] sm:$0xf]
  %v98 = vld [vmem:[%s1 + $0xa8] sm:$0xf]
  %v99 = vld [vmem:[%s1 + $0xac] sm:$0xf]
  %v100 = vld [vmem:[%s1 + $0xb0] sm:$0xf]
  %v101 = vld [vmem:[%s1 + $0xb4] sm:$0xf]
  %v102 = vld [vmem:[%s1 + $0xb8] sm:$0xf]
  %v103 = vld [vmem:[%s1 + $0xbc] sm:$0xf]
  %v104 = vld [vmem:[%s1 + $0xc0] sm:$0xf]
  %v105 = vld [vmem:[%s1 + $0xc4] sm:$0xf]
  %v106 = vld [vmem:[%s1 + $0xc8] sm:$0xf]
  %v107 = vld [vmem:[%s1 + $0xcc] sm:$0xf]
  %v108 = vld [vmem:[%s1 + $0xd0] sm:$0xf]
  %v109 = vld [vmem:[%s1 + $0xd4] sm:$0xf]
  %v110 = vld [vmem:[%s1 + $0xd8] sm:$0xf]
  %v111 = vld [vmem:[%s1 + $0xdc] sm:$0xf]
  %v112 = vld [vmem:[%s1 + $0xe0] sm:$0xf]
  %v113 = vld [vmem:[%s1 + $0xe4] sm:$0xf]
  %v114 = vld [vmem:[%s1 + $0xe8] sm:$0xf]
  %v115 = vld [vmem:[%s1 + $0xec] sm:$0xf]
  %v116 = vld [vmem:[%s1 + $0xf0] sm:$0xf]
  %v117 = vld [vmem:[%s1 + $0xf4] sm:$0xf]
  %v118 = vld [vmem:[%s1 + $0xf8] sm:$0xf]
  %v119 = vld [vmem:[%s1 + $0xfc] sm:$0xf]
  %v120 = vld [vmem:[%s2] sm:$0x1]
  %v122 = vperm.slane %v120, 0
  %v166 = vunpack.c.l.b16 %v14
  %v167 = vunpack.c.h.b16 %v14
  %v168 = vunpack.c.l.b16 %v15
  %v169 = vunpack.c.h.b16 %v15
  %v170 = vunpack.c.l.b16 %v16
  %v171 = vunpack.c.h.b16 %v16
  %v172 = vunpack.c.l.b16 %v17
  %v173 = vunpack.c.h.b16 %v17
  %v174 = vunpack.c.l.b16 %v18
  %v175 = vunpack.c.h.b16 %v18
  %v176 = vunpack.c.l.b16 %v19
  %v177 = vunpack.c.h.b16 %v19
  %v178 = vunpack.c.l.b16 %v20
  %v179 = vunpack.c.h.b16 %v20
  %v180 = vunpack.c.l.b16 %v21
  %v181 = vunpack.c.h.b16 %v21
  %v182 = vunpack.c.l.b16 %v22
  %v183 = vunpack.c.h.b16 %v22
  %v184 = vunpack.c.l.b16 %v23
  %v185 = vunpack.c.h.b16 %v23
  %v186 = vunpack.c.l.b16 %v24
  %v187 = vunpack.c.h.b16 %v24
  %v188 = vunpack.c.l.b16 %v25
  %v189 = vunpack.c.h.b16 %v25
  %v190 = vunpack.c.l.b16 %v26
  %v191 = vunpack.c.h.b16 %v26
  %v192 = vunpack.c.l.b16 %v27
  %v193 = vunpack.c.h.b16 %v27
  %v194 = vunpack.c.l.b16 %v28
  %v195 = vunpack.c.h.b16 %v28
  %v196 = vunpack.c.l.b16 %v29
  %v197 = vunpack.c.h.b16 %v29
  %v198 = vunpack.c.l.b16 %v30
  %v199 = vunpack.c.h.b16 %v30
  %v200 = vunpack.c.l.b16 %v31
  %v201 = vunpack.c.h.b16 %v31
  %v202 = vunpack.c.l.b16 %v32
  %v203 = vunpack.c.h.b16 %v32
  %v204 = vunpack.c.l.b16 %v33
  %v205 = vunpack.c.h.b16 %v33
  %v206 = vunpack.c.l.b16 %v34
  %v207 = vunpack.c.h.b16 %v34
  %v208 = vunpack.c.l.b16 %v35
  %v209 = vunpack.c.h.b16 %v35
  %v210 = vunpack.c.l.b16 %v36
  %v211 = vunpack.c.h.b16 %v36
  %v212 = vunpack.c.l.b16 %v37
  %v213 = vunpack.c.h.b16 %v37
  %v214 = vunpack.c.l.b16 %v38
  %v215 = vunpack.c.h.b16 %v38
  %v216 = vunpack.c.l.b16 %v39
  %v217 = vunpack.c.h.b16 %v39
  %v218 = vunpack.c.l.b16 %v40
  %v219 = vunpack.c.h.b16 %v40
  %v220 = vunpack.c.l.b16 %v41
  %v221 = vunpack.c.h.b16 %v41
  %v222 = vunpack.c.l.b16 %v42
  %v223 = vunpack.c.h.b16 %v42
  %v224 = vunpack.c.l.b16 %v43
  %v225 = vunpack.c.h.b16 %v43
  %v226 = vunpack.c.l.b16 %v44
  %v227 = vunpack.c.h.b16 %v44
  %v228 = vunpack.c.l.b16 %v45
  %v229 = vunpack.c.h.b16 %v45
  %v230 = vunpack.c.l.b16 %v46
  %v231 = vunpack.c.h.b16 %v46
  %v232 = vunpack.c.l.b16 %v47
  %v233 = vunpack.c.h.b16 %v47
  %v234 = vunpack.c.l.b16 %v48
  %v235 = vunpack.c.h.b16 %v48
  %v236 = vunpack.c.l.b16 %v49
  %v237 = vunpack.c.h.b16 %v49
  %v238 = vunpack.c.l.b16 %v50
  %v239 = vunpack.c.h.b16 %v50
  %v240 = vunpack.c.l.b16 %v51
  %v241 = vunpack.c.h.b16 %v51
  %v242 = vunpack.c.l.b16 %v52
  %v243 = vunpack.c.h.b16 %v52
  %v244 = vunpack.c.l.b16 %v53
  %v245 = vunpack.c.h.b16 %v53
  %v246 = vunpack.c.l.b16 %v54
  %v247 = vunpack.c.h.b16 %v54
  %v248 = vunpack.c.l.b16 %v55
  %v249 = vunpack.c.h.b16 %v55
  %v250 = vpack.c.b16 %v170, %v166
  %v251 = vpack.c.b16 %v171, %v167
  %v252 = vpack.c.b16 %v172, %v168
  %v253 = vpack.c.b16 %v173, %v169
  %v254 = vpack.c.b16 %v178, %v174
  %v255 = vpack.c.b16 %v179, %v175
  %v256 = vpack.c.b16 %v180, %v176
  %v257 = vpack.c.b16 %v181, %v177
  %v258 = vpack.c.b16 %v186, %v182
  %v259 = vpack.c.b16 %v187, %v183
  %v260 = vpack.c.b16 %v188, %v184
  %v261 = vpack.c.b16 %v189, %v185
  %v262 = vpack.c.b16 %v194, %v190
  %v263 = vpack.c.b16 %v195, %v191
  %v264 = vpack.c.b16 %v196, %v192
  %v265 = vpack.c.b16 %v197, %v193
  %v266 = vpack.c.b16 %v202, %v198
  %v267 = vpack.c.b16 %v203, %v199
  %v268 = vpack.c.b16 %v204, %v200
  %v269 = vpack.c.b16 %v205, %v201
  %v270 = vpack.c.b16 %v210, %v206
  %v271 = vpack.c.b16 %v211, %v207
  %v272 = vpack.c.b16 %v212, %v208
  %v273 = vpack.c.b16 %v213, %v209
  %v274 = vpack.c.b16 %v218, %v214
  %v275 = vpack.c.b16 %v219, %v215
  %v276 = vpack.c.b16 %v220, %v216
  %v277 = vpack.c.b16 %v221, %v217
  %v278 = vpack.c.b16 %v226, %v222
  %v279 = vpack.c.b16 %v227, %v223
  %v280 = vpack.c.b16 %v228, %v224
  %v281 = vpack.c.b16 %v229, %v225
  %v282 = vpack.c.b16 %v234, %v230
  %v283 = vpack.c.b16 %v235, %v231
  %v284 = vpack.c.b16 %v236, %v232
  %v285 = vpack.c.b16 %v237, %v233
  %v286 = vpack.c.b16 %v242, %v238
  %v287 = vpack.c.b16 %v243, %v239
  %v288 = vpack.c.b16 %v244, %v240
  %v289 = vpack.c.b16 %v245, %v241
  %v290 = vpack.c.b16 %v246, %v246
  %v291 = vpack.c.b16 %v247, %v247
  %v292 = vpack.c.b16 %v248, %v248
  %v293 = vpack.c.b16 %v249, %v249
  %v402 = vunpack.c.l.b16 %v56
  %v403 = vunpack.c.l.b16 %v57
  %v404 = vunpack.c.l.b16 %v58
  %v405 = vunpack.c.l.b16 %v59
  %v406 = vunpack.c.l.b16 %v60
  %v407 = vunpack.c.l.b16 %v61
  %v408 = vunpack.c.l.b16 %v62
  %v409 = vunpack.c.l.b16 %v63
  %v410 = vunpack.c.l.b16 %v64
  %v411 = vunpack.c.l.b16 %v65
  %v412 = vunpack.c.l.b16 %v66
  %v413 = vunpack.c.l.b16 %v67
  %v414 = vunpack.c.l.b16 %v68
  %v415 = vunpack.c.l.b16 %v69
  %v416 = vunpack.c.l.b16 %v70
  %v417 = vunpack.c.l.b16 %v71
  %v418 = vunpack.c.l.b16 %v72
  %v419 = vunpack.c.l.b16 %v73
  %v420 = vunpack.c.l.b16 %v74
  %v421 = vunpack.c.l.b16 %v75
  %v422 = vunpack.c.l.b16 %v76
  %v423 = vunpack.c.l.b16 %v77
  %v424 = vunpack.c.l.b16 %v78
  %v425 = vunpack.c.l.b16 %v79
  %v426 = vunpack.c.l.b16 %v80
  %v427 = vunpack.c.l.b16 %v81
  %v428 = vunpack.c.l.b16 %v82
  %v429 = vunpack.c.l.b16 %v83
  %v430 = vunpack.c.l.b16 %v84
  %v431 = vunpack.c.l.b16 %v85
  %v432 = vunpack.c.l.b16 %v86
  %v433 = vunpack.c.l.b16 %v87
  %v434 = vunpack.c.l.b16 %v88
  %v435 = vunpack.c.l.b16 %v89
  %v436 = vunpack.c.l.b16 %v90
  %v437 = vunpack.c.l.b16 %v91
  %v438 = vunpack.c.l.b16 %v92
  %v439 = vunpack.c.l.b16 %v93
  %v440 = vunpack.c.l.b16 %v94
  %v441 = vunpack.c.l.b16 %v95
  %v442 = vunpack.c.l.b16 %v96
  %v443 = vunpack.c.l.b16 %v97
  %v444 = vunpack.c.l.b16 %v98
  %v445 = vunpack.c.l.b16 %v99
  %v446 = vunpack.c.l.b16 %v100
  %v447 = vunpack.c.l.b16 %v101
  %v448 = vunpack.c.l.b16 %v102
  %v449 = vunpack.c.l.b16 %v103
  %v450 = vunpack.c.l.b16 %v104
  %v451 = vunpack.c.l.b16 %v105
  %v452 = vunpack.c.l.b16 %v106
  %v453 = vunpack.c.l.b16 %v107
  %v454 = vunpack.c.l.b16 %v108
  %v455 = vunpack.c.l.b16 %v109
  %v456 = vunpack.c.l.b16 %v110
  %v457 = vunpack.c.l.b16 %v111
  %v458 = vunpack.c.l.b16 %v112
  %v459 = vunpack.c.l.b16 %v113
  %v460 = vunpack.c.l.b16 %v114
  %v461 = vunpack.c.l.b16 %v115
  %v462 = vunpack.c.l.b16 %v116
  %v463 = vunpack.c.l.b16 %v117
  %v464 = vunpack.c.l.b16 %v118
  %v465 = vunpack.c.l.b16 %v119
  %v466 = vpack.c.b16 %v403, %v402
  %v467 = vpack.c.b16 %v405, %v404
  %v468 = vpack.c.b16 %v407, %v406
  %v469 = vpack.c.b16 %v409, %v408
  %v470 = vpack.c.b16 %v411, %v410
  %v471 = vpack.c.b16 %v413, %v412
  %v472 = vpack.c.b16 %v415, %v414
  %v473 = vpack.c.b16 %v417, %v416
  %v474 = vpack.c.b16 %v419, %v418
  %v475 = vpack.c.b16 %v421, %v420
  %v476 = vpack.c.b16 %v423, %v422
  %v477 = vpack.c.b16 %v425, %v424
  %v478 = vpack.c.b16 %v427, %v426
  %v479 = vpack.c.b16 %v429, %v428
  %v480 = vpack.c.b16 %v431, %v430
  %v481 = vpack.c.b16 %v433, %v432
  %v482 = vpack.c.b16 %v435, %v434
  %v483 = vpack.c.b16 %v437, %v436
  %v484 = vpack.c.b16 %v439, %v438
  %v485 = vpack.c.b16 %v441, %v440
  %v486 = vpack.c.b16 %v443, %v442
  %v487 = vpack.c.b16 %v445, %v444
  %v488 = vpack.c.b16 %v447, %v446
  %v489 = vpack.c.b16 %v449, %v448
  %v490 = vpack.c.b16 %v451, %v450
  %v491 = vpack.c.b16 %v453, %v452
  %v492 = vpack.c.b16 %v455, %v454
  %v493 = vpack.c.b16 %v457, %v456
  %v494 = vpack.c.b16 %v459, %v458
  %v495 = vpack.c.b16 %v461, %v460
  %v496 = vpack.c.b16 %v463, %v462
  %v497 = vpack.c.b16 %v465, %v464
  %530 = vmatpush.bf16.msra.mxu0 %v473
  %531 = vmatpush.bf16.msra.mxu0 %v472
  %532 = vmatpush.bf16.msra.mxu0 %v471
  %533 = vmatpush.bf16.msra.mxu0 %v470
  %534 = vmatpush.bf16.msra.mxu0 %v469
  %535 = vmatpush.bf16.msra.mxu0 %v468
  %536 = vmatpush.bf16.msra.mxu0 %v467
  %537 = vmatpush.bf16.msra.mxu0 %v466
  %538 = vmatmul.bf16.gmra.mxu0 %v250
  %v539 = vpop.f32.mrf.mxu0
  %v540 = vadd.f32 %v122, %v539
  %v541 = vpop.f32.mrf.mxu0
  %v542 = vadd.f32 %v122, %v541
  %543 = vmatmul.bf16.gmra.mxu0 %v254
  %v544 = vpop.f32.mrf.mxu0
  %v545 = vadd.f32 %v122, %v544
  %v546 = vpop.f32.mrf.mxu0
  %v547 = vadd.f32 %v122, %v546
  %548 = vmatmul.bf16.gmra.mxu0 %v258
  %v549 = vpop.f32.mrf.mxu0
  %v550 = vadd.f32 %v122, %v549
  %v551 = vpop.f32.mrf.mxu0
  %v552 = vadd.f32 %v122, %v551
  %553 = vmatmul.bf16.gmra.mxu0 %v262
  %v554 = vpop.f32.mrf.mxu0
  %v555 = vadd.f32 %v122, %v554
  %v556 = vpop.f32.mrf.mxu0
  %v557 = vadd.f32 %v122, %v556
  %558 = vmatmul.bf16.gmra.mxu0 %v266
  %v559 = vpop.f32.mrf.mxu0
  %v560 = vadd.f32 %v122, %v559
  %v561 = vpop.f32.mrf.mxu0
  %v562 = vadd.f32 %v122, %v561
  %563 = vmatmul.bf16.gmra.mxu0 %v270
  %v564 = vpop.f32.mrf.mxu0
  %v565 = vadd.f32 %v122, %v564
  %v566 = vpop.f32.mrf.mxu0
  %v567 = vadd.f32 %v122, %v566
  %568 = vmatmul.bf16.gmra.mxu0 %v274
  %v569 = vpop.f32.mrf.mxu0
  %v570 = vadd.f32 %v122, %v569
  %v571 = vpop.f32.mrf.mxu0
  %v572 = vadd.f32 %v122, %v571
  %573 = vmatmul.bf16.gmra.mxu0 %v278
  %v574 = vpop.f32.mrf.mxu0
  %v575 = vadd.f32 %v122, %v574
  %v576 = vpop.f32.mrf.mxu0
  %v577 = vadd.f32 %v122, %v576
  %578 = vmatmul.bf16.gmra.mxu0 %v282
  %v579 = vpop.f32.mrf.mxu0
  %v580 = vadd.f32 %v122, %v579
  %v581 = vpop.f32.mrf.mxu0
  %v582 = vadd.f32 %v122, %v581
  %583 = vmatmul.bf16.gmra.mxu0 %v286
  %v584 = vpop.f32.mrf.mxu0
  %v585 = vadd.f32 %v122, %v584
  %v586 = vpop.f32.mrf.mxu0
  %v587 = vadd.f32 %v122, %v586
  %588 = vmatmul.bf16.gmra.mxu0 %v290
  %v589 = vpop.f32.mrf.mxu0
  %v590 = vadd.f32 %v122, %v589
  %v591 = vpop.f32.mrf.mxu0
  %592 = vdwg.mxu0
  %593 = vmatpush.bf16.msra.mxu0 %v481
  %594 = vmatpush.bf16.msra.mxu0 %v480
  %595 = vmatpush.bf16.msra.mxu0 %v479
  %596 = vmatpush.bf16.msra.mxu0 %v478
  %597 = vmatpush.bf16.msra.mxu0 %v477
  %598 = vmatpush.bf16.msra.mxu0 %v476
  %599 = vmatpush.bf16.msra.mxu0 %v475
  %600 = vmatpush.bf16.msra.mxu0 %v474
  %601 = vmatmul.bf16.gmra.mxu0 %v251
  %v602 = vpop.f32.mrf.mxu0
  %v603 = vadd.f32 %v540, %v602
  %v604 = vpop.f32.mrf.mxu0
  %v605 = vadd.f32 %v542, %v604
  %606 = vmatmul.bf16.gmra.mxu0 %v255
  %v607 = vpop.f32.mrf.mxu0
  %v608 = vadd.f32 %v545, %v607
  %v609 = vpop.f32.mrf.mxu0
  %v610 = vadd.f32 %v547, %v609
  %611 = vmatmul.bf16.gmra.mxu0 %v259
  %v612 = vpop.f32.mrf.mxu0
  %v613 = vadd.f32 %v550, %v612
  %v614 = vpop.f32.mrf.mxu0
  %v615 = vadd.f32 %v552, %v614
  %616 = vmatmul.bf16.gmra.mxu0 %v263
  %v617 = vpop.f32.mrf.mxu0
  %v618 = vadd.f32 %v555, %v617
  %v619 = vpop.f32.mrf.mxu0
  %v620 = vadd.f32 %v557, %v619
  %621 = vmatmul.bf16.gmra.mxu0 %v267
  %v622 = vpop.f32.mrf.mxu0
  %v623 = vadd.f32 %v560, %v622
  %v624 = vpop.f32.mrf.mxu0
  %v625 = vadd.f32 %v562, %v624
  %626 = vmatmul.bf16.gmra.mxu0 %v271
  %v627 = vpop.f32.mrf.mxu0
  %v628 = vadd.f32 %v565, %v627
  %v629 = vpop.f32.mrf.mxu0
  %v630 = vadd.f32 %v567, %v629
  %631 = vmatmul.bf16.gmra.mxu0 %v275
  %v632 = vpop.f32.mrf.mxu0
  %v633 = vadd.f32 %v570, %v632
  %v634 = vpop.f32.mrf.mxu0
  %v635 = vadd.f32 %v572, %v634
  %636 = vmatmul.bf16.gmra.mxu0 %v279
  %v637 = vpop.f32.mrf.mxu0
  %v638 = vadd.f32 %v575, %v637
  %v639 = vpop.f32.mrf.mxu0
  %v640 = vadd.f32 %v577, %v639
  %641 = vmatmul.bf16.gmra.mxu0 %v283
  %v642 = vpop.f32.mrf.mxu0
  %v643 = vadd.f32 %v580, %v642
  %v644 = vpop.f32.mrf.mxu0
  %v645 = vadd.f32 %v582, %v644
  %646 = vmatmul.bf16.gmra.mxu0 %v287
  %v647 = vpop.f32.mrf.mxu0
  %v648 = vadd.f32 %v585, %v647
  %v649 = vpop.f32.mrf.mxu0
  %v650 = vadd.f32 %v587, %v649
  %651 = vmatmul.bf16.gmra.mxu0 %v291
  %v652 = vpop.f32.mrf.mxu0
  %v653 = vadd.f32 %v590, %v652
  %v654 = vpop.f32.mrf.mxu0
  %655 = vdwg.mxu0
  %656 = vmatpush.bf16.msra.mxu0 %v489
  %657 = vmatpush.bf16.msra.mxu0 %v488
  %658 = vmatpush.bf16.msra.mxu0 %v487
  %659 = vmatpush.bf16.msra.mxu0 %v486
  %660 = vmatpush.bf16.msra.mxu0 %v485
  %661 = vmatpush.bf16.msra.mxu0 %v484
  %662 = vmatpush.bf16.msra.mxu0 %v483
  %663 = vmatpush.bf16.msra.mxu0 %v482
  %664 = vmatmul.bf16.gmra.mxu0 %v252
  %v665 = vpop.f32.mrf.mxu0
  %v666 = vadd.f32 %v603, %v665
  %v667 = vpop.f32.mrf.mxu0
  %v668 = vadd.f32 %v605, %v667
  %669 = vmatmul.bf16.gmra.mxu0 %v256
  %v670 = vpop.f32.mrf.mxu0
  %v671 = vadd.f32 %v608, %v670
  %v672 = vpop.f32.mrf.mxu0
  %v673 = vadd.f32 %v610, %v672
  %674 = vmatmul.bf16.gmra.mxu0 %v260
  %v675 = vpop.f32.mrf.mxu0
  %v676 = vadd.f32 %v613, %v675
  %v677 = vpop.f32.mrf.mxu0
  %v678 = vadd.f32 %v615, %v677
  %679 = vmatmul.bf16.gmra.mxu0 %v264
  %v680 = vpop.f32.mrf.mxu0
  %v681 = vadd.f32 %v618, %v680
  %v682 = vpop.f32.mrf.mxu0
  %v683 = vadd.f32 %v620, %v682
  %684 = vmatmul.bf16.gmra.mxu0 %v268
  %v685 = vpop.f32.mrf.mxu0
  %v686 = vadd.f32 %v623, %v685
  %v687 = vpop.f32.mrf.mxu0
  %v688 = vadd.f32 %v625, %v687
  %689 = vmatmul.bf16.gmra.mxu0 %v272
  %v690 = vpop.f32.mrf.mxu0
  %v691 = vadd.f32 %v628, %v690
  %v692 = vpop.f32.mrf.mxu0
  %v693 = vadd.f32 %v630, %v692
  %694 = vmatmul.bf16.gmra.mxu0 %v276
  %v695 = vpop.f32.mrf.mxu0
  %v696 = vadd.f32 %v633, %v695
  %v697 = vpop.f32.mrf.mxu0
  %v698 = vadd.f32 %v635, %v697
  %699 = vmatmul.bf16.gmra.mxu0 %v280
  %v700 = vpop.f32.mrf.mxu0
  %v701 = vadd.f32 %v638, %v700
  %v702 = vpop.f32.mrf.mxu0
  %v703 = vadd.f32 %v640, %v702
  %704 = vmatmul.bf16.gmra.mxu0 %v284
  %v705 = vpop.f32.mrf.mxu0
  %v706 = vadd.f32 %v643, %v705
  %v707 = vpop.f32.mrf.mxu0
  %v708 = vadd.f32 %v645, %v707
  %709 = vmatmul.bf16.gmra.mxu0 %v288
  %v710 = vpop.f32.mrf.mxu0
  %v711 = vadd.f32 %v648, %v710
  %v712 = vpop.f32.mrf.mxu0
  %v713 = vadd.f32 %v650, %v712
  %714 = vmatmul.bf16.gmra.mxu0 %v292
  %v715 = vpop.f32.mrf.mxu0
  %v716 = vadd.f32 %v653, %v715
  %v717 = vpop.f32.mrf.mxu0
  %718 = vdwg.mxu0
  %719 = vmatpush.bf16.msra.mxu0 %v497
  %720 = vmatpush.bf16.msra.mxu0 %v496
  %721 = vmatpush.bf16.msra.mxu0 %v495
  %722 = vmatpush.bf16.msra.mxu0 %v494
  %723 = vmatpush.bf16.msra.mxu0 %v493
  %724 = vmatpush.bf16.msra.mxu0 %v492
  %725 = vmatpush.bf16.msra.mxu0 %v491
  %726 = vmatpush.bf16.msra.mxu0 %v490
  %727 = vmatmul.bf16.gmra.mxu0 %v253
  %v728 = vpop.f32.mrf.mxu0
  %v729 = vadd.f32 %v666, %v728
  %v730 = vpop.f32.mrf.mxu0
  %v731 = vadd.f32 %v668, %v730
  %732 = vmatmul.bf16.gmra.mxu0 %v257
  %v733 = vpop.f32.mrf.mxu0
  %v734 = vadd.f32 %v671, %v733
  %v735 = vpop.f32.mrf.mxu0
  %v736 = vadd.f32 %v673, %v735
  %737 = vmatmul.bf16.gmra.mxu0 %v261
  %v738 = vpop.f32.mrf.mxu0
  %v739 = vadd.f32 %v676, %v738
  %v740 = vpop.f32.mrf.mxu0
  %v741 = vadd.f32 %v678, %v740
  %742 = vmatmul.bf16.gmra.mxu0 %v265
  %v743 = vpop.f32.mrf.mxu0
  %v744 = vadd.f32 %v681, %v743
  %v745 = vpop.f32.mrf.mxu0
  %v746 = vadd.f32 %v683, %v745
  %747 = vmatmul.bf16.gmra.mxu0 %v269
  %v748 = vpop.f32.mrf.mxu0
  %v749 = vadd.f32 %v686, %v748
  %v750 = vpop.f32.mrf.mxu0
  %v751 = vadd.f32 %v688, %v750
  %752 = vmatmul.bf16.gmra.mxu0 %v273
  %v753 = vpop.f32.mrf.mxu0
  %v754 = vadd.f32 %v691, %v753
  %v755 = vpop.f32.mrf.mxu0
  %v756 = vadd.f32 %v693, %v755
  %757 = vmatmul.bf16.gmra.mxu0 %v277
  %v758 = vpop.f32.mrf.mxu0
  %v759 = vadd.f32 %v696, %v758
  %v760 = vpop.f32.mrf.mxu0
  %v761 = vadd.f32 %v698, %v760
  %762 = vmatmul.bf16.gmra.mxu0 %v281
  %v763 = vpop.f32.mrf.mxu0
  %v764 = vadd.f32 %v701, %v763
  %v765 = vpop.f32.mrf.mxu0
  %v766 = vadd.f32 %v703, %v765
  %767 = vmatmul.bf16.gmra.mxu0 %v285
  %v768 = vpop.f32.mrf.mxu0
  %v769 = vadd.f32 %v706, %v768
  %v770 = vpop.f32.mrf.mxu0
  %v771 = vadd.f32 %v708, %v770
  %772 = vmatmul.bf16.gmra.mxu0 %v289
  %v773 = vpop.f32.mrf.mxu0
  %v774 = vadd.f32 %v711, %v773
  %v775 = vpop.f32.mrf.mxu0
  %v776 = vadd.f32 %v713, %v775
  %777 = vmatmul.bf16.gmra.mxu0 %v293
  %v778 = vpop.f32.mrf.mxu0
  %v779 = vadd.f32 %v716, %v778
  %v780 = vpop.f32.mrf.mxu0
  %781 = vdwg.mxu0
  %v782 = vmax.f32 %v729, 0.0
  %v783 = vmax.f32 %v731, 0.0
  %v784 = vmax.f32 %v734, 0.0
  %v785 = vmax.f32 %v736, 0.0
  %v786 = vmax.f32 %v739, 0.0
  %v787 = vmax.f32 %v741, 0.0
  %v788 = vmax.f32 %v744, 0.0
  %v789 = vmax.f32 %v746, 0.0
  %v790 = vmax.f32 %v749, 0.0
  %v791 = vmax.f32 %v751, 0.0
  %v792 = vmax.f32 %v754, 0.0
  %v793 = vmax.f32 %v756, 0.0
  %v794 = vmax.f32 %v759, 0.0
  %v795 = vmax.f32 %v761, 0.0
  %v796 = vmax.f32 %v764, 0.0
  %v797 = vmax.f32 %v766, 0.0
  %v798 = vmax.f32 %v769, 0.0
  %v799 = vmax.f32 %v771, 0.0
  %v800 = vmax.f32 %v774, 0.0
  %v801 = vmax.f32 %v776, 0.0
  %v802 = vmax.f32 %v779, 0.0
  %v803 = vpack.c.bf16 %v782, %v782
  %v804 = vpack.c.bf16 %v783, %v783
  %v805 = vpack.c.bf16 %v784, %v784
  %v806 = vpack.c.bf16 %v785, %v785
  %v807 = vpack.c.bf16 %v786, %v786
  %v808 = vpack.c.bf16 %v787, %v787
  %v809 = vpack.c.bf16 %v788, %v788
  %v810 = vpack.c.bf16 %v789, %v789
  %v811 = vpack.c.bf16 %v790, %v790
  %v812 = vpack.c.bf16 %v791, %v791
  %v813 = vpack.c.bf16 %v792, %v792
  %v814 = vpack.c.bf16 %v793, %v793
  %v815 = vpack.c.bf16 %v794, %v794
  %v816 = vpack.c.bf16 %v795, %v795
  %v817 = vpack.c.bf16 %v796, %v796
  %v818 = vpack.c.bf16 %v797, %v797
  %v819 = vpack.c.bf16 %v798, %v798
  %v820 = vpack.c.bf16 %v799, %v799
  %v821 = vpack.c.bf16 %v800, %v800
  %v822 = vpack.c.bf16 %v801, %v801
  %v823 = vpack.c.bf16 %v802, %v802
  %vm824 = vcmask 519168
  %825 = vst.msk [vmem:[%s3] sm:$0xf] %vm824, %v803
  %826 = vst.msk [vmem:[%s3 + $0x4] sm:$0xf] %vm824, %v804
  %827 = vst.msk [vmem:[%s3 + $0x8] sm:$0xf] %vm824, %v805
  %828 = vst.msk [vmem:[%s3 + $0xc] sm:$0xf] %vm824, %v806
  %829 = vst.msk [vmem:[%s3 + $0x10] sm:$0xf] %vm824, %v807
  %830 = vst.msk [vmem:[%s3 + $0x14] sm:$0xf] %vm824, %v808
  %831 = vst.msk [vmem:[%s3 + $0x18] sm:$0xf] %vm824, %v809
  %832 = vst.msk [vmem:[%s3 + $0x1c] sm:$0xf] %vm824, %v810
  %833 = vst.msk [vmem:[%s3 + $0x20] sm:$0xf] %vm824, %v811
  %834 = vst.msk [vmem:[%s3 + $0x24] sm:$0xf] %vm824, %v812
  %835 = vst.msk [vmem:[%s3 + $0x28] sm:$0xf] %vm824, %v813
  %836 = vst.msk [vmem:[%s3 + $0x2c] sm:$0xf] %vm824, %v814
  %837 = vst.msk [vmem:[%s3 + $0x30] sm:$0xf] %vm824, %v815
  %838 = vst.msk [vmem:[%s3 + $0x34] sm:$0xf] %vm824, %v816
  %839 = vst.msk [vmem:[%s3 + $0x38] sm:$0xf] %vm824, %v817
  %840 = vst.msk [vmem:[%s3 + $0x3c] sm:$0xf] %vm824, %v818
  %841 = vst.msk [vmem:[%s3 + $0x40] sm:$0xf] %vm824, %v819
  %842 = vst.msk [vmem:[%s3 + $0x44] sm:$0xf] %vm824, %v820
  %843 = vst.msk [vmem:[%s3 + $0x48] sm:$0xf] %vm824, %v821
  %844 = vst.msk [vmem:[%s3 + $0x4c] sm:$0xf] %vm824, %v822
  %vm845 = vcmask 516096
  %846 = vst.msk [vmem:[%s3 + $0x50] sm:$0x1] %vm845, %v823
  // Predicated region
  $region14: #{dueling_dqn_forward.5} parent=0 // pred_check
    _
  $region15: #{dueling_dqn_forward.5} parent=0 // pred_check_branch
    %848 = sbr.rel (0) target = $region17
  $region16: #{dueling_dqn_forward.5} parent=0 // pred_region
    _
  $region17: #{dueling_dqn_forward.5} parent=0 // pred_fallthru
    _
  // Predicated region
  $region18: #{dueling_dqn_forward.5} parent=0 // pred_check
    _
  $region19: #{dueling_dqn_forward.5} parent=0 // pred_check_branch
    %850 = sbr.rel (0) target = $region21
  $region20: #{dueling_dqn_forward.5} parent=0 // pred_region
    _
  $region21: #{dueling_dqn_forward.5} parent=0 // pred_fallthru
    _

// kernel: dueling_dqn_forward.6
$region0: #{dueling_dqn_forward.6}
  #allocation0 [shape = 'u32[]', space=smem, size = 0x4, offset = 0x4, fixed_abs, tag = 'smem constant byte address 0x4 - core index']
  #allocation1 [shape = 'u32[72,128]{1,0:T(1,128)}', space=vmem, size = 0x9000, scoped, tag = 'internal scratch']
  %s0 = inlined_call_operand.vmem [shape: bf16[98,576], index: 0, kind: input, shape index: {}]
  %s1 = inlined_call_operand.vmem [shape: bf16[576,64], index: 1, kind: input, shape index: {}]
  %s2 = inlined_call_operand.vmem [shape: f32[1,64], index: 2, kind: input, shape index: {}]
  %s3 = inlined_call_operand.vmem [shape: bf16[98,64], index: 3, kind: output, shape index: {}]
  %s4 = sld [smem:[#allocation0]]
  $region22: #{dueling_dqn_forward.6} parent=0
    _
  %s6 = ssub.s32 1, %s4
  %s7 = scalar_select 0, %s6, %s4
  // Predicated region
  $region2: #{dueling_dqn_forward.6} parent=0 // pred_check
    _
  $region3: #{dueling_dqn_forward.6} parent=0 // pred_check_branch
    %9 = sbr.rel (0) target = $region5
  $region4: #{dueling_dqn_forward.6} parent=0 // pred_region
    _
  $region5: #{dueling_dqn_forward.6} parent=0 // pred_fallthru
    _
  // Predicated region
  $region6: #{dueling_dqn_forward.6} parent=0 // pred_check
    _
  $region7: #{dueling_dqn_forward.6} parent=0 // pred_check_branch
    %11 = sbr.rel (0) target = $region9
  $region8: #{dueling_dqn_forward.6} parent=0 // pred_region
    _
  $region9: #{dueling_dqn_forward.6} parent=0 // pred_fallthru
    _
  // Predicated region
  $region10: #{dueling_dqn_forward.6} parent=0 // pred_check
    _
  $region11: #{dueling_dqn_forward.6} parent=0 // pred_check_branch
    %13 = sbr.rel (0) target = $region13
  $region12: #{dueling_dqn_forward.6} parent=0 // pred_region
    _
  $region13: #{dueling_dqn_forward.6} parent=0 // pred_fallthru
    _
  %v15 = vld [vmem:[%s0] sm:$0xff]
  %v16 = vld [vmem:[%s0 + $0x8] sm:$0xff]
  %v17 = vld [vmem:[%s0 + $0x10] sm:$0xf]
  %v18 = vld [vmem:[%s0 + $0x14] sm:$0xff]
  %v19 = vld [vmem:[%s0 + $0x1c] sm:$0xff]
  %v20 = vld [vmem:[%s0 + $0x24] sm:$0xf]
  %v21 = vld [vmem:[%s0 + $0x28] sm:$0xff]
  %v22 = vld [vmem:[%s0 + $0x30] sm:$0xff]
  %v23 = vld [vmem:[%s0 + $0x38] sm:$0xf]
  %v24 = vld [vmem:[%s0 + $0x3c] sm:$0xff]
  %v25 = vld [vmem:[%s0 + $0x44] sm:$0xff]
  %v26 = vld [vmem:[%s0 + $0x4c] sm:$0xf]
  %v27 = vld [vmem:[%s0 + $0x50] sm:$0xff]
  %v28 = vld [vmem:[%s0 + $0x58] sm:$0xff]
  %v29 = vld [vmem:[%s0 + $0x60] sm:$0xf]
  %v30 = vld [vmem:[%s0 + $0x64] sm:$0xff]
  %v31 = vld [vmem:[%s0 + $0x6c] sm:$0xff]
  %v32 = vld [vmem:[%s0 + $0x74] sm:$0xf]
  %v33 = vld [vmem:[%s0 + $0x78] sm:$0xff]
  %v34 = vld [vmem:[%s0 + $0x80] sm:$0xff]
  %v35 = vld [vmem:[%s0 + $0x88] sm:$0xf]
  %v36 = vld [vmem:[%s0 + $0x8c] sm:$0xff]
  %v37 = vld [vmem:[%s0 + $0x94] sm:$0xff]
  %v38 = vld [vmem:[%s0 + $0x9c] sm:$0xf]
  %v39 = vld [vmem:[%s0 + $0xa0] sm:$0xff]
  %v40 = vld [vmem:[%s0 + $0xa8] sm:$0xff]
  %v41 = vld [vmem:[%s0 + $0xb0] sm:$0xf]
  %v42 = vld [vmem:[%s0 + $0xb4] sm:$0xff]
  %v43 = vld [vmem:[%s0 + $0xbc] sm:$0xff]
  %v44 = vld [vmem:[%s0 + $0xc4] sm:$0xf]
  %v45 = vld [vmem:[%s0 + $0xc8] sm:$0xff]
  %v46 = vld [vmem:[%s0 + $0xd0] sm:$0xff]
  %v47 = vld [vmem:[%s0 + $0xd8] sm:$0xf]
  %v48 = vld [vmem:[%s0 + $0xdc] sm:$0xff]
  %v49 = vld [vmem:[%s0 + $0xe4] sm:$0xff]
  %v50 = vld [vmem:[%s0 + $0xec] sm:$0xf]
  %v51 = vld [vmem:[%s0 + $0xf0] sm:$0x11]
  %v52 = vld [vmem:[%s0 + $0xf8] sm:$0x11]
  %v53 = vld [vmem:[%s0 + $0x100] sm:$0x1]
  %v54 = vld [vmem:[%s1] sm:$0xf]
  %v55 = vld [vmem:[%s1 + $0x4] sm:$0xf]
  %v56 = vld [vmem:[%s1 + $0x8] sm:$0xf]
  %v57 = vld [vmem:[%s1 + $0xc] sm:$0xf]
  %v58 = vld [vmem:[%s1 + $0x10] sm:$0xf]
  %v59 = vld [vmem:[%s1 + $0x14] sm:$0xf]
  %v60 = vld [vmem:[%s1 + $0x18] sm:$0xf]
  %v61 = vld [vmem:[%s1 + $0x1c] sm:$0xf]
  %v62 = vld [vmem:[%s1 + $0x20] sm:$0xf]
  %v63 = vld [vmem:[%s1 + $0x24] sm:$0xf]
  %v64 = vld [vmem:[%s1 + $0x28] sm:$0xf]
  %v65 = vld [vmem:[%s1 + $0x2c] sm:$0xf]
  %v66 = vld [vmem:[%s1 + $0x30] sm:$0xf]
  %v67 = vld [vmem:[%s1 + $0x34] sm:$0xf]
  %v68 = vld [vmem:[%s1 + $0x38] sm:$0xf]
  %v69 = vld [vmem:[%s1 + $0x3c] sm:$0xf]
  %v70 = vld [vmem:[%s1 + $0x40] sm:$0xf]
  %v71 = vld [vmem:[%s1 + $0x44] sm:$0xf]
  %v72 = vld [vmem:[%s1 + $0x48] sm:$0xf]
  %v73 = vld [vmem:[%s1 + $0x4c] sm:$0xf]
  %v74 = vld [vmem:[%s1 + $0x50] sm:$0xf]
  %v75 = vld [vmem:[%s1 + $0x54] sm:$0xf]
  %v76 = vld [vmem:[%s1 + $0x58] sm:$0xf]
  %v77 = vld [vmem:[%s1 + $0x5c] sm:$0xf]
  %v78 = vld [vmem:[%s1 + $0x60] sm:$0xf]
  %v79 = vld [vmem:[%s1 + $0x64] sm:$0xf]
  %v80 = vld [vmem:[%s1 + $0x68] sm:$0xf]
  %v81 = vld [vmem:[%s1 + $0x6c] sm:$0xf]
  %v82 = vld [vmem:[%s1 + $0x70] sm:$0xf]
  %v83 = vld [vmem:[%s1 + $0x74] sm:$0xf]
  %v84 = vld [vmem:[%s1 + $0x78] sm:$0xf]
  %v85 = vld [vmem:[%s1 + $0x7c] sm:$0xf]
  %v86 = vld [vmem:[%s1 + $0x80] sm:$0xf]
  %v87 = vld [vmem:[%s1 + $0x84] sm:$0xf]
  %v88 = vld [vmem:[%s1 + $0x88] sm:$0xf]
  %v89 = vld [vmem:[%s1 + $0x8c] sm:$0xf]
  %v90 = vld [vmem:[%s1 + $0x90] sm:$0xf]
  %v91 = vld [vmem:[%s1 + $0x94] sm:$0xf]
  %v92 = vld [vmem:[%s1 + $0x98] sm:$0xf]
  %v93 = vld [vmem:[%s1 + $0x9c] sm:$0xf]
  %v94 = vld [vmem:[%s1 + $0xa0] sm:$0xf]
  %v95 = vld [vmem:[%s1 + $0xa4] sm:$0xf]
  %v96 = vld [vmem:[%s1 + $0xa8] sm:$0xf]
  %v97 = vld [vmem:[%s1 + $0xac] sm:$0xf]
  %v98 = vld [vmem:[%s1 + $0xb0] sm:$0xf]
  %v99 = vld [vmem:[%s1 + $0xb4] sm:$0xf]
  %v100 = vld [vmem:[%s1 + $0xb8] sm:$0xf]
  %v101 = vld [vmem:[%s1 + $0xbc] sm:$0xf]
  %v102 = vld [vmem:[%s1 + $0xc0] sm:$0xf]
  %v103 = vld [vmem:[%s1 + $0xc4] sm:$0xf]
  %v104 = vld [vmem:[%s1 + $0xc8] sm:$0xf]
  %v105 = vld [vmem:[%s1 + $0xcc] sm:$0xf]
  %v106 = vld [vmem:[%s1 + $0xd0] sm:$0xf]
  %v107 = vld [vmem:[%s1 + $0xd4] sm:$0xf]
  %v108 = vld [vmem:[%s1 + $0xd8] sm:$0xf]
  %v109 = vld [vmem:[%s1 + $0xdc] sm:$0xf]
  %v110 = vld [vmem:[%s1 + $0xe0] sm:$0xf]
  %v111 = vld [vmem:[%s1 + $0xe4] sm:$0xf]
  %v112 = vld [vmem:[%s1 + $0xe8] sm:$0xf]
  %v113 = vld [vmem:[%s1 + $0xec] sm:$0xf]
  %v114 = vld [vmem:[%s1 + $0xf0] sm:$0xf]
  %v115 = vld [vmem:[%s1 + $0xf4] sm:$0xf]
  %v116 = vld [vmem:[%s1 + $0xf8] sm:$0xf]
  %v117 = vld [vmem:[%s1 + $0xfc] sm:$0xf]
  %v118 = vld [vmem:[%s1 + $0x100] sm:$0xf]
  %v119 = vld [vmem:[%s1 + $0x104] sm:$0xf]
  %v120 = vld [vmem:[%s1 + $0x108] sm:$0xf]
  %v121 = vld [vmem:[%s1 + $0x10c] sm:$0xf]
  %v122 = vld [vmem:[%s1 + $0x110] sm:$0xf]
  %v123 = vld [vmem:[%s1 + $0x114] sm:$0xf]
  %v124 = vld [vmem:[%s1 + $0x118] sm:$0xf]
  %v125 = vld [vmem:[%s1 + $0x11c] sm:$0xf]
  %v126 = vld [vmem:[%s2] sm:$0x1]
  %v128 = vperm.slane %v126, 0
  %v169 = vunpack.c.l.b16 %v15
  %v170 = vunpack.c.h.b16 %v15
  %v171 = vunpack.c.l.b16 %v16
  %v172 = vunpack.c.h.b16 %v16
  %v173 = vunpack.c.l.b16 %v17
  %v174 = vunpack.c.l.b16 %v18
  %v175 = vunpack.c.h.b16 %v18
  %v176 = vunpack.c.l.b16 %v19
  %v177 = vunpack.c.h.b16 %v19
  %v178 = vunpack.c.l.b16 %v20
  %v179 = vunpack.c.l.b16 %v21
  %v180 = vunpack.c.h.b16 %v21
  %v181 = vunpack.c.l.b16 %v22
  %v182 = vunpack.c.h.b16 %v22
  %v183 = vunpack.c.l.b16 %v23
  %v184 = vunpack.c.l.b16 %v24
  %v185 = vunpack.c.h.b16 %v24
  %v186 = vunpack.c.l.b16 %v25
  %v187 = vunpack.c.h.b16 %v25
  %v188 = vunpack.c.l.b16 %v26
  %v189 = vunpack.c.l.b16 %v27
  %v190 = vunpack.c.h.b16 %v27
  %v191 = vunpack.c.l.b16 %v28
  %v192 = vunpack.c.h.b16 %v28
  %v193 = vunpack.c.l.b16 %v29
  %v194 = vunpack.c.l.b16 %v30
  %v195 = vunpack.c.h.b16 %v30
  %v196 = vunpack.c.l.b16 %v31
  %v197 = vunpack.c.h.b16 %v31
  %v198 = vunpack.c.l.b16 %v32
  %v199 = vunpack.c.l.b16 %v33
  %v200 = vunpack.c.h.b16 %v33
  %v201 = vunpack.c.l.b16 %v34
  %v202 = vunpack.c.h.b16 %v34
  %v203 = vunpack.c.l.b16 %v35
  %v204 = vunpack.c.l.b16 %v36
  %v205 = vunpack.c.h.b16 %v36
  %v206 = vunpack.c.l.b16 %v37
  %v207 = vunpack.c.h.b16 %v37
  %v208 = vunpack.c.l.b16 %v38
  %v209 = vunpack.c.l.b16 %v39
  %v210 = vunpack.c.h.b16 %v39
  %v211 = vunpack.c.l.b16 %v40
  %v212 = vunpack.c.h.b16 %v40
  %v213 = vunpack.c.l.b16 %v41
  %v214 = vunpack.c.l.b16 %v42
  %v215 = vunpack.c.h.b16 %v42
  %v216 = vunpack.c.l.b16 %v43
  %v217 = vunpack.c.h.b16 %v43
  %v218 = vunpack.c.l.b16 %v44
  %v219 = vunpack.c.l.b16 %v45
  %v220 = vunpack.c.h.b16 %v45
  %v221 = vunpack.c.l.b16 %v46
  %v222 = vunpack.c.h.b16 %v46
  %v223 = vunpack.c.l.b16 %v47
  %v224 = vunpack.c.l.b16 %v48
  %v225 = vunpack.c.h.b16 %v48
  %v226 = vunpack.c.l.b16 %v49
  %v227 = vunpack.c.h.b16 %v49
  %v228 = vunpack.c.l.b16 %v50
  %v229 = vunpack.c.l.b16 %v51
  %v230 = vunpack.c.h.b16 %v51
  %v231 = vunpack.c.l.b16 %v52
  %v232 = vunpack.c.h.b16 %v52
  %v233 = vunpack.c.l.b16 %v53
  %v234 = vpack.c.b16 %v174, %v169
  %v235 = vpack.c.b16 %v175, %v170
  %v236 = vpack.c.b16 %v176, %v171
  %v237 = vpack.c.b16 %v177, %v172
  %v238 = vpack.c.b16 %v178, %v173
  %v239 = vpack.c.b16 %v184, %v179
  %v240 = vpack.c.b16 %v185, %v180
  %v241 = vpack.c.b16 %v186, %v181
  %v242 = vpack.c.b16 %v187, %v182
  %v243 = vpack.c.b16 %v188, %v183
  %v244 = vpack.c.b16 %v194, %v189
  %v245 = vpack.c.b16 %v195, %v190
  %v246 = vpack.c.b16 %v196, %v191
  %v247 = vpack.c.b16 %v197, %v192
  %v248 = vpack.c.b16 %v198, %v193
  %v249 = vpack.c.b16 %v204, %v199
  %v250 = vpack.c.b16 %v205, %v200
  %v251 = vpack.c.b16 %v206, %v201
  %v252 = vpack.c.b16 %v207, %v202
  %v253 = vpack.c.b16 %v208, %v203
  %v254 = vpack.c.b16 %v214, %v209
  %v255 = vpack.c.b16 %v215, %v210
  %v256 = vpack.c.b16 %v216, %v211
  %v257 = vpack.c.b16 %v217, %v212
  %v258 = vpack.c.b16 %v218, %v213
  %v259 = vpack.c.b16 %v224, %v219
  %v260 = vpack.c.b16 %v225, %v220
  %v261 = vpack.c.b16 %v226, %v221
  %v262 = vpack.c.b16 %v227, %v222
  %v263 = vpack.c.b16 %v228, %v223
  %v264 = vpack.c.b16 %v229, %v229
  %v265 = vpack.c.b16 %v230, %v230
  %v266 = vpack.c.b16 %v231, %v231
  %v267 = vpack.c.b16 %v232, %v232
  %v268 = vpack.c.b16 %v233, %v233
  %v369 = vunpack.c.l.b16 %v54
  %v370 = vunpack.c.l.b16 %v55
  %v371 = vunpack.c.l.b16 %v56
  %v372 = vunpack.c.l.b16 %v57
  %v373 = vunpack.c.l.b16 %v58
  %v374 = vunpack.c.l.b16 %v59
  %v375 = vunpack.c.l.b16 %v60
  %v376 = vunpack.c.l.b16 %v61
  %v377 = vunpack.c.l.b16 %v62
  %v378 = vunpack.c.l.b16 %v63
  %v379 = vunpack.c.l.b16 %v64
  %v380 = vunpack.c.l.b16 %v65
  %v381 = vunpack.c.l.b16 %v66
  %v382 = vunpack.c.l.b16 %v67
  %v383 = vunpack.c.l.b16 %v68
  %v384 = vunpack.c.l.b16 %v69
  %v385 = vunpack.c.l.b16 %v70
  %v386 = vunpack.c.l.b16 %v71
  %v387 = vunpack.c.l.b16 %v72
  %v388 = vunpack.c.l.b16 %v73
  %v389 = vunpack.c.l.b16 %v74
  %v390 = vunpack.c.l.b16 %v75
  %v391 = vunpack.c.l.b16 %v76
  %v392 = vunpack.c.l.b16 %v77
  %v393 = vunpack.c.l.b16 %v78
  %v394 = vunpack.c.l.b16 %v79
  %v395 = vunpack.c.l.b16 %v80
  %v396 = vunpack.c.l.b16 %v81
  %v397 = vunpack.c.l.b16 %v82
  %v398 = vunpack.c.l.b16 %v83
  %v399 = vunpack.c.l.b16 %v84
  %v400 = vunpack.c.l.b16 %v85
  %v401 = vunpack.c.l.b16 %v86
  %v402 = vunpack.c.l.b16 %v87
  %v403 = vunpack.c.l.b16 %v88
  %v404 = vunpack.c.l.b16 %v89
  %v405 = vunpack.c.l.b16 %v90
  %v406 = vunpack.c.l.b16 %v91
  %v407 = vunpack.c.l.b16 %v92
  %v408 = vunpack.c.l.b16 %v93
  %v409 = vunpack.c.l.b16 %v94
  %v410 = vunpack.c.l.b16 %v95
  %v411 = vunpack.c.l.b16 %v96
  %v412 = vunpack.c.l.b16 %v97
  %v413 = vunpack.c.l.b16 %v98
  %v414 = vunpack.c.l.b16 %v99
  %v415 = vunpack.c.l.b16 %v100
  %v416 = vunpack.c.l.b16 %v101
  %v417 = vunpack.c.l.b16 %v102
  %v418 = vunpack.c.l.b16 %v103
  %v419 = vunpack.c.l.b16 %v104
  %v420 = vunpack.c.l.b16 %v105
  %v421 = vunpack.c.l.b16 %v106
  %v422 = vunpack.c.l.b16 %v107
  %v423 = vunpack.c.l.b16 %v108
  %v424 = vunpack.c.l.b16 %v109
  %v425 = vunpack.c.l.b16 %v110
  %v426 = vunpack.c.l.b16 %v111
  %v427 = vunpack.c.l.b16 %v112
  %v428 = vunpack.c.l.b16 %v113
  %v429 = vunpack.c.l.b16 %v114
  %v430 = vunpack.c.l.b16 %v115
  %v431 = vunpack.c.l.b16 %v116
  %v432 = vunpack.c.l.b16 %v117
  %v433 = vunpack.c.l.b16 %v118
  %v434 = vunpack.c.l.b16 %v119
  %v435 = vunpack.c.l.b16 %v120
  %v436 = vunpack.c.l.b16 %v121
  %v437 = vunpack.c.l.b16 %v122
  %v438 = vunpack.c.l.b16 %v123
  %v439 = vunpack.c.l.b16 %v124
  %v440 = vunpack.c.l.b16 %v125
  %v441 = vpack.c.b16 %v370, %v369
  %v442 = vpack.c.b16 %v372, %v371
  %v443 = vpack.c.b16 %v374, %v373
  %v444 = vpack.c.b16 %v376, %v375
  %v445 = vpack.c.b16 %v378, %v377
  %v446 = vpack.c.b16 %v380, %v379
  %v447 = vpack.c.b16 %v382, %v381
  %v448 = vpack.c.b16 %v384, %v383
  %v449 = vpack.c.b16 %v386, %v385
  %v450 = vpack.c.b16 %v388, %v387
  %v451 = vpack.c.b16 %v390, %v389
  %v452 = vpack.c.b16 %v392, %v391
  %v453 = vpack.c.b16 %v394, %v393
  %v454 = vpack.c.b16 %v396, %v395
  %v455 = vpack.c.b16 %v398, %v397
  %v456 = vpack.c.b16 %v400, %v399
  %v457 = vpack.c.b16 %v402, %v401
  %v458 = vpack.c.b16 %v404, %v403
  %v459 = vpack.c.b16 %v406, %v405
  %v460 = vpack.c.b16 %v408, %v407
  %v461 = vpack.c.b16 %v410, %v409
  %v462 = vpack.c.b16 %v412, %v411
  %v463 = vpack.c.b16 %v414, %v413
  %v464 = vpack.c.b16 %v416, %v415
  %v465 = vpack.c.b16 %v418, %v417
  %v466 = vpack.c.b16 %v420, %v419
  %v467 = vpack.c.b16 %v422, %v421
  %v468 = vpack.c.b16 %v424, %v423
  %v469 = vpack.c.b16 %v426, %v425
  %v470 = vpack.c.b16 %v428, %v427
  %v471 = vpack.c.b16 %v430, %v429
  %v472 = vpack.c.b16 %v432, %v431
  %v473 = vpack.c.b16 %v434, %v433
  %v474 = vpack.c.b16 %v436, %v435
  %v475 = vpack.c.b16 %v438, %v437
  %v476 = vpack.c.b16 %v440, %v439
  %vm513 = vcmask 523264
  %v515 = vsel %vm513, %v238, 0
  %v518 = vsel %vm513, %v243, 0
  %v521 = vsel %vm513, %v248, 0
  %v524 = vsel %vm513, %v253, 0
  %v527 = vsel %vm513, %v258, 0
  %v530 = vsel %vm513, %v263, 0
  %v533 = vsel %vm513, %v268, 0
  %535 = vmatpush.bf16.msra.mxu0 %v448
  %536 = vmatpush.bf16.msra.mxu0 %v447
  %537 = vmatpush.bf16.msra.mxu0 %v446
  %538 = vmatpush.bf16.msra.mxu0 %v445
  %539 = vmatpush.bf16.msra.mxu0 %v444
  %540 = vmatpush.bf16.msra.mxu0 %v443
  %541 = vmatpush.bf16.msra.mxu0 %v442
  %542 = vmatpush.bf16.msra.mxu0 %v441
  %543 = vmatmul.bf16.gmra.mxu0 %v234
  %v544 = vpop.f32.mrf.mxu0
  %v545 = vadd.f32 %v128, %v544
  %v546 = vpop.f32.mrf.mxu0
  %v547 = vadd.f32 %v128, %v546
  %548 = vmatmul.bf16.gmra.mxu0 %v239
  %v549 = vpop.f32.mrf.mxu0
  %v550 = vadd.f32 %v128, %v549
  %v551 = vpop.f32.mrf.mxu0
  %v552 = vadd.f32 %v128, %v551
  %553 = vmatmul.bf16.gmra.mxu0 %v244
  %v554 = vpop.f32.mrf.mxu0
  %v555 = vadd.f32 %v128, %v554
  %v556 = vpop.f32.mrf.mxu0
  %v557 = vadd.f32 %v128, %v556
  %558 = vmatmul.bf16.gmra.mxu0 %v249
  %v559 = vpop.f32.mrf.mxu0
  %v560 = vadd.f32 %v128, %v559
  %v561 = vpop.f32.mrf.mxu0
  %v562 = vadd.f32 %v128, %v561
  %563 = vmatmul.bf16.gmra.mxu0 %v254
  %v564 = vpop.f32.mrf.mxu0
  %v565 = vadd.f32 %v128, %v564
  %v566 = vpop.f32.mrf.mxu0
  %v567 = vadd.f32 %v128, %v566
  %568 = vmatmul.bf16.gmra.mxu0 %v259
  %v569 = vpop.f32.mrf.mxu0
  %v570 = vadd.f32 %v128, %v569
  %v571 = vpop.f32.mrf.mxu0
  %v572 = vadd.f32 %v128, %v571
  %573 = vmatmul.bf16.gmra.mxu0 %v264
  %v574 = vpop.f32.mrf.mxu0
  %v575 = vadd.f32 %v128, %v574
  %v576 = vpop.f32.mrf.mxu0
  %577 = vdwg.mxu0
  %578 = vmatpush.bf16.msra.mxu0 %v456
  %579 = vmatpush.bf16.msra.mxu0 %v455
  %580 = vmatpush.bf16.msra.mxu0 %v454
  %581 = vmatpush.bf16.msra.mxu0 %v453
  %582 = vmatpush.bf16.msra.mxu0 %v452
  %583 = vmatpush.bf16.msra.mxu0 %v451
  %584 = vmatpush.bf16.msra.mxu0 %v450
  %585 = vmatpush.bf16.msra.mxu0 %v449
  %586 = vmatmul.bf16.gmra.mxu0 %v235
  %v587 = vpop.f32.mrf.mxu0
  %v588 = vadd.f32 %v545, %v587
  %v589 = vpop.f32.mrf.mxu0
  %v590 = vadd.f32 %v547, %v589
  %591 = vmatmul.bf16.gmra.mxu0 %v240
  %v592 = vpop.f32.mrf.mxu0
  %v593 = vadd.f32 %v550, %v592
  %v594 = vpop.f32.mrf.mxu0
  %v595 = vadd.f32 %v552, %v594
  %596 = vmatmul.bf16.gmra.mxu0 %v245
  %v597 = vpop.f32.mrf.mxu0
  %v598 = vadd.f32 %v555, %v597
  %v599 = vpop.f32.mrf.mxu0
  %v600 = vadd.f32 %v557, %v599
  %601 = vmatmul.bf16.gmra.mxu0 %v250
  %v602 = vpop.f32.mrf.mxu0
  %v603 = vadd.f32 %v560, %v602
  %v604 = vpop.f32.mrf.mxu0
  %v605 = vadd.f32 %v562, %v604
  %606 = vmatmul.bf16.gmra.mxu0 %v255
  %v607 = vpop.f32.mrf.mxu0
  %v608 = vadd.f32 %v565, %v607
  %v609 = vpop.f32.mrf.mxu0
  %v610 = vadd.f32 %v567, %v609
  %611 = vmatmul.bf16.gmra.mxu0 %v260
  %v612 = vpop.f32.mrf.mxu0
  %v613 = vadd.f32 %v570, %v612
  %v614 = vpop.f32.mrf.mxu0
  %v615 = vadd.f32 %v572, %v614
  %616 = vmatmul.bf16.gmra.mxu0 %v265
  %v617 = vpop.f32.mrf.mxu0
  %v618 = vadd.f32 %v575, %v617
  %v619 = vpop.f32.mrf.mxu0
  %620 = vdwg.mxu0
  %621 = vmatpush.bf16.msra.mxu0 %v464
  %622 = vmatpush.bf16.msra.mxu0 %v463
  %623 = vmatpush.bf16.msra.mxu0 %v462
  %624 = vmatpush.bf16.msra.mxu0 %v461
  %625 = vmatpush.bf16.msra.mxu0 %v460
  %626 = vmatpush.bf16.msra.mxu0 %v459
  %627 = vmatpush.bf16.msra.mxu0 %v458
  %628 = vmatpush.bf16.msra.mxu0 %v457
  %629 = vmatmul.bf16.gmra.mxu0 %v236
  %v630 = vpop.f32.mrf.mxu0
  %v631 = vadd.f32 %v588, %v630
  %v632 = vpop.f32.mrf.mxu0
  %v633 = vadd.f32 %v590, %v632
  %634 = vmatmul.bf16.gmra.mxu0 %v241
  %v635 = vpop.f32.mrf.mxu0
  %v636 = vadd.f32 %v593, %v635
  %v637 = vpop.f32.mrf.mxu0
  %v638 = vadd.f32 %v595, %v637
  %639 = vmatmul.bf16.gmra.mxu0 %v246
  %v640 = vpop.f32.mrf.mxu0
  %v641 = vadd.f32 %v598, %v640
  %v642 = vpop.f32.mrf.mxu0
  %v643 = vadd.f32 %v600, %v642
  %644 = vmatmul.bf16.gmra.mxu0 %v251
  %v645 = vpop.f32.mrf.mxu0
  %v646 = vadd.f32 %v603, %v645
  %v647 = vpop.f32.mrf.mxu0
  %v648 = vadd.f32 %v605, %v647
  %649 = vmatmul.bf16.gmra.mxu0 %v256
  %v650 = vpop.f32.mrf.mxu0
  %v651 = vadd.f32 %v608, %v650
  %v652 = vpop.f32.mrf.mxu0
  %v653 = vadd.f32 %v610, %v652
  %654 = vmatmul.bf16.gmra.mxu0 %v261
  %v655 = vpop.f32.mrf.mxu0
  %v656 = vadd.f32 %v613, %v655
  %v657 = vpop.f32.mrf.mxu0
  %v658 = vadd.f32 %v615, %v657
  %659 = vmatmul.bf16.gmra.mxu0 %v266
  %v660 = vpop.f32.mrf.mxu0
  %v661 = vadd.f32 %v618, %v660
  %v662 = vpop.f32.mrf.mxu0
  %663 = vdwg.mxu0
  %664 = vmatpush.bf16.msra.mxu0 %v472
  %665 = vmatpush.bf16.msra.mxu0 %v471
  %666 = vmatpush.bf16.msra.mxu0 %v470
  %667 = vmatpush.bf16.msra.mxu0 %v469
  %668 = vmatpush.bf16.msra.mxu0 %v468
  %669 = vmatpush.bf16.msra.mxu0 %v467
  %670 = vmatpush.bf16.msra.mxu0 %v466
  %671 = vmatpush.bf16.msra.mxu0 %v465
  %672 = vmatmul.bf16.gmra.mxu0 %v237
  %v673 = vpop.f32.mrf.mxu0
  %v674 = vadd.f32 %v631, %v673
  %v675 = vpop.f32.mrf.mxu0
  %v676 = vadd.f32 %v633, %v675
  %677 = vmatmul.bf16.gmra.mxu0 %v242
  %v678 = vpop.f32.mrf.mxu0
  %v679 = vadd.f32 %v636, %v678
  %v680 = vpop.f32.mrf.mxu0
  %v681 = vadd.f32 %v638, %v680
  %682 = vmatmul.bf16.gmra.mxu0 %v247
  %v683 = vpop.f32.mrf.mxu0
  %v684 = vadd.f32 %v641, %v683
  %v685 = vpop.f32.mrf.mxu0
  %v686 = vadd.f32 %v643, %v685
  %687 = vmatmul.bf16.gmra.mxu0 %v252
  %v688 = vpop.f32.mrf.mxu0
  %v689 = vadd.f32 %v646, %v688
  %v690 = vpop.f32.mrf.mxu0
  %v691 = vadd.f32 %v648, %v690
  %692 = vmatmul.bf16.gmra.mxu0 %v257
  %v693 = vpop.f32.mrf.mxu0
  %v694 = vadd.f32 %v651, %v693
  %v695 = vpop.f32.mrf.mxu0
  %v696 = vadd.f32 %v653, %v695
  %697 = vmatmul.bf16.gmra.mxu0 %v262
  %v698 = vpop.f32.mrf.mxu0
  %v699 = vadd.f32 %v656, %v698
  %v700 = vpop.f32.mrf.mxu0
  %v701 = vadd.f32 %v658, %v700
  %702 = vmatmul.bf16.gmra.mxu0 %v267
  %v703 = vpop.f32.mrf.mxu0
  %v704 = vadd.f32 %v661, %v703
  %v705 = vpop.f32.mrf.mxu0
  %706 = vdwg.mxu0
  %707 = vmatpush.bf16.msra.mxu0 0
  %708 = vmatpush.bf16.msra.mxu0 0
  %709 = vmatpush.bf16.msra.mxu0 0
  %710 = vmatpush.bf16.msra.mxu0 0
  %711 = vmatpush.bf16.msra.mxu0 %v476
  %712 = vmatpush.bf16.msra.mxu0 %v475
  %713 = vmatpush.bf16.msra.mxu0 %v474
  %714 = vmatpush.bf16.msra.mxu0 %v473
  %715 = vmatmul.bf16.gmra.mxu0 %v515
  %v716 = vpop.f32.mrf.mxu0
  %v717 = vadd.f32 %v674, %v716
  %v718 = vpop.f32.mrf.mxu0
  %v719 = vadd.f32 %v676, %v718
  %720 = vmatmul.bf16.gmra.mxu0 %v518
  %v721 = vpop.f32.mrf.mxu0
  %v722 = vadd.f32 %v679, %v721
  %v723 = vpop.f32.mrf.mxu0
  %v724 = vadd.f32 %v681, %v723
  %725 = vmatmul.bf16.gmra.mxu0 %v521
  %v726 = vpop.f32.mrf.mxu0
  %v727 = vadd.f32 %v684, %v726
  %v728 = vpop.f32.mrf.mxu0
  %v729 = vadd.f32 %v686, %v728
  %730 = vmatmul.bf16.gmra.mxu0 %v524
  %v731 = vpop.f32.mrf.mxu0
  %v732 = vadd.f32 %v689, %v731
  %v733 = vpop.f32.mrf.mxu0
  %v734 = vadd.f32 %v691, %v733
  %735 = vmatmul.bf16.gmra.mxu0 %v527
  %v736 = vpop.f32.mrf.mxu0
  %v737 = vadd.f32 %v694, %v736
  %v738 = vpop.f32.mrf.mxu0
  %v739 = vadd.f32 %v696, %v738
  %740 = vmatmul.bf16.gmra.mxu0 %v530
  %v741 = vpop.f32.mrf.mxu0
  %v742 = vadd.f32 %v699, %v741
  %v743 = vpop.f32.mrf.mxu0
  %v744 = vadd.f32 %v701, %v743
  %745 = vmatmul.bf16.gmra.mxu0 %v533
  %v746 = vpop.f32.mrf.mxu0
  %v747 = vadd.f32 %v704, %v746
  %v748 = vpop.f32.mrf.mxu0
  %749 = vdwg.mxu0
  %v750 = vmax.f32 %v717, 0.0
  %v751 = vmax.f32 %v719, 0.0
  %v752 = vmax.f32 %v722, 0.0
  %v753 = vmax.f32 %v724, 0.0
  %v754 = vmax.f32 %v727, 0.0
  %v755 = vmax.f32 %v729, 0.0
  %v756 = vmax.f32 %v732, 0.0
  %v757 = vmax.f32 %v734, 0.0
  %v758 = vmax.f32 %v737, 0.0
  %v759 = vmax.f32 %v739, 0.0
  %v760 = vmax.f32 %v742, 0.0
  %v761 = vmax.f32 %v744, 0.0
  %v762 = vmax.f32 %v747, 0.0
  %v763 = vpack.c.bf16 %v750, %v750
  %v764 = vpack.c.bf16 %v751, %v751
  %v765 = vpack.c.bf16 %v752, %v752
  %v766 = vpack.c.bf16 %v753, %v753
  %v767 = vpack.c.bf16 %v754, %v754
  %v768 = vpack.c.bf16 %v755, %v755
  %v769 = vpack.c.bf16 %v756, %v756
  %v770 = vpack.c.bf16 %v757, %v757
  %v771 = vpack.c.bf16 %v758, %v758
  %v772 = vpack.c.bf16 %v759, %v759
  %v773 = vpack.c.bf16 %v760, %v760
  %v774 = vpack.c.bf16 %v761, %v761
  %v775 = vpack.c.bf16 %v762, %v762
  %vm776 = vcmask 519168
  %777 = vst.msk [vmem:[%s3] sm:$0xf] %vm776, %v763
  %778 = vst.msk [vmem:[%s3 + $0x4] sm:$0xf] %vm776, %v764
  %779 = vst.msk [vmem:[%s3 + $0x8] sm:$0xf] %vm776, %v765
  %780 = vst.msk [vmem:[%s3 + $0xc] sm:$0xf] %vm776, %v766
  %781 = vst.msk [vmem:[%s3 + $0x10] sm:$0xf] %vm776, %v767
  %782 = vst.msk [vmem:[%s3 + $0x14] sm:$0xf] %vm776, %v768
  %783 = vst.msk [vmem:[%s3 + $0x18] sm:$0xf] %vm776, %v769
  %784 = vst.msk [vmem:[%s3 + $0x1c] sm:$0xf] %vm776, %v770
  %785 = vst.msk [vmem:[%s3 + $0x20] sm:$0xf] %vm776, %v771
  %786 = vst.msk [vmem:[%s3 + $0x24] sm:$0xf] %vm776, %v772
  %787 = vst.msk [vmem:[%s3 + $0x28] sm:$0xf] %vm776, %v773
  %788 = vst.msk [vmem:[%s3 + $0x2c] sm:$0xf] %vm776, %v774
  %vm789 = vcmask 516096
  %790 = vst.msk [vmem:[%s3 + $0x30] sm:$0x1] %vm789, %v775
  // Predicated region
  $region14: #{dueling_dqn_forward.6} parent=0 // pred_check
    _
  $region15: #{dueling_dqn_forward.6} parent=0 // pred_check_branch
    %792 = sbr.rel (0) target = $region17
  $region16: #{dueling_dqn_forward.6} parent=0 // pred_region
    _
  $region17: #{dueling_dqn_forward.6} parent=0 // pred_fallthru
    _
  // Predicated region
  $region18: #{dueling_dqn_forward.6} parent=0 // pred_check
    _
  $region19: #{dueling_dqn_forward.6} parent=0 // pred_check_branch
    %794 = sbr.rel (0) target = $region21
  $region20: #{dueling_dqn_forward.6} parent=0 // pred_region
    _
  $region21: #{dueling_dqn_forward.6} parent=0 // pred_fallthru
    _

// kernel: dueling_dqn_forward.7
$region0: #{dueling_dqn_forward.7}
  #allocation0 [shape = 'u32[]', space=smem, size = 0x4, offset = 0x4, fixed_abs, tag = 'smem constant byte address 0x4 - core index']
  #allocation1 [shape = 'u32[72,128]{1,0:T(1,128)}', space=vmem, size = 0x9000, scoped, tag = 'internal scratch']
  %s0 = inlined_call_operand.vmem [shape: bf16[2,3136], index: 0, kind: input, shape index: {}]
  %s1 = inlined_call_operand.vmem [shape: bf16[3136,1024], index: 1, kind: input, shape index: {}]
  %s2 = inlined_call_operand.vmem [shape: f32[1,1024], index: 2, kind: input, shape index: {}]
  %s3 = inlined_call_operand.vmem [shape: bf16[1024,4], index: 3, kind: input, shape index: {}]
  %s4 = inlined_call_operand.vmem [shape: f32[4,2,4], index: 4, kind: output, shape index: {}]
  %s5 = sld [smem:[#allocation0]]
  $region101: #{dueling_dqn_forward.7} parent=0
    _
  %s7 = ssub.s32 1, %s5
  %s8 = scalar_select 0, %s7, %s5
  $region1: #{dueling_dqn_forward.7} parent=0
    #allocation2 [shape = 'u8[3211264]{0}', space=vmem, size = 0x310000, scoped, tag = 'input window, operand 1']
    loop: start=0, step=1, limit=6
    $region2: #{dueling_dqn_forward.7} parent=1 // loop_pre_header
      _
    $region3: #{dueling_dqn_forward.7} parent=1 // loop_header
      %s10 = sphi 0, %s14
      %p11 = scmp.ge.s32.totalorder %s10, 6
      %s17 = sphi 0, %s29
      %s18 = sphi 0, %s25
      %s19 = sphi 0, %s17
      %s20 = sphi 0, %s18
      %s21 = sphi 0, %s19
      %s22 = sphi 0, %s20
      %s32 = sphi 0, %s34
      %s35 = sphi 0, %s32
      %s36 = sphi 0, %s35
      %s52 = sphi 0, %s36
      %s58 = sphi 0, %s60
      %s61 = sphi 0, %s58
      %s62 = sphi 0, %s61
      %s78 = sphi 0, %s62
      %s84 = sphi 0, %s86
      %s87 = sphi 0, %s84
      %s88 = sphi 0, %s87
      %s104 = sphi 0, %s88
      %s110 = sphi 0, %s112
      %s113 = sphi 0, %s110
      %s114 = sphi 0, %s113
      %s130 = sphi 0, %s114
      %s138 = sphi 0, %s140
      %s141 = sphi 0, %s138
      %s142 = sphi 0, %s141
      %s158 = sphi 0, %s142
    $region4: #{dueling_dqn_forward.7} parent=1 // loop_header_branch
      %13 = sbr.rel (%p11) target = $region8
    $region5: #{dueling_dqn_forward.7} parent=1 // loop_body
      %s15 = ssub.s32 %s10, 1
      %s16 = ssub.s32 %s10, 2
      %s23 = sadd.s32 1, %s18
      %p24 = scmp.ge.s32.totalorder %s23, 4
      %s25 = scalar_select %p24, 0, %s23
      %s26 = sadd.s32 1, %s17
      %s27 = scalar_select %p24, %s26, %s17
      %p28 = scmp.ge.s32.totalorder %s27, 1
      %s29 = scalar_select %p28, 0, %s27
      %s30 = ssub.s32 %s17, %s29
      %p31 = scmp.eq.s32.totalorder %s30, 0
      %s33 = sadd.s32 %s32, 1
      %s34 = scalar_select %p31, %s32, %s33
      %p37 = pneg %p31
      %p38 = scmp.eq.s32.totalorder %s10, 3
      %p39 = por %p37, %p38
      %p40 = scmp.ne.s32.totalorder %s32, %s35
      %p41 = scmp.eq.s32.totalorder %s10, 0
      %p42 = por %p40, %p41
      %p43 = scmp.ne.s32.totalorder %s32, %s35
      %p44 = scmp.eq.s32.totalorder %s15, 3
      %p45 = por %p43, %p44
      %p46 = scmp.ne.s32.totalorder %s35, %s36
      %p47 = scmp.eq.s32.totalorder %s15, 0
      %p48 = por %p46, %p47
      %p49 = scmp.ne.s32.totalorder %s35, %s36
      %p50 = scmp.eq.s32.totalorder %s16, 3
      %p51 = por %p49, %p50
      %p53 = scmp.ne.s32.totalorder %s36, %s52
      %p54 = scmp.eq.s32.totalorder %s16, 0
      %p55 = por %p53, %p54
      %s56 = ssub.s32 %s18, %s25
      %p57 = scmp.eq.s32.totalorder %s56, 0
      %s59 = sadd.s32 %s58, 1
      %s60 = scalar_select %p57, %s58, %s59
      %p63 = pneg %p57
      %p64 = scmp.eq.s32.totalorder %s10, 3
      %p65 = por %p63, %p64
      %p66 = scmp.ne.s32.totalorder %s58, %s61
      %p67 = scmp.eq.s32.totalorder %s10, 0
      %p68 = por %p66, %p67
      %p69 = scmp.ne.s32.totalorder %s58, %s61
      %p70 = scmp.eq.s32.totalorder %s15, 3
      %p71 = por %p69, %p70
      %p72 = scmp.ne.s32.totalorder %s61, %s62
      %p73 = scmp.eq.s32.totalorder %s15, 0
      %p74 = por %p72, %p73
      %p75 = scmp.ne.s32.totalorder %s61, %s62
      %p76 = scmp.eq.s32.totalorder %s16, 3
      %p77 = por %p75, %p76
      %p79 = scmp.ne.s32.totalorder %s62, %s78
      %p80 = scmp.eq.s32.totalorder %s16, 0
      %p81 = por %p79, %p80
      %s82 = ssub.s32 %s18, %s25
      %p83 = scmp.eq.s32.totalorder %s82, 0
      %s85 = sadd.s32 %s84, 1
      %s86 = scalar_select %p83, %s84, %s85
      %p89 = pneg %p83
      %p90 = scmp.eq.s32.totalorder %s10, 3
      %p91 = por %p89, %p90
      %p92 = scmp.ne.s32.totalorder %s84, %s87
      %p93 = scmp.eq.s32.totalorder %s10, 0
      %p94 = por %p92, %p93
      %p95 = scmp.ne.s32.totalorder %s84, %s87
      %p96 = scmp.eq.s32.totalorder %s15, 3
      %p97 = por %p95, %p96
      %p98 = scmp.ne.s32.totalorder %s87, %s88
      %p99 = scmp.eq.s32.totalorder %s15, 0
      %p100 = por %p98, %p99
      %p101 = scmp.ne.s32.totalorder %s87, %s88
      %p102 = scmp.eq.s32.totalorder %s16, 3
      %p103 = por %p101, %p102
      %p105 = scmp.ne.s32.totalorder %s88, %s104
      %p106 = scmp.eq.s32.totalorder %s16, 0
      %p107 = por %p105, %p106
      %s108 = ssub.s32 %s18, %s25
      %p109 = scmp.eq.s32.totalorder %s108, 0
      %s111 = sadd.s32 %s110, 1
      %s112 = scalar_select %p109, %s110, %s111
      %p115 = pneg %p109
      %p116 = scmp.eq.s32.totalorder %s10, 3
      %p117 = por %p115, %p116
      %p118 = scmp.ne.s32.totalorder %s110, %s113
      %p119 = scmp.eq.s32.totalorder %s10, 0
      %p120 = por %p118, %p119
      %p121 = scmp.ne.s32.totalorder %s110, %s113
      %p122 = scmp.eq.s32.totalorder %s15, 3
      %p123 = por %p121, %p122
      %p124 = scmp.ne.s32.totalorder %s113, %s114
      %p125 = scmp.eq.s32.totalorder %s15, 0
      %p126 = por %p124, %p125
      %p127 = scmp.ne.s32.totalorder %s113, %s114
      %p128 = scmp.eq.s32.totalorder %s16, 3
      %p129 = por %p127, %p128
      %p131 = scmp.ne.s32.totalorder %s114, %s130
      %p132 = scmp.eq.s32.totalorder %s16, 0
      %p133 = por %p131, %p132
      %s134 = ssub.s32 %s18, %s25
      %s135 = ssub.s32 %s17, %s29
      %s136 = sor.u32 %s134, %s135
      %p137 = scmp.eq.s32.totalorder %s136, 0
      %s139 = sadd.s32 %s138, 1
      %s140 = scalar_select %p137, %s138, %s139
      %p143 = pneg %p137
      %p144 = scmp.eq.s32.totalorder %s10, 3
      %p145 = por %p143, %p144
      %p146 = scmp.ne.s32.totalorder %s138, %s141
      %p147 = scmp.eq.s32.totalorder %s10, 0
      %p148 = por %p146, %p147
      %p149 = scmp.ne.s32.totalorder %s138, %s141
      %p150 = scmp.eq.s32.totalorder %s15, 3
      %p151 = por %p149, %p150
      %p152 = scmp.ne.s32.totalorder %s141, %s142
      %p153 = scmp.eq.s32.totalorder %s15, 0
      %p154 = por %p152, %p153
      %p155 = scmp.ne.s32.totalorder %s141, %s142
      %p156 = scmp.eq.s32.totalorder %s16, 3
      %p157 = por %p155, %p156
      %p159 = scmp.ne.s32.totalorder %s142, %s158
      %p160 = scmp.eq.s32.totalorder %s16, 0
      %p161 = por %p159, %p160
      %p162 = scmp.le.s32.totalorder 1, %s10
      %p163 = scmp.lt.s32.totalorder %s10, 5
      %p164 = pnand %p162, %p163
      %p165 = pneg %p164
      // Predicated region
      $region9: #{dueling_dqn_forward.7} parent=5 // pred_check
        _
      $region10: #{dueling_dqn_forward.7} parent=5 // pred_check_branch
        %167 = sbr.rel (%p164) target = $region12
      $region11: #{dueling_dqn_forward.7} parent=5 // pred_region
        %s168 = ssub.s32 %s10, 1
        // Predicated region
        $region13: #{dueling_dqn_forward.7} parent=11 // pred_check
          %p169 = pneg %p48
        $region14: #{dueling_dqn_forward.7} parent=11 // pred_check_branch
          %171 = sbr.rel (%p169) target = $region16
        $region15: #{dueling_dqn_forward.7} parent=11 // pred_region
          %p172 = scmp.lt.s32.totalorder %s19, 0
          %s173 = scalar_select %p172, %s19, 0
          %s174 = smul.addr %s173, 25
          %s175 = scalar_lea.vmem %s0, %s174
        $region16: #{dueling_dqn_forward.7} parent=11 // pred_fallthru
          _
      $region12: #{dueling_dqn_forward.7} parent=5 // pred_fallthru
        _
      %p176 = scmp.lt.s32.totalorder %s10, 4
      // Predicated region
      $region17: #{dueling_dqn_forward.7} parent=5 // pred_check
        %p177 = pneg %p176
      $region18: #{dueling_dqn_forward.7} parent=5 // pred_check_branch
        %179 = sbr.rel (%p177) target = $region20
      $region19: #{dueling_dqn_forward.7} parent=5 // pred_region
        // Predicated region
        $region21: #{dueling_dqn_forward.7} parent=19 // pred_check
          %p180 = pneg %p68
        $region22: #{dueling_dqn_forward.7} parent=19 // pred_check_branch
          %182 = sbr.rel (%p180) target = $region24
        $region23: #{dueling_dqn_forward.7} parent=19 // pred_region
          %s183 = sand.u32 %s58, 1
          %s184 = sand.u32 %s58, 1
          %s185 = smul.addr %s184, 3136
          %s186 = scalar_lea.vmem [#allocation2], %s185
          %s187 = smul.u32 2, %s18
          %s188 = smul.addr %s187, 4
          %s189 = scalar_lea.vmem %s1, %s188
          // Predicated region
          $region25: #{dueling_dqn_forward.7} parent=23 // pred_check
            _
          $region26: #{dueling_dqn_forward.7} parent=23 // pred_check_branch
            %191 = sbr.rel (0) target = $region28
          $region27: #{dueling_dqn_forward.7} parent=23 // pred_region
            // Predicated region
            $region29: #{dueling_dqn_forward.7} parent=27 // pred_check
              _
            $region30: #{dueling_dqn_forward.7} parent=27 // pred_check_branch
              %193 = sbr.rel (0) target = $region32
            $region31: #{dueling_dqn_forward.7} parent=27 // pred_region
              // Predicated region
              $region44: #{dueling_dqn_forward.7} parent=31 // pred_check
                _
              $region45: #{dueling_dqn_forward.7} parent=31 // pred_check_branch
                %991 = sbr.rel (0) target = $region47
              $region46: #{dueling_dqn_forward.7} parent=31 // pred_region
                loop: start=0, step=1, limit=1
                $region48: #{dueling_dqn_forward.7} parent=46 // loop_pre_header
                  _
                $region49: #{dueling_dqn_forward.7} parent=46 // loop_header
                  %s993 = sphi 0, %s997
                  %p994 = scmp.ge.s32.totalorder %s993, 1
                  %s998 = sphi 0, %s1787
                  %s999 = sphi %s189, %s1790
                  %s1000 = sphi %s186, %s1791
                $region50: #{dueling_dqn_forward.7} parent=46 // loop_header_branch
                  %996 = sbr.rel (%p994) target = $region54
                $region51: #{dueling_dqn_forward.7} parent=46 // loop_body
                  %v1001 = vld [vmem:[%s999] sm:$0xff]
                  %1002 = vst [vmem:[%s1000] sm:$0xff] %v1001
                  %v1003 = vld [vmem:[%s999 + $0x20] sm:$0xff]
                  %1004 = vst [vmem:[%s1000 + $0x8] sm:$0xff] %v1003
                  %v1005 = vld [vmem:[%s999 + $0x40] sm:$0xff]
                  %1006 = vst [vmem:[%s1000 + $0x10] sm:$0xff] %v1005
                  %v1007 = vld [vmem:[%s999 + $0x60] sm:$0xff]
                  %1008 = vst [vmem:[%s1000 + $0x18] sm:$0xff] %v1007
                  %v1009 = vld [vmem:[%s999 + $0x80] sm:$0xff]
                  %1010 = vst [vmem:[%s1000 + $0x20] sm:$0xff] %v1009
                  %v1011 = vld [vmem:[%s999 + $0xa0] sm:$0xff]
                  %1012 = vst [vmem:[%s1000 + $0x28] sm:$0xff] %v1011
                  %v1013 = vld [vmem:[%s999 + $0xc0] sm:$0xff]
                  %1014 = vst [vmem:[%s1000 + $0x30] sm:$0xff] %v1013
                  %v1015 = vld [vmem:[%s999 + $0xe0] sm:$0xff]
                  %1016 = vst [vmem:[%s1000 + $0x38] sm:$0xff] %v1015
                  %v1017 = vld [vmem:[%s999 + $0x100] sm:$0xff]
                  %1018 = vst [vmem:[%s1000 + $0x40] sm:$0xff] %v1017
                  %v1019 = vld [vmem:[%s999 + $0x120] sm:$0xff]
                  %1020 = vst [vmem:[%s1000 + $0x48] sm:$0xff] %v1019
                  %v1021 = vld [vmem:[%s999 + $0x140] sm:$0xff]
                  %1022 = vst [vmem:[%s1000 + $0x50] sm:$0xff] %v1021
                  %v1023 = vld [vmem:[%s999 + $0x160] sm:$0xff]
                  %1024 = vst [vmem:[%s1000 + $0x58] sm:$0xff] %v1023
                  %v1025 = vld [vmem:[%s999 + $0x180] sm:$0xff]
                  %1026 = vst [vmem:[%s1000 + $0x60] sm:$0xff] %v1025
                  %v1027 = vld [vmem:[%s999 + $0x1a0] sm:$0xff]
                  %1028 = vst [vmem:[%s1000 + $0x68] sm:$0xff] %v1027
                  %v1029 = vld [vmem:[%s999 + $0x1c0] sm:$0xff]
                  %1030 = vst [vmem:[%s1000 + $0x70] sm:$0xff] %v1029
                  %v1031 = vld [vmem:[%s999 + $0x1e0] sm:$0xff]
                  %1032 = vst [vmem:[%s1000 + $0x78] sm:$0xff] %v1031
                  %v1033 = vld [vmem:[%s999 + $0x200] sm:$0xff]
                  %1034 = vst [vmem:[%s1000 + $0x80] sm:$0xff] %v1033
                  %v1035 = vld [vmem:[%s999 + $0x220] sm:$0xff]
                  %1036 = vst [vmem:[%s1000 + $0x88] sm:$0xff] %v1035
                  %v1037 = vld [vmem:[%s999 + $0x240] sm:$0xff]
                  %1038 = vst [vmem:[%s1000 + $0x90] sm:$0xff] %v1037
                  %v1039 = vld [vmem:[%s999 + $0x260] sm:$0xff]
                  %1040 = vst [vmem:[%s1000 + $0x98] sm:$0xff] %v1039
                  %v1041 = vld [vmem:[%s999 + $0x280] sm:$0xff]
                  %1042 = vst [vmem:[%s1000 + $0xa0] sm:$0xff] %v1041
                  %v1043 = vld [vmem:[%s999 + $0x2a0] sm:$0xff]
                  %1044 = vst [vmem:[%s1000 + $0xa8] sm:$0xff] %v1043
                  %v1045 = vld [vmem:[%s999 + $0x2c0] sm:$0xff]
                  %1046 = vst [vmem:[%s1000 + $0xb0] sm:$0xff] %v1045
                  %v1047 = vld [vmem:[%s999 + $0x2e0] sm:$0xff]
                  %1048 = vst [vmem:[%s1000 + $0xb8] sm:$0xff] %v1047
                  %v1049 = vld [vmem:[%s999 + $0x300] sm:$0xff]
                  %1050 = vst [vmem:[%s1000 + $0xc0] sm:$0xff] %v1049
                  %v1051 = vld [vmem:[%s999 + $0x320] sm:$0xff]
                  %1052 = vst [vmem:[%s1000 + $0xc8] sm:$0xff] %v1051
                  %v1053 = vld [vmem:[%s999 + $0x340] sm:$0xff]
                  %1054 = vst [vmem:[%s1000 + $0xd0] sm:$0xff] %v1053
                  %v1055 = vld [vmem:[%s999 + $0x360] sm:$0xff]
                  %1056 = vst [vmem:[%s1000 + $0xd8] sm:$0xff] %v1055
                  %v1057 = vld [vmem:[%s999 + $0x380] sm:$0xff]
                  %1058 = vst [vmem:[%s1000 + $0xe0] sm:$0xff] %v1057
                  %v1059 = vld [vmem:[%s999 + $0x3a0] sm:$0xff]
                  %1060 = vst [vmem:[%s1000 + $0xe8] sm:$0xff] %v1059
                  %v1061 = vld [vmem:[%s999 + $0x3c0] sm:$0xff]
                  %1062 = vst [vmem:[%s1000 + $0xf0] sm:$0xff] %v1061
                  %v1063 = vld [vmem:[%s999 + $0x3e0] sm:$0xff]
                  %1064 = vst [vmem:[%s1000 + $0xf8] sm:$0xff] %v1063
                  %v1065 = vld [vmem:[%s999 + $0x400] sm:$0xff]
                  %1066 = vst [vmem:[%s1000 + $0x100] sm:$0xff] %v1065
                  %v1067 = vld [vmem:[%s999 + $0x420] sm:$0xff]
                  %1068 = vst [vmem:[%s1000 + $0x108] sm:$0xff] %v1067
                  %v1069 = vld [vmem:[%s999 + $0x440] sm:$0xff]
                  %1070 = vst [vmem:[%s1000 + $0x110] sm:$0xff] %v1069
                  %v1071 = vld [vmem:[%s999 + $0x460] sm:$0xff]
                  %1072 = vst [vmem:[%s1000 + $0x118] sm:$0xff] %v1071
                  %v1073 = vld [vmem:[%s999 + $0x480] sm:$0xff]
                  %1074 = vst [vmem:[%s1000 + $0x120] sm:$0xff] %v1073
                  %v1075 = vld [vmem:[%s999 + $0x4a0] sm:$0xff]
                  %1076 = vst [vmem:[%s1000 + $0x128] sm:$0xff] %v1075
                  %v1077 = vld [vmem:[%s999 + $0x4c0] sm:$0xff]
                  %1078 = vst [vmem:[%s1000 + $0x130] sm:$0xff] %v1077
                  %v1079 = vld [vmem:[%s999 + $0x4e0] sm:$0xff]
                  %1080 = vst [vmem:[%s1000 + $0x138] sm:$0xff] %v1079
                  %v1081 = vld [vmem:[%s999 + $0x500] sm:$0xff]
                  %1082 = vst [vmem:[%s1000 + $0x140] sm:$0xff] %v1081
                  %v1083 = vld [vmem:[%s999 + $0x520] sm:$0xff]
                  %1084 = vst [vmem:[%s1000 + $0x148] sm:$0xff] %v1083
                  %v1085 = vld [vmem:[%s999 + $0x540] sm:$0xff]
                  %1086 = vst [vmem:[%s1000 + $0x150] sm:$0xff] %v1085
                  %v1087 = vld [vmem:[%s999 + $0x560] sm:$0xff]
                  %1088 = vst [vmem:[%s1000 + $0x158] sm:$0xff] %v1087
                  %v1089 = vld [vmem:[%s999 + $0x580] sm:$0xff]
                  %1090 = vst [vmem:[%s1000 + $0x160] sm:$0xff] %v1089
                  %v1091 = vld [vmem:[%s999 + $0x5a0] sm:$0xff]
                  %1092 = vst [vmem:[%s1000 + $0x168] sm:$0xff] %v1091
                  %v1093 = vld [vmem:[%s999 + $0x5c0] sm:$0xff]
                  %1094 = vst [vmem:[%s1000 + $0x170] sm:$0xff] %v1093
                  %v1095 = vld [vmem:[%s999 + $0x5e0] sm:$0xff]
                  %1096 = vst [vmem:[%s1000 + $0x178] sm:$0xff] %v1095
                  %v1097 = vld [vmem:[%s999 + $0x600] sm:$0xff]
                  %1098 = vst [vmem:[%s1000 + $0x180] sm:$0xff] %v1097
                  %v1099 = vld [vmem:[%s999 + $0x620] sm:$0xff]
                  %1100 = vst [vmem:[%s1000 + $0x188] sm:$0xff] %v1099
                  %v1101 = vld [vmem:[%s999 + $0x640] sm:$0xff]
                  %1102 = vst [vmem:[%s1000 + $0x190] sm:$0xff] %v1101
                  %v1103 = vld [vmem:[%s999 + $0x660] sm:$0xff]
                  %1104 = vst [vmem:[%s1000 + $0x198] sm:$0xff] %v1103
                  %v1105 = vld [vmem:[%s999 + $0x680] sm:$0xff]
                  %1106 = vst [vmem:[%s1000 + $0x1a0] sm:$0xff] %v1105
                  %v1107 = vld [vmem:[%s999 + $0x6a0] sm:$0xff]
                  %1108 = vst [vmem:[%s1000 + $0x1a8] sm:$0xff] %v1107
                  %v1109 = vld [vmem:[%s999 + $0x6c0] sm:$0xff]
                  %1110 = vst [vmem:[%s1000 + $0x1b0] sm:$0xff] %v1109
                  %v1111 = vld [vmem:[%s999 + $0x6e0] sm:$0xff]
                  %1112 = vst [vmem:[%s1000 + $0x1b8] sm:$0xff] %v1111
                  %v1113 = vld [vmem:[%s999 + $0x700] sm:$0xff]
                  %1114 = vst [vmem:[%s1000 + $0x1c0] sm:$0xff] %v1113
                  %v1115 = vld [vmem:[%s999 + $0x720] sm:$0xff]
                  %1116 = vst [vmem:[%s1000 + $0x1c8] sm:$0xff] %v1115
                  %v1117 = vld [vmem:[%s999 + $0x740] sm:$0xff]
                  %1118 = vst [vmem:[%s1000 + $0x1d0] sm:$0xff] %v1117
                  %v1119 = vld [vmem:[%s999 + $0x760] sm:$0xff]
                  %1120 = vst [vmem:[%s1000 + $0x1d8] sm:$0xff] %v1119
                  %v1121 = vld [vmem:[%s999 + $0x780] sm:$0xff]
                  %1122 = vst [vmem:[%s1000 + $0x1e0] sm:$0xff] %v1121
                  %v1123 = vld [vmem:[%s999 + $0x7a0] sm:$0xff]
                  %1124 = vst [vmem:[%s1000 + $0x1e8] sm:$0xff] %v1123
                  %v1125 = vld [vmem:[%s999 + $0x7c0] sm:$0xff]
                  %1126 = vst [vmem:[%s1000 + $0x1f0] sm:$0xff] %v1125
                  %v1127 = vld [vmem:[%s999 + $0x7e0] sm:$0xff]
                  %1128 = vst [vmem:[%s1000 + $0x1f8] sm:$0xff] %v1127
                  %v1129 = vld [vmem:[%s999 + $0x800] sm:$0xff]
                  %1130 = vst [vmem:[%s1000 + $0x200] sm:$0xff] %v1129
                  %v1131 = vld [vmem:[%s999 + $0x820] sm:$0xff]
                  %1132 = vst [vmem:[%s1000 + $0x208] sm:$0xff] %v1131
                  %v1133 = vld [vmem:[%s999 + $0x840] sm:$0xff]
                  %1134 = vst [vmem:[%s1000 + $0x210] sm:$0xff] %v1133
                  %v1135 = vld [vmem:[%s999 + $0x860] sm:$0xff]
                  %1136 = vst [vmem:[%s1000 + $0x218] sm:$0xff] %v1135
                  %v1137 = vld [vmem:[%s999 + $0x880] sm:$0xff]
                  %1138 = vst [vmem:[%s1000 + $0x220] sm:$0xff] %v1137
                  %v1139 = vld [vmem:[%s999 + $0x8a0] sm:$0xff]
                  %1140 = vst [vmem:[%s1000 + $0x228] sm:$0xff] %v1139
                  %v1141 = vld [vmem:[%s999 + $0x8c0] sm:$0xff]
                  %1142 = vst [vmem:[%s1000 + $0x230] sm:$0xff] %v1141
                  %v1143 = vld [vmem:[%s999 + $0x8e0] sm:$0xff]
                  %1144 = vst [vmem:[%s1000 + $0x238] sm:$0xff] %v1143
                  %v1145 = vld [vmem:[%s999 + $0x900] sm:$0xff]
                  %1146 = vst [vmem:[%s1000 + $0x240] sm:$0xff] %v1145
                  %v1147 = vld [vmem:[%s999 + $0x920] sm:$0xff]
                  %1148 = vst [vmem:[%s1000 + $0x248] sm:$0xff] %v1147
                  %v1149 = vld [vmem:[%s999 + $0x940] sm:$0xff]
                  %1150 = vst [vmem:[%s1000 + $0x250] sm:$0xff] %v1149
                  %v1151 = vld [vmem:[%s999 + $0x960] sm:$0xff]
                  %1152 = vst [vmem:[%s1000 + $0x258] sm:$0xff] %v1151
                  %v1153 = vld [vmem:[%s999 + $0x980] sm:$0xff]
                  %1154 = vst [vmem:[%s1000 + $0x260] sm:$0xff] %v1153
                  %v1155 = vld [vmem:[%s999 + $0x9a0] sm:$0xff]
                  %1156 = vst [vmem:[%s1000 + $0x268] sm:$0xff] %v1155
                  %v1157 = vld [vmem:[%s999 + $0x9c0] sm:$0xff]
                  %1158 = vst [vmem:[%s1000 + $0x270] sm:$0xff] %v1157
                  %v1159 = vld [vmem:[%s999 + $0x9e0] sm:$0xff]
                  %1160 = vst [vmem:[%s1000 + $0x278] sm:$0xff] %v1159
                  %v1161 = vld [vmem:[%s999 + $0xa00] sm:$0xff]
                  %1162 = vst [vmem:[%s1000 + $0x280] sm:$0xff] %v1161
                  %v1163 = vld [vmem:[%s999 + $0xa20] sm:$0xff]
                  %1164 = vst [vmem:[%s1000 + $0x288] sm:$0xff] %v1163
                  %v1165 = vld [vmem:[%s999 + $0xa40] sm:$0xff]
                  %1166 = vst [vmem:[%s1000 + $0x290] sm:$0xff] %v1165
                  %v1167 = vld [vmem:[%s999 + $0xa60] sm:$0xff]
                  %1168 = vst [vmem:[%s1000 + $0x298] sm:$0xff] %v1167
                  %v1169 = vld [vmem:[%s999 + $0xa80] sm:$0xff]
                  %1170 = vst [vmem:[%s1000 + $0x2a0] sm:$0xff] %v1169
                  %v1171 = vld [vmem:[%s999 + $0xaa0] sm:$0xff]
                  %1172 = vst [vmem:[%s1000 + $0x2a8] sm:$0xff] %v1171
                  %v1173 = vld [vmem:[%s999 + $0xac0] sm:$0xff]
                  %1174 = vst [vmem:[%s1000 + $0x2b0] sm:$0xff] %v1173
                  %v1175 = vld [vmem:[%s999 + $0xae0] sm:$0xff]
                  %1176 = vst [vmem:[%s1000 + $0x2b8] sm:$0xff] %v1175
                  %v1177 = vld [vmem:[%s999 + $0xb00] sm:$0xff]
                  %1178 = vst [vmem:[%s1000 + $0x2c0] sm:$0xff] %v1177
                  %v1179 = vld [vmem:[%s999 + $0xb20] sm:$0xff]
                  %1180 = vst [vmem:[%s1000 + $0x2c8] sm:$0xff] %v1179
                  %v1181 = vld [vmem:[%s999 + $0xb40] sm:$0xff]
                  %1182 = vst [vmem:[%s1000 + $0x2d0] sm:$0xff] %v1181
                  %v1183 = vld [vmem:[%s999 + $0xb60] sm:$0xff]
                  %1184 = vst [vmem:[%s1000 + $0x2d8] sm:$0xff] %v1183
                  %v1185 = vld [vmem:[%s999 + $0xb80] sm:$0xff]
                  %1186 = vst [vmem:[%s1000 + $0x2e0] sm:$0xff] %v1185
                  %v1187 = vld [vmem:[%s999 + $0xba0] sm:$0xff]
                  %1188 = vst [vmem:[%s1000 + $0x2e8] sm:$0xff] %v1187
                  %v1189 = vld [vmem:[%s999 + $0xbc0] sm:$0xff]
                  %1190 = vst [vmem:[%s1000 + $0x2f0] sm:$0xff] %v1189
                  %v1191 = vld [vmem:[%s999 + $0xbe0] sm:$0xff]
                  %1192 = vst [vmem:[%s1000 + $0x2f8] sm:$0xff] %v1191
                  %v1193 = vld [vmem:[%s999 + $0xc00] sm:$0xff]
                  %1194 = vst [vmem:[%s1000 + $0x300] sm:$0xff] %v1193
                  %v1195 = vld [vmem:[%s999 + $0xc20] sm:$0xff]
                  %1196 = vst [vmem:[%s1000 + $0x308] sm:$0xff] %v1195
                  %v1197 = vld [vmem:[%s999 + $0xc40] sm:$0xff]
                  %1198 = vst [vmem:[%s1000 + $0x310] sm:$0xff] %v1197
                  %v1199 = vld [vmem:[%s999 + $0xc60] sm:$0xff]
                  %1200 = vst [vmem:[%s1000 + $0x318] sm:$0xff] %v1199
                  %v1201 = vld [vmem:[%s999 + $0xc80] sm:$0xff]
                  %1202 = vst [vmem:[%s1000 + $0x320] sm:$0xff] %v1201
                  %v1203 = vld [vmem:[%s999 + $0xca0] sm:$0xff]
                  %1204 = vst [vmem:[%s1000 + $0x328] sm:$0xff] %v1203
                  %v1205 = vld [vmem:[%s999 + $0xcc0] sm:$0xff]
                  %1206 = vst [vmem:[%s1000 + $0x330] sm:$0xff] %v1205
                  %v1207 = vld [vmem:[%s999 + $0xce0] sm:$0xff]
                  %1208 = vst [vmem:[%s1000 + $0x338] sm:$0xff] %v1207
                  %v1209 = vld [vmem:[%s999 + $0xd00] sm:$0xff]
                  %1210 = vst [vmem:[%s1000 + $0x340] sm:$0xff] %v1209
                  %v1211 = vld [vmem:[%s999 + $0xd20] sm:$0xff]
                  %1212 = vst [vmem:[%s1000 + $0x348] sm:$0xff] %v1211
                  %v1213 = vld [vmem:[%s999 + $0xd40] sm:$0xff]
                  %1214 = vst [vmem:[%s1000 + $0x350] sm:$0xff] %v1213
                  %v1215 = vld [vmem:[%s999 + $0xd60] sm:$0xff]
                  %1216 = vst [vmem:[%s1000 + $0x358] sm:$0xff] %v1215
                  %v1217 = vld [vmem:[%s999 + $0xd80] sm:$0xff]
                  %1218 = vst [vmem:[%s1000 + $0x360] sm:$0xff] %v1217
                  %v1219 = vld [vmem:[%s999 + $0xda0] sm:$0xff]
                  %1220 = vst [vmem:[%s1000 + $0x368] sm:$0xff] %v1219
                  %v1221 = vld [vmem:[%s999 + $0xdc0] sm:$0xff]
                  %1222 = vst [vmem:[%s1000 + $0x370] sm:$0xff] %v1221
                  %v1223 = vld [vmem:[%s999 + $0xde0] sm:$0xff]
                  %1224 = vst [vmem:[%s1000 + $0x378] sm:$0xff] %v1223
                  %v1225 = vld [vmem:[%s999 + $0xe00] sm:$0xff]
                  %1226 = vst [vmem:[%s1000 + $0x380] sm:$0xff] %v1225
                  %v1227 = vld [vmem:[%s999 + $0xe20] sm:$0xff]
                  %1228 = vst [vmem:[%s1000 + $0x388] sm:$0xff] %v1227
                  %v1229 = vld [vmem:[%s999 + $0xe40] sm:$0xff]
                  %1230 = vst [vmem:[%s1000 + $0x390] sm:$0xff] %v1229
                  %v1231 = vld [vmem:[%s999 + $0xe60] sm:$0xff]
                  %1232 = vst [vmem:[%s1000 + $0x398] sm:$0xff] %v1231
                  %v1233 = vld [vmem:[%s999 + $0xe80] sm:$0xff]
                  %1234 = vst [vmem:[%s1000 + $0x3a0] sm:$0xff] %v1233
                  %v1235 = vld [vmem:[%s999 + $0xea0] sm:$0xff]
                  %1236 = vst [vmem:[%s1000 + $0x3a8] sm:$0xff] %v1235
                  %v1237 = vld [vmem:[%s999 + $0xec0] sm:$0xff]
                  %1238 = vst [vmem:[%s1000 + $0x3b0] sm:$0xff] %v1237
                  %v1239 = vld [vmem:[%s999 + $0xee0] sm:$0xff]
                  %1240 = vst [vmem:[%s1000 + $0x3b8] sm:$0xff] %v1239
                  %v1241 = vld [vmem:[%s999 + $0xf00] sm:$0xff]
                  %1242 = vst [vmem:[%s1000 + $0x3c0] sm:$0xff] %v1241
                  %v1243 = vld [vmem:[%s999 + $0xf20] sm:$0xff]
                  %1244 = vst [vmem:[%s1000 + $0x3c8] sm:$0xff] %v1243
                  %v1245 = vld [vmem:[%s999 + $0xf40] sm:$0xff]
                  %1246 = vst [vmem:[%s1000 + $0x3d0] sm:$0xff] %v1245
                  %v1247 = vld [vmem:[%s999 + $0xf60] sm:$0xff]
                  %1248 = vst [vmem:[%s1000 + $0x3d8] sm:$0xff] %v1247
                  %v1249 = vld [vmem:[%s999 + $0xf80] sm:$0xff]
                  %1250 = vst [vmem:[%s1000 + $0x3e0] sm:$0xff] %v1249
                  %v1251 = vld [vmem:[%s999 + $0xfa0] sm:$0xff]
                  %1252 = vst [vmem:[%s1000 + $0x3e8] sm:$0xff] %v1251
                  %v1253 = vld [vmem:[%s999 + $0xfc0] sm:$0xff]
                  %1254 = vst [vmem:[%s1000 + $0x3f0] sm:$0xff] %v1253
                  %v1255 = vld [vmem:[%s999 + $0xfe0] sm:$0xff]
                  %1256 = vst [vmem:[%s1000 + $0x3f8] sm:$0xff] %v1255
                  %v1257 = vld [vmem:[%s999 + $0x1000] sm:$0xff]
                  %1258 = vst [vmem:[%s1000 + $0x400] sm:$0xff] %v1257
                  %v1259 = vld [vmem:[%s999 + $0x1020] sm:$0xff]
                  %1260 = vst [vmem:[%s1000 + $0x408] sm:$0xff] %v1259
                  %v1261 = vld [vmem:[%s999 + $0x1040] sm:$0xff]
                  %1262 = vst [vmem:[%s1000 + $0x410] sm:$0xff] %v1261
                  %v1263 = vld [vmem:[%s999 + $0x1060] sm:$0xff]
                  %1264 = vst [vmem:[%s1000 + $0x418] sm:$0xff] %v1263
                  %v1265 = vld [vmem:[%s999 + $0x1080] sm:$0xff]
                  %1266 = vst [vmem:[%s1000 + $0x420] sm:$0xff] %v1265
                  %v1267 = vld [vmem:[%s999 + $0x10a0] sm:$0xff]
                  %1268 = vst [vmem:[%s1000 + $0x428] sm:$0xff] %v1267
                  %v1269 = vld [vmem:[%s999 + $0x10c0] sm:$0xff]
                  %1270 = vst [vmem:[%s1000 + $0x430] sm:$0xff] %v1269
                  %v1271 = vld [vmem:[%s999 + $0x10e0] sm:$0xff]
                  %1272 = vst [vmem:[%s1000 + $0x438] sm:$0xff] %v1271
                  %v1273 = vld [vmem:[%s999 + $0x1100] sm:$0xff]
                  %1274 = vst [vmem:[%s1000 + $0x440] sm:$0xff] %v1273
                  %v1275 = vld [vmem:[%s999 + $0x1120] sm:$0xff]
                  %1276 = vst [vmem:[%s1000 + $0x448] sm:$0xff] %v1275
                  %v1277 = vld [vmem:[%s999 + $0x1140] sm:$0xff]
                  %1278 = vst [vmem:[%s1000 + $0x450] sm:$0xff] %v1277
                  %v1279 = vld [vmem:[%s999 + $0x1160] sm:$0xff]
                  %1280 = vst [vmem:[%s1000 + $0x458] sm:$0xff] %v1279
                  %v1281 = vld [vmem:[%s999 + $0x1180] sm:$0xff]
                  %1282 = vst [vmem:[%s1000 + $0x460] sm:$0xff] %v1281
                  %v1283 = vld [vmem:[%s999 + $0x11a0] sm:$0xff]
                  %1284 = vst [vmem:[%s1000 + $0x468] sm:$0xff] %v1283
                  %v1285 = vld [vmem:[%s999 + $0x11c0] sm:$0xff]
                  %1286 = vst [vmem:[%s1000 + $0x470] sm:$0xff] %v1285
                  %v1287 = vld [vmem:[%s999 + $0x11e0] sm:$0xff]
                  %1288 = vst [vmem:[%s1000 + $0x478] sm:$0xff] %v1287
                  %v1289 = vld [vmem:[%s999 + $0x1200] sm:$0xff]
                  %1290 = vst [vmem:[%s1000 + $0x480] sm:$0xff] %v1289
                  %v1291 = vld [vmem:[%s999 + $0x1220] sm:$0xff]
                  %1292 = vst [vmem:[%s1000 + $0x488] sm:$0xff] %v1291
                  %v1293 = vld [vmem:[%s999 + $0x1240] sm:$0xff]
                  %1294 = vst [vmem:[%s1000 + $0x490] sm:$0xff] %v1293
                  %v1295 = vld [vmem:[%s999 + $0x1260] sm:$0xff]
                  %1296 = vst [vmem:[%s1000 + $0x498] sm:$0xff] %v1295
                  %v1297 = vld [vmem:[%s999 + $0x1280] sm:$0xff]
                  %1298 = vst [vmem:[%s1000 + $0x4a0] sm:$0xff] %v1297
                  %v1299 = vld [vmem:[%s999 + $0x12a0] sm:$0xff]
                  %1300 = vst [vmem:[%s1000 + $0x4a8] sm:$0xff] %v1299
                  %v1301 = vld [vmem:[%s999 + $0x12c0] sm:$0xff]
                  %1302 = vst [vmem:[%s1000 + $0x4b0] sm:$0xff] %v1301
                  %v1303 = vld [vmem:[%s999 + $0x12e0] sm:$0xff]
                  %1304 = vst [vmem:[%s1000 + $0x4b8] sm:$0xff] %v1303
                  %v1305 = vld [vmem:[%s999 + $0x1300] sm:$0xff]
                  %1306 = vst [vmem:[%s1000 + $0x4c0] sm:$0xff] %v1305
                  %v1307 = vld [vmem:[%s999 + $0x1320] sm:$0xff]
                  %1308 = vst [vmem:[%s1000 + $0x4c8] sm:$0xff] %v1307
                  %v1309 = vld [vmem:[%s999 + $0x1340] sm:$0xff]
                  %1310 = vst [vmem:[%s1000 + $0x4d0] sm:$0xff] %v1309
                  %v1311 = vld [vmem:[%s999 + $0x1360] sm:$0xff]
                  %1312 = vst [vmem:[%s1000 + $0x4d8] sm:$0xff] %v1311
                  %v1313 = vld [vmem:[%s999 + $0x1380] sm:$0xff]
                  %1314 = vst [vmem:[%s1000 + $0x4e0] sm:$0xff] %v1313
                  %v1315 = vld [vmem:[%s999 + $0x13a0] sm:$0xff]
                  %1316 = vst [vmem:[%s1000 + $0x4e8] sm:$0xff] %v1315
                  %v1317 = vld [vmem:[%s999 + $0x13c0] sm:$0xff]
                  %1318 = vst [vmem:[%s1000 + $0x4f0] sm:$0xff] %v1317
                  %v1319 = vld [vmem:[%s999 + $0x13e0] sm:$0xff]
                  %1320 = vst [vmem:[%s1000 + $0x4f8] sm:$0xff] %v1319
                  %v1321 = vld [vmem:[%s999 + $0x1400] sm:$0xff]
                  %1322 = vst [vmem:[%s1000 + $0x500] sm:$0xff] %v1321
                  %v1323 = vld [vmem:[%s999 + $0x1420] sm:$0xff]
                  %1324 = vst [vmem:[%s1000 + $0x508] sm:$0xff] %v1323
                  %v1325 = vld [vmem:[%s999 + $0x1440] sm:$0xff]
                  %1326 = vst [vmem:[%s1000 + $0x510] sm:$0xff] %v1325
                  %v1327 = vld [vmem:[%s999 + $0x1460] sm:$0xff]
                  %1328 = vst [vmem:[%s1000 + $0x518] sm:$0xff] %v1327
                  %v1329 = vld [vmem:[%s999 + $0x1480] sm:$0xff]
                  %1330 = vst [vmem:[%s1000 + $0x520] sm:$0xff] %v1329
                  %v1331 = vld [vmem:[%s999 + $0x14a0] sm:$0xff]
                  %1332 = vst [vmem:[%s1000 + $0x528] sm:$0xff] %v1331
                  %v1333 = vld [vmem:[%s999 + $0x14c0] sm:$0xff]
                  %1334 = vst [vmem:[%s1000 + $0x530] sm:$0xff] %v1333
                  %v1335 = vld [vmem:[%s999 + $0x14e0] sm:$0xff]
                  %1336 = vst [vmem:[%s1000 + $0x538] sm:$0xff] %v1335
                  %v1337 = vld [vmem:[%s999 + $0x1500] sm:$0xff]
                  %1338 = vst [vmem:[%s1000 + $0x540] sm:$0xff] %v1337
                  %v1339 = vld [vmem:[%s999 + $0x1520] sm:$0xff]
                  %1340 = vst [vmem:[%s1000 + $0x548] sm:$0xff] %v1339
                  %v1341 = vld [vmem:[%s999 + $0x1540] sm:$0xff]
                  %1342 = vst [vmem:[%s1000 + $0x550] sm:$0xff] %v1341
                  %v1343 = vld [vmem:[%s999 + $0x1560] sm:$0xff]
                  %1344 = vst [vmem:[%s1000 + $0x558] sm:$0xff] %v1343
                  %v1345 = vld [vmem:[%s999 + $0x1580] sm:$0xff]
                  %1346 = vst [vmem:[%s1000 + $0x560] sm:$0xff] %v1345
                  %v1347 = vld [vmem:[%s999 + $0x15a0] sm:$0xff]
                  %1348 = vst [vmem:[%s1000 + $0x568] sm:$0xff] %v1347
                  %v1349 = vld [vmem:[%s999 + $0x15c0] sm:$0xff]
                  %1350 = vst [vmem:[%s1000 + $0x570] sm:$0xff] %v1349
                  %v1351 = vld [vmem:[%s999 + $0x15e0] sm:$0xff]
                  %1352 = vst [vmem:[%s1000 + $0x578] sm:$0xff] %v1351
                  %v1353 = vld [vmem:[%s999 + $0x1600] sm:$0xff]
                  %1354 = vst [vmem:[%s1000 + $0x580] sm:$0xff] %v1353
                  %v1355 = vld [vmem:[%s999 + $0x1620] sm:$0xff]
                  %1356 = vst [vmem:[%s1000 + $0x588] sm:$0xff] %v1355
                  %v1357 = vld [vmem:[%s999 + $0x1640] sm:$0xff]
                  %1358 = vst [vmem:[%s1000 + $0x590] sm:$0xff] %v1357
                  %v1359 = vld [vmem:[%s999 + $0x1660] sm:$0xff]
                  %1360 = vst [vmem:[%s1000 + $0x598] sm:$0xff] %v1359
                  %v1361 = vld [vmem:[%s999 + $0x1680] sm:$0xff]
                  %1362 = vst [vmem:[%s1000 + $0x5a0] sm:$0xff] %v1361
                  %v1363 = vld [vmem:[%s999 + $0x16a0] sm:$0xff]
                  %1364 = vst [vmem:[%s1000 + $0x5a8] sm:$0xff] %v1363
                  %v1365 = vld [vmem:[%s999 + $0x16c0] sm:$0xff]
                  %1366 = vst [vmem:[%s1000 + $0x5b0] sm:$0xff] %v1365
                  %v1367 = vld [vmem:[%s999 + $0x16e0] sm:$0xff]
                  %1368 = vst [vmem:[%s1000 + $0x5b8] sm:$0xff] %v1367
                  %v1369 = vld [vmem:[%s999 + $0x1700] sm:$0xff]
                  %1370 = vst [vmem:[%s1000 + $0x5c0] sm:$0xff] %v1369
                  %v1371 = vld [vmem:[%s999 + $0x1720] sm:$0xff]
                  %1372 = vst [vmem:[%s1000 + $0x5c8] sm:$0xff] %v1371
                  %v1373 = vld [vmem:[%s999 + $0x1740] sm:$0xff]
                  %1374 = vst [vmem:[%s1000 + $0x5d0] sm:$0xff] %v1373
                  %v1375 = vld [vmem:[%s999 + $0x1760] sm:$0xff]
                  %1376 = vst [vmem:[%s1000 + $0x5d8] sm:$0xff] %v1375
                  %v1377 = vld [vmem:[%s999 + $0x1780] sm:$0xff]
                  %1378 = vst [vmem:[%s1000 + $0x5e0] sm:$0xff] %v1377
                  %v1379 = vld [vmem:[%s999 + $0x17a0] sm:$0xff]
                  %1380 = vst [vmem:[%s1000 + $0x5e8] sm:$0xff] %v1379
                  %v1381 = vld [vmem:[%s999 + $0x17c0] sm:$0xff]
                  %1382 = vst [vmem:[%s1000 + $0x5f0] sm:$0xff] %v1381
                  %v1383 = vld [vmem:[%s999 + $0x17e0] sm:$0xff]
                  %1384 = vst [vmem:[%s1000 + $0x5f8] sm:$0xff] %v1383
                  %v1385 = vld [vmem:[%s999 + $0x1800] sm:$0xff]
                  %1386 = vst [vmem:[%s1000 + $0x600] sm:$0xff] %v1385
                  %v1387 = vld [vmem:[%s999 + $0x1820] sm:$0xff]
                  %1388 = vst [vmem:[%s1000 + $0x608] sm:$0xff] %v1387
                  %v1389 = vld [vmem:[%s999 + $0x1840] sm:$0xff]
                  %1390 = vst [vmem:[%s1000 + $0x610] sm:$0xff] %v1389
                  %v1391 = vld [vmem:[%s999 + $0x1860] sm:$0xff]
                  %1392 = vst [vmem:[%s1000 + $0x618] sm:$0xff] %v1391
                  %v1393 = vld [vmem:[%s999 + $0x1880] sm:$0xff]
                  %1394 = vst [vmem:[%s1000 + $0x620] sm:$0xff] %v1393
                  %v1395 = vld [vmem:[%s999 + $0x18a0] sm:$0xff]
                  %1396 = vst [vmem:[%s1000 + $0x628] sm:$0xff] %v1395
                  %v1397 = vld [vmem:[%s999 + $0x18c0] sm:$0xff]
                  %1398 = vst [vmem:[%s1000 + $0x630] sm:$0xff] %v1397
                  %v1399 = vld [vmem:[%s999 + $0x18e0] sm:$0xff]
                  %1400 = vst [vmem:[%s1000 + $0x638] sm:$0xff] %v1399
                  %v1401 = vld [vmem:[%s999 + $0x1900] sm:$0xff]
                  %1402 = vst [vmem:[%s1000 + $0x640] sm:$0xff] %v1401
                  %v1403 = vld [vmem:[%s999 + $0x1920] sm:$0xff]
                  %1404 = vst [vmem:[%s1000 + $0x648] sm:$0xff] %v1403
                  %v1405 = vld [vmem:[%s999 + $0x1940] sm:$0xff]
                  %1406 = vst [vmem:[%s1000 + $0x650] sm:$0xff] %v1405
                  %v1407 = vld [vmem:[%s999 + $0x1960] sm:$0xff]
                  %1408 = vst [vmem:[%s1000 + $0x658] sm:$0xff] %v1407
                  %v1409 = vld [vmem:[%s999 + $0x1980] sm:$0xff]
                  %1410 = vst [vmem:[%s1000 + $0x660] sm:$0xff] %v1409
                  %v1411 = vld [vmem:[%s999 + $0x19a0] sm:$0xff]
                  %1412 = vst [vmem:[%s1000 + $0x668] sm:$0xff] %v1411
                  %v1413 = vld [vmem:[%s999 + $0x19c0] sm:$0xff]
                  %1414 = vst [vmem:[%s1000 + $0x670] sm:$0xff] %v1413
                  %v1415 = vld [vmem:[%s999 + $0x19e0] sm:$0xff]
                  %1416 = vst [vmem:[%s1000 + $0x678] sm:$0xff] %v1415
                  %v1417 = vld [vmem:[%s999 + $0x1a00] sm:$0xff]
                  %1418 = vst [vmem:[%s1000 + $0x680] sm:$0xff] %v1417
                  %v1419 = vld [vmem:[%s999 + $0x1a20] sm:$0xff]
                  %1420 = vst [vmem:[%s1000 + $0x688] sm:$0xff] %v1419
                  %v1421 = vld [vmem:[%s999 + $0x1a40] sm:$0xff]
                  %1422 = vst [vmem:[%s1000 + $0x690] sm:$0xff] %v1421
                  %v1423 = vld [vmem:[%s999 + $0x1a60] sm:$0xff]
                  %1424 = vst [vmem:[%s1000 + $0x698] sm:$0xff] %v1423
                  %v1425 = vld [vmem:[%s999 + $0x1a80] sm:$0xff]
                  %1426 = vst [vmem:[%s1000 + $0x6a0] sm:$0xff] %v1425
                  %v1427 = vld [vmem:[%s999 + $0x1aa0] sm:$0xff]
                  %1428 = vst [vmem:[%s1000 + $0x6a8] sm:$0xff] %v1427
                  %v1429 = vld [vmem:[%s999 + $0x1ac0] sm:$0xff]
                  %1430 = vst [vmem:[%s1000 + $0x6b0] sm:$0xff] %v1429
                  %v1431 = vld [vmem:[%s999 + $0x1ae0] sm:$0xff]
                  %1432 = vst [vmem:[%s1000 + $0x6b8] sm:$0xff] %v1431
                  %v1433 = vld [vmem:[%s999 + $0x1b00] sm:$0xff]
                  %1434 = vst [vmem:[%s1000 + $0x6c0] sm:$0xff] %v1433
                  %v1435 = vld [vmem:[%s999 + $0x1b20] sm:$0xff]
                  %1436 = vst [vmem:[%s1000 + $0x6c8] sm:$0xff] %v1435
                  %v1437 = vld [vmem:[%s999 + $0x1b40] sm:$0xff]
                  %1438 = vst [vmem:[%s1000 + $0x6d0] sm:$0xff] %v1437
                  %v1439 = vld [vmem:[%s999 + $0x1b60] sm:$0xff]
                  %1440 = vst [vmem:[%s1000 + $0x6d8] sm:$0xff] %v1439
                  %v1441 = vld [vmem:[%s999 + $0x1b80] sm:$0xff]
                  %1442 = vst [vmem:[%s1000 + $0x6e0] sm:$0xff] %v1441
                  %v1443 = vld [vmem:[%s999 + $0x1ba0] sm:$0xff]
                  %1444 = vst [vmem:[%s1000 + $0x6e8] sm:$0xff] %v1443
                  %v1445 = vld [vmem:[%s999 + $0x1bc0] sm:$0xff]
                  %1446 = vst [vmem:[%s1000 + $0x6f0] sm:$0xff] %v1445
                  %v1447 = vld [vmem:[%s999 + $0x1be0] sm:$0xff]
                  %1448 = vst [vmem:[%s1000 + $0x6f8] sm:$0xff] %v1447
                  %v1449 = vld [vmem:[%s999 + $0x1c00] sm:$0xff]
                  %1450 = vst [vmem:[%s1000 + $0x700] sm:$0xff] %v1449
                  %v1451 = vld [vmem:[%s999 + $0x1c20] sm:$0xff]
                  %1452 = vst [vmem:[%s1000 + $0x708] sm:$0xff] %v1451
                  %v1453 = vld [vmem:[%s999 + $0x1c40] sm:$0xff]
                  %1454 = vst [vmem:[%s1000 + $0x710] sm:$0xff] %v1453
                  %v1455 = vld [vmem:[%s999 + $0x1c60] sm:$0xff]
                  %1456 = vst [vmem:[%s1000 + $0x718] sm:$0xff] %v1455
                  %v1457 = vld [vmem:[%s999 + $0x1c80] sm:$0xff]
                  %1458 = vst [vmem:[%s1000 + $0x720] sm:$0xff] %v1457
                  %v1459 = vld [vmem:[%s999 + $0x1ca0] sm:$0xff]
                  %1460 = vst [vmem:[%s1000 + $0x728] sm:$0xff] %v1459
                  %v1461 = vld [vmem:[%s999 + $0x1cc0] sm:$0xff]
                  %1462 = vst [vmem:[%s1000 + $0x730] sm:$0xff] %v1461
                  %v1463 = vld [vmem:[%s999 + $0x1ce0] sm:$0xff]
                  %1464 = vst [vmem:[%s1000 + $0x738] sm:$0xff] %v1463
                  %v1465 = vld [vmem:[%s999 + $0x1d00] sm:$0xff]
                  %1466 = vst [vmem:[%s1000 + $0x740] sm:$0xff] %v1465
                  %v1467 = vld [vmem:[%s999 + $0x1d20] sm:$0xff]
                  %1468 = vst [vmem:[%s1000 + $0x748] sm:$0xff] %v1467
                  %v1469 = vld [vmem:[%s999 + $0x1d40] sm:$0xff]
                  %1470 = vst [vmem:[%s1000 + $0x750] sm:$0xff] %v1469
                  %v1471 = vld [vmem:[%s999 + $0x1d60] sm:$0xff]
                  %1472 = vst [vmem:[%s1000 + $0x758] sm:$0xff] %v1471
                  %v1473 = vld [vmem:[%s999 + $0x1d80] sm:$0xff]
                  %1474 = vst [vmem:[%s1000 + $0x760] sm:$0xff] %v1473
                  %v1475 = vld [vmem:[%s999 + $0x1da0] sm:$0xff]
                  %1476 = vst [vmem:[%s1000 + $0x768] sm:$0xff] %v1475
                  %v1477 = vld [vmem:[%s999 + $0x1dc0] sm:$0xff]
                  %1478 = vst [vmem:[%s1000 + $0x770] sm:$0xff] %v1477
                  %v1479 = vld [vmem:[%s999 + $0x1de0] sm:$0xff]
                  %1480 = vst [vmem:[%s1000 + $0x778] sm:$0xff] %v1479
                  %v1481 = vld [vmem:[%s999 + $0x1e00] sm:$0xff]
                  %1482 = vst [vmem:[%s1000 + $0x780] sm:$0xff] %v1481
                  %v1483 = vld [vmem:[%s999 + $0x1e20] sm:$0xff]
                  %1484 = vst [vmem:[%s1000 + $0x788] sm:$0xff] %v1483
                  %v1485 = vld [vmem:[%s999 + $0x1e40] sm:$0xff]
                  %1486 = vst [vmem:[%s1000 + $0x790] sm:$0xff] %v1485
                  %v1487 = vld [vmem:[%s999 + $0x1e60] sm:$0xff]
                  %1488 = vst [vmem:[%s1000 + $0x798] sm:$0xff] %v1487
                  %v1489 = vld [vmem:[%s999 + $0x1e80] sm:$0xff]
                  %1490 = vst [vmem:[%s1000 + $0x7a0] sm:$0xff] %v1489
                  %v1491 = vld [vmem:[%s999 + $0x1ea0] sm:$0xff]
                  %1492 = vst [vmem:[%s1000 + $0x7a8] sm:$0xff] %v1491
                  %v1493 = vld [vmem:[%s999 + $0x1ec0] sm:$0xff]
                  %1494 = vst [vmem:[%s1000 + $0x7b0] sm:$0xff] %v1493
                  %v1495 = vld [vmem:[%s999 + $0x1ee0] sm:$0xff]
                  %1496 = vst [vmem:[%s1000 + $0x7b8] sm:$0xff] %v1495
                  %v1497 = vld [vmem:[%s999 + $0x1f00] sm:$0xff]
                  %1498 = vst [vmem:[%s1000 + $0x7c0] sm:$0xff] %v1497
                  %v1499 = vld [vmem:[%s999 + $0x1f20] sm:$0xff]
                  %1500 = vst [vmem:[%s1000 + $0x7c8] sm:$0xff] %v1499
                  %v1501 = vld [vmem:[%s999 + $0x1f40] sm:$0xff]
                  %1502 = vst [vmem:[%s1000 + $0x7d0] sm:$0xff] %v1501
                  %v1503 = vld [vmem:[%s999 + $0x1f60] sm:$0xff]
                  %1504 = vst [vmem:[%s1000 + $0x7d8] sm:$0xff] %v1503
                  %v1505 = vld [vmem:[%s999 + $0x1f80] sm:$0xff]
                  %1506 = vst [vmem:[%s1000 + $0x7e0] sm:$0xff] %v1505
                  %v1507 = vld [vmem:[%s999 + $0x1fa0] sm:$0xff]
                  %1508 = vst [vmem:[%s1000 + $0x7e8] sm:$0xff] %v1507
                  %v1509 = vld [vmem:[%s999 + $0x1fc0] sm:$0xff]
                  %1510 = vst [vmem:[%s1000 + $0x7f0] sm:$0xff] %v1509
                  %v1511 = vld [vmem:[%s999 + $0x1fe0] sm:$0xff]
                  %1512 = vst [vmem:[%s1000 + $0x7f8] sm:$0xff] %v1511
                  %v1513 = vld [vmem:[%s999 + $0x2000] sm:$0xff]
                  %1514 = vst [vmem:[%s1000 + $0x800] sm:$0xff] %v1513
                  %v1515 = vld [vmem:[%s999 + $0x2020] sm:$0xff]
                  %1516 = vst [vmem:[%s1000 + $0x808] sm:$0xff] %v1515
                  %v1517 = vld [vmem:[%s999 + $0x2040] sm:$0xff]
                  %1518 = vst [vmem:[%s1000 + $0x810] sm:$0xff] %v1517
                  %v1519 = vld [vmem:[%s999 + $0x2060] sm:$0xff]
                  %1520 = vst [vmem:[%s1000 + $0x818] sm:$0xff] %v1519
                  %v1521 = vld [vmem:[%s999 + $0x2080] sm:$0xff]
                  %1522 = vst [vmem:[%s1000 + $0x820] sm:$0xff] %v1521
                  %v1523 = vld [vmem:[%s999 + $0x20a0] sm:$0xff]
                  %1524 = vst [vmem:[%s1000 + $0x828] sm:$0xff] %v1523
                  %v1525 = vld [vmem:[%s999 + $0x20c0] sm:$0xff]
                  %1526 = vst [vmem:[%s1000 + $0x830] sm:$0xff] %v1525
                  %v1527 = vld [vmem:[%s999 + $0x20e0] sm:$0xff]
                  %1528 = vst [vmem:[%s1000 + $0x838] sm:$0xff] %v1527
                  %v1529 = vld [vmem:[%s999 + $0x2100] sm:$0xff]
                  %1530 = vst [vmem:[%s1000 + $0x840] sm:$0xff] %v1529
                  %v1531 = vld [vmem:[%s999 + $0x2120] sm:$0xff]
                  %1532 = vst [vmem:[%s1000 + $0x848] sm:$0xff] %v1531
                  %v1533 = vld [vmem:[%s999 + $0x2140] sm:$0xff]
                  %1534 = vst [vmem:[%s1000 + $0x850] sm:$0xff] %v1533
                  %v1535 = vld [vmem:[%s999 + $0x2160] sm:$0xff]
                  %1536 = vst [vmem:[%s1000 + $0x858] sm:$0xff] %v1535
                  %v1537 = vld [vmem:[%s999 + $0x2180] sm:$0xff]
                  %1538 = vst [vmem:[%s1000 + $0x860] sm:$0xff] %v1537
                  %v1539 = vld [vmem:[%s999 + $0x21a0] sm:$0xff]
                  %1540 = vst [vmem:[%s1000 + $0x868] sm:$0xff] %v1539
                  %v1541 = vld [vmem:[%s999 + $0x21c0] sm:$0xff]
                  %1542 = vst [vmem:[%s1000 + $0x870] sm:$0xff] %v1541
                  %v1543 = vld [vmem:[%s999 + $0x21e0] sm:$0xff]
                  %1544 = vst [vmem:[%s1000 + $0x878] sm:$0xff] %v1543
                  %v1545 = vld [vmem:[%s999 + $0x2200] sm:$0xff]
                  %1546 = vst [vmem:[%s1000 + $0x880] sm:$0xff] %v1545
                  %v1547 = vld [vmem:[%s999 + $0x2220] sm:$0xff]
                  %1548 = vst [vmem:[%s1000 + $0x888] sm:$0xff] %v1547
                  %v1549 = vld [vmem:[%s999 + $0x2240] sm:$0xff]
                  %1550 = vst [vmem:[%s1000 + $0x890] sm:$0xff] %v1549
                  %v1551 = vld [vmem:[%s999 + $0x2260] sm:$0xff]
                  %1552 = vst [vmem:[%s1000 + $0x898] sm:$0xff] %v1551
                  %v1553 = vld [vmem:[%s999 + $0x2280] sm:$0xff]
                  %1554 = vst [vmem:[%s1000 + $0x8a0] sm:$0xff] %v1553
                  %v1555 = vld [vmem:[%s999 + $0x22a0] sm:$0xff]
                  %1556 = vst [vmem:[%s1000 + $0x8a8] sm:$0xff] %v1555
                  %v1557 = vld [vmem:[%s999 + $0x22c0] sm:$0xff]
                  %1558 = vst [vmem:[%s1000 + $0x8b0] sm:$0xff] %v1557
                  %v1559 = vld [vmem:[%s999 + $0x22e0] sm:$0xff]
                  %1560 = vst [vmem:[%s1000 + $0x8b8] sm:$0xff] %v1559
                  %v1561 = vld [vmem:[%s999 + $0x2300] sm:$0xff]
                  %1562 = vst [vmem:[%s1000 + $0x8c0] sm:$0xff] %v1561
                  %v1563 = vld [vmem:[%s999 + $0x2320] sm:$0xff]
                  %1564 = vst [vmem:[%s1000 + $0x8c8] sm:$0xff] %v1563
                  %v1565 = vld [vmem:[%s999 + $0x2340] sm:$0xff]
                  %1566 = vst [vmem:[%s1000 + $0x8d0] sm:$0xff] %v1565
                  %v1567 = vld [vmem:[%s999 + $0x2360] sm:$0xff]
                  %1568 = vst [vmem:[%s1000 + $0x8d8] sm:$0xff] %v1567
                  %v1569 = vld [vmem:[%s999 + $0x2380] sm:$0xff]
                  %1570 = vst [vmem:[%s1000 + $0x8e0] sm:$0xff] %v1569
                  %v1571 = vld [vmem:[%s999 + $0x23a0] sm:$0xff]
                  %1572 = vst [vmem:[%s1000 + $0x8e8] sm:$0xff] %v1571
                  %v1573 = vld [vmem:[%s999 + $0x23c0] sm:$0xff]
                  %1574 = vst [vmem:[%s1000 + $0x8f0] sm:$0xff] %v1573
                  %v1575 = vld [vmem:[%s999 + $0x23e0] sm:$0xff]
                  %1576 = vst [vmem:[%s1000 + $0x8f8] sm:$0xff] %v1575
                  %v1577 = vld [vmem:[%s999 + $0x2400] sm:$0xff]
                  %1578 = vst [vmem:[%s1000 + $0x900] sm:$0xff] %v1577
                  %v1579 = vld [vmem:[%s999 + $0x2420] sm:$0xff]
                  %1580 = vst [vmem:[%s1000 + $0x908] sm:$0xff] %v1579
                  %v1581 = vld [vmem:[%s999 + $0x2440] sm:$0xff]
                  %1582 = vst [vmem:[%s1000 + $0x910] sm:$0xff] %v1581
                  %v1583 = vld [vmem:[%s999 + $0x2460] sm:$0xff]
                  %1584 = vst [vmem:[%s1000 + $0x918] sm:$0xff] %v1583
                  %v1585 = vld [vmem:[%s999 + $0x2480] sm:$0xff]
                  %1586 = vst [vmem:[%s1000 + $0x920] sm:$0xff] %v1585
                  %v1587 = vld [vmem:[%s999 + $0x24a0] sm:$0xff]
                  %1588 = vst [vmem:[%s1000 + $0x928] sm:$0xff] %v1587
                  %v1589 = vld [vmem:[%s999 + $0x24c0] sm:$0xff]
                  %1590 = vst [vmem:[%s1000 + $0x930] sm:$0xff] %v1589
                  %v1591 = vld [vmem:[%s999 + $0x24e0] sm:$0xff]
                  %1592 = vst [vmem:[%s1000 + $0x938] sm:$0xff] %v1591
                  %v1593 = vld [vmem:[%s999 + $0x2500] sm:$0xff]
                  %1594 = vst [vmem:[%s1000 + $0x940] sm:$0xff] %v1593
                  %v1595 = vld [vmem:[%s999 + $0x2520] sm:$0xff]
                  %1596 = vst [vmem:[%s1000 + $0x948] sm:$0xff] %v1595
                  %v1597 = vld [vmem:[%s999 + $0x2540] sm:$0xff]
                  %1598 = vst [vmem:[%s1000 + $0x950] sm:$0xff] %v1597
                  %v1599 = vld [vmem:[%s999 + $0x2560] sm:$0xff]
                  %1600 = vst [vmem:[%s1000 + $0x958] sm:$0xff] %v1599
                  %v1601 = vld [vmem:[%s999 + $0x2580] sm:$0xff]
                  %1602 = vst [vmem:[%s1000 + $0x960] sm:$0xff] %v1601
                  %v1603 = vld [vmem:[%s999 + $0x25a0] sm:$0xff]
                  %1604 = vst [vmem:[%s1000 + $0x968] sm:$0xff] %v1603
                  %v1605 = vld [vmem:[%s999 + $0x25c0] sm:$0xff]
                  %1606 = vst [vmem:[%s1000 + $0x970] sm:$0xff] %v1605
                  %v1607 = vld [vmem:[%s999 + $0x25e0] sm:$0xff]
                  %1608 = vst [vmem:[%s1000 + $0x978] sm:$0xff] %v1607
                  %v1609 = vld [vmem:[%s999 + $0x2600] sm:$0xff]
                  %1610 = vst [vmem:[%s1000 + $0x980] sm:$0xff] %v1609
                  %v1611 = vld [vmem:[%s999 + $0x2620] sm:$0xff]
                  %1612 = vst [vmem:[%s1000 + $0x988] sm:$0xff] %v1611
                  %v1613 = vld [vmem:[%s999 + $0x2640] sm:$0xff]
                  %1614 = vst [vmem:[%s1000 + $0x990] sm:$0xff] %v1613
                  %v1615 = vld [vmem:[%s999 + $0x2660] sm:$0xff]
                  %1616 = vst [vmem:[%s1000 + $0x998] sm:$0xff] %v1615
                  %v1617 = vld [vmem:[%s999 + $0x2680] sm:$0xff]
                  %1618 = vst [vmem:[%s1000 + $0x9a0] sm:$0xff] %v1617
                  %v1619 = vld [vmem:[%s999 + $0x26a0] sm:$0xff]
                  %1620 = vst [vmem:[%s1000 + $0x9a8] sm:$0xff] %v1619
                  %v1621 = vld [vmem:[%s999 + $0x26c0] sm:$0xff]
                  %1622 = vst [vmem:[%s1000 + $0x9b0] sm:$0xff] %v1621
                  %v1623 = vld [vmem:[%s999 + $0x26e0] sm:$0xff]
                  %1624 = vst [vmem:[%s1000 + $0x9b8] sm:$0xff] %v1623
                  %v1625 = vld [vmem:[%s999 + $0x2700] sm:$0xff]
                  %1626 = vst [vmem:[%s1000 + $0x9c0] sm:$0xff] %v1625
                  %v1627 = vld [vmem:[%s999 + $0x2720] sm:$0xff]
                  %1628 = vst [vmem:[%s1000 + $0x9c8] sm:$0xff] %v1627
                  %v1629 = vld [vmem:[%s999 + $0x2740] sm:$0xff]
                  %1630 = vst [vmem:[%s1000 + $0x9d0] sm:$0xff] %v1629
                  %v1631 = vld [vmem:[%s999 + $0x2760] sm:$0xff]
                  %1632 = vst [vmem:[%s1000 + $0x9d8] sm:$0xff] %v1631
                  %v1633 = vld [vmem:[%s999 + $0x2780] sm:$0xff]
                  %1634 = vst [vmem:[%s1000 + $0x9e0] sm:$0xff] %v1633
                  %v1635 = vld [vmem:[%s999 + $0x27a0] sm:$0xff]
                  %1636 = vst [vmem:[%s1000 + $0x9e8] sm:$0xff] %v1635
                  %v1637 = vld [vmem:[%s999 + $0x27c0] sm:$0xff]
                  %1638 = vst [vmem:[%s1000 + $0x9f0] sm:$0xff] %v1637
                  %v1639 = vld [vmem:[%s999 + $0x27e0] sm:$0xff]
                  %1640 = vst [vmem:[%s1000 + $0x9f8] sm:$0xff] %v1639
                  %v1641 = vld [vmem:[%s999 + $0x2800] sm:$0xff]
                  %1642 = vst [vmem:[%s1000 + $0xa00] sm:$0xff] %v1641
                  %v1643 = vld [vmem:[%s999 + $0x2820] sm:$0xff]
                  %1644 = vst [vmem:[%s1000 + $0xa08] sm:$0xff] %v1643
                  %v1645 = vld [vmem:[%s999 + $0x2840] sm:$0xff]
                  %1646 = vst [vmem:[%s1000 + $0xa10] sm:$0xff] %v1645
                  %v1647 = vld [vmem:[%s999 + $0x2860] sm:$0xff]
                  %1648 = vst [vmem:[%s1000 + $0xa18] sm:$0xff] %v1647
                  %v1649 = vld [vmem:[%s999 + $0x2880] sm:$0xff]
                  %1650 = vst [vmem:[%s1000 + $0xa20] sm:$0xff] %v1649
                  %v1651 = vld [vmem:[%s999 + $0x28a0] sm:$0xff]
                  %1652 = vst [vmem:[%s1000 + $0xa28] sm:$0xff] %v1651
                  %v1653 = vld [vmem:[%s999 + $0x28c0] sm:$0xff]
                  %1654 = vst [vmem:[%s1000 + $0xa30] sm:$0xff] %v1653
                  %v1655 = vld [vmem:[%s999 + $0x28e0] sm:$0xff]
                  %1656 = vst [vmem:[%s1000 + $0xa38] sm:$0xff] %v1655
                  %v1657 = vld [vmem:[%s999 + $0x2900] sm:$0xff]
                  %1658 = vst [vmem:[%s1000 + $0xa40] sm:$0xff] %v1657
                  %v1659 = vld [vmem:[%s999 + $0x2920] sm:$0xff]
                  %1660 = vst [vmem:[%s1000 + $0xa48] sm:$0xff] %v1659
                  %v1661 = vld [vmem:[%s999 + $0x2940] sm:$0xff]
                  %1662 = vst [vmem:[%s1000 + $0xa50] sm:$0xff] %v1661
                  %v1663 = vld [vmem:[%s999 + $0x2960] sm:$0xff]
                  %1664 = vst [vmem:[%s1000 + $0xa58] sm:$0xff] %v1663
                  %v1665 = vld [vmem:[%s999 + $0x2980] sm:$0xff]
                  %1666 = vst [vmem:[%s1000 + $0xa60] sm:$0xff] %v1665
                  %v1667 = vld [vmem:[%s999 + $0x29a0] sm:$0xff]
                  %1668 = vst [vmem:[%s1000 + $0xa68] sm:$0xff] %v1667
                  %v1669 = vld [vmem:[%s999 + $0x29c0] sm:$0xff]
                  %1670 = vst [vmem:[%s1000 + $0xa70] sm:$0xff] %v1669
                  %v1671 = vld [vmem:[%s999 + $0x29e0] sm:$0xff]
                  %1672 = vst [vmem:[%s1000 + $0xa78] sm:$0xff] %v1671
                  %v1673 = vld [vmem:[%s999 + $0x2a00] sm:$0xff]
                  %1674 = vst [vmem:[%s1000 + $0xa80] sm:$0xff] %v1673
                  %v1675 = vld [vmem:[%s999 + $0x2a20] sm:$0xff]
                  %1676 = vst [vmem:[%s1000 + $0xa88] sm:$0xff] %v1675
                  %v1677 = vld [vmem:[%s999 + $0x2a40] sm:$0xff]
                  %1678 = vst [vmem:[%s1000 + $0xa90] sm:$0xff] %v1677
                  %v1679 = vld [vmem:[%s999 + $0x2a60] sm:$0xff]
                  %1680 = vst [vmem:[%s1000 + $0xa98] sm:$0xff] %v1679
                  %v1681 = vld [vmem:[%s999 + $0x2a80] sm:$0xff]
                  %1682 = vst [vmem:[%s1000 + $0xaa0] sm:$0xff] %v1681
                  %v1683 = vld [vmem:[%s999 + $0x2aa0] sm:$0xff]
                  %1684 = vst [vmem:[%s1000 + $0xaa8] sm:$0xff] %v1683
                  %v1685 = vld [vmem:[%s999 + $0x2ac0] sm:$0xff]
                  %1686 = vst [vmem:[%s1000 + $0xab0] sm:$0xff] %v1685
                  %v1687 = vld [vmem:[%s999 + $0x2ae0] sm:$0xff]
                  %1688 = vst [vmem:[%s1000 + $0xab8] sm:$0xff] %v1687
                  %v1689 = vld [vmem:[%s999 + $0x2b00] sm:$0xff]
                  %1690 = vst [vmem:[%s1000 + $0xac0] sm:$0xff] %v1689
                  %v1691 = vld [vmem:[%s999 + $0x2b20] sm:$0xff]
                  %1692 = vst [vmem:[%s1000 + $0xac8] sm:$0xff] %v1691
                  %v1693 = vld [vmem:[%s999 + $0x2b40] sm:$0xff]
                  %1694 = vst [vmem:[%s1000 + $0xad0] sm:$0xff] %v1693
                  %v1695 = vld [vmem:[%s999 + $0x2b60] sm:$0xff]
                  %1696 = vst [vmem:[%s1000 + $0xad8] sm:$0xff] %v1695
                  %v1697 = vld [vmem:[%s999 + $0x2b80] sm:$0xff]
                  %1698 = vst [vmem:[%s1000 + $0xae0] sm:$0xff] %v1697
                  %v1699 = vld [vmem:[%s999 + $0x2ba0] sm:$0xff]
                  %1700 = vst [vmem:[%s1000 + $0xae8] sm:$0xff] %v1699
                  %v1701 = vld [vmem:[%s999 + $0x2bc0] sm:$0xff]
                  %1702 = vst [vmem:[%s1000 + $0xaf0] sm:$0xff] %v1701
                  %v1703 = vld [vmem:[%s999 + $0x2be0] sm:$0xff]
                  %1704 = vst [vmem:[%s1000 + $0xaf8] sm:$0xff] %v1703
                  %v1705 = vld [vmem:[%s999 + $0x2c00] sm:$0xff]
                  %1706 = vst [vmem:[%s1000 + $0xb00] sm:$0xff] %v1705
                  %v1707 = vld [vmem:[%s999 + $0x2c20] sm:$0xff]
                  %1708 = vst [vmem:[%s1000 + $0xb08] sm:$0xff] %v1707
                  %v1709 = vld [vmem:[%s999 + $0x2c40] sm:$0xff]
                  %1710 = vst [vmem:[%s1000 + $0xb10] sm:$0xff] %v1709
                  %v1711 = vld [vmem:[%s999 + $0x2c60] sm:$0xff]
                  %1712 = vst [vmem:[%s1000 + $0xb18] sm:$0xff] %v1711
                  %v1713 = vld [vmem:[%s999 + $0x2c80] sm:$0xff]
                  %1714 = vst [vmem:[%s1000 + $0xb20] sm:$0xff] %v1713
                  %v1715 = vld [vmem:[%s999 + $0x2ca0] sm:$0xff]
                  %1716 = vst [vmem:[%s1000 + $0xb28] sm:$0xff] %v1715
                  %v1717 = vld [vmem:[%s999 + $0x2cc0] sm:$0xff]
                  %1718 = vst [vmem:[%s1000 + $0xb30] sm:$0xff] %v1717
                  %v1719 = vld [vmem:[%s999 + $0x2ce0] sm:$0xff]
                  %1720 = vst [vmem:[%s1000 + $0xb38] sm:$0xff] %v1719
                  %v1721 = vld [vmem:[%s999 + $0x2d00] sm:$0xff]
                  %1722 = vst [vmem:[%s1000 + $0xb40] sm:$0xff] %v1721
                  %v1723 = vld [vmem:[%s999 + $0x2d20] sm:$0xff]
                  %1724 = vst [vmem:[%s1000 + $0xb48] sm:$0xff] %v1723
                  %v1725 = vld [vmem:[%s999 + $0x2d40] sm:$0xff]
                  %1726 = vst [vmem:[%s1000 + $0xb50] sm:$0xff] %v1725
                  %v1727 = vld [vmem:[%s999 + $0x2d60] sm:$0xff]
                  %1728 = vst [vmem:[%s1000 + $0xb58] sm:$0xff] %v1727
                  %v1729 = vld [vmem:[%s999 + $0x2d80] sm:$0xff]
                  %1730 = vst [vmem:[%s1000 + $0xb60] sm:$0xff] %v1729
                  %v1731 = vld [vmem:[%s999 + $0x2da0] sm:$0xff]
                  %1732 = vst [vmem:[%s1000 + $0xb68] sm:$0xff] %v1731
                  %v1733 = vld [vmem:[%s999 + $0x2dc0] sm:$0xff]
                  %1734 = vst [vmem:[%s1000 + $0xb70] sm:$0xff] %v1733
                  %v1735 = vld [vmem:[%s999 + $0x2de0] sm:$0xff]
                  %1736 = vst [vmem:[%s1000 + $0xb78] sm:$0xff] %v1735
                  %v1737 = vld [vmem:[%s999 + $0x2e00] sm:$0xff]
                  %1738 = vst [vmem:[%s1000 + $0xb80] sm:$0xff] %v1737
                  %v1739 = vld [vmem:[%s999 + $0x2e20] sm:$0xff]
                  %1740 = vst [vmem:[%s1000 + $0xb88] sm:$0xff] %v1739
                  %v1741 = vld [vmem:[%s999 + $0x2e40] sm:$0xff]
                  %1742 = vst [vmem:[%s1000 + $0xb90] sm:$0xff] %v1741
                  %v1743 = vld [vmem:[%s999 + $0x2e60] sm:$0xff]
                  %1744 = vst [vmem:[%s1000 + $0xb98] sm:$0xff] %v1743
                  %v1745 = vld [vmem:[%s999 + $0x2e80] sm:$0xff]
                  %1746 = vst [vmem:[%s1000 + $0xba0] sm:$0xff] %v1745
                  %v1747 = vld [vmem:[%s999 + $0x2ea0] sm:$0xff]
                  %1748 = vst [vmem:[%s1000 + $0xba8] sm:$0xff] %v1747
                  %v1749 = vld [vmem:[%s999 + $0x2ec0] sm:$0xff]
                  %1750 = vst [vmem:[%s1000 + $0xbb0] sm:$0xff] %v1749
                  %v1751 = vld [vmem:[%s999 + $0x2ee0] sm:$0xff]
                  %1752 = vst [vmem:[%s1000 + $0xbb8] sm:$0xff] %v1751
                  %v1753 = vld [vmem:[%s999 + $0x2f00] sm:$0xff]
                  %1754 = vst [vmem:[%s1000 + $0xbc0] sm:$0xff] %v1753
                  %v1755 = vld [vmem:[%s999 + $0x2f20] sm:$0xff]
                  %1756 = vst [vmem:[%s1000 + $0xbc8] sm:$0xff] %v1755
                  %v1757 = vld [vmem:[%s999 + $0x2f40] sm:$0xff]
                  %1758 = vst [vmem:[%s1000 + $0xbd0] sm:$0xff] %v1757
                  %v1759 = vld [vmem:[%s999 + $0x2f60] sm:$0xff]
                  %1760 = vst [vmem:[%s1000 + $0xbd8] sm:$0xff] %v1759
                  %v1761 = vld [vmem:[%s999 + $0x2f80] sm:$0xff]
                  %1762 = vst [vmem:[%s1000 + $0xbe0] sm:$0xff] %v1761
                  %v1763 = vld [vmem:[%s999 + $0x2fa0] sm:$0xff]
                  %1764 = vst [vmem:[%s1000 + $0xbe8] sm:$0xff] %v1763
                  %v1765 = vld [vmem:[%s999 + $0x2fc0] sm:$0xff]
                  %1766 = vst [vmem:[%s1000 + $0xbf0] sm:$0xff] %v1765
                  %v1767 = vld [vmem:[%s999 + $0x2fe0] sm:$0xff]
                  %1768 = vst [vmem:[%s1000 + $0xbf8] sm:$0xff] %v1767
                  %v1769 = vld [vmem:[%s999 + $0x3000] sm:$0xff]
                  %1770 = vst [vmem:[%s1000 + $0xc00] sm:$0xff] %v1769
                  %v1771 = vld [vmem:[%s999 + $0x3020] sm:$0xff]
                  %1772 = vst [vmem:[%s1000 + $0xc08] sm:$0xff] %v1771
                  %v1773 = vld [vmem:[%s999 + $0x3040] sm:$0xff]
                  %1774 = vst [vmem:[%s1000 + $0xc10] sm:$0xff] %v1773
                  %v1775 = vld [vmem:[%s999 + $0x3060] sm:$0xff]
                  %1776 = vst [vmem:[%s1000 + $0xc18] sm:$0xff] %v1775
                  %v1777 = vld [vmem:[%s999 + $0x3080] sm:$0xff]
                  %1778 = vst [vmem:[%s1000 + $0xc20] sm:$0xff] %v1777
                  %v1779 = vld [vmem:[%s999 + $0x30a0] sm:$0xff]
                  %1780 = vst [vmem:[%s1000 + $0xc28] sm:$0xff] %v1779
                  %v1781 = vld [vmem:[%s999 + $0x30c0] sm:$0xff]
                  %1782 = vst [vmem:[%s1000 + $0xc30] sm:$0xff] %v1781
                  %v1783 = vld [vmem:[%s999 + $0x30e0] sm:$0xff]
                  %1784 = vst [vmem:[%s1000 + $0xc38] sm:$0xff] %v1783
                  %s1785 = sadd.s32 1, %s998
                  %p1786 = scmp.ge.s32.totalorder %s1785, 1
                  %s1787 = scalar_select %p1786, 0, %s1785
                  %s1788 = smul.u32 %s1787, 8
                  %s1789 = smul.u32 %s1787, 8
                  %s1790 = scalar_lea.vmem %s189, %s1788
                  %s1791 = scalar_lea.vmem %s186, %s1789 [#allocation2]
                $region52: #{dueling_dqn_forward.7} parent=46 // loop_footer
                  %s997 = sadd.s32 1, %s993
                $region53: #{dueling_dqn_forward.7} parent=46 // loop_footer_branch
                  %992 = sbr.rel target = $region49
                $region54: #{dueling_dqn_forward.7} parent=46 // loop_exit
                  _
              $region47: #{dueling_dqn_forward.7} parent=31 // pred_fallthru
                _
              // Predicated region
              $region55: #{dueling_dqn_forward.7} parent=31 // pred_check
                _
              $region56: #{dueling_dqn_forward.7} parent=31 // pred_check_branch
                %1793 = sbr.rel target = $region58
              $region57: #{dueling_dqn_forward.7} parent=31 // pred_region
                %s1794 = scalar_lea.vmem %s189, 8
                %s1795 = scalar_lea.vmem %s186, 8 [#allocation2]
                loop: start=0, step=1, limit=1
                $region59: #{dueling_dqn_forward.7} parent=57 // loop_pre_header
                  _
                $region60: #{dueling_dqn_forward.7} parent=57 // loop_header
                  %s1797 = sphi 0, %s1801
                  %p1798 = scmp.ge.s32.totalorder %s1797, 1
                  %s1802 = sphi 0, %s2591
                  %s1803 = sphi %s189, %s2594
                  %s1804 = sphi %s186, %s2595
                $region61: #{dueling_dqn_forward.7} parent=57 // loop_header_branch
                  %1800 = sbr.rel (%p1798) target = $region65
                $region62: #{dueling_dqn_forward.7} parent=57 // loop_body
                  %v1805 = vld [vmem:[%s1803] sm:$0xff]
                  %1806 = vst [vmem:[%s1804] sm:$0xff] %v1805
                  %v1807 = vld [vmem:[%s1803 + $0x20] sm:$0xff]
                  %1808 = vst [vmem:[%s1804 + $0x8] sm:$0xff] %v1807
                  %v1809 = vld [vmem:[%s1803 + $0x40] sm:$0xff]
                  %1810 = vst [vmem:[%s1804 + $0x10] sm:$0xff] %v1809
                  %v1811 = vld [vmem:[%s1803 + $0x60] sm:$0xff]
                  %1812 = vst [vmem:[%s1804 + $0x18] sm:$0xff] %v1811
                  %v1813 = vld [vmem:[%s1803 + $0x80] sm:$0xff]
                  %1814 = vst [vmem:[%s1804 + $0x20] sm:$0xff] %v1813
                  %v1815 = vld [vmem:[%s1803 + $0xa0] sm:$0xff]
                  %1816 = vst [vmem:[%s1804 + $0x28] sm:$0xff] %v1815
                  %v1817 = vld [vmem:[%s1803 + $0xc0] sm:$0xff]
                  %1818 = vst [vmem:[%s1804 + $0x30] sm:$0xff] %v1817
                  %v1819 = vld [vmem:[%s1803 + $0xe0] sm:$0xff]
                  %1820 = vst [vmem:[%s1804 + $0x38] sm:$0xff] %v1819
                  %v1821 = vld [vmem:[%s1803 + $0x100] sm:$0xff]
                  %1822 = vst [vmem:[%s1804 + $0x40] sm:$0xff] %v1821
                  %v1823 = vld [vmem:[%s1803 + $0x120] sm:$0xff]
                  %1824 = vst [vmem:[%s1804 + $0x48] sm:$0xff] %v1823
                  %v1825 = vld [vmem:[%s1803 + $0x140] sm:$0xff]
                  %1826 = vst [vmem:[%s1804 + $0x50] sm:$0xff] %v1825
                  %v1827 = vld [vmem:[%s1803 + $0x160] sm:$0xff]
                  %1828 = vst [vmem:[%s1804 + $0x58] sm:$0xff] %v1827
                  %v1829 = vld [vmem:[%s1803 + $0x180] sm:$0xff]
                  %1830 = vst [vmem:[%s1804 + $0x60] sm:$0xff] %v1829
                  %v1831 = vld [vmem:[%s1803 + $0x1a0] sm:$0xff]
                  %1832 = vst [vmem:[%s1804 + $0x68] sm:$0xff] %v1831
                  %v1833 = vld [vmem:[%s1803 + $0x1c0] sm:$0xff]
                  %1834 = vst [vmem:[%s1804 + $0x70] sm:$0xff] %v1833
                  %v1835 = vld [vmem:[%s1803 + $0x1e0] sm:$0xff]
                  %1836 = vst [vmem:[%s1804 + $0x78] sm:$0xff] %v1835
                  %v1837 = vld [vmem:[%s1803 + $0x200] sm:$0xff]
                  %1838 = vst [vmem:[%s1804 + $0x80] sm:$0xff] %v1837
                  %v1839 = vld [vmem:[%s1803 + $0x220] sm:$0xff]
                  %1840 = vst [vmem:[%s1804 + $0x88] sm:$0xff] %v1839
                  %v1841 = vld [vmem:[%s1803 + $0x240] sm:$0xff]
                  %1842 = vst [vmem:[%s1804 + $0x90] sm:$0xff] %v1841
                  %v1843 = vld [vmem:[%s1803 + $0x260] sm:$0xff]
                  %1844 = vst [vmem:[%s1804 + $0x98] sm:$0xff] %v1843
                  %v1845 = vld [vmem:[%s1803 + $0x280] sm:$0xff]
                  %1846 = vst [vmem:[%s1804 + $0xa0] sm:$0xff] %v1845
                  %v1847 = vld [vmem:[%s1803 + $0x2a0] sm:$0xff]
                  %1848 = vst [vmem:[%s1804 + $0xa8] sm:$0xff] %v1847
                  %v1849 = vld [vmem:[%s1803 + $0x2c0] sm:$0xff]
                  %1850 = vst [vmem:[%s1804 + $0xb0] sm:$0xff] %v1849
                  %v1851 = vld [vmem:[%s1803 + $0x2e0] sm:$0xff]
                  %1852 = vst [vmem:[%s1804 + $0xb8] sm:$0xff] %v1851
                  %v1853 = vld [vmem:[%s1803 + $0x300] sm:$0xff]
                  %1854 = vst [vmem:[%s1804 + $0xc0] sm:$0xff] %v1853
                  %v1855 = vld [vmem:[%s1803 + $0x320] sm:$0xff]
                  %1856 = vst [vmem:[%s1804 + $0xc8] sm:$0xff] %v1855
                  %v1857 = vld [vmem:[%s1803 + $0x340] sm:$0xff]
                  %1858 = vst [vmem:[%s1804 + $0xd0] sm:$0xff] %v1857
                  %v1859 = vld [vmem:[%s1803 + $0x360] sm:$0xff]
                  %1860 = vst [vmem:[%s1804 + $0xd8] sm:$0xff] %v1859
                  %v1861 = vld [vmem:[%s1803 + $0x380] sm:$0xff]
                  %1862 = vst [vmem:[%s1804 + $0xe0] sm:$0xff] %v1861
                  %v1863 = vld [vmem:[%s1803 + $0x3a0] sm:$0xff]
                  %1864 = vst [vmem:[%s1804 + $0xe8] sm:$0xff] %v1863
                  %v1865 = vld [vmem:[%s1803 + $0x3c0] sm:$0xff]
                  %1866 = vst [vmem:[%s1804 + $0xf0] sm:$0xff] %v1865
                  %v1867 = vld [vmem:[%s1803 + $0x3e0] sm:$0xff]
                  %1868 = vst [vmem:[%s1804 + $0xf8] sm:$0xff] %v1867
                  %v1869 = vld [vmem:[%s1803 + $0x400] sm:$0xff]
                  %1870 = vst [vmem:[%s1804 + $0x100] sm:$0xff] %v1869
                  %v1871 = vld [vmem:[%s1803 + $0x420] sm:$0xff]
                  %1872 = vst [vmem:[%s1804 + $0x108] sm:$0xff] %v1871
                  %v1873 = vld [vmem:[%s1803 + $0x440] sm:$0xff]
                  %1874 = vst [vmem:[%s1804 + $0x110] sm:$0xff] %v1873
                  %v1875 = vld [vmem:[%s1803 + $0x460] sm:$0xff]
                  %1876 = vst [vmem:[%s1804 + $0x118] sm:$0xff] %v1875
                  %v1877 = vld [vmem:[%s1803 + $0x480] sm:$0xff]
                  %1878 = vst [vmem:[%s1804 + $0x120] sm:$0xff] %v1877
                  %v1879 = vld [vmem:[%s1803 + $0x4a0] sm:$0xff]
                  %1880 = vst [vmem:[%s1804 + $0x128] sm:$0xff] %v1879
                  %v1881 = vld [vmem:[%s1803 + $0x4c0] sm:$0xff]
                  %1882 = vst [vmem:[%s1804 + $0x130] sm:$0xff] %v1881
                  %v1883 = vld [vmem:[%s1803 + $0x4e0] sm:$0xff]
                  %1884 = vst [vmem:[%s1804 + $0x138] sm:$0xff] %v1883
                  %v1885 = vld [vmem:[%s1803 + $0x500] sm:$0xff]
                  %1886 = vst [vmem:[%s1804 + $0x140] sm:$0xff] %v1885
                  %v1887 = vld [vmem:[%s1803 + $0x520] sm:$0xff]
                  %1888 = vst [vmem:[%s1804 + $0x148] sm:$0xff] %v1887
                  %v1889 = vld [vmem:[%s1803 + $0x540] sm:$0xff]
                  %1890 = vst [vmem:[%s1804 + $0x150] sm:$0xff] %v1889
                  %v1891 = vld [vmem:[%s1803 + $0x560] sm:$0xff]
                  %1892 = vst [vmem:[%s1804 + $0x158] sm:$0xff] %v1891
                  %v1893 = vld [vmem:[%s1803 + $0x580] sm:$0xff]
                  %1894 = vst [vmem:[%s1804 + $0x160] sm:$0xff] %v1893
                  %v1895 = vld [vmem:[%s1803 + $0x5a0] sm:$0xff]
                  %1896 = vst [vmem:[%s1804 + $0x168] sm:$0xff] %v1895
                  %v1897 = vld [vmem:[%s1803 + $0x5c0] sm:$0xff]
                  %1898 = vst [vmem:[%s1804 + $0x170] sm:$0xff] %v1897
                  %v1899 = vld [vmem:[%s1803 + $0x5e0] sm:$0xff]
                  %1900 = vst [vmem:[%s1804 + $0x178] sm:$0xff] %v1899
                  %v1901 = vld [vmem:[%s1803 + $0x600] sm:$0xff]
                  %1902 = vst [vmem:[%s1804 + $0x180] sm:$0xff] %v1901
                  %v1903 = vld [vmem:[%s1803 + $0x620] sm:$0xff]
                  %1904 = vst [vmem:[%s1804 + $0x188] sm:$0xff] %v1903
                  %v1905 = vld [vmem:[%s1803 + $0x640] sm:$0xff]
                  %1906 = vst [vmem:[%s1804 + $0x190] sm:$0xff] %v1905
                  %v1907 = vld [vmem:[%s1803 + $0x660] sm:$0xff]
                  %1908 = vst [vmem:[%s1804 + $0x198] sm:$0xff] %v1907
                  %v1909 = vld [vmem:[%s1803 + $0x680] sm:$0xff]
                  %1910 = vst [vmem:[%s1804 + $0x1a0] sm:$0xff] %v1909
                  %v1911 = vld [vmem:[%s1803 + $0x6a0] sm:$0xff]
                  %1912 = vst [vmem:[%s1804 + $0x1a8] sm:$0xff] %v1911
                  %v1913 = vld [vmem:[%s1803 + $0x6c0] sm:$0xff]
                  %1914 = vst [vmem:[%s1804 + $0x1b0] sm:$0xff] %v1913
                  %v1915 = vld [vmem:[%s1803 + $0x6e0] sm:$0xff]
                  %1916 = vst [vmem:[%s1804 + $0x1b8] sm:$0xff] %v1915
                  %v1917 = vld [vmem:[%s1803 + $0x700] sm:$0xff]
                  %1918 = vst [vmem:[%s1804 + $0x1c0] sm:$0xff] %v1917
                  %v1919 = vld [vmem:[%s1803 + $0x720] sm:$0xff]
                  %1920 = vst [vmem:[%s1804 + $0x1c8] sm:$0xff] %v1919
                  %v1921 = vld [vmem:[%s1803 + $0x740] sm:$0xff]
                  %1922 = vst [vmem:[%s1804 + $0x1d0] sm:$0xff] %v1921
                  %v1923 = vld [vmem:[%s1803 + $0x760] sm:$0xff]
                  %1924 = vst [vmem:[%s1804 + $0x1d8] sm:$0xff] %v1923
                  %v1925 = vld [vmem:[%s1803 + $0x780] sm:$0xff]
                  %1926 = vst [vmem:[%s1804 + $0x1e0] sm:$0xff] %v1925
                  %v1927 = vld [vmem:[%s1803 + $0x7a0] sm:$0xff]
                  %1928 = vst [vmem:[%s1804 + $0x1e8] sm:$0xff] %v1927
                  %v1929 = vld [vmem:[%s1803 + $0x7c0] sm:$0xff]
                  %1930 = vst [vmem:[%s1804 + $0x1f0] sm:$0xff] %v1929
                  %v1931 = vld [vmem:[%s1803 + $0x7e0] sm:$0xff]
                  %1932 = vst [vmem:[%s1804 + $0x1f8] sm:$0xff] %v1931
                  %v1933 = vld [vmem:[%s1803 + $0x800] sm:$0xff]
                  %1934 = vst [vmem:[%s1804 + $0x200] sm:$0xff] %v1933
                  %v1935 = vld [vmem:[%s1803 + $0x820] sm:$0xff]
                  %1936 = vst [vmem:[%s1804 + $0x208] sm:$0xff] %v1935
                  %v1937 = vld [vmem:[%s1803 + $0x840] sm:$0xff]
                  %1938 = vst [vmem:[%s1804 + $0x210] sm:$0xff] %v1937
                  %v1939 = vld [vmem:[%s1803 + $0x860] sm:$0xff]
                  %1940 = vst [vmem:[%s1804 + $0x218] sm:$0xff] %v1939
                  %v1941 = vld [vmem:[%s1803 + $0x880] sm:$0xff]
                  %1942 = vst [vmem:[%s1804 + $0x220] sm:$0xff] %v1941
                  %v1943 = vld [vmem:[%s1803 + $0x8a0] sm:$0xff]
                  %1944 = vst [vmem:[%s1804 + $0x228] sm:$0xff] %v1943
                  %v1945 = vld [vmem:[%s1803 + $0x8c0] sm:$0xff]
                  %1946 = vst [vmem:[%s1804 + $0x230] sm:$0xff] %v1945
                  %v1947 = vld [vmem:[%s1803 + $0x8e0] sm:$0xff]
                  %1948 = vst [vmem:[%s1804 + $0x238] sm:$0xff] %v1947
                  %v1949 = vld [vmem:[%s1803 + $0x900] sm:$0xff]
                  %1950 = vst [vmem:[%s1804 + $0x240] sm:$0xff] %v1949
                  %v1951 = vld [vmem:[%s1803 + $0x920] sm:$0xff]
                  %1952 = vst [vmem:[%s1804 + $0x248] sm:$0xff] %v1951
                  %v1953 = vld [vmem:[%s1803 + $0x940] sm:$0xff]
                  %1954 = vst [vmem:[%s1804 + $0x250] sm:$0xff] %v1953
                  %v1955 = vld [vmem:[%s1803 + $0x960] sm:$0xff]
                  %1956 = vst [vmem:[%s1804 + $0x258] sm:$0xff] %v1955
                  %v1957 = vld [vmem:[%s1803 + $0x980] sm:$0xff]
                  %1958 = vst [vmem:[%s1804 + $0x260] sm:$0xff] %v1957
                  %v1959 = vld [vmem:[%s1803 + $0x9a0] sm:$0xff]
                  %1960 = vst [vmem:[%s1804 + $0x268] sm:$0xff] %v1959
                  %v1961 = vld [vmem:[%s1803 + $0x9c0] sm:$0xff]
                  %1962 = vst [vmem:[%s1804 + $0x270] sm:$0xff] %v1961
                  %v1963 = vld [vmem:[%s1803 + $0x9e0] sm:$0xff]
                  %1964 = vst [vmem:[%s1804 + $0x278] sm:$0xff] %v1963
                  %v1965 = vld [vmem:[%s1803 + $0xa00] sm:$0xff]
                  %1966 = vst [vmem:[%s1804 + $0x280] sm:$0xff] %v1965
                  %v1967 = vld [vmem:[%s1803 + $0xa20] sm:$0xff]
                  %1968 = vst [vmem:[%s1804 + $0x288] sm:$0xff] %v1967
                  %v1969 = vld [vmem:[%s1803 + $0xa40] sm:$0xff]
                  %1970 = vst [vmem:[%s1804 + $0x290] sm:$0xff] %v1969
                  %v1971 = vld [vmem:[%s1803 + $0xa60] sm:$0xff]
                  %1972 = vst [vmem:[%s1804 + $0x298] sm:$0xff] %v1971
                  %v1973 = vld [vmem:[%s1803 + $0xa80] sm:$0xff]
                  %1974 = vst [vmem:[%s1804 + $0x2a0] sm:$0xff] %v1973
                  %v1975 = vld [vmem:[%s1803 + $0xaa0] sm:$0xff]
                  %1976 = vst [vmem:[%s1804 + $0x2a8] sm:$0xff] %v1975
                  %v1977 = vld [vmem:[%s1803 + $0xac0] sm:$0xff]
                  %1978 = vst [vmem:[%s1804 + $0x2b0] sm:$0xff] %v1977
                  %v1979 = vld [vmem:[%s1803 + $0xae0] sm:$0xff]
                  %1980 = vst [vmem:[%s1804 + $0x2b8] sm:$0xff] %v1979
                  %v1981 = vld [vmem:[%s1803 + $0xb00] sm:$0xff]
                  %1982 = vst [vmem:[%s1804 + $0x2c0] sm:$0xff] %v1981
                  %v1983 = vld [vmem:[%s1803 + $0xb20] sm:$0xff]
                  %1984 = vst [vmem:[%s1804 + $0x2c8] sm:$0xff] %v1983
                  %v1985 = vld [vmem:[%s1803 + $0xb40] sm:$0xff]
                  %1986 = vst [vmem:[%s1804 + $0x2d0] sm:$0xff] %v1985
                  %v1987 = vld [vmem:[%s1803 + $0xb60] sm:$0xff]
                  %1988 = vst [vmem:[%s1804 + $0x2d8] sm:$0xff] %v1987
                  %v1989 = vld [vmem:[%s1803 + $0xb80] sm:$0xff]
                  %1990 = vst [vmem:[%s1804 + $0x2e0] sm:$0xff] %v1989
                  %v1991 = vld [vmem:[%s1803 + $0xba0] sm:$0xff]
                  %1992 = vst [vmem:[%s1804 + $0x2e8] sm:$0xff] %v1991
                  %v1993 = vld [vmem:[%s1803 + $0xbc0] sm:$0xff]
                  %1994 = vst [vmem:[%s1804 + $0x2f0] sm:$0xff] %v1993
                  %v1995 = vld [vmem:[%s1803 + $0xbe0] sm:$0xff]
                  %1996 = vst [vmem:[%s1804 + $0x2f8] sm:$0xff] %v1995
                  %v1997 = vld [vmem:[%s1803 + $0xc00] sm:$0xff]
                  %1998 = vst [vmem:[%s1804 + $0x300] sm:$0xff] %v1997
                  %v1999 = vld [vmem:[%s1803 + $0xc20] sm:$0xff]
                  %2000 = vst [vmem:[%s1804 + $0x308] sm:$0xff] %v1999
                  %v2001 = vld [vmem:[%s1803 + $0xc40] sm:$0xff]
                  %2002 = vst [vmem:[%s1804 + $0x310] sm:$0xff] %v2001
                  %v2003 = vld [vmem:[%s1803 + $0xc60] sm:$0xff]
                  %2004 = vst [vmem:[%s1804 + $0x318] sm:$0xff] %v2003
                  %v2005 = vld [vmem:[%s1803 + $0xc80] sm:$0xff]
                  %2006 = vst [vmem:[%s1804 + $0x320] sm:$0xff] %v2005
                  %v2007 = vld [vmem:[%s1803 + $0xca0] sm:$0xff]
                  %2008 = vst [vmem:[%s1804 + $0x328] sm:$0xff] %v2007
                  %v2009 = vld [vmem:[%s1803 + $0xcc0] sm:$0xff]
                  %2010 = vst [vmem:[%s1804 + $0x330] sm:$0xff] %v2009
                  %v2011 = vld [vmem:[%s1803 + $0xce0] sm:$0xff]
                  %2012 = vst [vmem:[%s1804 + $0x338] sm:$0xff] %v2011
                  %v2013 = vld [vmem:[%s1803 + $0xd00] sm:$0xff]
                  %2014 = vst [vmem:[%s1804 + $0x340] sm:$0xff] %v2013
                  %v2015 = vld [vmem:[%s1803 + $0xd20] sm:$0xff]
                  %2016 = vst [vmem:[%s1804 + $0x348] sm:$0xff] %v2015
                  %v2017 = vld [vmem:[%s1803 + $0xd40] sm:$0xff]
                  %2018 = vst [vmem:[%s1804 + $0x350] sm:$0xff] %v2017
                  %v2019 = vld [vmem:[%s1803 + $0xd60] sm:$0xff]
                  %2020 = vst [vmem:[%s1804 + $0x358] sm:$0xff] %v2019
                  %v2021 = vld [vmem:[%s1803 + $0xd80] sm:$0xff]
                  %2022 = vst [vmem:[%s1804 + $0x360] sm:$0xff] %v2021
                  %v2023 = vld [vmem:[%s1803 + $0xda0] sm:$0xff]
                  %2024 = vst [vmem:[%s1804 + $0x368] sm:$0xff] %v2023
                  %v2025 = vld [vmem:[%s1803 + $0xdc0] sm:$0xff]
                  %2026 = vst [vmem:[%s1804 + $0x370] sm:$0xff] %v2025
                  %v2027 = vld [vmem:[%s1803 + $0xde0] sm:$0xff]
                  %2028 = vst [vmem:[%s1804 + $0x378] sm:$0xff] %v2027
                  %v2029 = vld [vmem:[%s1803 + $0xe00] sm:$0xff]
                  %2030 = vst [vmem:[%s1804 + $0x380] sm:$0xff] %v2029
                  %v2031 = vld [vmem:[%s1803 + $0xe20] sm:$0xff]
                  %2032 = vst [vmem:[%s1804 + $0x388] sm:$0xff] %v2031
                  %v2033 = vld [vmem:[%s1803 + $0xe40] sm:$0xff]
                  %2034 = vst [vmem:[%s1804 + $0x390] sm:$0xff] %v2033
                  %v2035 = vld [vmem:[%s1803 + $0xe60] sm:$0xff]
                  %2036 = vst [vmem:[%s1804 + $0x398] sm:$0xff] %v2035
                  %v2037 = vld [vmem:[%s1803 + $0xe80] sm:$0xff]
                  %2038 = vst [vmem:[%s1804 + $0x3a0] sm:$0xff] %v2037
                  %v2039 = vld [vmem:[%s1803 + $0xea0] sm:$0xff]
                  %2040 = vst [vmem:[%s1804 + $0x3a8] sm:$0xff] %v2039
                  %v2041 = vld [vmem:[%s1803 + $0xec0] sm:$0xff]
                  %2042 = vst [vmem:[%s1804 + $0x3b0] sm:$0xff] %v2041
                  %v2043 = vld [vmem:[%s1803 + $0xee0] sm:$0xff]
                  %2044 = vst [vmem:[%s1804 + $0x3b8] sm:$0xff] %v2043
                  %v2045 = vld [vmem:[%s1803 + $0xf00] sm:$0xff]
                  %2046 = vst [vmem:[%s1804 + $0x3c0] sm:$0xff] %v2045
                  %v2047 = vld [vmem:[%s1803 + $0xf20] sm:$0xff]
                  %2048 = vst [vmem:[%s1804 + $0x3c8] sm:$0xff] %v2047
                  %v2049 = vld [vmem:[%s1803 + $0xf40] sm:$0xff]
                  %2050 = vst [vmem:[%s1804 + $0x3d0] sm:$0xff] %v2049
                  %v2051 = vld [vmem:[%s1803 + $0xf60] sm:$0xff]
                  %2052 = vst [vmem:[%s1804 + $0x3d8] sm:$0xff] %v2051
                  %v2053 = vld [vmem:[%s1803 + $0xf80] sm:$0xff]
                  %2054 = vst [vmem:[%s1804 + $0x3e0] sm:$0xff] %v2053
                  %v2055 = vld [vmem:[%s1803 + $0xfa0] sm:$0xff]
                  %2056 = vst [vmem:[%s1804 + $0x3e8] sm:$0xff] %v2055
                  %v2057 = vld [vmem:[%s1803 + $0xfc0] sm:$0xff]
                  %2058 = vst [vmem:[%s1804 + $0x3f0] sm:$0xff] %v2057
                  %v2059 = vld [vmem:[%s1803 + $0xfe0] sm:$0xff]
                  %2060 = vst [vmem:[%s1804 + $0x3f8] sm:$0xff] %v2059
                  %v2061 = vld [vmem:[%s1803 + $0x1000] sm:$0xff]
                  %2062 = vst [vmem:[%s1804 + $0x400] sm:$0xff] %v2061
                  %v2063 = vld [vmem:[%s1803 + $0x1020] sm:$0xff]
                  %2064 = vst [vmem:[%s1804 + $0x408] sm:$0xff] %v2063
                  %v2065 = vld [vmem:[%s1803 + $0x1040] sm:$0xff]
                  %2066 = vst [vmem:[%s1804 + $0x410] sm:$0xff] %v2065
                  %v2067 = vld [vmem:[%s1803 + $0x1060] sm:$0xff]
                  %2068 = vst [vmem:[%s1804 + $0x418] sm:$0xff] %v2067
                  %v2069 = vld [vmem:[%s1803 + $0x1080] sm:$0xff]
                  %2070 = vst [vmem:[%s1804 + $0x420] sm:$0xff] %v2069
                  %v2071 = vld [vmem:[%s1803 + $0x10a0] sm:$0xff]
                  %2072 = vst [vmem:[%s1804 + $0x428] sm:$0xff] %v2071
                  %v2073 = vld [vmem:[%s1803 + $0x10c0] sm:$0xff]
                  %2074 = vst [vmem:[%s1804 + $0x430] sm:$0xff] %v2073
                  %v2075 = vld [vmem:[%s1803 + $0x10e0] sm:$0xff]
                  %2076 = vst [vmem:[%s1804 + $0x438] sm:$0xff] %v2075
                  %v2077 = vld [vmem:[%s1803 + $0x1100] sm:$0xff]
                  %2078 = vst [vmem:[%s1804 + $0x440] sm:$0xff] %v2077
                  %v2079 = vld [vmem:[%s1803 + $0x1120] sm:$0xff]
                  %2080 = vst [vmem:[%s1804 + $0x448] sm:$0xff] %v2079
                  %v2081 = vld [vmem:[%s1803 + $0x1140] sm:$0xff]
                  %2082 = vst [vmem:[%s1804 + $0x450] sm:$0xff] %v2081
                  %v2083 = vld [vmem:[%s1803 + $0x1160] sm:$0xff]
                  %2084 = vst [vmem:[%s1804 + $0x458] sm:$0xff] %v2083
                  %v2085 = vld [vmem:[%s1803 + $0x1180] sm:$0xff]
                  %2086 = vst [vmem:[%s1804 + $0x460] sm:$0xff] %v2085
                  %v2087 = vld [vmem:[%s1803 + $0x11a0] sm:$0xff]
                  %2088 = vst [vmem:[%s1804 + $0x468] sm:$0xff] %v2087
                  %v2089 = vld [vmem:[%s1803 + $0x11c0] sm:$0xff]
                  %2090 = vst [vmem:[%s1804 + $0x470] sm:$0xff] %v2089
                  %v2091 = vld [vmem:[%s1803 + $0x11e0] sm:$0xff]
                  %2092 = vst [vmem:[%s1804 + $0x478] sm:$0xff] %v2091
                  %v2093 = vld [vmem:[%s1803 + $0x1200] sm:$0xff]
                  %2094 = vst [vmem:[%s1804 + $0x480] sm:$0xff] %v2093
                  %v2095 = vld [vmem:[%s1803 + $0x1220] sm:$0xff]
                  %2096 = vst [vmem:[%s1804 + $0x488] sm:$0xff] %v2095
                  %v2097 = vld [vmem:[%s1803 + $0x1240] sm:$0xff]
                  %2098 = vst [vmem:[%s1804 + $0x490] sm:$0xff] %v2097
                  %v2099 = vld [vmem:[%s1803 + $0x1260] sm:$0xff]
                  %2100 = vst [vmem:[%s1804 + $0x498] sm:$0xff] %v2099
                  %v2101 = vld [vmem:[%s1803 + $0x1280] sm:$0xff]
                  %2102 = vst [vmem:[%s1804 + $0x4a0] sm:$0xff] %v2101
                  %v2103 = vld [vmem:[%s1803 + $0x12a0] sm:$0xff]
                  %2104 = vst [vmem:[%s1804 + $0x4a8] sm:$0xff] %v2103
                  %v2105 = vld [vmem:[%s1803 + $0x12c0] sm:$0xff]
                  %2106 = vst [vmem:[%s1804 + $0x4b0] sm:$0xff] %v2105
                  %v2107 = vld [vmem:[%s1803 + $0x12e0] sm:$0xff]
                  %2108 = vst [vmem:[%s1804 + $0x4b8] sm:$0xff] %v2107
                  %v2109 = vld [vmem:[%s1803 + $0x1300] sm:$0xff]
                  %2110 = vst [vmem:[%s1804 + $0x4c0] sm:$0xff] %v2109
                  %v2111 = vld [vmem:[%s1803 + $0x1320] sm:$0xff]
                  %2112 = vst [vmem:[%s1804 + $0x4c8] sm:$0xff] %v2111
                  %v2113 = vld [vmem:[%s1803 + $0x1340] sm:$0xff]
                  %2114 = vst [vmem:[%s1804 + $0x4d0] sm:$0xff] %v2113
                  %v2115 = vld [vmem:[%s1803 + $0x1360] sm:$0xff]
                  %2116 = vst [vmem:[%s1804 + $0x4d8] sm:$0xff] %v2115
                  %v2117 = vld [vmem:[%s1803 + $0x1380] sm:$0xff]
                  %2118 = vst [vmem:[%s1804 + $0x4e0] sm:$0xff] %v2117
                  %v2119 = vld [vmem:[%s1803 + $0x13a0] sm:$0xff]
                  %2120 = vst [vmem:[%s1804 + $0x4e8] sm:$0xff] %v2119
                  %v2121 = vld [vmem:[%s1803 + $0x13c0] sm:$0xff]
                  %2122 = vst [vmem:[%s1804 + $0x4f0] sm:$0xff] %v2121
                  %v2123 = vld [vmem:[%s1803 + $0x13e0] sm:$0xff]
                  %2124 = vst [vmem:[%s1804 + $0x4f8] sm:$0xff] %v2123
                  %v2125 = vld [vmem:[%s1803 + $0x1400] sm:$0xff]
                  %2126 = vst [vmem:[%s1804 + $0x500] sm:$0xff] %v2125
                  %v2127 = vld [vmem:[%s1803 + $0x1420] sm:$0xff]
                  %2128 = vst [vmem:[%s1804 + $0x508] sm:$0xff] %v2127
                  %v2129 = vld [vmem:[%s1803 + $0x1440] sm:$0xff]
                  %2130 = vst [vmem:[%s1804 + $0x510] sm:$0xff] %v2129
                  %v2131 = vld [vmem:[%s1803 + $0x1460] sm:$0xff]
                  %2132 = vst [vmem:[%s1804 + $0x518] sm:$0xff] %v2131
                  %v2133 = vld [vmem:[%s1803 + $0x1480] sm:$0xff]
                  %2134 = vst [vmem:[%s1804 + $0x520] sm:$0xff] %v2133
                  %v2135 = vld [vmem:[%s1803 + $0x14a0] sm:$0xff]
                  %2136 = vst [vmem:[%s1804 + $0x528] sm:$0xff] %v2135
                  %v2137 = vld [vmem:[%s1803 + $0x14c0] sm:$0xff]
                  %2138 = vst [vmem:[%s1804 + $0x530] sm:$0xff] %v2137
                  %v2139 = vld [vmem:[%s1803 + $0x14e0] sm:$0xff]
                  %2140 = vst [vmem:[%s1804 + $0x538] sm:$0xff] %v2139
                  %v2141 = vld [vmem:[%s1803 + $0x1500] sm:$0xff]
                  %2142 = vst [vmem:[%s1804 + $0x540] sm:$0xff] %v2141
                  %v2143 = vld [vmem:[%s1803 + $0x1520] sm:$0xff]
                  %2144 = vst [vmem:[%s1804 + $0x548] sm:$0xff] %v2143
                  %v2145 = vld [vmem:[%s1803 + $0x1540] sm:$0xff]
                  %2146 = vst [vmem:[%s1804 + $0x550] sm:$0xff] %v2145
                  %v2147 = vld [vmem:[%s1803 + $0x1560] sm:$0xff]
                  %2148 = vst [vmem:[%s1804 + $0x558] sm:$0xff] %v2147
                  %v2149 = vld [vmem:[%s1803 + $0x1580] sm:$0xff]
                  %2150 = vst [vmem:[%s1804 + $0x560] sm:$0xff] %v2149
                  %v2151 = vld [vmem:[%s1803 + $0x15a0] sm:$0xff]
                  %2152 = vst [vmem:[%s1804 + $0x568] sm:$0xff] %v2151
                  %v2153 = vld [vmem:[%s1803 + $0x15c0] sm:$0xff]
                  %2154 = vst [vmem:[%s1804 + $0x570] sm:$0xff] %v2153
                  %v2155 = vld [vmem:[%s1803 + $0x15e0] sm:$0xff]
                  %2156 = vst [vmem:[%s1804 + $0x578] sm:$0xff] %v2155
                  %v2157 = vld [vmem:[%s1803 + $0x1600] sm:$0xff]
                  %2158 = vst [vmem:[%s1804 + $0x580] sm:$0xff] %v2157
                  %v2159 = vld [vmem:[%s1803 + $0x1620] sm:$0xff]
                  %2160 = vst [vmem:[%s1804 + $0x588] sm:$0xff] %v2159
                  %v2161 = vld [vmem:[%s1803 + $0x1640] sm:$0xff]
                  %2162 = vst [vmem:[%s1804 + $0x590] sm:$0xff] %v2161
                  %v2163 = vld [vmem:[%s1803 + $0x1660] sm:$0xff]
                  %2164 = vst [vmem:[%s1804 + $0x598] sm:$0xff] %v2163
                  %v2165 = vld [vmem:[%s1803 + $0x1680] sm:$0xff]
                  %2166 = vst [vmem:[%s1804 + $0x5a0] sm:$0xff] %v2165
                  %v2167 = vld [vmem:[%s1803 + $0x16a0] sm:$0xff]
                  %2168 = vst [vmem:[%s1804 + $0x5a8] sm:$0xff] %v2167
                  %v2169 = vld [vmem:[%s1803 + $0x16c0] sm:$0xff]
                  %2170 = vst [vmem:[%s1804 + $0x5b0] sm:$0xff] %v2169
                  %v2171 = vld [vmem:[%s1803 + $0x16e0] sm:$0xff]
                  %2172 = vst [vmem:[%s1804 + $0x5b8] sm:$0xff] %v2171
                  %v2173 = vld [vmem:[%s1803 + $0x1700] sm:$0xff]
                  %2174 = vst [vmem:[%s1804 + $0x5c0] sm:$0xff] %v2173
                  %v2175 = vld [vmem:[%s1803 + $0x1720] sm:$0xff]
                  %2176 = vst [vmem:[%s1804 + $0x5c8] sm:$0xff] %v2175
                  %v2177 = vld [vmem:[%s1803 + $0x1740] sm:$0xff]
                  %2178 = vst [vmem:[%s1804 + $0x5d0] sm:$0xff] %v2177
                  %v2179 = vld [vmem:[%s1803 + $0x1760] sm:$0xff]
                  %2180 = vst [vmem:[%s1804 + $0x5d8] sm:$0xff] %v2179
                  %v2181 = vld [vmem:[%s1803 + $0x1780] sm:$0xff]
                  %2182 = vst [vmem:[%s1804 + $0x5e0] sm:$0xff] %v2181
                  %v2183 = vld [vmem:[%s1803 + $0x17a0] sm:$0xff]
                  %2184 = vst [vmem:[%s1804 + $0x5e8] sm:$0xff] %v2183
                  %v2185 = vld [vmem:[%s1803 + $0x17c0] sm:$0xff]
                  %2186 = vst [vmem:[%s1804 + $0x5f0] sm:$0xff] %v2185
                  %v2187 = vld [vmem:[%s1803 + $0x17e0] sm:$0xff]
                  %2188 = vst [vmem:[%s1804 + $0x5f8] sm:$0xff] %v2187
                  %v2189 = vld [vmem:[%s1803 + $0x1800] sm:$0xff]
                  %2190 = vst [vmem:[%s1804 + $0x600] sm:$0xff] %v2189
                  %v2191 = vld [vmem:[%s1803 + $0x1820] sm:$0xff]
                  %2192 = vst [vmem:[%s1804 + $0x608] sm:$0xff] %v2191
                  %v2193 = vld [vmem:[%s1803 + $0x1840] sm:$0xff]
                  %2194 = vst [vmem:[%s1804 + $0x610] sm:$0xff] %v2193
                  %v2195 = vld [vmem:[%s1803 + $0x1860] sm:$0xff]
                  %2196 = vst [vmem:[%s1804 + $0x618] sm:$0xff] %v2195
                  %v2197 = vld [vmem:[%s1803 + $0x1880] sm:$0xff]
                  %2198 = vst [vmem:[%s1804 + $0x620] sm:$0xff] %v2197
                  %v2199 = vld [vmem:[%s1803 + $0x18a0] sm:$0xff]
                  %2200 = vst [vmem:[%s1804 + $0x628] sm:$0xff] %v2199
                  %v2201 = vld [vmem:[%s1803 + $0x18c0] sm:$0xff]
                  %2202 = vst [vmem:[%s1804 + $0x630] sm:$0xff] %v2201
                  %v2203 = vld [vmem:[%s1803 + $0x18e0] sm:$0xff]
                  %2204 = vst [vmem:[%s1804 + $0x638] sm:$0xff] %v2203
                  %v2205 = vld [vmem:[%s1803 + $0x1900] sm:$0xff]
                  %2206 = vst [vmem:[%s1804 + $0x640] sm:$0xff] %v2205
                  %v2207 = vld [vmem:[%s1803 + $0x1920] sm:$0xff]
                  %2208 = vst [vmem:[%s1804 + $0x648] sm:$0xff] %v2207
                  %v2209 = vld [vmem:[%s1803 + $0x1940] sm:$0xff]
                  %2210 = vst [vmem:[%s1804 + $0x650] sm:$0xff] %v2209
                  %v2211 = vld [vmem:[%s1803 + $0x1960] sm:$0xff]
                  %2212 = vst [vmem:[%s1804 + $0x658] sm:$0xff] %v2211
                  %v2213 = vld [vmem:[%s1803 + $0x1980] sm:$0xff]
                  %2214 = vst [vmem:[%s1804 + $0x660] sm:$0xff] %v2213
                  %v2215 = vld [vmem:[%s1803 + $0x19a0] sm:$0xff]
                  %2216 = vst [vmem:[%s1804 + $0x668] sm:$0xff] %v2215
                  %v2217 = vld [vmem:[%s1803 + $0x19c0] sm:$0xff]
                  %2218 = vst [vmem:[%s1804 + $0x670] sm:$0xff] %v2217
                  %v2219 = vld [vmem:[%s1803 + $0x19e0] sm:$0xff]
                  %2220 = vst [vmem:[%s1804 + $0x678] sm:$0xff] %v2219
                  %v2221 = vld [vmem:[%s1803 + $0x1a00] sm:$0xff]
                  %2222 = vst [vmem:[%s1804 + $0x680] sm:$0xff] %v2221
                  %v2223 = vld [vmem:[%s1803 + $0x1a20] sm:$0xff]
                  %2224 = vst [vmem:[%s1804 + $0x688] sm:$0xff] %v2223
                  %v2225 = vld [vmem:[%s1803 + $0x1a40] sm:$0xff]
                  %2226 = vst [vmem:[%s1804 + $0x690] sm:$0xff] %v2225
                  %v2227 = vld [vmem:[%s1803 + $0x1a60] sm:$0xff]
                  %2228 = vst [vmem:[%s1804 + $0x698] sm:$0xff] %v2227
                  %v2229 = vld [vmem:[%s1803 + $0x1a80] sm:$0xff]
                  %2230 = vst [vmem:[%s1804 + $0x6a0] sm:$0xff] %v2229
                  %v2231 = vld [vmem:[%s1803 + $0x1aa0] sm:$0xff]
                  %2232 = vst [vmem:[%s1804 + $0x6a8] sm:$0xff] %v2231
                  %v2233 = vld [vmem:[%s1803 + $0x1ac0] sm:$0xff]
                  %2234 = vst [vmem:[%s1804 + $0x6b0] sm:$0xff] %v2233
                  %v2235 = vld [vmem:[%s1803 + $0x1ae0] sm:$0xff]
                  %2236 = vst [vmem:[%s1804 + $0x6b8] sm:$0xff] %v2235
                  %v2237 = vld [vmem:[%s1803 + $0x1b00] sm:$0xff]
                  %2238 = vst [vmem:[%s1804 + $0x6c0] sm:$0xff] %v2237
                  %v2239 = vld [vmem:[%s1803 + $0x1b20] sm:$0xff]
                  %2240 = vst [vmem:[%s1804 + $0x6c8] sm:$0xff] %v2239
                  %v2241 = vld [vmem:[%s1803 + $0x1b40] sm:$0xff]
                  %2242 = vst [vmem:[%s1804 + $0x6d0] sm:$0xff] %v2241
                  %v2243 = vld [vmem:[%s1803 + $0x1b60] sm:$0xff]
                  %2244 = vst [vmem:[%s1804 + $0x6d8] sm:$0xff] %v2243
                  %v2245 = vld [vmem:[%s1803 + $0x1b80] sm:$0xff]
                  %2246 = vst [vmem:[%s1804 + $0x6e0] sm:$0xff] %v2245
                  %v2247 = vld [vmem:[%s1803 + $0x1ba0] sm:$0xff]
                  %2248 = vst [vmem:[%s1804 + $0x6e8] sm:$0xff] %v2247
                  %v2249 = vld [vmem:[%s1803 + $0x1bc0] sm:$0xff]
                  %2250 = vst [vmem:[%s1804 + $0x6f0] sm:$0xff] %v2249
                  %v2251 = vld [vmem:[%s1803 + $0x1be0] sm:$0xff]
                  %2252 = vst [vmem:[%s1804 + $0x6f8] sm:$0xff] %v2251
                  %v2253 = vld [vmem:[%s1803 + $0x1c00] sm:$0xff]
                  %2254 = vst [vmem:[%s1804 + $0x700] sm:$0xff] %v2253
                  %v2255 = vld [vmem:[%s1803 + $0x1c20] sm:$0xff]
                  %2256 = vst [vmem:[%s1804 + $0x708] sm:$0xff] %v2255
                  %v2257 = vld [vmem:[%s1803 + $0x1c40] sm:$0xff]
                  %2258 = vst [vmem:[%s1804 + $0x710] sm:$0xff] %v2257
                  %v2259 = vld [vmem:[%s1803 + $0x1c60] sm:$0xff]
                  %2260 = vst [vmem:[%s1804 + $0x718] sm:$0xff] %v2259
                  %v2261 = vld [vmem:[%s1803 + $0x1c80] sm:$0xff]
                  %2262 = vst [vmem:[%s1804 + $0x720] sm:$0xff] %v2261
                  %v2263 = vld [vmem:[%s1803 + $0x1ca0] sm:$0xff]
                  %2264 = vst [vmem:[%s1804 + $0x728] sm:$0xff] %v2263
                  %v2265 = vld [vmem:[%s1803 + $0x1cc0] sm:$0xff]
                  %2266 = vst [vmem:[%s1804 + $0x730] sm:$0xff] %v2265
                  %v2267 = vld [vmem:[%s1803 + $0x1ce0] sm:$0xff]
                  %2268 = vst [vmem:[%s1804 + $0x738] sm:$0xff] %v2267
                  %v2269 = vld [vmem:[%s1803 + $0x1d00] sm:$0xff]
                  %2270 = vst [vmem:[%s1804 + $0x740] sm:$0xff] %v2269
                  %v2271 = vld [vmem:[%s1803 + $0x1d20] sm:$0xff]
                  %2272 = vst [vmem:[%s1804 + $0x748] sm:$0xff] %v2271
                  %v2273 = vld [vmem:[%s1803 + $0x1d40] sm:$0xff]
                  %2274 = vst [vmem:[%s1804 + $0x750] sm:$0xff] %v2273
                  %v2275 = vld [vmem:[%s1803 + $0x1d60] sm:$0xff]
                  %2276 = vst [vmem:[%s1804 + $0x758] sm:$0xff] %v2275
                  %v2277 = vld [vmem:[%s1803 + $0x1d80] sm:$0xff]
                  %2278 = vst [vmem:[%s1804 + $0x760] sm:$0xff] %v2277
                  %v2279 = vld [vmem:[%s1803 + $0x1da0] sm:$0xff]
                  %2280 = vst [vmem:[%s1804 + $0x768] sm:$0xff] %v2279
                  %v2281 = vld [vmem:[%s1803 + $0x1dc0] sm:$0xff]
                  %2282 = vst [vmem:[%s1804 + $0x770] sm:$0xff] %v2281
                  %v2283 = vld [vmem:[%s1803 + $0x1de0] sm:$0xff]
                  %2284 = vst [vmem:[%s1804 + $0x778] sm:$0xff] %v2283
                  %v2285 = vld [vmem:[%s1803 + $0x1e00] sm:$0xff]
                  %2286 = vst [vmem:[%s1804 + $0x780] sm:$0xff] %v2285
                  %v2287 = vld [vmem:[%s1803 + $0x1e20] sm:$0xff]
                  %2288 = vst [vmem:[%s1804 + $0x788] sm:$0xff] %v2287
                  %v2289 = vld [vmem:[%s1803 + $0x1e40] sm:$0xff]
                  %2290 = vst [vmem:[%s1804 + $0x790] sm:$0xff] %v2289
                  %v2291 = vld [vmem:[%s1803 + $0x1e60] sm:$0xff]
                  %2292 = vst [vmem:[%s1804 + $0x798] sm:$0xff] %v2291
                  %v2293 = vld [vmem:[%s1803 + $0x1e80] sm:$0xff]
                  %2294 = vst [vmem:[%s1804 + $0x7a0] sm:$0xff] %v2293
                  %v2295 = vld [vmem:[%s1803 + $0x1ea0] sm:$0xff]
                  %2296 = vst [vmem:[%s1804 + $0x7a8] sm:$0xff] %v2295
                  %v2297 = vld [vmem:[%s1803 + $0x1ec0] sm:$0xff]
                  %2298 = vst [vmem:[%s1804 + $0x7b0] sm:$0xff] %v2297
                  %v2299 = vld [vmem:[%s1803 + $0x1ee0] sm:$0xff]
                  %2300 = vst [vmem:[%s1804 + $0x7b8] sm:$0xff] %v2299
                  %v2301 = vld [vmem:[%s1803 + $0x1f00] sm:$0xff]
                  %2302 = vst [vmem:[%s1804 + $0x7c0] sm:$0xff] %v2301
                  %v2303 = vld [vmem:[%s1803 + $0x1f20] sm:$0xff]
                  %2304 = vst [vmem:[%s1804 + $0x7c8] sm:$0xff] %v2303
                  %v2305 = vld [vmem:[%s1803 + $0x1f40] sm:$0xff]
                  %2306 = vst [vmem:[%s1804 + $0x7d0] sm:$0xff] %v2305
                  %v2307 = vld [vmem:[%s1803 + $0x1f60] sm:$0xff]
                  %2308 = vst [vmem:[%s1804 + $0x7d8] sm:$0xff] %v2307
                  %v2309 = vld [vmem:[%s1803 + $0x1f80] sm:$0xff]
                  %2310 = vst [vmem:[%s1804 + $0x7e0] sm:$0xff] %v2309
                  %v2311 = vld [vmem:[%s1803 + $0x1fa0] sm:$0xff]
                  %2312 = vst [vmem:[%s1804 + $0x7e8] sm:$0xff] %v2311
                  %v2313 = vld [vmem:[%s1803 + $0x1fc0] sm:$0xff]
                  %2314 = vst [vmem:[%s1804 + $0x7f0] sm:$0xff] %v2313
                  %v2315 = vld [vmem:[%s1803 + $0x1fe0] sm:$0xff]
                  %2316 = vst [vmem:[%s1804 + $0x7f8] sm:$0xff] %v2315
                  %v2317 = vld [vmem:[%s1803 + $0x2000] sm:$0xff]
                  %2318 = vst [vmem:[%s1804 + $0x800] sm:$0xff] %v2317
                  %v2319 = vld [vmem:[%s1803 + $0x2020] sm:$0xff]
                  %2320 = vst [vmem:[%s1804 + $0x808] sm:$0xff] %v2319
                  %v2321 = vld [vmem:[%s1803 + $0x2040] sm:$0xff]
                  %2322 = vst [vmem:[%s1804 + $0x810] sm:$0xff] %v2321
                  %v2323 = vld [vmem:[%s1803 + $0x2060] sm:$0xff]
                  %2324 = vst [vmem:[%s1804 + $0x818] sm:$0xff] %v2323
                  %v2325 = vld [vmem:[%s1803 + $0x2080] sm:$0xff]
                  %2326 = vst [vmem:[%s1804 + $0x820] sm:$0xff] %v2325
                  %v2327 = vld [vmem:[%s1803 + $0x20a0] sm:$0xff]
                  %2328 = vst [vmem:[%s1804 + $0x828] sm:$0xff] %v2327
                  %v2329 = vld [vmem:[%s1803 + $0x20c0] sm:$0xff]
                  %2330 = vst [vmem:[%s1804 + $0x830] sm:$0xff] %v2329
                  %v2331 = vld [vmem:[%s1803 + $0x20e0] sm:$0xff]
                  %2332 = vst [vmem:[%s1804 + $0x838] sm:$0xff] %v2331
                  %v2333 = vld [vmem:[%s1803 + $0x2100] sm:$0xff]
                  %2334 = vst [vmem:[%s1804 + $0x840] sm:$0xff] %v2333
                  %v2335 = vld [vmem:[%s1803 + $0x2120] sm:$0xff]
                  %2336 = vst [vmem:[%s1804 + $0x848] sm:$0xff] %v2335
                  %v2337 = vld [vmem:[%s1803 + $0x2140] sm:$0xff]
                  %2338 = vst [vmem:[%s1804 + $0x850] sm:$0xff] %v2337
                  %v2339 = vld [vmem:[%s1803 + $0x2160] sm:$0xff]
                  %2340 = vst [vmem:[%s1804 + $0x858] sm:$0xff] %v2339
                  %v2341 = vld [vmem:[%s1803 + $0x2180] sm:$0xff]
                  %2342 = vst [vmem:[%s1804 + $0x860] sm:$0xff] %v2341
                  %v2343 = vld [vmem:[%s1803 + $0x21a0] sm:$0xff]
                  %2344 = vst [vmem:[%s1804 + $0x868] sm:$0xff] %v2343
                  %v2345 = vld [vmem:[%s1803 + $0x21c0] sm:$0xff]
                  %2346 = vst [vmem:[%s1804 + $0x870] sm:$0xff] %v2345
                  %v2347 = vld [vmem:[%s1803 + $0x21e0] sm:$0xff]
                  %2348 = vst [vmem:[%s1804 + $0x878] sm:$0xff] %v2347
                  %v2349 = vld [vmem:[%s1803 + $0x2200] sm:$0xff]
                  %2350 = vst [vmem:[%s1804 + $0x880] sm:$0xff] %v2349
                  %v2351 = vld [vmem:[%s1803 + $0x2220] sm:$0xff]
                  %2352 = vst [vmem:[%s1804 + $0x888] sm:$0xff] %v2351
                  %v2353 = vld [vmem:[%s1803 + $0x2240] sm:$0xff]
                  %2354 = vst [vmem:[%s1804 + $0x890] sm:$0xff] %v2353
                  %v2355 = vld [vmem:[%s1803 + $0x2260] sm:$0xff]
                  %2356 = vst [vmem:[%s1804 + $0x898] sm:$0xff] %v2355
                  %v2357 = vld [vmem:[%s1803 + $0x2280] sm:$0xff]
                  %2358 = vst [vmem:[%s1804 + $0x8a0] sm:$0xff] %v2357
                  %v2359 = vld [vmem:[%s1803 + $0x22a0] sm:$0xff]
                  %2360 = vst [vmem:[%s1804 + $0x8a8] sm:$0xff] %v2359
                  %v2361 = vld [vmem:[%s1803 + $0x22c0] sm:$0xff]
                  %2362 = vst [vmem:[%s1804 + $0x8b0] sm:$0xff] %v2361
                  %v2363 = vld [vmem:[%s1803 + $0x22e0] sm:$0xff]
                  %2364 = vst [vmem:[%s1804 + $0x8b8] sm:$0xff] %v2363
                  %v2365 = vld [vmem:[%s1803 + $0x2300] sm:$0xff]
                  %2366 = vst [vmem:[%s1804 + $0x8c0] sm:$0xff] %v2365
                  %v2367 = vld [vmem:[%s1803 + $0x2320] sm:$0xff]
                  %2368 = vst [vmem:[%s1804 + $0x8c8] sm:$0xff] %v2367
                  %v2369 = vld [vmem:[%s1803 + $0x2340] sm:$0xff]
                  %2370 = vst [vmem:[%s1804 + $0x8d0] sm:$0xff] %v2369
                  %v2371 = vld [vmem:[%s1803 + $0x2360] sm:$0xff]
                  %2372 = vst [vmem:[%s1804 + $0x8d8] sm:$0xff] %v2371
                  %v2373 = vld [vmem:[%s1803 + $0x2380] sm:$0xff]
                  %2374 = vst [vmem:[%s1804 + $0x8e0] sm:$0xff] %v2373
                  %v2375 = vld [vmem:[%s1803 + $0x23a0] sm:$0xff]
                  %2376 = vst [vmem:[%s1804 + $0x8e8] sm:$0xff] %v2375
                  %v2377 = vld [vmem:[%s1803 + $0x23c0] sm:$0xff]
                  %2378 = vst [vmem:[%s1804 + $0x8f0] sm:$0xff] %v2377
                  %v2379 = vld [vmem:[%s1803 + $0x23e0] sm:$0xff]
                  %2380 = vst [vmem:[%s1804 + $0x8f8] sm:$0xff] %v2379
                  %v2381 = vld [vmem:[%s1803 + $0x2400] sm:$0xff]
                  %2382 = vst [vmem:[%s1804 + $0x900] sm:$0xff] %v2381
                  %v2383 = vld [vmem:[%s1803 + $0x2420] sm:$0xff]
                  %2384 = vst [vmem:[%s1804 + $0x908] sm:$0xff] %v2383
                  %v2385 = vld [vmem:[%s1803 + $0x2440] sm:$0xff]
                  %2386 = vst [vmem:[%s1804 + $0x910] sm:$0xff] %v2385
                  %v2387 = vld [vmem:[%s1803 + $0x2460] sm:$0xff]
                  %2388 = vst [vmem:[%s1804 + $0x918] sm:$0xff] %v2387
                  %v2389 = vld [vmem:[%s1803 + $0x2480] sm:$0xff]
                  %2390 = vst [vmem:[%s1804 + $0x920] sm:$0xff] %v2389
                  %v2391 = vld [vmem:[%s1803 + $0x24a0] sm:$0xff]
                  %2392 = vst [vmem:[%s1804 + $0x928] sm:$0xff] %v2391
                  %v2393 = vld [vmem:[%s1803 + $0x24c0] sm:$0xff]
                  %2394 = vst [vmem:[%s1804 + $0x930] sm:$0xff] %v2393
                  %v2395 = vld [vmem:[%s1803 + $0x24e0] sm:$0xff]
                  %2396 = vst [vmem:[%s1804 + $0x938] sm:$0xff] %v2395
                  %v2397 = vld [vmem:[%s1803 + $0x2500] sm:$0xff]
                  %2398 = vst [vmem:[%s1804 + $0x940] sm:$0xff] %v2397
                  %v2399 = vld [vmem:[%s1803 + $0x2520] sm:$0xff]
                  %2400 = vst [vmem:[%s1804 + $0x948] sm:$0xff] %v2399
                  %v2401 = vld [vmem:[%s1803 + $0x2540] sm:$0xff]
                  %2402 = vst [vmem:[%s1804 + $0x950] sm:$0xff] %v2401
                  %v2403 = vld [vmem:[%s1803 + $0x2560] sm:$0xff]
                  %2404 = vst [vmem:[%s1804 + $0x958] sm:$0xff] %v2403
                  %v2405 = vld [vmem:[%s1803 + $0x2580] sm:$0xff]
                  %2406 = vst [vmem:[%s1804 + $0x960] sm:$0xff] %v2405
                  %v2407 = vld [vmem:[%s1803 + $0x25a0] sm:$0xff]
                  %2408 = vst [vmem:[%s1804 + $0x968] sm:$0xff] %v2407
                  %v2409 = vld [vmem:[%s1803 + $0x25c0] sm:$0xff]
                  %2410 = vst [vmem:[%s1804 + $0x970] sm:$0xff] %v2409
                  %v2411 = vld [vmem:[%s1803 + $0x25e0] sm:$0xff]
                  %2412 = vst [vmem:[%s1804 + $0x978] sm:$0xff] %v2411
                  %v2413 = vld [vmem:[%s1803 + $0x2600] sm:$0xff]
                  %2414 = vst [vmem:[%s1804 + $0x980] sm:$0xff] %v2413
                  %v2415 = vld [vmem:[%s1803 + $0x2620] sm:$0xff]
                  %2416 = vst [vmem:[%s1804 + $0x988] sm:$0xff] %v2415
                  %v2417 = vld [vmem:[%s1803 + $0x2640] sm:$0xff]
                  %2418 = vst [vmem:[%s1804 + $0x990] sm:$0xff] %v2417
                  %v2419 = vld [vmem:[%s1803 + $0x2660] sm:$0xff]
                  %2420 = vst [vmem:[%s1804 + $0x998] sm:$0xff] %v2419
                  %v2421 = vld [vmem:[%s1803 + $0x2680] sm:$0xff]
                  %2422 = vst [vmem:[%s1804 + $0x9a0] sm:$0xff] %v2421
                  %v2423 = vld [vmem:[%s1803 + $0x26a0] sm:$0xff]
                  %2424 = vst [vmem:[%s1804 + $0x9a8] sm:$0xff] %v2423
                  %v2425 = vld [vmem:[%s1803 + $0x26c0] sm:$0xff]
                  %2426 = vst [vmem:[%s1804 + $0x9b0] sm:$0xff] %v2425
                  %v2427 = vld [vmem:[%s1803 + $0x26e0] sm:$0xff]
                  %2428 = vst [vmem:[%s1804 + $0x9b8] sm:$0xff] %v2427
                  %v2429 = vld [vmem:[%s1803 + $0x2700] sm:$0xff]
                  %2430 = vst [vmem:[%s1804 + $0x9c0] sm:$0xff] %v2429
                  %v2431 = vld [vmem:[%s1803 + $0x2720] sm:$0xff]
                  %2432 = vst [vmem:[%s1804 + $0x9c8] sm:$0xff] %v2431
                  %v2433 = vld [vmem:[%s1803 + $0x2740] sm:$0xff]
                  %2434 = vst [vmem:[%s1804 + $0x9d0] sm:$0xff] %v2433
                  %v2435 = vld [vmem:[%s1803 + $0x2760] sm:$0xff]
                  %2436 = vst [vmem:[%s1804 + $0x9d8] sm:$0xff] %v2435
                  %v2437 = vld [vmem:[%s1803 + $0x2780] sm:$0xff]
                  %2438 = vst [vmem:[%s1804 + $0x9e0] sm:$0xff] %v2437
                  %v2439 = vld [vmem:[%s1803 + $0x27a0] sm:$0xff]
                  %2440 = vst [vmem:[%s1804 + $0x9e8] sm:$0xff] %v2439
                  %v2441 = vld [vmem:[%s1803 + $0x27c0] sm:$0xff]
                  %2442 = vst [vmem:[%s1804 + $0x9f0] sm:$0xff] %v2441
                  %v2443 = vld [vmem:[%s1803 + $0x27e0] sm:$0xff]
                  %2444 = vst [vmem:[%s1804 + $0x9f8] sm:$0xff] %v2443
                  %v2445 = vld [vmem:[%s1803 + $0x2800] sm:$0xff]
                  %2446 = vst [vmem:[%s1804 + $0xa00] sm:$0xff] %v2445
                  %v2447 = vld [vmem:[%s1803 + $0x2820] sm:$0xff]
                  %2448 = vst [vmem:[%s1804 + $0xa08] sm:$0xff] %v2447
                  %v2449 = vld [vmem:[%s1803 + $0x2840] sm:$0xff]
                  %2450 = vst [vmem:[%s1804 + $0xa10] sm:$0xff] %v2449
                  %v2451 = vld [vmem:[%s1803 + $0x2860] sm:$0xff]
                  %2452 = vst [vmem:[%s1804 + $0xa18] sm:$0xff] %v2451
                  %v2453 = vld [vmem:[%s1803 + $0x2880] sm:$0xff]
                  %2454 = vst [vmem:[%s1804 + $0xa20] sm:$0xff] %v2453
                  %v2455 = vld [vmem:[%s1803 + $0x28a0] sm:$0xff]
                  %2456 = vst [vmem:[%s1804 + $0xa28] sm:$0xff] %v2455
                  %v2457 = vld [vmem:[%s1803 + $0x28c0] sm:$0xff]
                  %2458 = vst [vmem:[%s1804 + $0xa30] sm:$0xff] %v2457
                  %v2459 = vld [vmem:[%s1803 + $0x28e0] sm:$0xff]
                  %2460 = vst [vmem:[%s1804 + $0xa38] sm:$0xff] %v2459
                  %v2461 = vld [vmem:[%s1803 + $0x2900] sm:$0xff]
                  %2462 = vst [vmem:[%s1804 + $0xa40] sm:$0xff] %v2461
                  %v2463 = vld [vmem:[%s1803 + $0x2920] sm:$0xff]
                  %2464 = vst [vmem:[%s1804 + $0xa48] sm:$0xff] %v2463
                  %v2465 = vld [vmem:[%s1803 + $0x2940] sm:$0xff]
                  %2466 = vst [vmem:[%s1804 + $0xa50] sm:$0xff] %v2465
                  %v2467 = vld [vmem:[%s1803 + $0x2960] sm:$0xff]
                  %2468 = vst [vmem:[%s1804 + $0xa58] sm:$0xff] %v2467
                  %v2469 = vld [vmem:[%s1803 + $0x2980] sm:$0xff]
                  %2470 = vst [vmem:[%s1804 + $0xa60] sm:$0xff] %v2469
                  %v2471 = vld [vmem:[%s1803 + $0x29a0] sm:$0xff]
                  %2472 = vst [vmem:[%s1804 + $0xa68] sm:$0xff] %v2471
                  %v2473 = vld [vmem:[%s1803 + $0x29c0] sm:$0xff]
                  %2474 = vst [vmem:[%s1804 + $0xa70] sm:$0xff] %v2473
                  %v2475 = vld [vmem:[%s1803 + $0x29e0] sm:$0xff]
                  %2476 = vst [vmem:[%s1804 + $0xa78] sm:$0xff] %v2475
                  %v2477 = vld [vmem:[%s1803 + $0x2a00] sm:$0xff]
                  %2478 = vst [vmem:[%s1804 + $0xa80] sm:$0xff] %v2477
                  %v2479 = vld [vmem:[%s1803 + $0x2a20] sm:$0xff]
                  %2480 = vst [vmem:[%s1804 + $0xa88] sm:$0xff] %v2479
                  %v2481 = vld [vmem:[%s1803 + $0x2a40] sm:$0xff]
                  %2482 = vst [vmem:[%s1804 + $0xa90] sm:$0xff] %v2481
                  %v2483 = vld [vmem:[%s1803 + $0x2a60] sm:$0xff]
                  %2484 = vst [vmem:[%s1804 + $0xa98] sm:$0xff] %v2483
                  %v2485 = vld [vmem:[%s1803 + $0x2a80] sm:$0xff]
                  %2486 = vst [vmem:[%s1804 + $0xaa0] sm:$0xff] %v2485
                  %v2487 = vld [vmem:[%s1803 + $0x2aa0] sm:$0xff]
                  %2488 = vst [vmem:[%s1804 + $0xaa8] sm:$0xff] %v2487
                  %v2489 = vld [vmem:[%s1803 + $0x2ac0] sm:$0xff]
                  %2490 = vst [vmem:[%s1804 + $0xab0] sm:$0xff] %v2489
                  %v2491 = vld [vmem:[%s1803 + $0x2ae0] sm:$0xff]
                  %2492 = vst [vmem:[%s1804 + $0xab8] sm:$0xff] %v2491
                  %v2493 = vld [vmem:[%s1803 + $0x2b00] sm:$0xff]
                  %2494 = vst [vmem:[%s1804 + $0xac0] sm:$0xff] %v2493
                  %v2495 = vld [vmem:[%s1803 + $0x2b20] sm:$0xff]
                  %2496 = vst [vmem:[%s1804 + $0xac8] sm:$0xff] %v2495
                  %v2497 = vld [vmem:[%s1803 + $0x2b40] sm:$0xff]
                  %2498 = vst [vmem:[%s1804 + $0xad0] sm:$0xff] %v2497
                  %v2499 = vld [vmem:[%s1803 + $0x2b60] sm:$0xff]
                  %2500 = vst [vmem:[%s1804 + $0xad8] sm:$0xff] %v2499
                  %v2501 = vld [vmem:[%s1803 + $0x2b80] sm:$0xff]
                  %2502 = vst [vmem:[%s1804 + $0xae0] sm:$0xff] %v2501
                  %v2503 = vld [vmem:[%s1803 + $0x2ba0] sm:$0xff]
                  %2504 = vst [vmem:[%s1804 + $0xae8] sm:$0xff] %v2503
                  %v2505 = vld [vmem:[%s1803 + $0x2bc0] sm:$0xff]
                  %2506 = vst [vmem:[%s1804 + $0xaf0] sm:$0xff] %v2505
                  %v2507 = vld [vmem:[%s1803 + $0x2be0] sm:$0xff]
                  %2508 = vst [vmem:[%s1804 + $0xaf8] sm:$0xff] %v2507
                  %v2509 = vld [vmem:[%s1803 + $0x2c00] sm:$0xff]
                  %2510 = vst [vmem:[%s1804 + $0xb00] sm:$0xff] %v2509
                  %v2511 = vld [vmem:[%s1803 + $0x2c20] sm:$0xff]
                  %2512 = vst [vmem:[%s1804 + $0xb08] sm:$0xff] %v2511
                  %v2513 = vld [vmem:[%s1803 + $0x2c40] sm:$0xff]
                  %2514 = vst [vmem:[%s1804 + $0xb10] sm:$0xff] %v2513
                  %v2515 = vld [vmem:[%s1803 + $0x2c60] sm:$0xff]
                  %2516 = vst [vmem:[%s1804 + $0xb18] sm:$0xff] %v2515
                  %v2517 = vld [vmem:[%s1803 + $0x2c80] sm:$0xff]
                  %2518 = vst [vmem:[%s1804 + $0xb20] sm:$0xff] %v2517
                  %v2519 = vld [vmem:[%s1803 + $0x2ca0] sm:$0xff]
                  %2520 = vst [vmem:[%s1804 + $0xb28] sm:$0xff] %v2519
                  %v2521 = vld [vmem:[%s1803 + $0x2cc0] sm:$0xff]
                  %2522 = vst [vmem:[%s1804 + $0xb30] sm:$0xff] %v2521
                  %v2523 = vld [vmem:[%s1803 + $0x2ce0] sm:$0xff]
                  %2524 = vst [vmem:[%s1804 + $0xb38] sm:$0xff] %v2523
                  %v2525 = vld [vmem:[%s1803 + $0x2d00] sm:$0xff]
                  %2526 = vst [vmem:[%s1804 + $0xb40] sm:$0xff] %v2525
                  %v2527 = vld [vmem:[%s1803 + $0x2d20] sm:$0xff]
                  %2528 = vst [vmem:[%s1804 + $0xb48] sm:$0xff] %v2527
                  %v2529 = vld [vmem:[%s1803 + $0x2d40] sm:$0xff]
                  %2530 = vst [vmem:[%s1804 + $0xb50] sm:$0xff] %v2529
                  %v2531 = vld [vmem:[%s1803 + $0x2d60] sm:$0xff]
                  %2532 = vst [vmem:[%s1804 + $0xb58] sm:$0xff] %v2531
                  %v2533 = vld [vmem:[%s1803 + $0x2d80] sm:$0xff]
                  %2534 = vst [vmem:[%s1804 + $0xb60] sm:$0xff] %v2533
                  %v2535 = vld [vmem:[%s1803 + $0x2da0] sm:$0xff]
                  %2536 = vst [vmem:[%s1804 + $0xb68] sm:$0xff] %v2535
                  %v2537 = vld [vmem:[%s1803 + $0x2dc0] sm:$0xff]
                  %2538 = vst [vmem:[%s1804 + $0xb70] sm:$0xff] %v2537
                  %v2539 = vld [vmem:[%s1803 + $0x2de0] sm:$0xff]
                  %2540 = vst [vmem:[%s1804 + $0xb78] sm:$0xff] %v2539
                  %v2541 = vld [vmem:[%s1803 + $0x2e00] sm:$0xff]
                  %2542 = vst [vmem:[%s1804 + $0xb80] sm:$0xff] %v2541
                  %v2543 = vld [vmem:[%s1803 + $0x2e20] sm:$0xff]
                  %2544 = vst [vmem:[%s1804 + $0xb88] sm:$0xff] %v2543
                  %v2545 = vld [vmem:[%s1803 + $0x2e40] sm:$0xff]
                  %2546 = vst [vmem:[%s1804 + $0xb90] sm:$0xff] %v2545
                  %v2547 = vld [vmem:[%s1803 + $0x2e60] sm:$0xff]
                  %2548 = vst [vmem:[%s1804 + $0xb98] sm:$0xff] %v2547
                  %v2549 = vld [vmem:[%s1803 + $0x2e80] sm:$0xff]
                  %2550 = vst [vmem:[%s1804 + $0xba0] sm:$0xff] %v2549
                  %v2551 = vld [vmem:[%s1803 + $0x2ea0] sm:$0xff]
                  %2552 = vst [vmem:[%s1804 + $0xba8] sm:$0xff] %v2551
                  %v2553 = vld [vmem:[%s1803 + $0x2ec0] sm:$0xff]
                  %2554 = vst [vmem:[%s1804 + $0xbb0] sm:$0xff] %v2553
                  %v2555 = vld [vmem:[%s1803 + $0x2ee0] sm:$0xff]
                  %2556 = vst [vmem:[%s1804 + $0xbb8] sm:$0xff] %v2555
                  %v2557 = vld [vmem:[%s1803 + $0x2f00] sm:$0xff]
                  %2558 = vst [vmem:[%s1804 + $0xbc0] sm:$0xff] %v2557
                  %v2559 = vld [vmem:[%s1803 + $0x2f20] sm:$0xff]
                  %2560 = vst [vmem:[%s1804 + $0xbc8] sm:$0xff] %v2559
                  %v2561 = vld [vmem:[%s1803 + $0x2f40] sm:$0xff]
                  %2562 = vst [vmem:[%s1804 + $0xbd0] sm:$0xff] %v2561
                  %v2563 = vld [vmem:[%s1803 + $0x2f60] sm:$0xff]
                  %2564 = vst [vmem:[%s1804 + $0xbd8] sm:$0xff] %v2563
                  %v2565 = vld [vmem:[%s1803 + $0x2f80] sm:$0xff]
                  %2566 = vst [vmem:[%s1804 + $0xbe0] sm:$0xff] %v2565
                  %v2567 = vld [vmem:[%s1803 + $0x2fa0] sm:$0xff]
                  %2568 = vst [vmem:[%s1804 + $0xbe8] sm:$0xff] %v2567
                  %v2569 = vld [vmem:[%s1803 + $0x2fc0] sm:$0xff]
                  %2570 = vst [vmem:[%s1804 + $0xbf0] sm:$0xff] %v2569
                  %v2571 = vld [vmem:[%s1803 + $0x2fe0] sm:$0xff]
                  %2572 = vst [vmem:[%s1804 + $0xbf8] sm:$0xff] %v2571
                  %v2573 = vld [vmem:[%s1803 + $0x3000] sm:$0xff]
                  %2574 = vst [vmem:[%s1804 + $0xc00] sm:$0xff] %v2573
                  %v2575 = vld [vmem:[%s1803 + $0x3020] sm:$0xff]
                  %2576 = vst [vmem:[%s1804 + $0xc08] sm:$0xff] %v2575
                  %v2577 = vld [vmem:[%s1803 + $0x3040] sm:$0xff]
                  %2578 = vst [vmem:[%s1804 + $0xc10] sm:$0xff] %v2577
                  %v2579 = vld [vmem:[%s1803 + $0x3060] sm:$0xff]
                  %2580 = vst [vmem:[%s1804 + $0xc18] sm:$0xff] %v2579
                  %v2581 = vld [vmem:[%s1803 + $0x3080] sm:$0xff]
                  %2582 = vst [vmem:[%s1804 + $0xc20] sm:$0xff] %v2581
                  %v2583 = vld [vmem:[%s1803 + $0x30a0] sm:$0xff]
                  %2584 = vst [vmem:[%s1804 + $0xc28] sm:$0xff] %v2583
                  %v2585 = vld [vmem:[%s1803 + $0x30c0] sm:$0xff]
                  %2586 = vst [vmem:[%s1804 + $0xc30] sm:$0xff] %v2585
                  %v2587 = vld [vmem:[%s1803 + $0x30e0] sm:$0xff]
                  %2588 = vst [vmem:[%s1804 + $0xc38] sm:$0xff] %v2587
                  %s2589 = sadd.s32 1, %s1802
                  %p2590 = scmp.ge.s32.totalorder %s2589, 1
                  %s2591 = scalar_select %p2590, 0, %s2589
                  %s2592 = smul.u32 %s2591, 8
                  %s2593 = smul.u32 %s2591, 8
                  %s2594 = scalar_lea.vmem %s189, %s2592
                  %s2595 = scalar_lea.vmem %s186, %s2593 [#allocation2]
                $region63: #{dueling_dqn_forward.7} parent=57 // loop_footer
                  %s1801 = sadd.s32 1, %s1797
                $region64: #{dueling_dqn_forward.7} parent=57 // loop_footer_branch
                  %1796 = sbr.rel target = $region60
                $region65: #{dueling_dqn_forward.7} parent=57 // loop_exit
                  _
                %s2597 = ssub.s32 1, 1
                loop: start=0, step=1, limit=1
                $region66: #{dueling_dqn_forward.7} parent=57 // loop_pre_header
                  _
                $region67: #{dueling_dqn_forward.7} parent=57 // loop_header
                  %s2599 = sphi 0, %s2603
                  %p2600 = scmp.ge.s32.totalorder %s2599, 1
                  %s2604 = sphi %s1794, %s1794
                  %s2605 = sphi %s1795, %s1795
                $region68: #{dueling_dqn_forward.7} parent=57 // loop_header_branch
                  %2602 = sbr.rel (%p2600) target = $region72
                $region69: #{dueling_dqn_forward.7} parent=57 // loop_body
                  %v2606 = vld [vmem:[%s2604] sm:%s2597]
                  %2607 = vst [vmem:[%s2605] sm:%s2597] %v2606
                  %v2608 = vld [vmem:[%s2604 + $0x20] sm:%s2597]
                  %2609 = vst [vmem:[%s2605 + $0x8] sm:%s2597] %v2608
                  %v2610 = vld [vmem:[%s2604 + $0x40] sm:%s2597]
                  %2611 = vst [vmem:[%s2605 + $0x10] sm:%s2597] %v2610
                  %v2612 = vld [vmem:[%s2604 + $0x60] sm:%s2597]
                  %2613 = vst [vmem:[%s2605 + $0x18] sm:%s2597] %v2612
                  %v2614 = vld [vmem:[%s2604 + $0x80] sm:%s2597]
                  %2615 = vst [vmem:[%s2605 + $0x20] sm:%s2597] %v2614
                  %v2616 = vld [vmem:[%s2604 + $0xa0] sm:%s2597]
                  %2617 = vst [vmem:[%s2605 + $0x28] sm:%s2597] %v2616
                  %v2618 = vld [vmem:[%s2604 + $0xc0] sm:%s2597]
                  %2619 = vst [vmem:[%s2605 + $0x30] sm:%s2597] %v2618
                  %v2620 = vld [vmem:[%s2604 + $0xe0] sm:%s2597]
                  %2621 = vst [vmem:[%s2605 + $0x38] sm:%s2597] %v2620
                  %v2622 = vld [vmem:[%s2604 + $0x100] sm:%s2597]
                  %2623 = vst [vmem:[%s2605 + $0x40] sm:%s2597] %v2622
                  %v2624 = vld [vmem:[%s2604 + $0x120] sm:%s2597]
                  %2625 = vst [vmem:[%s2605 + $0x48] sm:%s2597] %v2624
                  %v2626 = vld [vmem:[%s2604 + $0x140] sm:%s2597]
                  %2627 = vst [vmem:[%s2605 + $0x50] sm:%s2597] %v2626
                  %v2628 = vld [vmem:[%s2604 + $0x160] sm:%s2597]
                  %2629 = vst [vmem:[%s2605 + $0x58] sm:%s2597] %v2628
                  %v2630 = vld [vmem:[%s2604 + $0x180] sm:%s2597]
                  %2631 = vst [vmem:[%s2605 + $0x60] sm:%s2597] %v2630
                  %v2632 = vld [vmem:[%s2604 + $0x1a0] sm:%s2597]
                  %2633 = vst [vmem:[%s2605 + $0x68] sm:%s2597] %v2632
                  %v2634 = vld [vmem:[%s2604 + $0x1c0] sm:%s2597]
                  %2635 = vst [vmem:[%s2605 + $0x70] sm:%s2597] %v2634
                  %v2636 = vld [vmem:[%s2604 + $0x1e0] sm:%s2597]
                  %2637 = vst [vmem:[%s2605 + $0x78] sm:%s2597] %v2636
                  %v2638 = vld [vmem:[%s2604 + $0x200] sm:%s2597]
                  %2639 = vst [vmem:[%s2605 + $0x80] sm:%s2597] %v2638
                  %v2640 = vld [vmem:[%s2604 + $0x220] sm:%s2597]
                  %2641 = vst [vmem:[%s2605 + $0x88] sm:%s2597] %v2640
                  %v2642 = vld [vmem:[%s2604 + $0x240] sm:%s2597]
                  %2643 = vst [vmem:[%s2605 + $0x90] sm:%s2597] %v2642
                  %v2644 = vld [vmem:[%s2604 + $0x260] sm:%s2597]
                  %2645 = vst [vmem:[%s2605 + $0x98] sm:%s2597] %v2644
                  %v2646 = vld [vmem:[%s2604 + $0x280] sm:%s2597]
                  %2647 = vst [vmem:[%s2605 + $0xa0] sm:%s2597] %v2646
                  %v2648 = vld [vmem:[%s2604 + $0x2a0] sm:%s2597]
                  %2649 = vst [vmem:[%s2605 + $0xa8] sm:%s2597] %v2648
                  %v2650 = vld [vmem:[%s2604 + $0x2c0] sm:%s2597]
                  %2651 = vst [vmem:[%s2605 + $0xb0] sm:%s2597] %v2650
                  %v2652 = vld [vmem:[%s2604 + $0x2e0] sm:%s2597]
                  %2653 = vst [vmem:[%s2605 + $0xb8] sm:%s2597] %v2652
                  %v2654 = vld [vmem:[%s2604 + $0x300] sm:%s2597]
                  %2655 = vst [vmem:[%s2605 + $0xc0] sm:%s2597] %v2654
                  %v2656 = vld [vmem:[%s2604 + $0x320] sm:%s2597]
                  %2657 = vst [vmem:[%s2605 + $0xc8] sm:%s2597] %v2656
                  %v2658 = vld [vmem:[%s2604 + $0x340] sm:%s2597]
                  %2659 = vst [vmem:[%s2605 + $0xd0] sm:%s2597] %v2658
                  %v2660 = vld [vmem:[%s2604 + $0x360] sm:%s2597]
                  %2661 = vst [vmem:[%s2605 + $0xd8] sm:%s2597] %v2660
                  %v2662 = vld [vmem:[%s2604 + $0x380] sm:%s2597]
                  %2663 = vst [vmem:[%s2605 + $0xe0] sm:%s2597] %v2662
                  %v2664 = vld [vmem:[%s2604 + $0x3a0] sm:%s2597]
                  %2665 = vst [vmem:[%s2605 + $0xe8] sm:%s2597] %v2664
                  %v2666 = vld [vmem:[%s2604 + $0x3c0] sm:%s2597]
                  %2667 = vst [vmem:[%s2605 + $0xf0] sm:%s2597] %v2666
                  %v2668 = vld [vmem:[%s2604 + $0x3e0] sm:%s2597]
                  %2669 = vst [vmem:[%s2605 + $0xf8] sm:%s2597] %v2668
                  %v2670 = vld [vmem:[%s2604 + $0x400] sm:%s2597]
                  %2671 = vst [vmem:[%s2605 + $0x100] sm:%s2597] %v2670
                  %v2672 = vld [vmem:[%s2604 + $0x420] sm:%s2597]
                  %2673 = vst [vmem:[%s2605 + $0x108] sm:%s2597] %v2672
                  %v2674 = vld [vmem:[%s2604 + $0x440] sm:%s2597]
                  %2675 = vst [vmem:[%s2605 + $0x110] sm:%s2597] %v2674
                  %v2676 = vld [vmem:[%s2604 + $0x460] sm:%s2597]
                  %2677 = vst [vmem:[%s2605 + $0x118] sm:%s2597] %v2676
                  %v2678 = vld [vmem:[%s2604 + $0x480] sm:%s2597]
                  %2679 = vst [vmem:[%s2605 + $0x120] sm:%s2597] %v2678
                  %v2680 = vld [vmem:[%s2604 + $0x4a0] sm:%s2597]
                  %2681 = vst [vmem:[%s2605 + $0x128] sm:%s2597] %v2680
                  %v2682 = vld [vmem:[%s2604 + $0x4c0] sm:%s2597]
                  %2683 = vst [vmem:[%s2605 + $0x130] sm:%s2597] %v2682
                  %v2684 = vld [vmem:[%s2604 + $0x4e0] sm:%s2597]
                  %2685 = vst [vmem:[%s2605 + $0x138] sm:%s2597] %v2684
                  %v2686 = vld [vmem:[%s2604 + $0x500] sm:%s2597]
                  %2687 = vst [vmem:[%s2605 + $0x140] sm:%s2597] %v2686
                  %v2688 = vld [vmem:[%s2604 + $0x520] sm:%s2597]
                  %2689 = vst [vmem:[%s2605 + $0x148] sm:%s2597] %v2688
                  %v2690 = vld [vmem:[%s2604 + $0x540] sm:%s2597]
                  %2691 = vst [vmem:[%s2605 + $0x150] sm:%s2597] %v2690
                  %v2692 = vld [vmem:[%s2604 + $0x560] sm:%s2597]
                  %2693 = vst [vmem:[%s2605 + $0x158] sm:%s2597] %v2692
                  %v2694 = vld [vmem:[%s2604 + $0x580] sm:%s2597]
                  %2695 = vst [vmem:[%s2605 + $0x160] sm:%s2597] %v2694
                  %v2696 = vld [vmem:[%s2604 + $0x5a0] sm:%s2597]
                  %2697 = vst [vmem:[%s2605 + $0x168] sm:%s2597] %v2696
                  %v2698 = vld [vmem:[%s2604 + $0x5c0] sm:%s2597]
                  %2699 = vst [vmem:[%s2605 + $0x170] sm:%s2597] %v2698
                  %v2700 = vld [vmem:[%s2604 + $0x5e0] sm:%s2597]
                  %2701 = vst [vmem:[%s2605 + $0x178] sm:%s2597] %v2700
                  %v2702 = vld [vmem:[%s2604 + $0x600] sm:%s2597]
                  %2703 = vst [vmem:[%s2605 + $0x180] sm:%s2597] %v2702
                  %v2704 = vld [vmem:[%s2604 + $0x620] sm:%s2597]
                  %2705 = vst [vmem:[%s2605 + $0x188] sm:%s2597] %v2704
                  %v2706 = vld [vmem:[%s2604 + $0x640] sm:%s2597]
                  %2707 = vst [vmem:[%s2605 + $0x190] sm:%s2597] %v2706
                  %v2708 = vld [vmem:[%s2604 + $0x660] sm:%s2597]
                  %2709 = vst [vmem:[%s2605 + $0x198] sm:%s2597] %v2708
                  %v2710 = vld [vmem:[%s2604 + $0x680] sm:%s2597]
                  %2711 = vst [vmem:[%s2605 + $0x1a0] sm:%s2597] %v2710
                  %v2712 = vld [vmem:[%s2604 + $0x6a0] sm:%s2597]
                  %2713 = vst [vmem:[%s2605 + $0x1a8] sm:%s2597] %v2712
                  %v2714 = vld [vmem:[%s2604 + $0x6c0] sm:%s2597]
                  %2715 = vst [vmem:[%s2605 + $0x1b0] sm:%s2597] %v2714
                  %v2716 = vld [vmem:[%s2604 + $0x6e0] sm:%s2597]
                  %2717 = vst [vmem:[%s2605 + $0x1b8] sm:%s2597] %v2716
                  %v2718 = vld [vmem:[%s2604 + $0x700] sm:%s2597]
                  %2719 = vst [vmem:[%s2605 + $0x1c0] sm:%s2597] %v2718
                  %v2720 = vld [vmem:[%s2604 + $0x720] sm:%s2597]
                  %2721 = vst [vmem:[%s2605 + $0x1c8] sm:%s2597] %v2720
                  %v2722 = vld [vmem:[%s2604 + $0x740] sm:%s2597]
                  %2723 = vst [vmem:[%s2605 + $0x1d0] sm:%s2597] %v2722
                  %v2724 = vld [vmem:[%s2604 + $0x760] sm:%s2597]
                  %2725 = vst [vmem:[%s2605 + $0x1d8] sm:%s2597] %v2724
                  %v2726 = vld [vmem:[%s2604 + $0x780] sm:%s2597]
                  %2727 = vst [vmem:[%s2605 + $0x1e0] sm:%s2597] %v2726
                  %v2728 = vld [vmem:[%s2604 + $0x7a0] sm:%s2597]
                  %2729 = vst [vmem:[%s2605 + $0x1e8] sm:%s2597] %v2728
                  %v2730 = vld [vmem:[%s2604 + $0x7c0] sm:%s2597]
                  %2731 = vst [vmem:[%s2605 + $0x1f0] sm:%s2597] %v2730
                  %v2732 = vld [vmem:[%s2604 + $0x7e0] sm:%s2597]
                  %2733 = vst [vmem:[%s2605 + $0x1f8] sm:%s2597] %v2732
                  %v2734 = vld [vmem:[%s2604 + $0x800] sm:%s2597]
                  %2735 = vst [vmem:[%s2605 + $0x200] sm:%s2597] %v2734
                  %v2736 = vld [vmem:[%s2604 + $0x820] sm:%s2597]
                  %2737 = vst [vmem:[%s2605 + $0x208] sm:%s2597] %v2736
                  %v2738 = vld [vmem:[%s2604 + $0x840] sm:%s2597]
                  %2739 = vst [vmem:[%s2605 + $0x210] sm:%s2597] %v2738
                  %v2740 = vld [vmem:[%s2604 + $0x860] sm:%s2597]
                  %2741 = vst [vmem:[%s2605 + $0x218] sm:%s2597] %v2740
                  %v2742 = vld [vmem:[%s2604 + $0x880] sm:%s2597]
                  %2743 = vst [vmem:[%s2605 + $0x220] sm:%s2597] %v2742
                  %v2744 = vld [vmem:[%s2604 + $0x8a0] sm:%s2597]
                  %2745 = vst [vmem:[%s2605 + $0x228] sm:%s2597] %v2744
                  %v2746 = vld [vmem:[%s2604 + $0x8c0] sm:%s2597]
                  %2747 = vst [vmem:[%s2605 + $0x230] sm:%s2597] %v2746
                  %v2748 = vld [vmem:[%s2604 + $0x8e0] sm:%s2597]
                  %2749 = vst [vmem:[%s2605 + $0x238] sm:%s2597] %v2748
                  %v2750 = vld [vmem:[%s2604 + $0x900] sm:%s2597]
                  %2751 = vst [vmem:[%s2605 + $0x240] sm:%s2597] %v2750
                  %v2752 = vld [vmem:[%s2604 + $0x920] sm:%s2597]
                  %2753 = vst [vmem:[%s2605 + $0x248] sm:%s2597] %v2752
                  %v2754 = vld [vmem:[%s2604 + $0x940] sm:%s2597]
                  %2755 = vst [vmem:[%s2605 + $0x250] sm:%s2597] %v2754
                  %v2756 = vld [vmem:[%s2604 + $0x960] sm:%s2597]
                  %2757 = vst [vmem:[%s2605 + $0x258] sm:%s2597] %v2756
                  %v2758 = vld [vmem:[%s2604 + $0x980] sm:%s2597]
                  %2759 = vst [vmem:[%s2605 + $0x260] sm:%s2597] %v2758
                  %v2760 = vld [vmem:[%s2604 + $0x9a0] sm:%s2597]
                  %2761 = vst [vmem:[%s2605 + $0x268] sm:%s2597] %v2760
                  %v2762 = vld [vmem:[%s2604 + $0x9c0] sm:%s2597]
                  %2763 = vst [vmem:[%s2605 + $0x270] sm:%s2597] %v2762
                  %v2764 = vld [vmem:[%s2604 + $0x9e0] sm:%s2597]
                  %2765 = vst [vmem:[%s2605 + $0x278] sm:%s2597] %v2764
                  %v2766 = vld [vmem:[%s2604 + $0xa00] sm:%s2597]
                  %2767 = vst [vmem:[%s2605 + $0x280] sm:%s2597] %v2766
                  %v2768 = vld [vmem:[%s2604 + $0xa20] sm:%s2597]
                  %2769 = vst [vmem:[%s2605 + $0x288] sm:%s2597] %v2768
                  %v2770 = vld [vmem:[%s2604 + $0xa40] sm:%s2597]
                  %2771 = vst [vmem:[%s2605 + $0x290] sm:%s2597] %v2770
                  %v2772 = vld [vmem:[%s2604 + $0xa60] sm:%s2597]
                  %2773 = vst [vmem:[%s2605 + $0x298] sm:%s2597] %v2772
                  %v2774 = vld [vmem:[%s2604 + $0xa80] sm:%s2597]
                  %2775 = vst [vmem:[%s2605 + $0x2a0] sm:%s2597] %v2774
                  %v2776 = vld [vmem:[%s2604 + $0xaa0] sm:%s2597]
                  %2777 = vst [vmem:[%s2605 + $0x2a8] sm:%s2597] %v2776
                  %v2778 = vld [vmem:[%s2604 + $0xac0] sm:%s2597]
                  %2779 = vst [vmem:[%s2605 + $0x2b0] sm:%s2597] %v2778
                  %v2780 = vld [vmem:[%s2604 + $0xae0] sm:%s2597]
                  %2781 = vst [vmem:[%s2605 + $0x2b8] sm:%s2597] %v2780
                  %v2782 = vld [vmem:[%s2604 + $0xb00] sm:%s2597]
                  %2783 = vst [vmem:[%s2605 + $0x2c0] sm:%s2597] %v2782
                  %v2784 = vld [vmem:[%s2604 + $0xb20] sm:%s2597]
                  %2785 = vst [vmem:[%s2605 + $0x2c8] sm:%s2597] %v2784
                  %v2786 = vld [vmem:[%s2604 + $0xb40] sm:%s2597]
                  %2787 = vst [vmem:[%s2605 + $0x2d0] sm:%s2597] %v2786
                  %v2788 = vld [vmem:[%s2604 + $0xb60] sm:%s2597]
                  %2789 = vst [vmem:[%s2605 + $0x2d8] sm:%s2597] %v2788
                  %v2790 = vld [vmem:[%s2604 + $0xb80] sm:%s2597]
                  %2791 = vst [vmem:[%s2605 + $0x2e0] sm:%s2597] %v2790
                  %v2792 = vld [vmem:[%s2604 + $0xba0] sm:%s2597]
                  %2793 = vst [vmem:[%s2605 + $0x2e8] sm:%s2597] %v2792
                  %v2794 = vld [vmem:[%s2604 + $0xbc0] sm:%s2597]
                  %2795 = vst [vmem:[%s2605 + $0x2f0] sm:%s2597] %v2794
                  %v2796 = vld [vmem:[%s2604 + $0xbe0] sm:%s2597]
                  %2797 = vst [vmem:[%s2605 + $0x2f8] sm:%s2597] %v2796
                  %v2798 = vld [vmem:[%s2604 + $0xc00] sm:%s2597]
                  %2799 = vst [vmem:[%s2605 + $0x300] sm:%s2597] %v2798
                  %v2800 = vld [vmem:[%s2604 + $0xc20] sm:%s2597]
                  %2801 = vst [vmem:[%s2605 + $0x308] sm:%s2597] %v2800
                  %v2802 = vld [vmem:[%s2604 + $0xc40] sm:%s2597]
                  %2803 = vst [vmem:[%s2605 + $0x310] sm:%s2597] %v2802
                  %v2804 = vld [vmem:[%s2604 + $0xc60] sm:%s2597]
                  %2805 = vst [vmem:[%s2605 + $0x318] sm:%s2597] %v2804
                  %v2806 = vld [vmem:[%s2604 + $0xc80] sm:%s2597]
                  %2807 = vst [vmem:[%s2605 + $0x320] sm:%s2597] %v2806
                  %v2808 = vld [vmem:[%s2604 + $0xca0] sm:%s2597]
                  %2809 = vst [vmem:[%s2605 + $0x328] sm:%s2597] %v2808
                  %v2810 = vld [vmem:[%s2604 + $0xcc0] sm:%s2597]
                  %2811 = vst [vmem:[%s2605 + $0x330] sm:%s2597] %v2810
                  %v2812 = vld [vmem:[%s2604 + $0xce0] sm:%s2597]
                  %2813 = vst [vmem:[%s2605 + $0x338] sm:%s2597] %v2812
                  %v2814 = vld [vmem:[%s2604 + $0xd00] sm:%s2597]
                  %2815 = vst [vmem:[%s2605 + $0x340] sm:%s2597] %v2814
                  %v2816 = vld [vmem:[%s2604 + $0xd20] sm:%s2597]
                  %2817 = vst [vmem:[%s2605 + $0x348] sm:%s2597] %v2816
                  %v2818 = vld [vmem:[%s2604 + $0xd40] sm:%s2597]
                  %2819 = vst [vmem:[%s2605 + $0x350] sm:%s2597] %v2818
                  %v2820 = vld [vmem:[%s2604 + $0xd60] sm:%s2597]
                  %2821 = vst [vmem:[%s2605 + $0x358] sm:%s2597] %v2820
                  %v2822 = vld [vmem:[%s2604 + $0xd80] sm:%s2597]
                  %2823 = vst [vmem:[%s2605 + $0x360] sm:%s2597] %v2822
                  %v2824 = vld [vmem:[%s2604 + $0xda0] sm:%s2597]
                  %2825 = vst [vmem:[%s2605 + $0x368] sm:%s2597] %v2824
                  %v2826 = vld [vmem:[%s2604 + $0xdc0] sm:%s2597]
                  %2827 = vst [vmem:[%s2605 + $0x370] sm:%s2597] %v2826
                  %v2828 = vld [vmem:[%s2604 + $0xde0] sm:%s2597]
                  %2829 = vst [vmem:[%s2605 + $0x378] sm:%s2597] %v2828
                  %v2830 = vld [vmem:[%s2604 + $0xe00] sm:%s2597]
                  %2831 = vst [vmem:[%s2605 + $0x380] sm:%s2597] %v2830
                  %v2832 = vld [vmem:[%s2604 + $0xe20] sm:%s2597]
                  %2833 = vst [vmem:[%s2605 + $0x388] sm:%s2597] %v2832
                  %v2834 = vld [vmem:[%s2604 + $0xe40] sm:%s2597]
                  %2835 = vst [vmem:[%s2605 + $0x390] sm:%s2597] %v2834
                  %v2836 = vld [vmem:[%s2604 + $0xe60] sm:%s2597]
                  %2837 = vst [vmem:[%s2605 + $0x398] sm:%s2597] %v2836
                  %v2838 = vld [vmem:[%s2604 + $0xe80] sm:%s2597]
                  %2839 = vst [vmem:[%s2605 + $0x3a0] sm:%s2597] %v2838
                  %v2840 = vld [vmem:[%s2604 + $0xea0] sm:%s2597]
                  %2841 = vst [vmem:[%s2605 + $0x3a8] sm:%s2597] %v2840
                  %v2842 = vld [vmem:[%s2604 + $0xec0] sm:%s2597]
                  %2843 = vst [vmem:[%s2605 + $0x3b0] sm:%s2597] %v2842
                  %v2844 = vld [vmem:[%s2604 + $0xee0] sm:%s2597]
                  %2845 = vst [vmem:[%s2605 + $0x3b8] sm:%s2597] %v2844
                  %v2846 = vld [vmem:[%s2604 + $0xf00] sm:%s2597]
                  %2847 = vst [vmem:[%s2605 + $0x3c0] sm:%s2597] %v2846
                  %v2848 = vld [vmem:[%s2604 + $0xf20] sm:%s2597]
                  %2849 = vst [vmem:[%s2605 + $0x3c8] sm:%s2597] %v2848
                  %v2850 = vld [vmem:[%s2604 + $0xf40] sm:%s2597]
                  %2851 = vst [vmem:[%s2605 + $0x3d0] sm:%s2597] %v2850
                  %v2852 = vld [vmem:[%s2604 + $0xf60] sm:%s2597]
                  %2853 = vst [vmem:[%s2605 + $0x3d8] sm:%s2597] %v2852
                  %v2854 = vld [vmem:[%s2604 + $0xf80] sm:%s2597]
                  %2855 = vst [vmem:[%s2605 + $0x3e0] sm:%s2597] %v2854
                  %v2856 = vld [vmem:[%s2604 + $0xfa0] sm:%s2597]
                  %2857 = vst [vmem:[%s2605 + $0x3e8] sm:%s2597] %v2856
                  %v2858 = vld [vmem:[%s2604 + $0xfc0] sm:%s2597]
                  %2859 = vst [vmem:[%s2605 + $0x3f0] sm:%s2597] %v2858
                  %v2860 = vld [vmem:[%s2604 + $0xfe0] sm:%s2597]
                  %2861 = vst [vmem:[%s2605 + $0x3f8] sm:%s2597] %v2860
                  %v2862 = vld [vmem:[%s2604 + $0x1000] sm:%s2597]
                  %2863 = vst [vmem:[%s2605 + $0x400] sm:%s2597] %v2862
                  %v2864 = vld [vmem:[%s2604 + $0x1020] sm:%s2597]
                  %2865 = vst [vmem:[%s2605 + $0x408] sm:%s2597] %v2864
                  %v2866 = vld [vmem:[%s2604 + $0x1040] sm:%s2597]
                  %2867 = vst [vmem:[%s2605 + $0x410] sm:%s2597] %v2866
                  %v2868 = vld [vmem:[%s2604 + $0x1060] sm:%s2597]
                  %2869 = vst [vmem:[%s2605 + $0x418] sm:%s2597] %v2868
                  %v2870 = vld [vmem:[%s2604 + $0x1080] sm:%s2597]
                  %2871 = vst [vmem:[%s2605 + $0x420] sm:%s2597] %v2870
                  %v2872 = vld [vmem:[%s2604 + $0x10a0] sm:%s2597]
                  %2873 = vst [vmem:[%s2605 + $0x428] sm:%s2597] %v2872
                  %v2874 = vld [vmem:[%s2604 + $0x10c0] sm:%s2597]
                  %2875 = vst [vmem:[%s2605 + $0x430] sm:%s2597] %v2874
                  %v2876 = vld [vmem:[%s2604 + $0x10e0] sm:%s2597]
                  %2877 = vst [vmem:[%s2605 + $0x438] sm:%s2597] %v2876
                  %v2878 = vld [vmem:[%s2604 + $0x1100] sm:%s2597]
                  %2879 = vst [vmem:[%s2605 + $0x440] sm:%s2597] %v2878
                  %v2880 = vld [vmem:[%s2604 + $0x1120] sm:%s2597]
                  %2881 = vst [vmem:[%s2605 + $0x448] sm:%s2597] %v2880
                  %v2882 = vld [vmem:[%s2604 + $0x1140] sm:%s2597]
                  %2883 = vst [vmem:[%s2605 + $0x450] sm:%s2597] %v2882
                  %v2884 = vld [vmem:[%s2604 + $0x1160] sm:%s2597]
                  %2885 = vst [vmem:[%s2605 + $0x458] sm:%s2597] %v2884
                  %v2886 = vld [vmem:[%s2604 + $0x1180] sm:%s2597]
                  %2887 = vst [vmem:[%s2605 + $0x460] sm:%s2597] %v2886
                  %v2888 = vld [vmem:[%s2604 + $0x11a0] sm:%s2597]
                  %2889 = vst [vmem:[%s2605 + $0x468] sm:%s2597] %v2888
                  %v2890 = vld [vmem:[%s2604 + $0x11c0] sm:%s2597]
                  %2891 = vst [vmem:[%s2605 + $0x470] sm:%s2597] %v2890
                  %v2892 = vld [vmem:[%s2604 + $0x11e0] sm:%s2597]
                  %2893 = vst [vmem:[%s2605 + $0x478] sm:%s2597] %v2892
                  %v2894 = vld [vmem:[%s2604 + $0x1200] sm:%s2597]
                  %2895 = vst [vmem:[%s2605 + $0x480] sm:%s2597] %v2894
                  %v2896 = vld [vmem:[%s2604 + $0x1220] sm:%s2597]
                  %2897 = vst [vmem:[%s2605 + $0x488] sm:%s2597] %v2896
                  %v2898 = vld [vmem:[%s2604 + $0x1240] sm:%s2597]
                  %2899 = vst [vmem:[%s2605 + $0x490] sm:%s2597] %v2898
                  %v2900 = vld [vmem:[%s2604 + $0x1260] sm:%s2597]
                  %2901 = vst [vmem:[%s2605 + $0x498] sm:%s2597] %v2900
                  %v2902 = vld [vmem:[%s2604 + $0x1280] sm:%s2597]
                  %2903 = vst [vmem:[%s2605 + $0x4a0] sm:%s2597] %v2902
                  %v2904 = vld [vmem:[%s2604 + $0x12a0] sm:%s2597]
                  %2905 = vst [vmem:[%s2605 + $0x4a8] sm:%s2597] %v2904
                  %v2906 = vld [vmem:[%s2604 + $0x12c0] sm:%s2597]
                  %2907 = vst [vmem:[%s2605 + $0x4b0] sm:%s2597] %v2906
                  %v2908 = vld [vmem:[%s2604 + $0x12e0] sm:%s2597]
                  %2909 = vst [vmem:[%s2605 + $0x4b8] sm:%s2597] %v2908
                  %v2910 = vld [vmem:[%s2604 + $0x1300] sm:%s2597]
                  %2911 = vst [vmem:[%s2605 + $0x4c0] sm:%s2597] %v2910
                  %v2912 = vld [vmem:[%s2604 + $0x1320] sm:%s2597]
                  %2913 = vst [vmem:[%s2605 + $0x4c8] sm:%s2597] %v2912
                  %v2914 = vld [vmem:[%s2604 + $0x1340] sm:%s2597]
                  %2915 = vst [vmem:[%s2605 + $0x4d0] sm:%s2597] %v2914
                  %v2916 = vld [vmem:[%s2604 + $0x1360] sm:%s2597]
                  %2917 = vst [vmem:[%s2605 + $0x4d8] sm:%s2597] %v2916
                  %v2918 = vld [vmem:[%s2604 + $0x1380] sm:%s2597]
                  %2919 = vst [vmem:[%s2605 + $0x4e0] sm:%s2597] %v2918
                  %v2920 = vld [vmem:[%s2604 + $0x13a0] sm:%s2597]
                  %2921 = vst [vmem:[%s2605 + $0x4e8] sm:%s2597] %v2920
                  %v2922 = vld [vmem:[%s2604 + $0x13c0] sm:%s2597]
                  %2923 = vst [vmem:[%s2605 + $0x4f0] sm:%s2597] %v2922
                  %v2924 = vld [vmem:[%s2604 + $0x13e0] sm:%s2597]
                  %2925 = vst [vmem:[%s2605 + $0x4f8] sm:%s2597] %v2924
                  %v2926 = vld [vmem:[%s2604 + $0x1400] sm:%s2597]
                  %2927 = vst [vmem:[%s2605 + $0x500] sm:%s2597] %v2926
                  %v2928 = vld [vmem:[%s2604 + $0x1420] sm:%s2597]
                  %2929 = vst [vmem:[%s2605 + $0x508] sm:%s2597] %v2928
                  %v2930 = vld [vmem:[%s2604 + $0x1440] sm:%s2597]
                  %2931 = vst [vmem:[%s2605 + $0x510] sm:%s2597] %v2930
                  %v2932 = vld [vmem:[%s2604 + $0x1460] sm:%s2597]
                  %2933 = vst [vmem:[%s2605 + $0x518] sm:%s2597] %v2932
                  %v2934 = vld [vmem:[%s2604 + $0x1480] sm:%s2597]
                  %2935 = vst [vmem:[%s2605 + $0x520] sm:%s2597] %v2934
                  %v2936 = vld [vmem:[%s2604 + $0x14a0] sm:%s2597]
                  %2937 = vst [vmem:[%s2605 + $0x528] sm:%s2597] %v2936
                  %v2938 = vld [vmem:[%s2604 + $0x14c0] sm:%s2597]
                  %2939 = vst [vmem:[%s2605 + $0x530] sm:%s2597] %v2938
                  %v2940 = vld [vmem:[%s2604 + $0x14e0] sm:%s2597]
                  %2941 = vst [vmem:[%s2605 + $0x538] sm:%s2597] %v2940
                  %v2942 = vld [vmem:[%s2604 + $0x1500] sm:%s2597]
                  %2943 = vst [vmem:[%s2605 + $0x540] sm:%s2597] %v2942
                  %v2944 = vld [vmem:[%s2604 + $0x1520] sm:%s2597]
                  %2945 = vst [vmem:[%s2605 + $0x548] sm:%s2597] %v2944
                  %v2946 = vld [vmem:[%s2604 + $0x1540] sm:%s2597]
                  %2947 = vst [vmem:[%s2605 + $0x550] sm:%s2597] %v2946
                  %v2948 = vld [vmem:[%s2604 + $0x1560] sm:%s2597]
                  %2949 = vst [vmem:[%s2605 + $0x558] sm:%s2597] %v2948
                  %v2950 = vld [vmem:[%s2604 + $0x1580] sm:%s2597]
                  %2951 = vst [vmem:[%s2605 + $0x560] sm:%s2597] %v2950
                  %v2952 = vld [vmem:[%s2604 + $0x15a0] sm:%s2597]
                  %2953 = vst [vmem:[%s2605 + $0x568] sm:%s2597] %v2952
                  %v2954 = vld [vmem:[%s2604 + $0x15c0] sm:%s2597]
                  %2955 = vst [vmem:[%s2605 + $0x570] sm:%s2597] %v2954
                  %v2956 = vld [vmem:[%s2604 + $0x15e0] sm:%s2597]
                  %2957 = vst [vmem:[%s2605 + $0x578] sm:%s2597] %v2956
                  %v2958 = vld [vmem:[%s2604 + $0x1600] sm:%s2597]
                  %2959 = vst [vmem:[%s2605 + $0x580] sm:%s2597] %v2958
                  %v2960 = vld [vmem:[%s2604 + $0x1620] sm:%s2597]
                  %2961 = vst [vmem:[%s2605 + $0x588] sm:%s2597] %v2960
                  %v2962 = vld [vmem:[%s2604 + $0x1640] sm:%s2597]
                  %2963 = vst [vmem:[%s2605 + $0x590] sm:%s2597] %v2962
                  %v2964 = vld [vmem:[%s2604 + $0x1660] sm:%s2597]
                  %2965 = vst [vmem:[%s2605 + $0x598] sm:%s2597] %v2964
                  %v2966 = vld [vmem:[%s2604 + $0x1680] sm:%s2597]
                  %2967 = vst [vmem:[%s2605 + $0x5a0] sm:%s2597] %v2966
                  %v2968 = vld [vmem:[%s2604 + $0x16a0] sm:%s2597]
                  %2969 = vst [vmem:[%s2605 + $0x5a8] sm:%s2597] %v2968
                  %v2970 = vld [vmem:[%s2604 + $0x16c0] sm:%s2597]
                  %2971 = vst [vmem:[%s2605 + $0x5b0] sm:%s2597] %v2970
                  %v2972 = vld [vmem:[%s2604 + $0x16e0] sm:%s2597]
                  %2973 = vst [vmem:[%s2605 + $0x5b8] sm:%s2597] %v2972
                  %v2974 = vld [vmem:[%s2604 + $0x1700] sm:%s2597]
                  %2975 = vst [vmem:[%s2605 + $0x5c0] sm:%s2597] %v2974
                  %v2976 = vld [vmem:[%s2604 + $0x1720] sm:%s2597]
                  %2977 = vst [vmem:[%s2605 + $0x5c8] sm:%s2597] %v2976
                  %v2978 = vld [vmem:[%s2604 + $0x1740] sm:%s2597]
                  %2979 = vst [vmem:[%s2605 + $0x5d0] sm:%s2597] %v2978
                  %v2980 = vld [vmem:[%s2604 + $0x1760] sm:%s2597]
                  %2981 = vst [vmem:[%s2605 + $0x5d8] sm:%s2597] %v2980
                  %v2982 = vld [vmem:[%s2604 + $0x1780] sm:%s2597]
                  %2983 = vst [vmem:[%s2605 + $0x5e0] sm:%s2597] %v2982
                  %v2984 = vld [vmem:[%s2604 + $0x17a0] sm:%s2597]
                  %2985 = vst [vmem:[%s2605 + $0x5e8] sm:%s2597] %v2984
                  %v2986 = vld [vmem:[%s2604 + $0x17c0] sm:%s2597]
                  %2987 = vst [vmem:[%s2605 + $0x5f0] sm:%s2597] %v2986
                  %v2988 = vld [vmem:[%s2604 + $0x17e0] sm:%s2597]
                  %2989 = vst [vmem:[%s2605 + $0x5f8] sm:%s2597] %v2988
                  %v2990 = vld [vmem:[%s2604 + $0x1800] sm:%s2597]
                  %2991 = vst [vmem:[%s2605 + $0x600] sm:%s2597] %v2990
                  %v2992 = vld [vmem:[%s2604 + $0x1820] sm:%s2597]
                  %2993 = vst [vmem:[%s2605 + $0x608] sm:%s2597] %v2992
                  %v2994 = vld [vmem:[%s2604 + $0x1840] sm:%s2597]
                  %2995 = vst [vmem:[%s2605 + $0x610] sm:%s2597] %v2994
                  %v2996 = vld [vmem:[%s2604 + $0x1860] sm:%s2597]
                  %2997 = vst [vmem:[%s2605 + $0x618] sm:%s2597] %v2996
                  %v2998 = vld [vmem:[%s2604 + $0x1880] sm:%s2597]
                  %2999 = vst [vmem:[%s2605 + $0x620] sm:%s2597] %v2998
                  %v3000 = vld [vmem:[%s2604 + $0x18a0] sm:%s2597]
                  %3001 = vst [vmem:[%s2605 + $0x628] sm:%s2597] %v3000
                  %v3002 = vld [vmem:[%s2604 + $0x18c0] sm:%s2597]
                  %3003 = vst [vmem:[%s2605 + $0x630] sm:%s2597] %v3002
                  %v3004 = vld [vmem:[%s2604 + $0x18e0] sm:%s2597]
                  %3005 = vst [vmem:[%s2605 + $0x638] sm:%s2597] %v3004
                  %v3006 = vld [vmem:[%s2604 + $0x1900] sm:%s2597]
                  %3007 = vst [vmem:[%s2605 + $0x640] sm:%s2597] %v3006
                  %v3008 = vld [vmem:[%s2604 + $0x1920] sm:%s2597]
                  %3009 = vst [vmem:[%s2605 + $0x648] sm:%s2597] %v3008
                  %v3010 = vld [vmem:[%s2604 + $0x1940] sm:%s2597]
                  %3011 = vst [vmem:[%s2605 + $0x650] sm:%s2597] %v3010
                  %v3012 = vld [vmem:[%s2604 + $0x1960] sm:%s2597]
                  %3013 = vst [vmem:[%s2605 + $0x658] sm:%s2597] %v3012
                  %v3014 = vld [vmem:[%s2604 + $0x1980] sm:%s2597]
                  %3015 = vst [vmem:[%s2605 + $0x660] sm:%s2597] %v3014
                  %v3016 = vld [vmem:[%s2604 + $0x19a0] sm:%s2597]
                  %3017 = vst [vmem:[%s2605 + $0x668] sm:%s2597] %v3016
                  %v3018 = vld [vmem:[%s2604 + $0x19c0] sm:%s2597]
                  %3019 = vst [vmem:[%s2605 + $0x670] sm:%s2597] %v3018
                  %v3020 = vld [vmem:[%s2604 + $0x19e0] sm:%s2597]
                  %3021 = vst [vmem:[%s2605 + $0x678] sm:%s2597] %v3020
                  %v3022 = vld [vmem:[%s2604 + $0x1a00] sm:%s2597]
                  %3023 = vst [vmem:[%s2605 + $0x680] sm:%s2597] %v3022
                  %v3024 = vld [vmem:[%s2604 + $0x1a20] sm:%s2597]
                  %3025 = vst [vmem:[%s2605 + $0x688] sm:%s2597] %v3024
                  %v3026 = vld [vmem:[%s2604 + $0x1a40] sm:%s2597]
                  %3027 = vst [vmem:[%s2605 + $0x690] sm:%s2597] %v3026
                  %v3028 = vld [vmem:[%s2604 + $0x1a60] sm:%s2597]
                  %3029 = vst [vmem:[%s2605 + $0x698] sm:%s2597] %v3028
                  %v3030 = vld [vmem:[%s2604 + $0x1a80] sm:%s2597]
                  %3031 = vst [vmem:[%s2605 + $0x6a0] sm:%s2597] %v3030
                  %v3032 = vld [vmem:[%s2604 + $0x1aa0] sm:%s2597]
                  %3033 = vst [vmem:[%s2605 + $0x6a8] sm:%s2597] %v3032
                  %v3034 = vld [vmem:[%s2604 + $0x1ac0] sm:%s2597]
                  %3035 = vst [vmem:[%s2605 + $0x6b0] sm:%s2597] %v3034
                  %v3036 = vld [vmem:[%s2604 + $0x1ae0] sm:%s2597]
                  %3037 = vst [vmem:[%s2605 + $0x6b8] sm:%s2597] %v3036
                  %v3038 = vld [vmem:[%s2604 + $0x1b00] sm:%s2597]
                  %3039 = vst [vmem:[%s2605 + $0x6c0] sm:%s2597] %v3038
                  %v3040 = vld [vmem:[%s2604 + $0x1b20] sm:%s2597]
                  %3041 = vst [vmem:[%s2605 + $0x6c8] sm:%s2597] %v3040
                  %v3042 = vld [vmem:[%s2604 + $0x1b40] sm:%s2597]
                  %3043 = vst [vmem:[%s2605 + $0x6d0] sm:%s2597] %v3042
                  %v3044 = vld [vmem:[%s2604 + $0x1b60] sm:%s2597]
                  %3045 = vst [vmem:[%s2605 + $0x6d8] sm:%s2597] %v3044
                  %v3046 = vld [vmem:[%s2604 + $0x1b80] sm:%s2597]
                  %3047 = vst [vmem:[%s2605 + $0x6e0] sm:%s2597] %v3046
                  %v3048 = vld [vmem:[%s2604 + $0x1ba0] sm:%s2597]
                  %3049 = vst [vmem:[%s2605 + $0x6e8] sm:%s2597] %v3048
                  %v3050 = vld [vmem:[%s2604 + $0x1bc0] sm:%s2597]
                  %3051 = vst [vmem:[%s2605 + $0x6f0] sm:%s2597] %v3050
                  %v3052 = vld [vmem:[%s2604 + $0x1be0] sm:%s2597]
                  %3053 = vst [vmem:[%s2605 + $0x6f8] sm:%s2597] %v3052
                  %v3054 = vld [vmem:[%s2604 + $0x1c00] sm:%s2597]
                  %3055 = vst [vmem:[%s2605 + $0x700] sm:%s2597] %v3054
                  %v3056 = vld [vmem:[%s2604 + $0x1c20] sm:%s2597]
                  %3057 = vst [vmem:[%s2605 + $0x708] sm:%s2597] %v3056
                  %v3058 = vld [vmem:[%s2604 + $0x1c40] sm:%s2597]
                  %3059 = vst [vmem:[%s2605 + $0x710] sm:%s2597] %v3058
                  %v3060 = vld [vmem:[%s2604 + $0x1c60] sm:%s2597]
                  %3061 = vst [vmem:[%s2605 + $0x718] sm:%s2597] %v3060
                  %v3062 = vld [vmem:[%s2604 + $0x1c80] sm:%s2597]
                  %3063 = vst [vmem:[%s2605 + $0x720] sm:%s2597] %v3062
                  %v3064 = vld [vmem:[%s2604 + $0x1ca0] sm:%s2597]
                  %3065 = vst [vmem:[%s2605 + $0x728] sm:%s2597] %v3064
                  %v3066 = vld [vmem:[%s2604 + $0x1cc0] sm:%s2597]
                  %3067 = vst [vmem:[%s2605 + $0x730] sm:%s2597] %v3066
                  %v3068 = vld [vmem:[%s2604 + $0x1ce0] sm:%s2597]
                  %3069 = vst [vmem:[%s2605 + $0x738] sm:%s2597] %v3068
                  %v3070 = vld [vmem:[%s2604 + $0x1d00] sm:%s2597]
                  %3071 = vst [vmem:[%s2605 + $0x740] sm:%s2597] %v3070
                  %v3072 = vld [vmem:[%s2604 + $0x1d20] sm:%s2597]
                  %3073 = vst [vmem:[%s2605 + $0x748] sm:%s2597] %v3072
                  %v3074 = vld [vmem:[%s2604 + $0x1d40] sm:%s2597]
                  %3075 = vst [vmem:[%s2605 + $0x750] sm:%s2597] %v3074
                  %v3076 = vld [vmem:[%s2604 + $0x1d60] sm:%s2597]
                  %3077 = vst [vmem:[%s2605 + $0x758] sm:%s2597] %v3076
                  %v3078 = vld [vmem:[%s2604 + $0x1d80] sm:%s2597]
                  %3079 = vst [vmem:[%s2605 + $0x760] sm:%s2597] %v3078
                  %v3080 = vld [vmem:[%s2604 + $0x1da0] sm:%s2597]
                  %3081 = vst [vmem:[%s2605 + $0x768] sm:%s2597] %v3080
                  %v3082 = vld [vmem:[%s2604 + $0x1dc0] sm:%s2597]
                  %3083 = vst [vmem:[%s2605 + $0x770] sm:%s2597] %v3082
                  %v3084 = vld [vmem:[%s2604 + $0x1de0] sm:%s2597]
                  %3085 = vst [vmem:[%s2605 + $0x778] sm:%s2597] %v3084
                  %v3086 = vld [vmem:[%s2604 + $0x1e00] sm:%s2597]
                  %3087 = vst [vmem:[%s2605 + $0x780] sm:%s2597] %v3086
                  %v3088 = vld [vmem:[%s2604 + $0x1e20] sm:%s2597]
                  %3089 = vst [vmem:[%s2605 + $0x788] sm:%s2597] %v3088
                  %v3090 = vld [vmem:[%s2604 + $0x1e40] sm:%s2597]
                  %3091 = vst [vmem:[%s2605 + $0x790] sm:%s2597] %v3090
                  %v3092 = vld [vmem:[%s2604 + $0x1e60] sm:%s2597]
                  %3093 = vst [vmem:[%s2605 + $0x798] sm:%s2597] %v3092
                  %v3094 = vld [vmem:[%s2604 + $0x1e80] sm:%s2597]
                  %3095 = vst [vmem:[%s2605 + $0x7a0] sm:%s2597] %v3094
                  %v3096 = vld [vmem:[%s2604 + $0x1ea0] sm:%s2597]
                  %3097 = vst [vmem:[%s2605 + $0x7a8] sm:%s2597] %v3096
                  %v3098 = vld [vmem:[%s2604 + $0x1ec0] sm:%s2597]
                  %3099 = vst [vmem:[%s2605 + $0x7b0] sm:%s2597] %v3098
                  %v3100 = vld [vmem:[%s2604 + $0x1ee0] sm:%s2597]
                  %3101 = vst [vmem:[%s2605 + $0x7b8] sm:%s2597] %v3100
                  %v3102 = vld [vmem:[%s2604 + $0x1f00] sm:%s2597]
                  %3103 = vst [vmem:[%s2605 + $0x7c0] sm:%s2597] %v3102
                  %v3104 = vld [vmem:[%s2604 + $0x1f20] sm:%s2597]
                  %3105 = vst [vmem:[%s2605 + $0x7c8] sm:%s2597] %v3104
                  %v3106 = vld [vmem:[%s2604 + $0x1f40] sm:%s2597]
                  %3107 = vst [vmem:[%s2605 + $0x7d0] sm:%s2597] %v3106
                  %v3108 = vld [vmem:[%s2604 + $0x1f60] sm:%s2597]
                  %3109 = vst [vmem:[%s2605 + $0x7d8] sm:%s2597] %v3108
                  %v3110 = vld [vmem:[%s2604 + $0x1f80] sm:%s2597]
                  %3111 = vst [vmem:[%s2605 + $0x7e0] sm:%s2597] %v3110
                  %v3112 = vld [vmem:[%s2604 + $0x1fa0] sm:%s2597]
                  %3113 = vst [vmem:[%s2605 + $0x7e8] sm:%s2597] %v3112
                  %v3114 = vld [vmem:[%s2604 + $0x1fc0] sm:%s2597]
                  %3115 = vst [vmem:[%s2605 + $0x7f0] sm:%s2597] %v3114
                  %v3116 = vld [vmem:[%s2604 + $0x1fe0] sm:%s2597]
                  %3117 = vst [vmem:[%s2605 + $0x7f8] sm:%s2597] %v3116
                  %v3118 = vld [vmem:[%s2604 + $0x2000] sm:%s2597]
                  %3119 = vst [vmem:[%s2605 + $0x800] sm:%s2597] %v3118
                  %v3120 = vld [vmem:[%s2604 + $0x2020] sm:%s2597]
                  %3121 = vst [vmem:[%s2605 + $0x808] sm:%s2597] %v3120
                  %v3122 = vld [vmem:[%s2604 + $0x2040] sm:%s2597]
                  %3123 = vst [vmem:[%s2605 + $0x810] sm:%s2597] %v3122
                  %v3124 = vld [vmem:[%s2604 + $0x2060] sm:%s2597]
                  %3125 = vst [vmem:[%s2605 + $0x818] sm:%s2597] %v3124
                  %v3126 = vld [vmem:[%s2604 + $0x2080] sm:%s2597]
                  %3127 = vst [vmem:[%s2605 + $0x820] sm:%s2597] %v3126
                  %v3128 = vld [vmem:[%s2604 + $0x20a0] sm:%s2597]
                  %3129 = vst [vmem:[%s2605 + $0x828] sm:%s2597] %v3128
                  %v3130 = vld [vmem:[%s2604 + $0x20c0] sm:%s2597]
                  %3131 = vst [vmem:[%s2605 + $0x830] sm:%s2597] %v3130
                  %v3132 = vld [vmem:[%s2604 + $0x20e0] sm:%s2597]
                  %3133 = vst [vmem:[%s2605 + $0x838] sm:%s2597] %v3132
                  %v3134 = vld [vmem:[%s2604 + $0x2100] sm:%s2597]
                  %3135 = vst [vmem:[%s2605 + $0x840] sm:%s2597] %v3134
                  %v3136 = vld [vmem:[%s2604 + $0x2120] sm:%s2597]
                  %3137 = vst [vmem:[%s2605 + $0x848] sm:%s2597] %v3136
                  %v3138 = vld [vmem:[%s2604 + $0x2140] sm:%s2597]
                  %3139 = vst [vmem:[%s2605 + $0x850] sm:%s2597] %v3138
                  %v3140 = vld [vmem:[%s2604 + $0x2160] sm:%s2597]
                  %3141 = vst [vmem:[%s2605 + $0x858] sm:%s2597] %v3140
                  %v3142 = vld [vmem:[%s2604 + $0x2180] sm:%s2597]
                  %3143 = vst [vmem:[%s2605 + $0x860] sm:%s2597] %v3142
                  %v3144 = vld [vmem:[%s2604 + $0x21a0] sm:%s2597]
                  %3145 = vst [vmem:[%s2605 + $0x868] sm:%s2597] %v3144
                  %v3146 = vld [vmem:[%s2604 + $0x21c0] sm:%s2597]
                  %3147 = vst [vmem:[%s2605 + $0x870] sm:%s2597] %v3146
                  %v3148 = vld [vmem:[%s2604 + $0x21e0] sm:%s2597]
                  %3149 = vst [vmem:[%s2605 + $0x878] sm:%s2597] %v3148
                  %v3150 = vld [vmem:[%s2604 + $0x2200] sm:%s2597]
                  %3151 = vst [vmem:[%s2605 + $0x880] sm:%s2597] %v3150
                  %v3152 = vld [vmem:[%s2604 + $0x2220] sm:%s2597]
                  %3153 = vst [vmem:[%s2605 + $0x888] sm:%s2597] %v3152
                  %v3154 = vld [vmem:[%s2604 + $0x2240] sm:%s2597]
                  %3155 = vst [vmem:[%s2605 + $0x890] sm:%s2597] %v3154
                  %v3156 = vld [vmem:[%s2604 + $0x2260] sm:%s2597]
                  %3157 = vst [vmem:[%s2605 + $0x898] sm:%s2597] %v3156
                  %v3158 = vld [vmem:[%s2604 + $0x2280] sm:%s2597]
                  %3159 = vst [vmem:[%s2605 + $0x8a0] sm:%s2597] %v3158
                  %v3160 = vld [vmem:[%s2604 + $0x22a0] sm:%s2597]
                  %3161 = vst [vmem:[%s2605 + $0x8a8] sm:%s2597] %v3160
                  %v3162 = vld [vmem:[%s2604 + $0x22c0] sm:%s2597]
                  %3163 = vst [vmem:[%s2605 + $0x8b0] sm:%s2597] %v3162
                  %v3164 = vld [vmem:[%s2604 + $0x22e0] sm:%s2597]
                  %3165 = vst [vmem:[%s2605 + $0x8b8] sm:%s2597] %v3164
                  %v3166 = vld [vmem:[%s2604 + $0x2300] sm:%s2597]
                  %3167 = vst [vmem:[%s2605 + $0x8c0] sm:%s2597] %v3166
                  %v3168 = vld [vmem:[%s2604 + $0x2320] sm:%s2597]
                  %3169 = vst [vmem:[%s2605 + $0x8c8] sm:%s2597] %v3168
                  %v3170 = vld [vmem:[%s2604 + $0x2340] sm:%s2597]
                  %3171 = vst [vmem:[%s2605 + $0x8d0] sm:%s2597] %v3170
                  %v3172 = vld [vmem:[%s2604 + $0x2360] sm:%s2597]
                  %3173 = vst [vmem:[%s2605 + $0x8d8] sm:%s2597] %v3172
                  %v3174 = vld [vmem:[%s2604 + $0x2380] sm:%s2597]
                  %3175 = vst [vmem:[%s2605 + $0x8e0] sm:%s2597] %v3174
                  %v3176 = vld [vmem:[%s2604 + $0x23a0] sm:%s2597]
                  %3177 = vst [vmem:[%s2605 + $0x8e8] sm:%s2597] %v3176
                  %v3178 = vld [vmem:[%s2604 + $0x23c0] sm:%s2597]
                  %3179 = vst [vmem:[%s2605 + $0x8f0] sm:%s2597] %v3178
                  %v3180 = vld [vmem:[%s2604 + $0x23e0] sm:%s2597]
                  %3181 = vst [vmem:[%s2605 + $0x8f8] sm:%s2597] %v3180
                  %v3182 = vld [vmem:[%s2604 + $0x2400] sm:%s2597]
                  %3183 = vst [vmem:[%s2605 + $0x900] sm:%s2597] %v3182
                  %v3184 = vld [vmem:[%s2604 + $0x2420] sm:%s2597]
                  %3185 = vst [vmem:[%s2605 + $0x908] sm:%s2597] %v3184
                  %v3186 = vld [vmem:[%s2604 + $0x2440] sm:%s2597]
                  %3187 = vst [vmem:[%s2605 + $0x910] sm:%s2597] %v3186
                  %v3188 = vld [vmem:[%s2604 + $0x2460] sm:%s2597]
                  %3189 = vst [vmem:[%s2605 + $0x918] sm:%s2597] %v3188
                  %v3190 = vld [vmem:[%s2604 + $0x2480] sm:%s2597]
                  %3191 = vst [vmem:[%s2605 + $0x920] sm:%s2597] %v3190
                  %v3192 = vld [vmem:[%s2604 + $0x24a0] sm:%s2597]
                  %3193 = vst [vmem:[%s2605 + $0x928] sm:%s2597] %v3192
                  %v3194 = vld [vmem:[%s2604 + $0x24c0] sm:%s2597]
                  %3195 = vst [vmem:[%s2605 + $0x930] sm:%s2597] %v3194
                  %v3196 = vld [vmem:[%s2604 + $0x24e0] sm:%s2597]
                  %3197 = vst [vmem:[%s2605 + $0x938] sm:%s2597] %v3196
                  %v3198 = vld [vmem:[%s2604 + $0x2500] sm:%s2597]
                  %3199 = vst [vmem:[%s2605 + $0x940] sm:%s2597] %v3198
                  %v3200 = vld [vmem:[%s2604 + $0x2520] sm:%s2597]
                  %3201 = vst [vmem:[%s2605 + $0x948] sm:%s2597] %v3200
                  %v3202 = vld [vmem:[%s2604 + $0x2540] sm:%s2597]
                  %3203 = vst [vmem:[%s2605 + $0x950] sm:%s2597] %v3202
                  %v3204 = vld [vmem:[%s2604 + $0x2560] sm:%s2597]
                  %3205 = vst [vmem:[%s2605 + $0x958] sm:%s2597] %v3204
                  %v3206 = vld [vmem:[%s2604 + $0x2580] sm:%s2597]
                  %3207 = vst [vmem:[%s2605 + $0x960] sm:%s2597] %v3206
                  %v3208 = vld [vmem:[%s2604 + $0x25a0] sm:%s2597]
                  %3209 = vst [vmem:[%s2605 + $0x968] sm:%s2597] %v3208
                  %v3210 = vld [vmem:[%s2604 + $0x25c0] sm:%s2597]
                  %3211 = vst [vmem:[%s2605 + $0x970] sm:%s2597] %v3210
                  %v3212 = vld [vmem:[%s2604 + $0x25e0] sm:%s2597]
                  %3213 = vst [vmem:[%s2605 + $0x978] sm:%s2597] %v3212
                  %v3214 = vld [vmem:[%s2604 + $0x2600] sm:%s2597]
                  %3215 = vst [vmem:[%s2605 + $0x980] sm:%s2597] %v3214
                  %v3216 = vld [vmem:[%s2604 + $0x2620] sm:%s2597]
                  %3217 = vst [vmem:[%s2605 + $0x988] sm:%s2597] %v3216
                  %v3218 = vld [vmem:[%s2604 + $0x2640] sm:%s2597]
                  %3219 = vst [vmem:[%s2605 + $0x990] sm:%s2597] %v3218
                  %v3220 = vld [vmem:[%s2604 + $0x2660] sm:%s2597]
                  %3221 = vst [vmem:[%s2605 + $0x998] sm:%s2597] %v3220
                  %v3222 = vld [vmem:[%s2604 + $0x2680] sm:%s2597]
                  %3223 = vst [vmem:[%s2605 + $0x9a0] sm:%s2597] %v3222
                  %v3224 = vld [vmem:[%s2604 + $0x26a0] sm:%s2597]
                  %3225 = vst [vmem:[%s2605 + $0x9a8] sm:%s2597] %v3224
                  %v3226 = vld [vmem:[%s2604 + $0x26c0] sm:%s2597]
                  %3227 = vst [vmem:[%s2605 + $0x9b0] sm:%s2597] %v3226
                  %v3228 = vld [vmem:[%s2604 + $0x26e0] sm:%s2597]
                  %3229 = vst [vmem:[%s2605 + $0x9b8] sm:%s2597] %v3228
                  %v3230 = vld [vmem:[%s2604 + $0x2700] sm:%s2597]
                  %3231 = vst [vmem:[%s2605 + $0x9c0] sm:%s2597] %v3230
                  %v3232 = vld [vmem:[%s2604 + $0x2720] sm:%s2597]
                  %3233 = vst [vmem:[%s2605 + $0x9c8] sm:%s2597] %v3232
                  %v3234 = vld [vmem:[%s2604 + $0x2740] sm:%s2597]
                  %3235 = vst [vmem:[%s2605 + $0x9d0] sm:%s2597] %v3234
                  %v3236 = vld [vmem:[%s2604 + $0x2760] sm:%s2597]
                  %3237 = vst [vmem:[%s2605 + $0x9d8] sm:%s2597] %v3236
                  %v3238 = vld [vmem:[%s2604 + $0x2780] sm:%s2597]
                  %3239 = vst [vmem:[%s2605 + $0x9e0] sm:%s2597] %v3238
                  %v3240 = vld [vmem:[%s2604 + $0x27a0] sm:%s2597]
                  %3241 = vst [vmem:[%s2605 + $0x9e8] sm:%s2597] %v3240
                  %v3242 = vld [vmem:[%s2604 + $0x27c0] sm:%s2597]
                  %3243 = vst [vmem:[%s2605 + $0x9f0] sm:%s2597] %v3242
                  %v3244 = vld [vmem:[%s2604 + $0x27e0] sm:%s2597]
                  %3245 = vst [vmem:[%s2605 + $0x9f8] sm:%s2597] %v3244
                  %v3246 = vld [vmem:[%s2604 + $0x2800] sm:%s2597]
                  %3247 = vst [vmem:[%s2605 + $0xa00] sm:%s2597] %v3246
                  %v3248 = vld [vmem:[%s2604 + $0x2820] sm:%s2597]
                  %3249 = vst [vmem:[%s2605 + $0xa08] sm:%s2597] %v3248
                  %v3250 = vld [vmem:[%s2604 + $0x2840] sm:%s2597]
                  %3251 = vst [vmem:[%s2605 + $0xa10] sm:%s2597] %v3250
                  %v3252 = vld [vmem:[%s2604 + $0x2860] sm:%s2597]
                  %3253 = vst [vmem:[%s2605 + $0xa18] sm:%s2597] %v3252
                  %v3254 = vld [vmem:[%s2604 + $0x2880] sm:%s2597]
                  %3255 = vst [vmem:[%s2605 + $0xa20] sm:%s2597] %v3254
                  %v3256 = vld [vmem:[%s2604 + $0x28a0] sm:%s2597]
                  %3257 = vst [vmem:[%s2605 + $0xa28] sm:%s2597] %v3256
                  %v3258 = vld [vmem:[%s2604 + $0x28c0] sm:%s2597]
                  %3259 = vst [vmem:[%s2605 + $0xa30] sm:%s2597] %v3258
                  %v3260 = vld [vmem:[%s2604 + $0x28e0] sm:%s2597]
                  %3261 = vst [vmem:[%s2605 + $0xa38] sm:%s2597] %v3260
                  %v3262 = vld [vmem:[%s2604 + $0x2900] sm:%s2597]
                  %3263 = vst [vmem:[%s2605 + $0xa40] sm:%s2597] %v3262
                  %v3264 = vld [vmem:[%s2604 + $0x2920] sm:%s2597]
                  %3265 = vst [vmem:[%s2605 + $0xa48] sm:%s2597] %v3264
                  %v3266 = vld [vmem:[%s2604 + $0x2940] sm:%s2597]
                  %3267 = vst [vmem:[%s2605 + $0xa50] sm:%s2597] %v3266
                  %v3268 = vld [vmem:[%s2604 + $0x2960] sm:%s2597]
                  %3269 = vst [vmem:[%s2605 + $0xa58] sm:%s2597] %v3268
                  %v3270 = vld [vmem:[%s2604 + $0x2980] sm:%s2597]
                  %3271 = vst [vmem:[%s2605 + $0xa60] sm:%s2597] %v3270
                  %v3272 = vld [vmem:[%s2604 + $0x29a0] sm:%s2597]
                  %3273 = vst [vmem:[%s2605 + $0xa68] sm:%s2597] %v3272
                  %v3274 = vld [vmem:[%s2604 + $0x29c0] sm:%s2597]
                  %3275 = vst [vmem:[%s2605 + $0xa70] sm:%s2597] %v3274
                  %v3276 = vld [vmem:[%s2604 + $0x29e0] sm:%s2597]
                  %3277 = vst [vmem:[%s2605 + $0xa78] sm:%s2597] %v3276
                  %v3278 = vld [vmem:[%s2604 + $0x2a00] sm:%s2597]
                  %3279 = vst [vmem:[%s2605 + $0xa80] sm:%s2597] %v3278
                  %v3280 = vld [vmem:[%s2604 + $0x2a20] sm:%s2597]
                  %3281 = vst [vmem:[%s2605 + $0xa88] sm:%s2597] %v3280
                  %v3282 = vld [vmem:[%s2604 + $0x2a40] sm:%s2597]
                  %3283 = vst [vmem:[%s2605 + $0xa90] sm:%s2597] %v3282
                  %v3284 = vld [vmem:[%s2604 + $0x2a60] sm:%s2597]
                  %3285 = vst [vmem:[%s2605 + $0xa98] sm:%s2597] %v3284
                  %v3286 = vld [vmem:[%s2604 + $0x2a80] sm:%s2597]
                  %3287 = vst [vmem:[%s2605 + $0xaa0] sm:%s2597] %v3286
                  %v3288 = vld [vmem:[%s2604 + $0x2aa0] sm:%s2597]
                  %3289 = vst [vmem:[%s2605 + $0xaa8] sm:%s2597] %v3288
                  %v3290 = vld [vmem:[%s2604 + $0x2ac0] sm:%s2597]
                  %3291 = vst [vmem:[%s2605 + $0xab0] sm:%s2597] %v3290
                  %v3292 = vld [vmem:[%s2604 + $0x2ae0] sm:%s2597]
                  %3293 = vst [vmem:[%s2605 + $0xab8] sm:%s2597] %v3292
                  %v3294 = vld [vmem:[%s2604 + $0x2b00] sm:%s2597]
                  %3295 = vst [vmem:[%s2605 + $0xac0] sm:%s2597] %v3294
                  %v3296 = vld [vmem:[%s2604 + $0x2b20] sm:%s2597]
                  %3297 = vst [vmem:[%s2605 + $0xac8] sm:%s2597] %v3296
                  %v3298 = vld [vmem:[%s2604 + $0x2b40] sm:%s2597]
                  %3299 = vst [vmem:[%s2605 + $0xad0] sm:%s2597] %v3298
                  %v3300 = vld [vmem:[%s2604 + $0x2b60] sm:%s2597]
                  %3301 = vst [vmem:[%s2605 + $0xad8] sm:%s2597] %v3300
                  %v3302 = vld [vmem:[%s2604 + $0x2b80] sm:%s2597]
                  %3303 = vst [vmem:[%s2605 + $0xae0] sm:%s2597] %v3302
                  %v3304 = vld [vmem:[%s2604 + $0x2ba0] sm:%s2597]
                  %3305 = vst [vmem:[%s2605 + $0xae8] sm:%s2597] %v3304
                  %v3306 = vld [vmem:[%s2604 + $0x2bc0] sm:%s2597]
                  %3307 = vst [vmem:[%s2605 + $0xaf0] sm:%s2597] %v3306
                  %v3308 = vld [vmem:[%s2604 + $0x2be0] sm:%s2597]
                  %3309 = vst [vmem:[%s2605 + $0xaf8] sm:%s2597] %v3308
                  %v3310 = vld [vmem:[%s2604 + $0x2c00] sm:%s2597]
                  %3311 = vst [vmem:[%s2605 + $0xb00] sm:%s2597] %v3310
                  %v3312 = vld [vmem:[%s2604 + $0x2c20] sm:%s2597]
                  %3313 = vst [vmem:[%s2605 + $0xb08] sm:%s2597] %v3312
                  %v3314 = vld [vmem:[%s2604 + $0x2c40] sm:%s2597]
                  %3315 = vst [vmem:[%s2605 + $0xb10] sm:%s2597] %v3314
                  %v3316 = vld [vmem:[%s2604 + $0x2c60] sm:%s2597]
                  %3317 = vst [vmem:[%s2605 + $0xb18] sm:%s2597] %v3316
                  %v3318 = vld [vmem:[%s2604 + $0x2c80] sm:%s2597]
                  %3319 = vst [vmem:[%s2605 + $0xb20] sm:%s2597] %v3318
                  %v3320 = vld [vmem:[%s2604 + $0x2ca0] sm:%s2597]
                  %3321 = vst [vmem:[%s2605 + $0xb28] sm:%s2597] %v3320
                  %v3322 = vld [vmem:[%s2604 + $0x2cc0] sm:%s2597]
                  %3323 = vst [vmem:[%s2605 + $0xb30] sm:%s2597] %v3322
                  %v3324 = vld [vmem:[%s2604 + $0x2ce0] sm:%s2597]
                  %3325 = vst [vmem:[%s2605 + $0xb38] sm:%s2597] %v3324
                  %v3326 = vld [vmem:[%s2604 + $0x2d00] sm:%s2597]
                  %3327 = vst [vmem:[%s2605 + $0xb40] sm:%s2597] %v3326
                  %v3328 = vld [vmem:[%s2604 + $0x2d20] sm:%s2597]
                  %3329 = vst [vmem:[%s2605 + $0xb48] sm:%s2597] %v3328
                  %v3330 = vld [vmem:[%s2604 + $0x2d40] sm:%s2597]
                  %3331 = vst [vmem:[%s2605 + $0xb50] sm:%s2597] %v3330
                  %v3332 = vld [vmem:[%s2604 + $0x2d60] sm:%s2597]
                  %3333 = vst [vmem:[%s2605 + $0xb58] sm:%s2597] %v3332
                  %v3334 = vld [vmem:[%s2604 + $0x2d80] sm:%s2597]
                  %3335 = vst [vmem:[%s2605 + $0xb60] sm:%s2597] %v3334
                  %v3336 = vld [vmem:[%s2604 + $0x2da0] sm:%s2597]
                  %3337 = vst [vmem:[%s2605 + $0xb68] sm:%s2597] %v3336
                  %v3338 = vld [vmem:[%s2604 + $0x2dc0] sm:%s2597]
                  %3339 = vst [vmem:[%s2605 + $0xb70] sm:%s2597] %v3338
                  %v3340 = vld [vmem:[%s2604 + $0x2de0] sm:%s2597]
                  %3341 = vst [vmem:[%s2605 + $0xb78] sm:%s2597] %v3340
                  %v3342 = vld [vmem:[%s2604 + $0x2e00] sm:%s2597]
                  %3343 = vst [vmem:[%s2605 + $0xb80] sm:%s2597] %v3342
                  %v3344 = vld [vmem:[%s2604 + $0x2e20] sm:%s2597]
                  %3345 = vst [vmem:[%s2605 + $0xb88] sm:%s2597] %v3344
                  %v3346 = vld [vmem:[%s2604 + $0x2e40] sm:%s2597]
                  %3347 = vst [vmem:[%s2605 + $0xb90] sm:%s2597] %v3346
                  %v3348 = vld [vmem:[%s2604 + $0x2e60] sm:%s2597]
                  %3349 = vst [vmem:[%s2605 + $0xb98] sm:%s2597] %v3348
                  %v3350 = vld [vmem:[%s2604 + $0x2e80] sm:%s2597]
                  %3351 = vst [vmem:[%s2605 + $0xba0] sm:%s2597] %v3350
                  %v3352 = vld [vmem:[%s2604 + $0x2ea0] sm:%s2597]
                  %3353 = vst [vmem:[%s2605 + $0xba8] sm:%s2597] %v3352
                  %v3354 = vld [vmem:[%s2604 + $0x2ec0] sm:%s2597]
                  %3355 = vst [vmem:[%s2605 + $0xbb0] sm:%s2597] %v3354
                  %v3356 = vld [vmem:[%s2604 + $0x2ee0] sm:%s2597]
                  %3357 = vst [vmem:[%s2605 + $0xbb8] sm:%s2597] %v3356
                  %v3358 = vld [vmem:[%s2604 + $0x2f00] sm:%s2597]
                  %3359 = vst [vmem:[%s2605 + $0xbc0] sm:%s2597] %v3358
                  %v3360 = vld [vmem:[%s2604 + $0x2f20] sm:%s2597]
                  %3361 = vst [vmem:[%s2605 + $0xbc8] sm:%s2597] %v3360
                  %v3362 = vld [vmem:[%s2604 + $0x2f40] sm:%s2597]
                  %3363 = vst [vmem:[%s2605 + $0xbd0] sm:%s2597] %v3362
                  %v3364 = vld [vmem:[%s2604 + $0x2f60] sm:%s2597]
                  %3365 = vst [vmem:[%s2605 + $0xbd8] sm:%s2597] %v3364
                  %v3366 = vld [vmem:[%s2604 + $0x2f80] sm:%s2597]
                  %3367 = vst [vmem:[%s2605 + $0xbe0] sm:%s2597] %v3366
                  %v3368 = vld [vmem:[%s2604 + $0x2fa0] sm:%s2597]
                  %3369 = vst [vmem:[%s2605 + $0xbe8] sm:%s2597] %v3368
                  %v3370 = vld [vmem:[%s2604 + $0x2fc0] sm:%s2597]
                  %3371 = vst [vmem:[%s2605 + $0xbf0] sm:%s2597] %v3370
                  %v3372 = vld [vmem:[%s2604 + $0x2fe0] sm:%s2597]
                  %3373 = vst [vmem:[%s2605 + $0xbf8] sm:%s2597] %v3372
                  %v3374 = vld [vmem:[%s2604 + $0x3000] sm:%s2597]
                  %3375 = vst [vmem:[%s2605 + $0xc00] sm:%s2597] %v3374
                  %v3376 = vld [vmem:[%s2604 + $0x3020] sm:%s2597]
                  %3377 = vst [vmem:[%s2605 + $0xc08] sm:%s2597] %v3376
                  %v3378 = vld [vmem:[%s2604 + $0x3040] sm:%s2597]
                  %3379 = vst [vmem:[%s2605 + $0xc10] sm:%s2597] %v3378
                  %v3380 = vld [vmem:[%s2604 + $0x3060] sm:%s2597]
                  %3381 = vst [vmem:[%s2605 + $0xc18] sm:%s2597] %v3380
                  %v3382 = vld [vmem:[%s2604 + $0x3080] sm:%s2597]
                  %3383 = vst [vmem:[%s2605 + $0xc20] sm:%s2597] %v3382
                  %v3384 = vld [vmem:[%s2604 + $0x30a0] sm:%s2597]
                  %3385 = vst [vmem:[%s2605 + $0xc28] sm:%s2597] %v3384
                  %v3386 = vld [vmem:[%s2604 + $0x30c0] sm:%s2597]
                  %3387 = vst [vmem:[%s2605 + $0xc30] sm:%s2597] %v3386
                  %v3388 = vld [vmem:[%s2604 + $0x30e0] sm:%s2597]
                  %3389 = vst [vmem:[%s2605 + $0xc38] sm:%s2597] %v3388
                $region70: #{dueling_dqn_forward.7} parent=57 // loop_footer
                  %s2603 = sadd.s32 1, %s2599
                $region71: #{dueling_dqn_forward.7} parent=57 // loop_footer_branch
                  %2598 = sbr.rel target = $region67
                $region72: #{dueling_dqn_forward.7} parent=57 // loop_exit
                  _
              $region58: #{dueling_dqn_forward.7} parent=31 // pred_fallthru
                _
            $region32: #{dueling_dqn_forward.7} parent=27 // pred_fallthru
              _
            // Predicated region
            $region33: #{dueling_dqn_forward.7} parent=27 // pred_check
              _
            $region34: #{dueling_dqn_forward.7} parent=27 // pred_check_branch
              %195 = sbr.rel target = $region36
            $region35: #{dueling_dqn_forward.7} parent=27 // pred_region
              %s197 = ssub.s32 256, 1
              loop: start=0, step=1, limit=1
              $region37: #{dueling_dqn_forward.7} parent=35 // loop_pre_header
                _
              $region38: #{dueling_dqn_forward.7} parent=35 // loop_header
                %s199 = sphi 0, %s203
                %p200 = scmp.ge.s32.totalorder %s199, 1
                %s204 = sphi %s189, %s189
                %s205 = sphi %s186, %s186
              $region39: #{dueling_dqn_forward.7} parent=35 // loop_header_branch
                %202 = sbr.rel (%p200) target = $region43
              $region40: #{dueling_dqn_forward.7} parent=35 // loop_body
                %v206 = vld [vmem:[%s204] sm:%s197]
                %207 = vst [vmem:[%s205] sm:%s197] %v206
                %v208 = vld [vmem:[%s204 + $0x20] sm:%s197]
                %209 = vst [vmem:[%s205 + $0x8] sm:%s197] %v208
                %v210 = vld [vmem:[%s204 + $0x40] sm:%s197]
                %211 = vst [vmem:[%s205 + $0x10] sm:%s197] %v210
                %v212 = vld [vmem:[%s204 + $0x60] sm:%s197]
                %213 = vst [vmem:[%s205 + $0x18] sm:%s197] %v212
                %v214 = vld [vmem:[%s204 + $0x80] sm:%s197]
                %215 = vst [vmem:[%s205 + $0x20] sm:%s197] %v214
                %v216 = vld [vmem:[%s204 + $0xa0] sm:%s197]
                %217 = vst [vmem:[%s205 + $0x28] sm:%s197] %v216
                %v218 = vld [vmem:[%s204 + $0xc0] sm:%s197]
                %219 = vst [vmem:[%s205 + $0x30] sm:%s197] %v218
                %v220 = vld [vmem:[%s204 + $0xe0] sm:%s197]
                %221 = vst [vmem:[%s205 + $0x38] sm:%s197] %v220
                %v222 = vld [vmem:[%s204 + $0x100] sm:%s197]
                %223 = vst [vmem:[%s205 + $0x40] sm:%s197] %v222
                %v224 = vld [vmem:[%s204 + $0x120] sm:%s197]
                %225 = vst [vmem:[%s205 + $0x48] sm:%s197] %v224
                %v226 = vld [vmem:[%s204 + $0x140] sm:%s197]
                %227 = vst [vmem:[%s205 + $0x50] sm:%s197] %v226
                %v228 = vld [vmem:[%s204 + $0x160] sm:%s197]
                %229 = vst [vmem:[%s205 + $0x58] sm:%s197] %v228
                %v230 = vld [vmem:[%s204 + $0x180] sm:%s197]
                %231 = vst [vmem:[%s205 + $0x60] sm:%s197] %v230
                %v232 = vld [vmem:[%s204 + $0x1a0] sm:%s197]
                %233 = vst [vmem:[%s205 + $0x68] sm:%s197] %v232
                %v234 = vld [vmem:[%s204 + $0x1c0] sm:%s197]
                %235 = vst [vmem:[%s205 + $0x70] sm:%s197] %v234
                %v236 = vld [vmem:[%s204 + $0x1e0] sm:%s197]
                %237 = vst [vmem:[%s205 + $0x78] sm:%s197] %v236
                %v238 = vld [vmem:[%s204 + $0x200] sm:%s197]
                %239 = vst [vmem:[%s205 + $0x80] sm:%s197] %v238
                %v240 = vld [vmem:[%s204 + $0x220] sm:%s197]
                %241 = vst [vmem:[%s205 + $0x88] sm:%s197] %v240
                %v242 = vld [vmem:[%s204 + $0x240] sm:%s197]
                %243 = vst [vmem:[%s205 + $0x90] sm:%s197] %v242
                %v244 = vld [vmem:[%s204 + $0x260] sm:%s197]
                %245 = vst [vmem:[%s205 + $0x98] sm:%s197] %v244
                %v246 = vld [vmem:[%s204 + $0x280] sm:%s197]
                %247 = vst [vmem:[%s205 + $0xa0] sm:%s197] %v246
                %v248 = vld [vmem:[%s204 + $0x2a0] sm:%s197]
                %249 = vst [vmem:[%s205 + $0xa8] sm:%s197] %v248
                %v250 = vld [vmem:[%s204 + $0x2c0] sm:%s197]
                %251 = vst [vmem:[%s205 + $0xb0] sm:%s197] %v250
                %v252 = vld [vmem:[%s204 + $0x2e0] sm:%s197]
                %253 = vst [vmem:[%s205 + $0xb8] sm:%s197] %v252
                %v254 = vld [vmem:[%s204 + $0x300] sm:%s197]
                %255 = vst [vmem:[%s205 + $0xc0] sm:%s197] %v254
                %v256 = vld [vmem:[%s204 + $0x320] sm:%s197]
                %257 = vst [vmem:[%s205 + $0xc8] sm:%s197] %v256
                %v258 = vld [vmem:[%s204 + $0x340] sm:%s197]
                %259 = vst [vmem:[%s205 + $0xd0] sm:%s197] %v258
                %v260 = vld [vmem:[%s204 + $0x360] sm:%s197]
                %261 = vst [vmem:[%s205 + $0xd8] sm:%s197] %v260
                %v262 = vld [vmem:[%s204 + $0x380] sm:%s197]
                %263 = vst [vmem:[%s205 + $0xe0] sm:%s197] %v262
                %v264 = vld [vmem:[%s204 + $0x3a0] sm:%s197]
                %265 = vst [vmem:[%s205 + $0xe8] sm:%s197] %v264
                %v266 = vld [vmem:[%s204 + $0x3c0] sm:%s197]
                %267 = vst [vmem:[%s205 + $0xf0] sm:%s197] %v266
                %v268 = vld [vmem:[%s204 + $0x3e0] sm:%s197]
                %269 = vst [vmem:[%s205 + $0xf8] sm:%s197] %v268
                %v270 = vld [vmem:[%s204 + $0x400] sm:%s197]
                %271 = vst [vmem:[%s205 + $0x100] sm:%s197] %v270
                %v272 = vld [vmem:[%s204 + $0x420] sm:%s197]
                %273 = vst [vmem:[%s205 + $0x108] sm:%s197] %v272
                %v274 = vld [vmem:[%s204 + $0x440] sm:%s197]
                %275 = vst [vmem:[%s205 + $0x110] sm:%s197] %v274
                %v276 = vld [vmem:[%s204 + $0x460] sm:%s197]
                %277 = vst [vmem:[%s205 + $0x118] sm:%s197] %v276
                %v278 = vld [vmem:[%s204 + $0x480] sm:%s197]
                %279 = vst [vmem:[%s205 + $0x120] sm:%s197] %v278
                %v280 = vld [vmem:[%s204 + $0x4a0] sm:%s197]
                %281 = vst [vmem:[%s205 + $0x128] sm:%s197] %v280
                %v282 = vld [vmem:[%s204 + $0x4c0] sm:%s197]
                %283 = vst [vmem:[%s205 + $0x130] sm:%s197] %v282
                %v284 = vld [vmem:[%s204 + $0x4e0] sm:%s197]
                %285 = vst [vmem:[%s205 + $0x138] sm:%s197] %v284
                %v286 = vld [vmem:[%s204 + $0x500] sm:%s197]
                %287 = vst [vmem:[%s205 + $0x140] sm:%s197] %v286
                %v288 = vld [vmem:[%s204 + $0x520] sm:%s197]
                %289 = vst [vmem:[%s205 + $0x148] sm:%s197] %v288
                %v290 = vld [vmem:[%s204 + $0x540] sm:%s197]
                %291 = vst [vmem:[%s205 + $0x150] sm:%s197] %v290
                %v292 = vld [vmem:[%s204 + $0x560] sm:%s197]
                %293 = vst [vmem:[%s205 + $0x158] sm:%s197] %v292
                %v294 = vld [vmem:[%s204 + $0x580] sm:%s197]
                %295 = vst [vmem:[%s205 + $0x160] sm:%s197] %v294
                %v296 = vld [vmem:[%s204 + $0x5a0] sm:%s197]
                %297 = vst [vmem:[%s205 + $0x168] sm:%s197] %v296
                %v298 = vld [vmem:[%s204 + $0x5c0] sm:%s197]
                %299 = vst [vmem:[%s205 + $0x170] sm:%s197] %v298
                %v300 = vld [vmem:[%s204 + $0x5e0] sm:%s197]
                %301 = vst [vmem:[%s205 + $0x178] sm:%s197] %v300
                %v302 = vld [vmem:[%s204 + $0x600] sm:%s197]
                %303 = vst [vmem:[%s205 + $0x180] sm:%s197] %v302
                %v304 = vld [vmem:[%s204 + $0x620] sm:%s197]
                %305 = vst [vmem:[%s205 + $0x188] sm:%s197] %v304
                %v306 = vld [vmem:[%s204 + $0x640] sm:%s197]
                %307 = vst [vmem:[%s205 + $0x190] sm:%s197] %v306
                %v308 = vld [vmem:[%s204 + $0x660] sm:%s197]
                %309 = vst [vmem:[%s205 + $0x198] sm:%s197] %v308
                %v310 = vld [vmem:[%s204 + $0x680] sm:%s197]
                %311 = vst [vmem:[%s205 + $0x1a0] sm:%s197] %v310
                %v312 = vld [vmem:[%s204 + $0x6a0] sm:%s197]
                %313 = vst [vmem:[%s205 + $0x1a8] sm:%s197] %v312
                %v314 = vld [vmem:[%s204 + $0x6c0] sm:%s197]
                %315 = vst [vmem:[%s205 + $0x1b0] sm:%s197] %v314
                %v316 = vld [vmem:[%s204 + $0x6e0] sm:%s197]
                %317 = vst [vmem:[%s205 + $0x1b8] sm:%s197] %v316
                %v318 = vld [vmem:[%s204 + $0x700] sm:%s197]
                %319 = vst [vmem:[%s205 + $0x1c0] sm:%s197] %v318
                %v320 = vld [vmem:[%s204 + $0x720] sm:%s197]
                %321 = vst [vmem:[%s205 + $0x1c8] sm:%s197] %v320
                %v322 = vld [vmem:[%s204 + $0x740] sm:%s197]
                %323 = vst [vmem:[%s205 + $0x1d0] sm:%s197] %v322
                %v324 = vld [vmem:[%s204 + $0x760] sm:%s197]
                %325 = vst [vmem:[%s205 + $0x1d8] sm:%s197] %v324
                %v326 = vld [vmem:[%s204 + $0x780] sm:%s197]
                %327 = vst [vmem:[%s205 + $0x1e0] sm:%s197] %v326
                %v328 = vld [vmem:[%s204 + $0x7a0] sm:%s197]
                %329 = vst [vmem:[%s205 + $0x1e8] sm:%s197] %v328
                %v330 = vld [vmem:[%s204 + $0x7c0] sm:%s197]
                %331 = vst [vmem:[%s205 + $0x1f0] sm:%s197] %v330
                %v332 = vld [vmem:[%s204 + $0x7e0] sm:%s197]
                %333 = vst [vmem:[%s205 + $0x1f8] sm:%s197] %v332
                %v334 = vld [vmem:[%s204 + $0x800] sm:%s197]
                %335 = vst [vmem:[%s205 + $0x200] sm:%s197] %v334
                %v336 = vld [vmem:[%s204 + $0x820] sm:%s197]
                %337 = vst [vmem:[%s205 + $0x208] sm:%s197] %v336
                %v338 = vld [vmem:[%s204 + $0x840] sm:%s197]
                %339 = vst [vmem:[%s205 + $0x210] sm:%s197] %v338
                %v340 = vld [vmem:[%s204 + $0x860] sm:%s197]
                %341 = vst [vmem:[%s205 + $0x218] sm:%s197] %v340
                %v342 = vld [vmem:[%s204 + $0x880] sm:%s197]
                %343 = vst [vmem:[%s205 + $0x220] sm:%s197] %v342
                %v344 = vld [vmem:[%s204 + $0x8a0] sm:%s197]
                %345 = vst [vmem:[%s205 + $0x228] sm:%s197] %v344
                %v346 = vld [vmem:[%s204 + $0x8c0] sm:%s197]
                %347 = vst [vmem:[%s205 + $0x230] sm:%s197] %v346
                %v348 = vld [vmem:[%s204 + $0x8e0] sm:%s197]
                %349 = vst [vmem:[%s205 + $0x238] sm:%s197] %v348
                %v350 = vld [vmem:[%s204 + $0x900] sm:%s197]
                %351 = vst [vmem:[%s205 + $0x240] sm:%s197] %v350
                %v352 = vld [vmem:[%s204 + $0x920] sm:%s197]
                %353 = vst [vmem:[%s205 + $0x248] sm:%s197] %v352
                %v354 = vld [vmem:[%s204 + $0x940] sm:%s197]
                %355 = vst [vmem:[%s205 + $0x250] sm:%s197] %v354
                %v356 = vld [vmem:[%s204 + $0x960] sm:%s197]
                %357 = vst [vmem:[%s205 + $0x258] sm:%s197] %v356
                %v358 = vld [vmem:[%s204 + $0x980] sm:%s197]
                %359 = vst [vmem:[%s205 + $0x260] sm:%s197] %v358
                %v360 = vld [vmem:[%s204 + $0x9a0] sm:%s197]
                %361 = vst [vmem:[%s205 + $0x268] sm:%s197] %v360
                %v362 = vld [vmem:[%s204 + $0x9c0] sm:%s197]
                %363 = vst [vmem:[%s205 + $0x270] sm:%s197] %v362
                %v364 = vld [vmem:[%s204 + $0x9e0] sm:%s197]
                %365 = vst [vmem:[%s205 + $0x278] sm:%s197] %v364
                %v366 = vld [vmem:[%s204 + $0xa00] sm:%s197]
                %367 = vst [vmem:[%s205 + $0x280] sm:%s197] %v366
                %v368 = vld [vmem:[%s204 + $0xa20] sm:%s197]
                %369 = vst [vmem:[%s205 + $0x288] sm:%s197] %v368
                %v370 = vld [vmem:[%s204 + $0xa40] sm:%s197]
                %371 = vst [vmem:[%s205 + $0x290] sm:%s197] %v370
                %v372 = vld [vmem:[%s204 + $0xa60] sm:%s197]
                %373 = vst [vmem:[%s205 + $0x298] sm:%s197] %v372
                %v374 = vld [vmem:[%s204 + $0xa80] sm:%s197]
                %375 = vst [vmem:[%s205 + $0x2a0] sm:%s197] %v374
                %v376 = vld [vmem:[%s204 + $0xaa0] sm:%s197]
                %377 = vst [vmem:[%s205 + $0x2a8] sm:%s197] %v376
                %v378 = vld [vmem:[%s204 + $0xac0] sm:%s197]
                %379 = vst [vmem:[%s205 + $0x2b0] sm:%s197] %v378
                %v380 = vld [vmem:[%s204 + $0xae0] sm:%s197]
                %381 = vst [vmem:[%s205 + $0x2b8] sm:%s197] %v380
                %v382 = vld [vmem:[%s204 + $0xb00] sm:%s197]
                %383 = vst [vmem:[%s205 + $0x2c0] sm:%s197] %v382
                %v384 = vld [vmem:[%s204 + $0xb20] sm:%s197]
                %385 = vst [vmem:[%s205 + $0x2c8] sm:%s197] %v384
                %v386 = vld [vmem:[%s204 + $0xb40] sm:%s197]
                %387 = vst [vmem:[%s205 + $0x2d0] sm:%s197] %v386
                %v388 = vld [vmem:[%s204 + $0xb60] sm:%s197]
                %389 = vst [vmem:[%s205 + $0x2d8] sm:%s197] %v388
                %v390 = vld [vmem:[%s204 + $0xb80] sm:%s197]
                %391 = vst [vmem:[%s205 + $0x2e0] sm:%s197] %v390
                %v392 = vld [vmem:[%s204 + $0xba0] sm:%s197]
                %393 = vst [vmem:[%s205 + $0x2e8] sm:%s197] %v392
                %v394 = vld [vmem:[%s204 + $0xbc0] sm:%s197]
                %395 = vst [vmem:[%s205 + $0x2f0] sm:%s197] %v394
                %v396 = vld [vmem:[%s204 + $0xbe0] sm:%s197]
                %397 = vst [vmem:[%s205 + $0x2f8] sm:%s197] %v396
                %v398 = vld [vmem:[%s204 + $0xc00] sm:%s197]
                %399 = vst [vmem:[%s205 + $0x300] sm:%s197] %v398
                %v400 = vld [vmem:[%s204 + $0xc20] sm:%s197]
                %401 = vst [vmem:[%s205 + $0x308] sm:%s197] %v400
                %v402 = vld [vmem:[%s204 + $0xc40] sm:%s197]
                %403 = vst [vmem:[%s205 + $0x310] sm:%s197] %v402
                %v404 = vld [vmem:[%s204 + $0xc60] sm:%s197]
                %405 = vst [vmem:[%s205 + $0x318] sm:%s197] %v404
                %v406 = vld [vmem:[%s204 + $0xc80] sm:%s197]
                %407 = vst [vmem:[%s205 + $0x320] sm:%s197] %v406
                %v408 = vld [vmem:[%s204 + $0xca0] sm:%s197]
                %409 = vst [vmem:[%s205 + $0x328] sm:%s197] %v408
                %v410 = vld [vmem:[%s204 + $0xcc0] sm:%s197]
                %411 = vst [vmem:[%s205 + $0x330] sm:%s197] %v410
                %v412 = vld [vmem:[%s204 + $0xce0] sm:%s197]
                %413 = vst [vmem:[%s205 + $0x338] sm:%s197] %v412
                %v414 = vld [vmem:[%s204 + $0xd00] sm:%s197]
                %415 = vst [vmem:[%s205 + $0x340] sm:%s197] %v414
                %v416 = vld [vmem:[%s204 + $0xd20] sm:%s197]
                %417 = vst [vmem:[%s205 + $0x348] sm:%s197] %v416
                %v418 = vld [vmem:[%s204 + $0xd40] sm:%s197]
                %419 = vst [vmem:[%s205 + $0x350] sm:%s197] %v418
                %v420 = vld [vmem:[%s204 + $0xd60] sm:%s197]
                %421 = vst [vmem:[%s205 + $0x358] sm:%s197] %v420
                %v422 = vld [vmem:[%s204 + $0xd80] sm:%s197]
                %423 = vst [vmem:[%s205 + $0x360] sm:%s197] %v422
                %v424 = vld [vmem:[%s204 + $0xda0] sm:%s197]
                %425 = vst [vmem:[%s205 + $0x368] sm:%s197] %v424
                %v426 = vld [vmem:[%s204 + $0xdc0] sm:%s197]
                %427 = vst [vmem:[%s205 + $0x370] sm:%s197] %v426
                %v428 = vld [vmem:[%s204 + $0xde0] sm:%s197]
                %429 = vst [vmem:[%s205 + $0x378] sm:%s197] %v428
                %v430 = vld [vmem:[%s204 + $0xe00] sm:%s197]
                %431 = vst [vmem:[%s205 + $0x380] sm:%s197] %v430
                %v432 = vld [vmem:[%s204 + $0xe20] sm:%s197]
                %433 = vst [vmem:[%s205 + $0x388] sm:%s197] %v432
                %v434 = vld [vmem:[%s204 + $0xe40] sm:%s197]
                %435 = vst [vmem:[%s205 + $0x390] sm:%s197] %v434
                %v436 = vld [vmem:[%s204 + $0xe60] sm:%s197]
                %437 = vst [vmem:[%s205 + $0x398] sm:%s197] %v436
                %v438 = vld [vmem:[%s204 + $0xe80] sm:%s197]
                %439 = vst [vmem:[%s205 + $0x3a0] sm:%s197] %v438
                %v440 = vld [vmem:[%s204 + $0xea0] sm:%s197]
                %441 = vst [vmem:[%s205 + $0x3a8] sm:%s197] %v440
                %v442 = vld [vmem:[%s204 + $0xec0] sm:%s197]
                %443 = vst [vmem:[%s205 + $0x3b0] sm:%s197] %v442
                %v444 = vld [vmem:[%s204 + $0xee0] sm:%s197]
                %445 = vst [vmem:[%s205 + $0x3b8] sm:%s197] %v444
                %v446 = vld [vmem:[%s204 + $0xf00] sm:%s197]
                %447 = vst [vmem:[%s205 + $0x3c0] sm:%s197] %v446
                %v448 = vld [vmem:[%s204 + $0xf20] sm:%s197]
                %449 = vst [vmem:[%s205 + $0x3c8] sm:%s197] %v448
                %v450 = vld [vmem:[%s204 + $0xf40] sm:%s197]
                %451 = vst [vmem:[%s205 + $0x3d0] sm:%s197] %v450
                %v452 = vld [vmem:[%s204 + $0xf60] sm:%s197]
                %453 = vst [vmem:[%s205 + $0x3d8] sm:%s197] %v452
                %v454 = vld [vmem:[%s204 + $0xf80] sm:%s197]
                %455 = vst [vmem:[%s205 + $0x3e0] sm:%s197] %v454
                %v456 = vld [vmem:[%s204 + $0xfa0] sm:%s197]
                %457 = vst [vmem:[%s205 + $0x3e8] sm:%s197] %v456
                %v458 = vld [vmem:[%s204 + $0xfc0] sm:%s197]
                %459 = vst [vmem:[%s205 + $0x3f0] sm:%s197] %v458
                %v460 = vld [vmem:[%s204 + $0xfe0] sm:%s197]
                %461 = vst [vmem:[%s205 + $0x3f8] sm:%s197] %v460
                %v462 = vld [vmem:[%s204 + $0x1000] sm:%s197]
                %463 = vst [vmem:[%s205 + $0x400] sm:%s197] %v462
                %v464 = vld [vmem:[%s204 + $0x1020] sm:%s197]
                %465 = vst [vmem:[%s205 + $0x408] sm:%s197] %v464
                %v466 = vld [vmem:[%s204 + $0x1040] sm:%s197]
                %467 = vst [vmem:[%s205 + $0x410] sm:%s197] %v466
                %v468 = vld [vmem:[%s204 + $0x1060] sm:%s197]
                %469 = vst [vmem:[%s205 + $0x418] sm:%s197] %v468
                %v470 = vld [vmem:[%s204 + $0x1080] sm:%s197]
                %471 = vst [vmem:[%s205 + $0x420] sm:%s197] %v470
                %v472 = vld [vmem:[%s204 + $0x10a0] sm:%s197]
                %473 = vst [vmem:[%s205 + $0x428] sm:%s197] %v472
                %v474 = vld [vmem:[%s204 + $0x10c0] sm:%s197]
                %475 = vst [vmem:[%s205 + $0x430] sm:%s197] %v474
                %v476 = vld [vmem:[%s204 + $0x10e0] sm:%s197]
                %477 = vst [vmem:[%s205 + $0x438] sm:%s197] %v476
                %v478 = vld [vmem:[%s204 + $0x1100] sm:%s197]
                %479 = vst [vmem:[%s205 + $0x440] sm:%s197] %v478
                %v480 = vld [vmem:[%s204 + $0x1120] sm:%s197]
                %481 = vst [vmem:[%s205 + $0x448] sm:%s197] %v480
                %v482 = vld [vmem:[%s204 + $0x1140] sm:%s197]
                %483 = vst [vmem:[%s205 + $0x450] sm:%s197] %v482
                %v484 = vld [vmem:[%s204 + $0x1160] sm:%s197]
                %485 = vst [vmem:[%s205 + $0x458] sm:%s197] %v484
                %v486 = vld [vmem:[%s204 + $0x1180] sm:%s197]
                %487 = vst [vmem:[%s205 + $0x460] sm:%s197] %v486
                %v488 = vld [vmem:[%s204 + $0x11a0] sm:%s197]
                %489 = vst [vmem:[%s205 + $0x468] sm:%s197] %v488
                %v490 = vld [vmem:[%s204 + $0x11c0] sm:%s197]
                %491 = vst [vmem:[%s205 + $0x470] sm:%s197] %v490
                %v492 = vld [vmem:[%s204 + $0x11e0] sm:%s197]
                %493 = vst [vmem:[%s205 + $0x478] sm:%s197] %v492
                %v494 = vld [vmem:[%s204 + $0x1200] sm:%s197]
                %495 = vst [vmem:[%s205 + $0x480] sm:%s197] %v494
                %v496 = vld [vmem:[%s204 + $0x1220] sm:%s197]
                %497 = vst [vmem:[%s205 + $0x488] sm:%s197] %v496
                %v498 = vld [vmem:[%s204 + $0x1240] sm:%s197]
                %499 = vst [vmem:[%s205 + $0x490] sm:%s197] %v498
                %v500 = vld [vmem:[%s204 + $0x1260] sm:%s197]
                %501 = vst [vmem:[%s205 + $0x498] sm:%s197] %v500
                %v502 = vld [vmem:[%s204 + $0x1280] sm:%s197]
                %503 = vst [vmem:[%s205 + $0x4a0] sm:%s197] %v502
                %v504 = vld [vmem:[%s204 + $0x12a0] sm:%s197]
                %505 = vst [vmem:[%s205 + $0x4a8] sm:%s197] %v504
                %v506 = vld [vmem:[%s204 + $0x12c0] sm:%s197]
                %507 = vst [vmem:[%s205 + $0x4b0] sm:%s197] %v506
                %v508 = vld [vmem:[%s204 + $0x12e0] sm:%s197]
                %509 = vst [vmem:[%s205 + $0x4b8] sm:%s197] %v508
                %v510 = vld [vmem:[%s204 + $0x1300] sm:%s197]
                %511 = vst [vmem:[%s205 + $0x4c0] sm:%s197] %v510
                %v512 = vld [vmem:[%s204 + $0x1320] sm:%s197]
                %513 = vst [vmem:[%s205 + $0x4c8] sm:%s197] %v512
                %v514 = vld [vmem:[%s204 + $0x1340] sm:%s197]
                %515 = vst [vmem:[%s205 + $0x4d0] sm:%s197] %v514
                %v516 = vld [vmem:[%s204 + $0x1360] sm:%s197]
                %517 = vst [vmem:[%s205 + $0x4d8] sm:%s197] %v516
                %v518 = vld [vmem:[%s204 + $0x1380] sm:%s197]
                %519 = vst [vmem:[%s205 + $0x4e0] sm:%s197] %v518
                %v520 = vld [vmem:[%s204 + $0x13a0] sm:%s197]
                %521 = vst [vmem:[%s205 + $0x4e8] sm:%s197] %v520
                %v522 = vld [vmem:[%s204 + $0x13c0] sm:%s197]
                %523 = vst [vmem:[%s205 + $0x4f0] sm:%s197] %v522
                %v524 = vld [vmem:[%s204 + $0x13e0] sm:%s197]
                %525 = vst [vmem:[%s205 + $0x4f8] sm:%s197] %v524
                %v526 = vld [vmem:[%s204 + $0x1400] sm:%s197]
                %527 = vst [vmem:[%s205 + $0x500] sm:%s197] %v526
                %v528 = vld [vmem:[%s204 + $0x1420] sm:%s197]
                %529 = vst [vmem:[%s205 + $0x508] sm:%s197] %v528
                %v530 = vld [vmem:[%s204 + $0x1440] sm:%s197]
                %531 = vst [vmem:[%s205 + $0x510] sm:%s197] %v530
                %v532 = vld [vmem:[%s204 + $0x1460] sm:%s197]
                %533 = vst [vmem:[%s205 + $0x518] sm:%s197] %v532
                %v534 = vld [vmem:[%s204 + $0x1480] sm:%s197]
                %535 = vst [vmem:[%s205 + $0x520] sm:%s197] %v534
                %v536 = vld [vmem:[%s204 + $0x14a0] sm:%s197]
                %537 = vst [vmem:[%s205 + $0x528] sm:%s197] %v536
                %v538 = vld [vmem:[%s204 + $0x14c0] sm:%s197]
                %539 = vst [vmem:[%s205 + $0x530] sm:%s197] %v538
                %v540 = vld [vmem:[%s204 + $0x14e0] sm:%s197]
                %541 = vst [vmem:[%s205 + $0x538] sm:%s197] %v540
                %v542 = vld [vmem:[%s204 + $0x1500] sm:%s197]
                %543 = vst [vmem:[%s205 + $0x540] sm:%s197] %v542
                %v544 = vld [vmem:[%s204 + $0x1520] sm:%s197]
                %545 = vst [vmem:[%s205 + $0x548] sm:%s197] %v544
                %v546 = vld [vmem:[%s204 + $0x1540] sm:%s197]
                %547 = vst [vmem:[%s205 + $0x550] sm:%s197] %v546
                %v548 = vld [vmem:[%s204 + $0x1560] sm:%s197]
                %549 = vst [vmem:[%s205 + $0x558] sm:%s197] %v548
                %v550 = vld [vmem:[%s204 + $0x1580] sm:%s197]
                %551 = vst [vmem:[%s205 + $0x560] sm:%s197] %v550
                %v552 = vld [vmem:[%s204 + $0x15a0] sm:%s197]
                %553 = vst [vmem:[%s205 + $0x568] sm:%s197] %v552
                %v554 = vld [vmem:[%s204 + $0x15c0] sm:%s197]
                %555 = vst [vmem:[%s205 + $0x570] sm:%s197] %v554
                %v556 = vld [vmem:[%s204 + $0x15e0] sm:%s197]
                %557 = vst [vmem:[%s205 + $0x578] sm:%s197] %v556
                %v558 = vld [vmem:[%s204 + $0x1600] sm:%s197]
                %559 = vst [vmem:[%s205 + $0x580] sm:%s197] %v558
                %v560 = vld [vmem:[%s204 + $0x1620] sm:%s197]
                %561 = vst [vmem:[%s205 + $0x588] sm:%s197] %v560
                %v562 = vld [vmem:[%s204 + $0x1640] sm:%s197]
                %563 = vst [vmem:[%s205 + $0x590] sm:%s197] %v562
                %v564 = vld [vmem:[%s204 + $0x1660] sm:%s197]
                %565 = vst [vmem:[%s205 + $0x598] sm:%s197] %v564
                %v566 = vld [vmem:[%s204 + $0x1680] sm:%s197]
                %567 = vst [vmem:[%s205 + $0x5a0] sm:%s197] %v566
                %v568 = vld [vmem:[%s204 + $0x16a0] sm:%s197]
                %569 = vst [vmem:[%s205 + $0x5a8] sm:%s197] %v568
                %v570 = vld [vmem:[%s204 + $0x16c0] sm:%s197]
                %571 = vst [vmem:[%s205 + $0x5b0] sm:%s197] %v570
                %v572 = vld [vmem:[%s204 + $0x16e0] sm:%s197]
                %573 = vst [vmem:[%s205 + $0x5b8] sm:%s197] %v572
                %v574 = vld [vmem:[%s204 + $0x1700] sm:%s197]
                %575 = vst [vmem:[%s205 + $0x5c0] sm:%s197] %v574
                %v576 = vld [vmem:[%s204 + $0x1720] sm:%s197]
                %577 = vst [vmem:[%s205 + $0x5c8] sm:%s197] %v576
                %v578 = vld [vmem:[%s204 + $0x1740] sm:%s197]
                %579 = vst [vmem:[%s205 + $0x5d0] sm:%s197] %v578
                %v580 = vld [vmem:[%s204 + $0x1760] sm:%s197]
                %581 = vst [vmem:[%s205 + $0x5d8] sm:%s197] %v580
                %v582 = vld [vmem:[%s204 + $0x1780] sm:%s197]
                %583 = vst [vmem:[%s205 + $0x5e0] sm:%s197] %v582
                %v584 = vld [vmem:[%s204 + $0x17a0] sm:%s197]
                %585 = vst [vmem:[%s205 + $0x5e8] sm:%s197] %v584
                %v586 = vld [vmem:[%s204 + $0x17c0] sm:%s197]
                %587 = vst [vmem:[%s205 + $0x5f0] sm:%s197] %v586
                %v588 = vld [vmem:[%s204 + $0x17e0] sm:%s197]
                %589 = vst [vmem:[%s205 + $0x5f8] sm:%s197] %v588
                %v590 = vld [vmem:[%s204 + $0x1800] sm:%s197]
                %591 = vst [vmem:[%s205 + $0x600] sm:%s197] %v590
                %v592 = vld [vmem:[%s204 + $0x1820] sm:%s197]
                %593 = vst [vmem:[%s205 + $0x608] sm:%s197] %v592
                %v594 = vld [vmem:[%s204 + $0x1840] sm:%s197]
                %595 = vst [vmem:[%s205 + $0x610] sm:%s197] %v594
                %v596 = vld [vmem:[%s204 + $0x1860] sm:%s197]
                %597 = vst [vmem:[%s205 + $0x618] sm:%s197] %v596
                %v598 = vld [vmem:[%s204 + $0x1880] sm:%s197]
                %599 = vst [vmem:[%s205 + $0x620] sm:%s197] %v598
                %v600 = vld [vmem:[%s204 + $0x18a0] sm:%s197]
                %601 = vst [vmem:[%s205 + $0x628] sm:%s197] %v600
                %v602 = vld [vmem:[%s204 + $0x18c0] sm:%s197]
                %603 = vst [vmem:[%s205 + $0x630] sm:%s197] %v602
                %v604 = vld [vmem:[%s204 + $0x18e0] sm:%s197]
                %605 = vst [vmem:[%s205 + $0x638] sm:%s197] %v604
                %v606 = vld [vmem:[%s204 + $0x1900] sm:%s197]
                %607 = vst [vmem:[%s205 + $0x640] sm:%s197] %v606
                %v608 = vld [vmem:[%s204 + $0x1920] sm:%s197]
                %609 = vst [vmem:[%s205 + $0x648] sm:%s197] %v608
                %v610 = vld [vmem:[%s204 + $0x1940] sm:%s197]
                %611 = vst [vmem:[%s205 + $0x650] sm:%s197] %v610
                %v612 = vld [vmem:[%s204 + $0x1960] sm:%s197]
                %613 = vst [vmem:[%s205 + $0x658] sm:%s197] %v612
                %v614 = vld [vmem:[%s204 + $0x1980] sm:%s197]
                %615 = vst [vmem:[%s205 + $0x660] sm:%s197] %v614
                %v616 = vld [vmem:[%s204 + $0x19a0] sm:%s197]
                %617 = vst [vmem:[%s205 + $0x668] sm:%s197] %v616
                %v618 = vld [vmem:[%s204 + $0x19c0] sm:%s197]
                %619 = vst [vmem:[%s205 + $0x670] sm:%s197] %v618
                %v620 = vld [vmem:[%s204 + $0x19e0] sm:%s197]
                %621 = vst [vmem:[%s205 + $0x678] sm:%s197] %v620
                %v622 = vld [vmem:[%s204 + $0x1a00] sm:%s197]
                %623 = vst [vmem:[%s205 + $0x680] sm:%s197] %v622
                %v624 = vld [vmem:[%s204 + $0x1a20] sm:%s197]
                %625 = vst [vmem:[%s205 + $0x688] sm:%s197] %v624
                %v626 = vld [vmem:[%s204 + $0x1a40] sm:%s197]
                %627 = vst [vmem:[%s205 + $0x690] sm:%s197] %v626
                %v628 = vld [vmem:[%s204 + $0x1a60] sm:%s197]
                %629 = vst [vmem:[%s205 + $0x698] sm:%s197] %v628
                %v630 = vld [vmem:[%s204 + $0x1a80] sm:%s197]
                %631 = vst [vmem:[%s205 + $0x6a0] sm:%s197] %v630
                %v632 = vld [vmem:[%s204 + $0x1aa0] sm:%s197]
                %633 = vst [vmem:[%s205 + $0x6a8] sm:%s197] %v632
                %v634 = vld [vmem:[%s204 + $0x1ac0] sm:%s197]
                %635 = vst [vmem:[%s205 + $0x6b0] sm:%s197] %v634
                %v636 = vld [vmem:[%s204 + $0x1ae0] sm:%s197]
                %637 = vst [vmem:[%s205 + $0x6b8] sm:%s197] %v636
                %v638 = vld [vmem:[%s204 + $0x1b00] sm:%s197]
                %639 = vst [vmem:[%s205 + $0x6c0] sm:%s197] %v638
                %v640 = vld [vmem:[%s204 + $0x1b20] sm:%s197]
                %641 = vst [vmem:[%s205 + $0x6c8] sm:%s197] %v640
                %v642 = vld [vmem:[%s204 + $0x1b40] sm:%s197]
                %643 = vst [vmem:[%s205 + $0x6d0] sm:%s197] %v642
                %v644 = vld [vmem:[%s204 + $0x1b60] sm:%s197]
                %645 = vst [vmem:[%s205 + $0x6d8] sm:%s197] %v644
                %v646 = vld [vmem:[%s204 + $0x1b80] sm:%s197]
                %647 = vst [vmem:[%s205 + $0x6e0] sm:%s197] %v646
                %v648 = vld [vmem:[%s204 + $0x1ba0] sm:%s197]
                %649 = vst [vmem:[%s205 + $0x6e8] sm:%s197] %v648
                %v650 = vld [vmem:[%s204 + $0x1bc0] sm:%s197]
                %651 = vst [vmem:[%s205 + $0x6f0] sm:%s197] %v650
                %v652 = vld [vmem:[%s204 + $0x1be0] sm:%s197]
                %653 = vst [vmem:[%s205 + $0x6f8] sm:%s197] %v652
                %v654 = vld [vmem:[%s204 + $0x1c00] sm:%s197]
                %655 = vst [vmem:[%s205 + $0x700] sm:%s197] %v654
                %v656 = vld [vmem:[%s204 + $0x1c20] sm:%s197]
                %657 = vst [vmem:[%s205 + $0x708] sm:%s197] %v656
                %v658 = vld [vmem:[%s204 + $0x1c40] sm:%s197]
                %659 = vst [vmem:[%s205 + $0x710] sm:%s197] %v658
                %v660 = vld [vmem:[%s204 + $0x1c60] sm:%s197]
                %661 = vst [vmem:[%s205 + $0x718] sm:%s197] %v660
                %v662 = vld [vmem:[%s204 + $0x1c80] sm:%s197]
                %663 = vst [vmem:[%s205 + $0x720] sm:%s197] %v662
                %v664 = vld [vmem:[%s204 + $0x1ca0] sm:%s197]
                %665 = vst [vmem:[%s205 + $0x728] sm:%s197] %v664
                %v666 = vld [vmem:[%s204 + $0x1cc0] sm:%s197]
                %667 = vst [vmem:[%s205 + $0x730] sm:%s197] %v666
                %v668 = vld [vmem:[%s204 + $0x1ce0] sm:%s197]
                %669 = vst [vmem:[%s205 + $0x738] sm:%s197] %v668
                %v670 = vld [vmem:[%s204 + $0x1d00] sm:%s197]
                %671 = vst [vmem:[%s205 + $0x740] sm:%s197] %v670
                %v672 = vld [vmem:[%s204 + $0x1d20] sm:%s197]
                %673 = vst [vmem:[%s205 + $0x748] sm:%s197] %v672
                %v674 = vld [vmem:[%s204 + $0x1d40] sm:%s197]
                %675 = vst [vmem:[%s205 + $0x750] sm:%s197] %v674
                %v676 = vld [vmem:[%s204 + $0x1d60] sm:%s197]
                %677 = vst [vmem:[%s205 + $0x758] sm:%s197] %v676
                %v678 = vld [vmem:[%s204 + $0x1d80] sm:%s197]
                %679 = vst [vmem:[%s205 + $0x760] sm:%s197] %v678
                %v680 = vld [vmem:[%s204 + $0x1da0] sm:%s197]
                %681 = vst [vmem:[%s205 + $0x768] sm:%s197] %v680
                %v682 = vld [vmem:[%s204 + $0x1dc0] sm:%s197]
                %683 = vst [vmem:[%s205 + $0x770] sm:%s197] %v682
                %v684 = vld [vmem:[%s204 + $0x1de0] sm:%s197]
                %685 = vst [vmem:[%s205 + $0x778] sm:%s197] %v684
                %v686 = vld [vmem:[%s204 + $0x1e00] sm:%s197]
                %687 = vst [vmem:[%s205 + $0x780] sm:%s197] %v686
                %v688 = vld [vmem:[%s204 + $0x1e20] sm:%s197]
                %689 = vst [vmem:[%s205 + $0x788] sm:%s197] %v688
                %v690 = vld [vmem:[%s204 + $0x1e40] sm:%s197]
                %691 = vst [vmem:[%s205 + $0x790] sm:%s197] %v690
                %v692 = vld [vmem:[%s204 + $0x1e60] sm:%s197]
                %693 = vst [vmem:[%s205 + $0x798] sm:%s197] %v692
                %v694 = vld [vmem:[%s204 + $0x1e80] sm:%s197]
                %695 = vst [vmem:[%s205 + $0x7a0] sm:%s197] %v694
                %v696 = vld [vmem:[%s204 + $0x1ea0] sm:%s197]
                %697 = vst [vmem:[%s205 + $0x7a8] sm:%s197] %v696
                %v698 = vld [vmem:[%s204 + $0x1ec0] sm:%s197]
                %699 = vst [vmem:[%s205 + $0x7b0] sm:%s197] %v698
                %v700 = vld [vmem:[%s204 + $0x1ee0] sm:%s197]
                %701 = vst [vmem:[%s205 + $0x7b8] sm:%s197] %v700
                %v702 = vld [vmem:[%s204 + $0x1f00] sm:%s197]
                %703 = vst [vmem:[%s205 + $0x7c0] sm:%s197] %v702
                %v704 = vld [vmem:[%s204 + $0x1f20] sm:%s197]
                %705 = vst [vmem:[%s205 + $0x7c8] sm:%s197] %v704
                %v706 = vld [vmem:[%s204 + $0x1f40] sm:%s197]
                %707 = vst [vmem:[%s205 + $0x7d0] sm:%s197] %v706
                %v708 = vld [vmem:[%s204 + $0x1f60] sm:%s197]
                %709 = vst [vmem:[%s205 + $0x7d8] sm:%s197] %v708
                %v710 = vld [vmem:[%s204 + $0x1f80] sm:%s197]
                %711 = vst [vmem:[%s205 + $0x7e0] sm:%s197] %v710
                %v712 = vld [vmem:[%s204 + $0x1fa0] sm:%s197]
                %713 = vst [vmem:[%s205 + $0x7e8] sm:%s197] %v712
                %v714 = vld [vmem:[%s204 + $0x1fc0] sm:%s197]
                %715 = vst [vmem:[%s205 + $0x7f0] sm:%s197] %v714
                %v716 = vld [vmem:[%s204 + $0x1fe0] sm:%s197]
                %717 = vst [vmem:[%s205 + $0x7f8] sm:%s197] %v716
                %v718 = vld [vmem:[%s204 + $0x2000] sm:%s197]
                %719 = vst [vmem:[%s205 + $0x800] sm:%s197] %v718
                %v720 = vld [vmem:[%s204 + $0x2020] sm:%s197]
                %721 = vst [vmem:[%s205 + $0x808] sm:%s197] %v720
                %v722 = vld [vmem:[%s204 + $0x2040] sm:%s197]
                %723 = vst [vmem:[%s205 + $0x810] sm:%s197] %v722
                %v724 = vld [vmem:[%s204 + $0x2060] sm:%s197]
                %725 = vst [vmem:[%s205 + $0x818] sm:%s197] %v724
                %v726 = vld [vmem:[%s204 + $0x2080] sm:%s197]
                %727 = vst [vmem:[%s205 + $0x820] sm:%s197] %v726
                %v728 = vld [vmem:[%s204 + $0x20a0] sm:%s197]
                %729 = vst [vmem:[%s205 + $0x828] sm:%s197] %v728
                %v730 = vld [vmem:[%s204 + $0x20c0] sm:%s197]
                %731 = vst [vmem:[%s205 + $0x830] sm:%s197] %v730
                %v732 = vld [vmem:[%s204 + $0x20e0] sm:%s197]
                %733 = vst [vmem:[%s205 + $0x838] sm:%s197] %v732
                %v734 = vld [vmem:[%s204 + $0x2100] sm:%s197]
                %735 = vst [vmem:[%s205 + $0x840] sm:%s197] %v734
                %v736 = vld [vmem:[%s204 + $0x2120] sm:%s197]
                %737 = vst [vmem:[%s205 + $0x848] sm:%s197] %v736
                %v738 = vld [vmem:[%s204 + $0x2140] sm:%s197]
                %739 = vst [vmem:[%s205 + $0x850] sm:%s197] %v738
                %v740 = vld [vmem:[%s204 + $0x2160] sm:%s197]
                %741 = vst [vmem:[%s205 + $0x858] sm:%s197] %v740
                %v742 = vld [vmem:[%s204 + $0x2180] sm:%s197]
                %743 = vst [vmem:[%s205 + $0x860] sm:%s197] %v742
                %v744 = vld [vmem:[%s204 + $0x21a0] sm:%s197]
                %745 = vst [vmem:[%s205 + $0x868] sm:%s197] %v744
                %v746 = vld [vmem:[%s204 + $0x21c0] sm:%s197]
                %747 = vst [vmem:[%s205 + $0x870] sm:%s197] %v746
                %v748 = vld [vmem:[%s204 + $0x21e0] sm:%s197]
                %749 = vst [vmem:[%s205 + $0x878] sm:%s197] %v748
                %v750 = vld [vmem:[%s204 + $0x2200] sm:%s197]
                %751 = vst [vmem:[%s205 + $0x880] sm:%s197] %v750
                %v752 = vld [vmem:[%s204 + $0x2220] sm:%s197]
                %753 = vst [vmem:[%s205 + $0x888] sm:%s197] %v752
                %v754 = vld [vmem:[%s204 + $0x2240] sm:%s197]
                %755 = vst [vmem:[%s205 + $0x890] sm:%s197] %v754
                %v756 = vld [vmem:[%s204 + $0x2260] sm:%s197]
                %757 = vst [vmem:[%s205 + $0x898] sm:%s197] %v756
                %v758 = vld [vmem:[%s204 + $0x2280] sm:%s197]
                %759 = vst [vmem:[%s205 + $0x8a0] sm:%s197] %v758
                %v760 = vld [vmem:[%s204 + $0x22a0] sm:%s197]
                %761 = vst [vmem:[%s205 + $0x8a8] sm:%s197] %v760
                %v762 = vld [vmem:[%s204 + $0x22c0] sm:%s197]
                %763 = vst [vmem:[%s205 + $0x8b0] sm:%s197] %v762
                %v764 = vld [vmem:[%s204 + $0x22e0] sm:%s197]
                %765 = vst [vmem:[%s205 + $0x8b8] sm:%s197] %v764
                %v766 = vld [vmem:[%s204 + $0x2300] sm:%s197]
                %767 = vst [vmem:[%s205 + $0x8c0] sm:%s197] %v766
                %v768 = vld [vmem:[%s204 + $0x2320] sm:%s197]
                %769 = vst [vmem:[%s205 + $0x8c8] sm:%s197] %v768
                %v770 = vld [vmem:[%s204 + $0x2340] sm:%s197]
                %771 = vst [vmem:[%s205 + $0x8d0] sm:%s197] %v770
                %v772 = vld [vmem:[%s204 + $0x2360] sm:%s197]
                %773 = vst [vmem:[%s205 + $0x8d8] sm:%s197] %v772
                %v774 = vld [vmem:[%s204 + $0x2380] sm:%s197]
                %775 = vst [vmem:[%s205 + $0x8e0] sm:%s197] %v774
                %v776 = vld [vmem:[%s204 + $0x23a0] sm:%s197]
                %777 = vst [vmem:[%s205 + $0x8e8] sm:%s197] %v776
                %v778 = vld [vmem:[%s204 + $0x23c0] sm:%s197]
                %779 = vst [vmem:[%s205 + $0x8f0] sm:%s197] %v778
                %v780 = vld [vmem:[%s204 + $0x23e0] sm:%s197]
                %781 = vst [vmem:[%s205 + $0x8f8] sm:%s197] %v780
                %v782 = vld [vmem:[%s204 + $0x2400] sm:%s197]
                %783 = vst [vmem:[%s205 + $0x900] sm:%s197] %v782
                %v784 = vld [vmem:[%s204 + $0x2420] sm:%s197]
                %785 = vst [vmem:[%s205 + $0x908] sm:%s197] %v784
                %v786 = vld [vmem:[%s204 + $0x2440] sm:%s197]
                %787 = vst [vmem:[%s205 + $0x910] sm:%s197] %v786
                %v788 = vld [vmem:[%s204 + $0x2460] sm:%s197]
                %789 = vst [vmem:[%s205 + $0x918] sm:%s197] %v788
                %v790 = vld [vmem:[%s204 + $0x2480] sm:%s197]
                %791 = vst [vmem:[%s205 + $0x920] sm:%s197] %v790
                %v792 = vld [vmem:[%s204 + $0x24a0] sm:%s197]
                %793 = vst [vmem:[%s205 + $0x928] sm:%s197] %v792
                %v794 = vld [vmem:[%s204 + $0x24c0] sm:%s197]
                %795 = vst [vmem:[%s205 + $0x930] sm:%s197] %v794
                %v796 = vld [vmem:[%s204 + $0x24e0] sm:%s197]
                %797 = vst [vmem:[%s205 + $0x938] sm:%s197] %v796
                %v798 = vld [vmem:[%s204 + $0x2500] sm:%s197]
                %799 = vst [vmem:[%s205 + $0x940] sm:%s197] %v798
                %v800 = vld [vmem:[%s204 + $0x2520] sm:%s197]
                %801 = vst [vmem:[%s205 + $0x948] sm:%s197] %v800
                %v802 = vld [vmem:[%s204 + $0x2540] sm:%s197]
                %803 = vst [vmem:[%s205 + $0x950] sm:%s197] %v802
                %v804 = vld [vmem:[%s204 + $0x2560] sm:%s197]
                %805 = vst [vmem:[%s205 + $0x958] sm:%s197] %v804
                %v806 = vld [vmem:[%s204 + $0x2580] sm:%s197]
                %807 = vst [vmem:[%s205 + $0x960] sm:%s197] %v806
                %v808 = vld [vmem:[%s204 + $0x25a0] sm:%s197]
                %809 = vst [vmem:[%s205 + $0x968] sm:%s197] %v808
                %v810 = vld [vmem:[%s204 + $0x25c0] sm:%s197]
                %811 = vst [vmem:[%s205 + $0x970] sm:%s197] %v810
                %v812 = vld [vmem:[%s204 + $0x25e0] sm:%s197]
                %813 = vst [vmem:[%s205 + $0x978] sm:%s197] %v812
                %v814 = vld [vmem:[%s204 + $0x2600] sm:%s197]
                %815 = vst [vmem:[%s205 + $0x980] sm:%s197] %v814
                %v816 = vld [vmem:[%s204 + $0x2620] sm:%s197]
                %817 = vst [vmem:[%s205 + $0x988] sm:%s197] %v816
                %v818 = vld [vmem:[%s204 + $0x2640] sm:%s197]
                %819 = vst [vmem:[%s205 + $0x990] sm:%s197] %v818
                %v820 = vld [vmem:[%s204 + $0x2660] sm:%s197]
                %821 = vst [vmem:[%s205 + $0x998] sm:%s197] %v820
                %v822 = vld [vmem:[%s204 + $0x2680] sm:%s197]
                %823 = vst [vmem:[%s205 + $0x9a0] sm:%s197] %v822
                %v824 = vld [vmem:[%s204 + $0x26a0] sm:%s197]
                %825 = vst [vmem:[%s205 + $0x9a8] sm:%s197] %v824
                %v826 = vld [vmem:[%s204 + $0x26c0] sm:%s197]
                %827 = vst [vmem:[%s205 + $0x9b0] sm:%s197] %v826
                %v828 = vld [vmem:[%s204 + $0x26e0] sm:%s197]
                %829 = vst [vmem:[%s205 + $0x9b8] sm:%s197] %v828
                %v830 = vld [vmem:[%s204 + $0x2700] sm:%s197]
                %831 = vst [vmem:[%s205 + $0x9c0] sm:%s197] %v830
                %v832 = vld [vmem:[%s204 + $0x2720] sm:%s197]
                %833 = vst [vmem:[%s205 + $0x9c8] sm:%s197] %v832
                %v834 = vld [vmem:[%s204 + $0x2740] sm:%s197]
                %835 = vst [vmem:[%s205 + $0x9d0] sm:%s197] %v834
                %v836 = vld [vmem:[%s204 + $0x2760] sm:%s197]
                %837 = vst [vmem:[%s205 + $0x9d8] sm:%s197] %v836
                %v838 = vld [vmem:[%s204 + $0x2780] sm:%s197]
                %839 = vst [vmem:[%s205 + $0x9e0] sm:%s197] %v838
                %v840 = vld [vmem:[%s204 + $0x27a0] sm:%s197]
                %841 = vst [vmem:[%s205 + $0x9e8] sm:%s197] %v840
                %v842 = vld [vmem:[%s204 + $0x27c0] sm:%s197]
                %843 = vst [vmem:[%s205 + $0x9f0] sm:%s197] %v842
                %v844 = vld [vmem:[%s204 + $0x27e0] sm:%s197]
                %845 = vst [vmem:[%s205 + $0x9f8] sm:%s197] %v844
                %v846 = vld [vmem:[%s204 + $0x2800] sm:%s197]
                %847 = vst [vmem:[%s205 + $0xa00] sm:%s197] %v846
                %v848 = vld [vmem:[%s204 + $0x2820] sm:%s197]
                %849 = vst [vmem:[%s205 + $0xa08] sm:%s197] %v848
                %v850 = vld [vmem:[%s204 + $0x2840] sm:%s197]
                %851 = vst [vmem:[%s205 + $0xa10] sm:%s197] %v850
                %v852 = vld [vmem:[%s204 + $0x2860] sm:%s197]
                %853 = vst [vmem:[%s205 + $0xa18] sm:%s197] %v852
                %v854 = vld [vmem:[%s204 + $0x2880] sm:%s197]
                %855 = vst [vmem:[%s205 + $0xa20] sm:%s197] %v854
                %v856 = vld [vmem:[%s204 + $0x28a0] sm:%s197]
                %857 = vst [vmem:[%s205 + $0xa28] sm:%s197] %v856
                %v858 = vld [vmem:[%s204 + $0x28c0] sm:%s197]
                %859 = vst [vmem:[%s205 + $0xa30] sm:%s197] %v858
                %v860 = vld [vmem:[%s204 + $0x28e0] sm:%s197]
                %861 = vst [vmem:[%s205 + $0xa38] sm:%s197] %v860
                %v862 = vld [vmem:[%s204 + $0x2900] sm:%s197]
                %863 = vst [vmem:[%s205 + $0xa40] sm:%s197] %v862
                %v864 = vld [vmem:[%s204 + $0x2920] sm:%s197]
                %865 = vst [vmem:[%s205 + $0xa48] sm:%s197] %v864
                %v866 = vld [vmem:[%s204 + $0x2940] sm:%s197]
                %867 = vst [vmem:[%s205 + $0xa50] sm:%s197] %v866
                %v868 = vld [vmem:[%s204 + $0x2960] sm:%s197]
                %869 = vst [vmem:[%s205 + $0xa58] sm:%s197] %v868
                %v870 = vld [vmem:[%s204 + $0x2980] sm:%s197]
                %871 = vst [vmem:[%s205 + $0xa60] sm:%s197] %v870
                %v872 = vld [vmem:[%s204 + $0x29a0] sm:%s197]
                %873 = vst [vmem:[%s205 + $0xa68] sm:%s197] %v872
                %v874 = vld [vmem:[%s204 + $0x29c0] sm:%s197]
                %875 = vst [vmem:[%s205 + $0xa70] sm:%s197] %v874
                %v876 = vld [vmem:[%s204 + $0x29e0] sm:%s197]
                %877 = vst [vmem:[%s205 + $0xa78] sm:%s197] %v876
                %v878 = vld [vmem:[%s204 + $0x2a00] sm:%s197]
                %879 = vst [vmem:[%s205 + $0xa80] sm:%s197] %v878
                %v880 = vld [vmem:[%s204 + $0x2a20] sm:%s197]
                %881 = vst [vmem:[%s205 + $0xa88] sm:%s197] %v880
                %v882 = vld [vmem:[%s204 + $0x2a40] sm:%s197]
                %883 = vst [vmem:[%s205 + $0xa90] sm:%s197] %v882
                %v884 = vld [vmem:[%s204 + $0x2a60] sm:%s197]
                %885 = vst [vmem:[%s205 + $0xa98] sm:%s197] %v884
                %v886 = vld [vmem:[%s204 + $0x2a80] sm:%s197]
                %887 = vst [vmem:[%s205 + $0xaa0] sm:%s197] %v886
                %v888 = vld [vmem:[%s204 + $0x2aa0] sm:%s197]
                %889 = vst [vmem:[%s205 + $0xaa8] sm:%s197] %v888
                %v890 = vld [vmem:[%s204 + $0x2ac0] sm:%s197]
                %891 = vst [vmem:[%s205 + $0xab0] sm:%s197] %v890
                %v892 = vld [vmem:[%s204 + $0x2ae0] sm:%s197]
                %893 = vst [vmem:[%s205 + $0xab8] sm:%s197] %v892
                %v894 = vld [vmem:[%s204 + $0x2b00] sm:%s197]
                %895 = vst [vmem:[%s205 + $0xac0] sm:%s197] %v894
                %v896 = vld [vmem:[%s204 + $0x2b20] sm:%s197]
                %897 = vst [vmem:[%s205 + $0xac8] sm:%s197] %v896
                %v898 = vld [vmem:[%s204 + $0x2b40] sm:%s197]
                %899 = vst [vmem:[%s205 + $0xad0] sm:%s197] %v898
                %v900 = vld [vmem:[%s204 + $0x2b60] sm:%s197]
                %901 = vst [vmem:[%s205 + $0xad8] sm:%s197] %v900
                %v902 = vld [vmem:[%s204 + $0x2b80] sm:%s197]
                %903 = vst [vmem:[%s205 + $0xae0] sm:%s197] %v902
                %v904 = vld [vmem:[%s204 + $0x2ba0] sm:%s197]
                %905 = vst [vmem:[%s205 + $0xae8] sm:%s197] %v904
                %v906 = vld [vmem:[%s204 + $0x2bc0] sm:%s197]
                %907 = vst [vmem:[%s205 + $0xaf0] sm:%s197] %v906
                %v908 = vld [vmem:[%s204 + $0x2be0] sm:%s197]
                %909 = vst [vmem:[%s205 + $0xaf8] sm:%s197] %v908
                %v910 = vld [vmem:[%s204 + $0x2c00] sm:%s197]
                %911 = vst [vmem:[%s205 + $0xb00] sm:%s197] %v910
                %v912 = vld [vmem:[%s204 + $0x2c20] sm:%s197]
                %913 = vst [vmem:[%s205 + $0xb08] sm:%s197] %v912
                %v914 = vld [vmem:[%s204 + $0x2c40] sm:%s197]
                %915 = vst [vmem:[%s205 + $0xb10] sm:%s197] %v914
                %v916 = vld [vmem:[%s204 + $0x2c60] sm:%s197]
                %917 = vst [vmem:[%s205 + $0xb18] sm:%s197] %v916
                %v918 = vld [vmem:[%s204 + $0x2c80] sm:%s197]
                %919 = vst [vmem:[%s205 + $0xb20] sm:%s197] %v918
                %v920 = vld [vmem:[%s204 + $0x2ca0] sm:%s197]
                %921 = vst [vmem:[%s205 + $0xb28] sm:%s197] %v920
                %v922 = vld [vmem:[%s204 + $0x2cc0] sm:%s197]
                %923 = vst [vmem:[%s205 + $0xb30] sm:%s197] %v922
                %v924 = vld [vmem:[%s204 + $0x2ce0] sm:%s197]
                %925 = vst [vmem:[%s205 + $0xb38] sm:%s197] %v924
                %v926 = vld [vmem:[%s204 + $0x2d00] sm:%s197]
                %927 = vst [vmem:[%s205 + $0xb40] sm:%s197] %v926
                %v928 = vld [vmem:[%s204 + $0x2d20] sm:%s197]
                %929 = vst [vmem:[%s205 + $0xb48] sm:%s197] %v928
                %v930 = vld [vmem:[%s204 + $0x2d40] sm:%s197]
                %931 = vst [vmem:[%s205 + $0xb50] sm:%s197] %v930
                %v932 = vld [vmem:[%s204 + $0x2d60] sm:%s197]
                %933 = vst [vmem:[%s205 + $0xb58] sm:%s197] %v932
                %v934 = vld [vmem:[%s204 + $0x2d80] sm:%s197]
                %935 = vst [vmem:[%s205 + $0xb60] sm:%s197] %v934
                %v936 = vld [vmem:[%s204 + $0x2da0] sm:%s197]
                %937 = vst [vmem:[%s205 + $0xb68] sm:%s197] %v936
                %v938 = vld [vmem:[%s204 + $0x2dc0] sm:%s197]
                %939 = vst [vmem:[%s205 + $0xb70] sm:%s197] %v938
                %v940 = vld [vmem:[%s204 + $0x2de0] sm:%s197]
                %941 = vst [vmem:[%s205 + $0xb78] sm:%s197] %v940
                %v942 = vld [vmem:[%s204 + $0x2e00] sm:%s197]
                %943 = vst [vmem:[%s205 + $0xb80] sm:%s197] %v942
                %v944 = vld [vmem:[%s204 + $0x2e20] sm:%s197]
                %945 = vst [vmem:[%s205 + $0xb88] sm:%s197] %v944
                %v946 = vld [vmem:[%s204 + $0x2e40] sm:%s197]
                %947 = vst [vmem:[%s205 + $0xb90] sm:%s197] %v946
                %v948 = vld [vmem:[%s204 + $0x2e60] sm:%s197]
                %949 = vst [vmem:[%s205 + $0xb98] sm:%s197] %v948
                %v950 = vld [vmem:[%s204 + $0x2e80] sm:%s197]
                %951 = vst [vmem:[%s205 + $0xba0] sm:%s197] %v950
                %v952 = vld [vmem:[%s204 + $0x2ea0] sm:%s197]
                %953 = vst [vmem:[%s205 + $0xba8] sm:%s197] %v952
                %v954 = vld [vmem:[%s204 + $0x2ec0] sm:%s197]
                %955 = vst [vmem:[%s205 + $0xbb0] sm:%s197] %v954
                %v956 = vld [vmem:[%s204 + $0x2ee0] sm:%s197]
                %957 = vst [vmem:[%s205 + $0xbb8] sm:%s197] %v956
                %v958 = vld [vmem:[%s204 + $0x2f00] sm:%s197]
                %959 = vst [vmem:[%s205 + $0xbc0] sm:%s197] %v958
                %v960 = vld [vmem:[%s204 + $0x2f20] sm:%s197]
                %961 = vst [vmem:[%s205 + $0xbc8] sm:%s197] %v960
                %v962 = vld [vmem:[%s204 + $0x2f40] sm:%s197]
                %963 = vst [vmem:[%s205 + $0xbd0] sm:%s197] %v962
                %v964 = vld [vmem:[%s204 + $0x2f60] sm:%s197]
                %965 = vst [vmem:[%s205 + $0xbd8] sm:%s197] %v964
                %v966 = vld [vmem:[%s204 + $0x2f80] sm:%s197]
                %967 = vst [vmem:[%s205 + $0xbe0] sm:%s197] %v966
                %v968 = vld [vmem:[%s204 + $0x2fa0] sm:%s197]
                %969 = vst [vmem:[%s205 + $0xbe8] sm:%s197] %v968
                %v970 = vld [vmem:[%s204 + $0x2fc0] sm:%s197]
                %971 = vst [vmem:[%s205 + $0xbf0] sm:%s197] %v970
                %v972 = vld [vmem:[%s204 + $0x2fe0] sm:%s197]
                %973 = vst [vmem:[%s205 + $0xbf8] sm:%s197] %v972
                %v974 = vld [vmem:[%s204 + $0x3000] sm:%s197]
                %975 = vst [vmem:[%s205 + $0xc00] sm:%s197] %v974
                %v976 = vld [vmem:[%s204 + $0x3020] sm:%s197]
                %977 = vst [vmem:[%s205 + $0xc08] sm:%s197] %v976
                %v978 = vld [vmem:[%s204 + $0x3040] sm:%s197]
                %979 = vst [vmem:[%s205 + $0xc10] sm:%s197] %v978
                %v980 = vld [vmem:[%s204 + $0x3060] sm:%s197]
                %981 = vst [vmem:[%s205 + $0xc18] sm:%s197] %v980
                %v982 = vld [vmem:[%s204 + $0x3080] sm:%s197]
                %983 = vst [vmem:[%s205 + $0xc20] sm:%s197] %v982
                %v984 = vld [vmem:[%s204 + $0x30a0] sm:%s197]
                %985 = vst [vmem:[%s205 + $0xc28] sm:%s197] %v984
                %v986 = vld [vmem:[%s204 + $0x30c0] sm:%s197]
                %987 = vst [vmem:[%s205 + $0xc30] sm:%s197] %v986
                %v988 = vld [vmem:[%s204 + $0x30e0] sm:%s197]
                %989 = vst [vmem:[%s205 + $0xc38] sm:%s197] %v988
              $region41: #{dueling_dqn_forward.7} parent=35 // loop_footer
                %s203 = sadd.s32 1, %s199
              $region42: #{dueling_dqn_forward.7} parent=35 // loop_footer_branch
                %198 = sbr.rel target = $region38
              $region43: #{dueling_dqn_forward.7} parent=35 // loop_exit
                _
            $region36: #{dueling_dqn_forward.7} parent=27 // pred_fallthru
              _
          $region28: #{dueling_dqn_forward.7} parent=23 // pred_fallthru
            _
          %3390 = vnop
        $region24: #{dueling_dqn_forward.7} parent=19 // pred_fallthru
          _
        // Predicated region
        $region73: #{dueling_dqn_forward.7} parent=19 // pred_check
          %p3391 = pneg %p94
        $region74: #{dueling_dqn_forward.7} parent=19 // pred_check_branch
          %3393 = sbr.rel (%p3391) target = $region76
        $region75: #{dueling_dqn_forward.7} parent=19 // pred_region
          %s3394 = smul.u32 2, %s18
          %p3395 = scmp.lt.s32.totalorder %s3394, 7
          %s3396 = scalar_select %p3395, %s3394, 7
          %s3397 = scalar_lea.vmem %s2, %s3396
          %s3398 = smul.u32 2, %s18
        $region76: #{dueling_dqn_forward.7} parent=19 // pred_fallthru
          _
        // Predicated region
        $region77: #{dueling_dqn_forward.7} parent=19 // pred_check
          %p3399 = pneg %p120
        $region78: #{dueling_dqn_forward.7} parent=19 // pred_check_branch
          %3401 = sbr.rel (%p3399) target = $region80
        $region79: #{dueling_dqn_forward.7} parent=19 // pred_region
          %s3402 = smul.u32 32, %s18
          %p3403 = scmp.lt.s32.totalorder %s3402, 127
          %s3404 = scalar_select %p3403, %s3402, 127
          %s3405 = smul.addr %s3404, 4
          %s3406 = scalar_lea.vmem %s3, %s3405
          %s3407 = smul.u32 32, %s18
        $region80: #{dueling_dqn_forward.7} parent=19 // pred_fallthru
          _
      $region20: #{dueling_dqn_forward.7} parent=5 // pred_fallthru
        _
      %p3408 = scmp.le.s32.totalorder 1, %s10
      %p3409 = scmp.lt.s32.totalorder %s10, 5
      %p3410 = pnand %p3408, %p3409
      %p3411 = pneg %p3410
      // Predicated region
      $region81: #{dueling_dqn_forward.7} parent=5 // pred_check
        _
      $region82: #{dueling_dqn_forward.7} parent=5 // pred_check_branch
        %3413 = sbr.rel (%p3410) target = $region84
      $region83: #{dueling_dqn_forward.7} parent=5 // pred_region
        %s3414 = ssub.s32 %s10, 1
        %s3415 = sand.u32 %s61, 1
        %s3416 = sand.u32 %s61, 1
        %s3417 = smul.addr %s3416, 3136
        %s3418 = scalar_lea.vmem [#allocation2], %s3417
        // Predicated region
        $region85: #{dueling_dqn_forward.7} parent=83 // pred_check
          %p3419 = pneg %p74
        $region86: #{dueling_dqn_forward.7} parent=83 // pred_check_branch
          %3421 = sbr.rel (%p3419) target = $region88
        $region87: #{dueling_dqn_forward.7} parent=83 // pred_region
          _
        $region88: #{dueling_dqn_forward.7} parent=83 // pred_fallthru
          _
        %p3422 = scmp.lt.s32.totalorder %s19, 0
        %s3423 = scalar_select %p3422, %s19, 0
        %s3424 = smul.addr %s3423, 25
        %s3425 = scalar_lea.vmem %s0, %s3424
        %p3426 = pneg %p48
        %p3427 = pneg %p45
        %s3428 = sand.u32 %s61, 1
        %s3429 = sand.u32 %s61, 1
        %s3430 = smul.addr %s3429, 3136
        %s3431 = scalar_lea.vmem [#allocation2], %s3430
        %p3432 = pneg %p74
        %p3433 = pneg %p71
        %s3434 = smul.u32 2, %s20
        %p3435 = scmp.lt.s32.totalorder %s3434, 7
        %s3436 = scalar_select %p3435, %s3434, 7
        %s3437 = scalar_lea.vmem %s2, %s3436
        %p3438 = pneg %p100
        %p3439 = pneg %p97
        %s3440 = smul.u32 32, %s20
        %p3441 = scmp.lt.s32.totalorder %s3440, 127
        %s3442 = scalar_select %p3441, %s3440, 127
        %s3443 = smul.addr %s3442, 4
        %s3444 = scalar_lea.vmem %s3, %s3443
        %p3445 = pneg %p126
        %p3446 = pneg %p123
        %p3447 = pneg %p154
        %p3448 = pneg %p151
        %p3449 = scmp.lt.s32.totalorder %s20, 3
        %s3450 = scalar_select %p3449, %s20, 3
        %p3451 = scmp.lt.s32.totalorder %s19, 0
        %s3452 = scalar_select %p3451, %s19, 0
        %s3453 = sadd.s32 %s3452, %s3450
        %s3454 = smul.addr %s3453, 2
        %s3455 = scalar_lea.vmem %s4, %s3454
        %p3456 = scmp.lt.s32.totalorder %s19, 0
        %s3457 = scalar_select %p3456, %s19, 0
        %s3458 = smul.addr %s3457, 25
        %s3459 = scalar_lea.vmem %s0, %s3458
        %s3460 = smul.u32 2, %s20
        %s3461 = smul.u32 2, %s20
        %p3462 = scmp.lt.s32.totalorder %s3461, 7
        %s3463 = scalar_select %p3462, %s3461, 7
        %s3464 = scalar_lea.vmem %s2, %s3463
        %s3465 = smul.u32 2, %s20
        %s3466 = smul.u32 32, %s20
        %p3467 = scmp.lt.s32.totalorder %s3466, 127
        %s3468 = scalar_select %p3467, %s3466, 127
        %s3469 = smul.addr %s3468, 4
        %s3470 = scalar_lea.vmem %s3, %s3469
        %s3471 = smul.u32 32, %s20
        %p3472 = scmp.lt.s32.totalorder %s20, 3
        %s3473 = scalar_select %p3472, %s20, 3
        %p3474 = scmp.lt.s32.totalorder %s19, 0
        %s3475 = scalar_select %p3474, %s19, 0
        %s3476 = sadd.s32 %s3475, %s3473
        %s3477 = smul.addr %s3476, 2
        %s3478 = scalar_lea.vmem %s4, %s3477
        %v3480 = vld [vmem:[%s3459] sm:$0xff]
        %v3481 = vld [vmem:[%s3459 + $0x8] sm:$0xff]
        %v3482 = vld [vmem:[%s3459 + $0x10] sm:$0xff]
        %v3483 = vld [vmem:[%s3459 + $0x18] sm:$0x1]
        %v3484 = vld [vmem:[%s3418] sm:$0xff]
        %v3485 = vld [vmem:[%s3418 + $0x8] sm:$0xff]
        %v3486 = vld [vmem:[%s3418 + $0x10] sm:$0xff]
        %v3487 = vld [vmem:[%s3418 + $0x18] sm:$0xff]
        %v3488 = vld [vmem:[%s3418 + $0x20] sm:$0xff]
        %v3489 = vld [vmem:[%s3418 + $0x28] sm:$0xff]
        %v3490 = vld [vmem:[%s3418 + $0x30] sm:$0xff]
        %v3491 = vld [vmem:[%s3418 + $0x38] sm:$0xff]
        %v3492 = vld [vmem:[%s3418 + $0x40] sm:$0xff]
        %v3493 = vld [vmem:[%s3418 + $0x48] sm:$0xff]
        %v3494 = vld [vmem:[%s3418 + $0x50] sm:$0xff]
        %v3495 = vld [vmem:[%s3418 + $0x58] sm:$0xff]
        %v3496 = vld [vmem:[%s3418 + $0x60] sm:$0xff]
        %v3497 = vld [vmem:[%s3418 + $0x68] sm:$0xff]
        %v3498 = vld [vmem:[%s3418 + $0x70] sm:$0xff]
        %v3499 = vld [vmem:[%s3418 + $0x78] sm:$0xff]
        %v3500 = vld [vmem:[%s3418 + $0x80] sm:$0xff]
        %v3501 = vld [vmem:[%s3418 + $0x88] sm:$0xff]
        %v3502 = vld [vmem:[%s3418 + $0x90] sm:$0xff]
        %v3503 = vld [vmem:[%s3418 + $0x98] sm:$0xff]
        %v3504 = vld [vmem:[%s3418 + $0xa0] sm:$0xff]
        %v3505 = vld [vmem:[%s3418 + $0xa8] sm:$0xff]
        %v3506 = vld [vmem:[%s3418 + $0xb0] sm:$0xff]
        %v3507 = vld [vmem:[%s3418 + $0xb8] sm:$0xff]
        %v3508 = vld [vmem:[%s3418 + $0xc0] sm:$0xff]
        %v3509 = vld [vmem:[%s3418 + $0xc8] sm:$0xff]
        %v3510 = vld [vmem:[%s3418 + $0xd0] sm:$0xff]
        %v3511 = vld [vmem:[%s3418 + $0xd8] sm:$0xff]
        %v3512 = vld [vmem:[%s3418 + $0xe0] sm:$0xff]
        %v3513 = vld [vmem:[%s3418 + $0xe8] sm:$0xff]
        %v3514 = vld [vmem:[%s3418 + $0xf0] sm:$0xff]
        %v3515 = vld [vmem:[%s3418 + $0xf8] sm:$0xff]
        %v3516 = vld [vmem:[%s3418 + $0x100] sm:$0xff]
        %v3517 = vld [vmem:[%s3418 + $0x108] sm:$0xff]
        %v3518 = vld [vmem:[%s3418 + $0x110] sm:$0xff]
        %v3519 = vld [vmem:[%s3418 + $0x118] sm:$0xff]
        %v3520 = vld [vmem:[%s3418 + $0x120] sm:$0xff]
        %v3521 = vld [vmem:[%s3418 + $0x128] sm:$0xff]
        %v3522 = vld [vmem:[%s3418 + $0x130] sm:$0xff]
        %v3523 = vld [vmem:[%s3418 + $0x138] sm:$0xff]
        %v3524 = vld [vmem:[%s3418 + $0x140] sm:$0xff]
        %v3525 = vld [vmem:[%s3418 + $0x148] sm:$0xff]
        %v3526 = vld [vmem:[%s3418 + $0x150] sm:$0xff]
        %v3527 = vld [vmem:[%s3418 + $0x158] sm:$0xff]
        %v3528 = vld [vmem:[%s3418 + $0x160] sm:$0xff]
        %v3529 = vld [vmem:[%s3418 + $0x168] sm:$0xff]
        %v3530 = vld [vmem:[%s3418 + $0x170] sm:$0xff]
        %v3531 = vld [vmem:[%s3418 + $0x178] sm:$0xff]
        %v3532 = vld [vmem:[%s3418 + $0x180] sm:$0xff]
        %v3533 = vld [vmem:[%s3418 + $0x188] sm:$0xff]
        %v3534 = vld [vmem:[%s3418 + $0x190] sm:$0xff]
        %v3535 = vld [vmem:[%s3418 + $0x198] sm:$0xff]
        %v3536 = vld [vmem:[%s3418 + $0x1a0] sm:$0xff]
        %v3537 = vld [vmem:[%s3418 + $0x1a8] sm:$0xff]
        %v3538 = vld [vmem:[%s3418 + $0x1b0] sm:$0xff]
        %v3539 = vld [vmem:[%s3418 + $0x1b8] sm:$0xff]
        %v3540 = vld [vmem:[%s3418 + $0x1c0] sm:$0xff]
        %v3541 = vld [vmem:[%s3418 + $0x1c8] sm:$0xff]
        %v3542 = vld [vmem:[%s3418 + $0x1d0] sm:$0xff]
        %v3543 = vld [vmem:[%s3418 + $0x1d8] sm:$0xff]
        %v3544 = vld [vmem:[%s3418 + $0x1e0] sm:$0xff]
        %v3545 = vld [vmem:[%s3418 + $0x1e8] sm:$0xff]
        %v3546 = vld [vmem:[%s3418 + $0x1f0] sm:$0xff]
        %v3547 = vld [vmem:[%s3418 + $0x1f8] sm:$0xff]
        %v3548 = vld [vmem:[%s3418 + $0x200] sm:$0xff]
        %v3549 = vld [vmem:[%s3418 + $0x208] sm:$0xff]
        %v3550 = vld [vmem:[%s3418 + $0x210] sm:$0xff]
        %v3551 = vld [vmem:[%s3418 + $0x218] sm:$0xff]
        %v3552 = vld [vmem:[%s3418 + $0x220] sm:$0xff]
        %v3553 = vld [vmem:[%s3418 + $0x228] sm:$0xff]
        %v3554 = vld [vmem:[%s3418 + $0x230] sm:$0xff]
        %v3555 = vld [vmem:[%s3418 + $0x238] sm:$0xff]
        %v3556 = vld [vmem:[%s3418 + $0x240] sm:$0xff]
        %v3557 = vld [vmem:[%s3418 + $0x248] sm:$0xff]
        %v3558 = vld [vmem:[%s3418 + $0x250] sm:$0xff]
        %v3559 = vld [vmem:[%s3418 + $0x258] sm:$0xff]
        %v3560 = vld [vmem:[%s3418 + $0x260] sm:$0xff]
        %v3561 = vld [vmem:[%s3418 + $0x268] sm:$0xff]
        %v3562 = vld [vmem:[%s3418 + $0x270] sm:$0xff]
        %v3563 = vld [vmem:[%s3418 + $0x278] sm:$0xff]
        %v3564 = vld [vmem:[%s3418 + $0x280] sm:$0xff]
        %v3565 = vld [vmem:[%s3418 + $0x288] sm:$0xff]
        %v3566 = vld [vmem:[%s3418 + $0x290] sm:$0xff]
        %v3567 = vld [vmem:[%s3418 + $0x298] sm:$0xff]
        %v3568 = vld [vmem:[%s3418 + $0x2a0] sm:$0xff]
        %v3569 = vld [vmem:[%s3418 + $0x2a8] sm:$0xff]
        %v3570 = vld [vmem:[%s3418 + $0x2b0] sm:$0xff]
        %v3571 = vld [vmem:[%s3418 + $0x2b8] sm:$0xff]
        %v3572 = vld [vmem:[%s3418 + $0x2c0] sm:$0xff]
        %v3573 = vld [vmem:[%s3418 + $0x2c8] sm:$0xff]
        %v3574 = vld [vmem:[%s3418 + $0x2d0] sm:$0xff]
        %v3575 = vld [vmem:[%s3418 + $0x2d8] sm:$0xff]
        %v3576 = vld [vmem:[%s3418 + $0x2e0] sm:$0xff]
        %v3577 = vld [vmem:[%s3418 + $0x2e8] sm:$0xff]
        %v3578 = vld [vmem:[%s3418 + $0x2f0] sm:$0xff]
        %v3579 = vld [vmem:[%s3418 + $0x2f8] sm:$0xff]
        %v3580 = vld [vmem:[%s3418 + $0x300] sm:$0xff]
        %v3581 = vld [vmem:[%s3418 + $0x308] sm:$0xff]
        %v3582 = vld [vmem:[%s3418 + $0x310] sm:$0xff]
        %v3583 = vld [vmem:[%s3418 + $0x318] sm:$0xff]
        %v3584 = vld [vmem:[%s3418 + $0x320] sm:$0xff]
        %v3585 = vld [vmem:[%s3418 + $0x328] sm:$0xff]
        %v3586 = vld [vmem:[%s3418 + $0x330] sm:$0xff]
        %v3587 = vld [vmem:[%s3418 + $0x338] sm:$0xff]
        %v3588 = vld [vmem:[%s3418 + $0x340] sm:$0xff]
        %v3589 = vld [vmem:[%s3418 + $0x348] sm:$0xff]
        %v3590 = vld [vmem:[%s3418 + $0x350] sm:$0xff]
        %v3591 = vld [vmem:[%s3418 + $0x358] sm:$0xff]
        %v3592 = vld [vmem:[%s3418 + $0x360] sm:$0xff]
        %v3593 = vld [vmem:[%s3418 + $0x368] sm:$0xff]
        %v3594 = vld [vmem:[%s3418 + $0x370] sm:$0xff]
        %v3595 = vld [vmem:[%s3418 + $0x378] sm:$0xff]
        %v3596 = vld [vmem:[%s3418 + $0x380] sm:$0xff]
        %v3597 = vld [vmem:[%s3418 + $0x388] sm:$0xff]
        %v3598 = vld [vmem:[%s3418 + $0x390] sm:$0xff]
        %v3599 = vld [vmem:[%s3418 + $0x398] sm:$0xff]
        %v3600 = vld [vmem:[%s3418 + $0x3a0] sm:$0xff]
        %v3601 = vld [vmem:[%s3418 + $0x3a8] sm:$0xff]
        %v3602 = vld [vmem:[%s3418 + $0x3b0] sm:$0xff]
        %v3603 = vld [vmem:[%s3418 + $0x3b8] sm:$0xff]
        %v3604 = vld [vmem:[%s3418 + $0x3c0] sm:$0xff]
        %v3605 = vld [vmem:[%s3418 + $0x3c8] sm:$0xff]
        %v3606 = vld [vmem:[%s3418 + $0x3d0] sm:$0xff]
        %v3607 = vld [vmem:[%s3418 + $0x3d8] sm:$0xff]
        %v3608 = vld [vmem:[%s3418 + $0x3e0] sm:$0xff]
        %v3609 = vld [vmem:[%s3418 + $0x3e8] sm:$0xff]
        %v3610 = vld [vmem:[%s3418 + $0x3f0] sm:$0xff]
        %v3611 = vld [vmem:[%s3418 + $0x3f8] sm:$0xff]
        %v3612 = vld [vmem:[%s3418 + $0x400] sm:$0xff]
        %v3613 = vld [vmem:[%s3418 + $0x408] sm:$0xff]
        %v3614 = vld [vmem:[%s3418 + $0x410] sm:$0xff]
        %v3615 = vld [vmem:[%s3418 + $0x418] sm:$0xff]
        %v3616 = vld [vmem:[%s3418 + $0x420] sm:$0xff]
        %v3617 = vld [vmem:[%s3418 + $0x428] sm:$0xff]
        %v3618 = vld [vmem:[%s3418 + $0x430] sm:$0xff]
        %v3619 = vld [vmem:[%s3418 + $0x438] sm:$0xff]
        %v3620 = vld [vmem:[%s3418 + $0x440] sm:$0xff]
        %v3621 = vld [vmem:[%s3418 + $0x448] sm:$0xff]
        %v3622 = vld [vmem:[%s3418 + $0x450] sm:$0xff]
        %v3623 = vld [vmem:[%s3418 + $0x458] sm:$0xff]
        %v3624 = vld [vmem:[%s3418 + $0x460] sm:$0xff]
        %v3625 = vld [vmem:[%s3418 + $0x468] sm:$0xff]
        %v3626 = vld [vmem:[%s3418 + $0x470] sm:$0xff]
        %v3627 = vld [vmem:[%s3418 + $0x478] sm:$0xff]
        %v3628 = vld [vmem:[%s3418 + $0x480] sm:$0xff]
        %v3629 = vld [vmem:[%s3418 + $0x488] sm:$0xff]
        %v3630 = vld [vmem:[%s3418 + $0x490] sm:$0xff]
        %v3631 = vld [vmem:[%s3418 + $0x498] sm:$0xff]
        %v3632 = vld [vmem:[%s3418 + $0x4a0] sm:$0xff]
        %v3633 = vld [vmem:[%s3418 + $0x4a8] sm:$0xff]
        %v3634 = vld [vmem:[%s3418 + $0x4b0] sm:$0xff]
        %v3635 = vld [vmem:[%s3418 + $0x4b8] sm:$0xff]
        %v3636 = vld [vmem:[%s3418 + $0x4c0] sm:$0xff]
        %v3637 = vld [vmem:[%s3418 + $0x4c8] sm:$0xff]
        %v3638 = vld [vmem:[%s3418 + $0x4d0] sm:$0xff]
        %v3639 = vld [vmem:[%s3418 + $0x4d8] sm:$0xff]
        %v3640 = vld [vmem:[%s3418 + $0x4e0] sm:$0xff]
        %v3641 = vld [vmem:[%s3418 + $0x4e8] sm:$0xff]
        %v3642 = vld [vmem:[%s3418 + $0x4f0] sm:$0xff]
        %v3643 = vld [vmem:[%s3418 + $0x4f8] sm:$0xff]
        %v3644 = vld [vmem:[%s3418 + $0x500] sm:$0xff]
        %v3645 = vld [vmem:[%s3418 + $0x508] sm:$0xff]
        %v3646 = vld [vmem:[%s3418 + $0x510] sm:$0xff]
        %v3647 = vld [vmem:[%s3418 + $0x518] sm:$0xff]
        %v3648 = vld [vmem:[%s3418 + $0x520] sm:$0xff]
        %v3649 = vld [vmem:[%s3418 + $0x528] sm:$0xff]
        %v3650 = vld [vmem:[%s3418 + $0x530] sm:$0xff]
        %v3651 = vld [vmem:[%s3418 + $0x538] sm:$0xff]
        %v3652 = vld [vmem:[%s3418 + $0x540] sm:$0xff]
        %v3653 = vld [vmem:[%s3418 + $0x548] sm:$0xff]
        %v3654 = vld [vmem:[%s3418 + $0x550] sm:$0xff]
        %v3655 = vld [vmem:[%s3418 + $0x558] sm:$0xff]
        %v3656 = vld [vmem:[%s3418 + $0x560] sm:$0xff]
        %v3657 = vld [vmem:[%s3418 + $0x568] sm:$0xff]
        %v3658 = vld [vmem:[%s3418 + $0x570] sm:$0xff]
        %v3659 = vld [vmem:[%s3418 + $0x578] sm:$0xff]
        %v3660 = vld [vmem:[%s3418 + $0x580] sm:$0xff]
        %v3661 = vld [vmem:[%s3418 + $0x588] sm:$0xff]
        %v3662 = vld [vmem:[%s3418 + $0x590] sm:$0xff]
        %v3663 = vld [vmem:[%s3418 + $0x598] sm:$0xff]
        %v3664 = vld [vmem:[%s3418 + $0x5a0] sm:$0xff]
        %v3665 = vld [vmem:[%s3418 + $0x5a8] sm:$0xff]
        %v3666 = vld [vmem:[%s3418 + $0x5b0] sm:$0xff]
        %v3667 = vld [vmem:[%s3418 + $0x5b8] sm:$0xff]
        %v3668 = vld [vmem:[%s3418 + $0x5c0] sm:$0xff]
        %v3669 = vld [vmem:[%s3418 + $0x5c8] sm:$0xff]
        %v3670 = vld [vmem:[%s3418 + $0x5d0] sm:$0xff]
        %v3671 = vld [vmem:[%s3418 + $0x5d8] sm:$0xff]
        %v3672 = vld [vmem:[%s3418 + $0x5e0] sm:$0xff]
        %v3673 = vld [vmem:[%s3418 + $0x5e8] sm:$0xff]
        %v3674 = vld [vmem:[%s3418 + $0x5f0] sm:$0xff]
        %v3675 = vld [vmem:[%s3418 + $0x5f8] sm:$0xff]
        %v3676 = vld [vmem:[%s3418 + $0x600] sm:$0xff]
        %v3677 = vld [vmem:[%s3418 + $0x608] sm:$0xff]
        %v3678 = vld [vmem:[%s3418 + $0x610] sm:$0xff]
        %v3679 = vld [vmem:[%s3418 + $0x618] sm:$0xff]
        %v3680 = vld [vmem:[%s3418 + $0x620] sm:$0xff]
        %v3681 = vld [vmem:[%s3418 + $0x628] sm:$0xff]
        %v3682 = vld [vmem:[%s3418 + $0x630] sm:$0xff]
        %v3683 = vld [vmem:[%s3418 + $0x638] sm:$0xff]
        %v3684 = vld [vmem:[%s3418 + $0x640] sm:$0xff]
        %v3685 = vld [vmem:[%s3418 + $0x648] sm:$0xff]
        %v3686 = vld [vmem:[%s3418 + $0x650] sm:$0xff]
        %v3687 = vld [vmem:[%s3418 + $0x658] sm:$0xff]
        %v3688 = vld [vmem:[%s3418 + $0x660] sm:$0xff]
        %v3689 = vld [vmem:[%s3418 + $0x668] sm:$0xff]
        %v3690 = vld [vmem:[%s3418 + $0x670] sm:$0xff]
        %v3691 = vld [vmem:[%s3418 + $0x678] sm:$0xff]
        %v3692 = vld [vmem:[%s3418 + $0x680] sm:$0xff]
        %v3693 = vld [vmem:[%s3418 + $0x688] sm:$0xff]
        %v3694 = vld [vmem:[%s3418 + $0x690] sm:$0xff]
        %v3695 = vld [vmem:[%s3418 + $0x698] sm:$0xff]
        %v3696 = vld [vmem:[%s3418 + $0x6a0] sm:$0xff]
        %v3697 = vld [vmem:[%s3418 + $0x6a8] sm:$0xff]
        %v3698 = vld [vmem:[%s3418 + $0x6b0] sm:$0xff]
        %v3699 = vld [vmem:[%s3418 + $0x6b8] sm:$0xff]
        %v3700 = vld [vmem:[%s3418 + $0x6c0] sm:$0xff]
        %v3701 = vld [vmem:[%s3418 + $0x6c8] sm:$0xff]
        %v3702 = vld [vmem:[%s3418 + $0x6d0] sm:$0xff]
        %v3703 = vld [vmem:[%s3418 + $0x6d8] sm:$0xff]
        %v3704 = vld [vmem:[%s3418 + $0x6e0] sm:$0xff]
        %v3705 = vld [vmem:[%s3418 + $0x6e8] sm:$0xff]
        %v3706 = vld [vmem:[%s3418 + $0x6f0] sm:$0xff]
        %v3707 = vld [vmem:[%s3418 + $0x6f8] sm:$0xff]
        %v3708 = vld [vmem:[%s3418 + $0x700] sm:$0xff]
        %v3709 = vld [vmem:[%s3418 + $0x708] sm:$0xff]
        %v3710 = vld [vmem:[%s3418 + $0x710] sm:$0xff]
        %v3711 = vld [vmem:[%s3418 + $0x718] sm:$0xff]
        %v3712 = vld [vmem:[%s3418 + $0x720] sm:$0xff]
        %v3713 = vld [vmem:[%s3418 + $0x728] sm:$0xff]
        %v3714 = vld [vmem:[%s3418 + $0x730] sm:$0xff]
        %v3715 = vld [vmem:[%s3418 + $0x738] sm:$0xff]
        %v3716 = vld [vmem:[%s3418 + $0x740] sm:$0xff]
        %v3717 = vld [vmem:[%s3418 + $0x748] sm:$0xff]
        %v3718 = vld [vmem:[%s3418 + $0x750] sm:$0xff]
        %v3719 = vld [vmem:[%s3418 + $0x758] sm:$0xff]
        %v3720 = vld [vmem:[%s3418 + $0x760] sm:$0xff]
        %v3721 = vld [vmem:[%s3418 + $0x768] sm:$0xff]
        %v3722 = vld [vmem:[%s3418 + $0x770] sm:$0xff]
        %v3723 = vld [vmem:[%s3418 + $0x778] sm:$0xff]
        %v3724 = vld [vmem:[%s3418 + $0x780] sm:$0xff]
        %v3725 = vld [vmem:[%s3418 + $0x788] sm:$0xff]
        %v3726 = vld [vmem:[%s3418 + $0x790] sm:$0xff]
        %v3727 = vld [vmem:[%s3418 + $0x798] sm:$0xff]
        %v3728 = vld [vmem:[%s3418 + $0x7a0] sm:$0xff]
        %v3729 = vld [vmem:[%s3418 + $0x7a8] sm:$0xff]
        %v3730 = vld [vmem:[%s3418 + $0x7b0] sm:$0xff]
        %v3731 = vld [vmem:[%s3418 + $0x7b8] sm:$0xff]
        %v3732 = vld [vmem:[%s3418 + $0x7c0] sm:$0xff]
        %v3733 = vld [vmem:[%s3418 + $0x7c8] sm:$0xff]
        %v3734 = vld [vmem:[%s3418 + $0x7d0] sm:$0xff]
        %v3735 = vld [vmem:[%s3418 + $0x7d8] sm:$0xff]
        %v3736 = vld [vmem:[%s3418 + $0x7e0] sm:$0xff]
        %v3737 = vld [vmem:[%s3418 + $0x7e8] sm:$0xff]
        %v3738 = vld [vmem:[%s3418 + $0x7f0] sm:$0xff]
        %v3739 = vld [vmem:[%s3418 + $0x7f8] sm:$0xff]
        %v3740 = vld [vmem:[%s3418 + $0x800] sm:$0xff]
        %v3741 = vld [vmem:[%s3418 + $0x808] sm:$0xff]
        %v3742 = vld [vmem:[%s3418 + $0x810] sm:$0xff]
        %v3743 = vld [vmem:[%s3418 + $0x818] sm:$0xff]
        %v3744 = vld [vmem:[%s3418 + $0x820] sm:$0xff]
        %v3745 = vld [vmem:[%s3418 + $0x828] sm:$0xff]
        %v3746 = vld [vmem:[%s3418 + $0x830] sm:$0xff]
        %v3747 = vld [vmem:[%s3418 + $0x838] sm:$0xff]
        %v3748 = vld [vmem:[%s3418 + $0x840] sm:$0xff]
        %v3749 = vld [vmem:[%s3418 + $0x848] sm:$0xff]
        %v3750 = vld [vmem:[%s3418 + $0x850] sm:$0xff]
        %v3751 = vld [vmem:[%s3418 + $0x858] sm:$0xff]
        %v3752 = vld [vmem:[%s3418 + $0x860] sm:$0xff]
        %v3753 = vld [vmem:[%s3418 + $0x868] sm:$0xff]
        %v3754 = vld [vmem:[%s3418 + $0x870] sm:$0xff]
        %v3755 = vld [vmem:[%s3418 + $0x878] sm:$0xff]
        %v3756 = vld [vmem:[%s3418 + $0x880] sm:$0xff]
        %v3757 = vld [vmem:[%s3418 + $0x888] sm:$0xff]
        %v3758 = vld [vmem:[%s3418 + $0x890] sm:$0xff]
        %v3759 = vld [vmem:[%s3418 + $0x898] sm:$0xff]
        %v3760 = vld [vmem:[%s3418 + $0x8a0] sm:$0xff]
        %v3761 = vld [vmem:[%s3418 + $0x8a8] sm:$0xff]
        %v3762 = vld [vmem:[%s3418 + $0x8b0] sm:$0xff]
        %v3763 = vld [vmem:[%s3418 + $0x8b8] sm:$0xff]
        %v3764 = vld [vmem:[%s3418 + $0x8c0] sm:$0xff]
        %v3765 = vld [vmem:[%s3418 + $0x8c8] sm:$0xff]
        %v3766 = vld [vmem:[%s3418 + $0x8d0] sm:$0xff]
        %v3767 = vld [vmem:[%s3418 + $0x8d8] sm:$0xff]
        %v3768 = vld [vmem:[%s3418 + $0x8e0] sm:$0xff]
        %v3769 = vld [vmem:[%s3418 + $0x8e8] sm:$0xff]
        %v3770 = vld [vmem:[%s3418 + $0x8f0] sm:$0xff]
        %v3771 = vld [vmem:[%s3418 + $0x8f8] sm:$0xff]
        %v3772 = vld [vmem:[%s3418 + $0x900] sm:$0xff]
        %v3773 = vld [vmem:[%s3418 + $0x908] sm:$0xff]
        %v3774 = vld [vmem:[%s3418 + $0x910] sm:$0xff]
        %v3775 = vld [vmem:[%s3418 + $0x918] sm:$0xff]
        %v3776 = vld [vmem:[%s3418 + $0x920] sm:$0xff]
        %v3777 = vld [vmem:[%s3418 + $0x928] sm:$0xff]
        %v3778 = vld [vmem:[%s3418 + $0x930] sm:$0xff]
        %v3779 = vld [vmem:[%s3418 + $0x938] sm:$0xff]
        %v3780 = vld [vmem:[%s3418 + $0x940] sm:$0xff]
        %v3781 = vld [vmem:[%s3418 + $0x948] sm:$0xff]
        %v3782 = vld [vmem:[%s3418 + $0x950] sm:$0xff]
        %v3783 = vld [vmem:[%s3418 + $0x958] sm:$0xff]
        %v3784 = vld [vmem:[%s3418 + $0x960] sm:$0xff]
        %v3785 = vld [vmem:[%s3418 + $0x968] sm:$0xff]
        %v3786 = vld [vmem:[%s3418 + $0x970] sm:$0xff]
        %v3787 = vld [vmem:[%s3418 + $0x978] sm:$0xff]
        %v3788 = vld [vmem:[%s3418 + $0x980] sm:$0xff]
        %v3789 = vld [vmem:[%s3418 + $0x988] sm:$0xff]
        %v3790 = vld [vmem:[%s3418 + $0x990] sm:$0xff]
        %v3791 = vld [vmem:[%s3418 + $0x998] sm:$0xff]
        %v3792 = vld [vmem:[%s3418 + $0x9a0] sm:$0xff]
        %v3793 = vld [vmem:[%s3418 + $0x9a8] sm:$0xff]
        %v3794 = vld [vmem:[%s3418 + $0x9b0] sm:$0xff]
        %v3795 = vld [vmem:[%s3418 + $0x9b8] sm:$0xff]
        %v3796 = vld [vmem:[%s3418 + $0x9c0] sm:$0xff]
        %v3797 = vld [vmem:[%s3418 + $0x9c8] sm:$0xff]
        %v3798 = vld [vmem:[%s3418 + $0x9d0] sm:$0xff]
        %v3799 = vld [vmem:[%s3418 + $0x9d8] sm:$0xff]
        %v3800 = vld [vmem:[%s3418 + $0x9e0] sm:$0xff]
        %v3801 = vld [vmem:[%s3418 + $0x9e8] sm:$0xff]
        %v3802 = vld [vmem:[%s3418 + $0x9f0] sm:$0xff]
        %v3803 = vld [vmem:[%s3418 + $0x9f8] sm:$0xff]
        %v3804 = vld [vmem:[%s3418 + $0xa00] sm:$0xff]
        %v3805 = vld [vmem:[%s3418 + $0xa08] sm:$0xff]
        %v3806 = vld [vmem:[%s3418 + $0xa10] sm:$0xff]
        %v3807 = vld [vmem:[%s3418 + $0xa18] sm:$0xff]
        %v3808 = vld [vmem:[%s3418 + $0xa20] sm:$0xff]
        %v3809 = vld [vmem:[%s3418 + $0xa28] sm:$0xff]
        %v3810 = vld [vmem:[%s3418 + $0xa30] sm:$0xff]
        %v3811 = vld [vmem:[%s3418 + $0xa38] sm:$0xff]
        %v3812 = vld [vmem:[%s3418 + $0xa40] sm:$0xff]
        %v3813 = vld [vmem:[%s3418 + $0xa48] sm:$0xff]
        %v3814 = vld [vmem:[%s3418 + $0xa50] sm:$0xff]
        %v3815 = vld [vmem:[%s3418 + $0xa58] sm:$0xff]
        %v3816 = vld [vmem:[%s3418 + $0xa60] sm:$0xff]
        %v3817 = vld [vmem:[%s3418 + $0xa68] sm:$0xff]
        %v3818 = vld [vmem:[%s3418 + $0xa70] sm:$0xff]
        %v3819 = vld [vmem:[%s3418 + $0xa78] sm:$0xff]
        %v3820 = vld [vmem:[%s3418 + $0xa80] sm:$0xff]
        %v3821 = vld [vmem:[%s3418 + $0xa88] sm:$0xff]
        %v3822 = vld [vmem:[%s3418 + $0xa90] sm:$0xff]
        %v3823 = vld [vmem:[%s3418 + $0xa98] sm:$0xff]
        %v3824 = vld [vmem:[%s3418 + $0xaa0] sm:$0xff]
        %v3825 = vld [vmem:[%s3418 + $0xaa8] sm:$0xff]
        %v3826 = vld [vmem:[%s3418 + $0xab0] sm:$0xff]
        %v3827 = vld [vmem:[%s3418 + $0xab8] sm:$0xff]
        %v3828 = vld [vmem:[%s3418 + $0xac0] sm:$0xff]
        %v3829 = vld [vmem:[%s3418 + $0xac8] sm:$0xff]
        %v3830 = vld [vmem:[%s3418 + $0xad0] sm:$0xff]
        %v3831 = vld [vmem:[%s3418 + $0xad8] sm:$0xff]
        %v3832 = vld [vmem:[%s3418 + $0xae0] sm:$0xff]
        %v3833 = vld [vmem:[%s3418 + $0xae8] sm:$0xff]
        %v3834 = vld [vmem:[%s3418 + $0xaf0] sm:$0xff]
        %v3835 = vld [vmem:[%s3418 + $0xaf8] sm:$0xff]
        %v3836 = vld [vmem:[%s3418 + $0xb00] sm:$0xff]
        %v3837 = vld [vmem:[%s3418 + $0xb08] sm:$0xff]
        %v3838 = vld [vmem:[%s3418 + $0xb10] sm:$0xff]
        %v3839 = vld [vmem:[%s3418 + $0xb18] sm:$0xff]
        %v3840 = vld [vmem:[%s3418 + $0xb20] sm:$0xff]
        %v3841 = vld [vmem:[%s3418 + $0xb28] sm:$0xff]
        %v3842 = vld [vmem:[%s3418 + $0xb30] sm:$0xff]
        %v3843 = vld [vmem:[%s3418 + $0xb38] sm:$0xff]
        %v3844 = vld [vmem:[%s3418 + $0xb40] sm:$0xff]
        %v3845 = vld [vmem:[%s3418 + $0xb48] sm:$0xff]
        %v3846 = vld [vmem:[%s3418 + $0xb50] sm:$0xff]
        %v3847 = vld [vmem:[%s3418 + $0xb58] sm:$0xff]
        %v3848 = vld [vmem:[%s3418 + $0xb60] sm:$0xff]
        %v3849 = vld [vmem:[%s3418 + $0xb68] sm:$0xff]
        %v3850 = vld [vmem:[%s3418 + $0xb70] sm:$0xff]
        %v3851 = vld [vmem:[%s3418 + $0xb78] sm:$0xff]
        %v3852 = vld [vmem:[%s3418 + $0xb80] sm:$0xff]
        %v3853 = vld [vmem:[%s3418 + $0xb88] sm:$0xff]
        %v3854 = vld [vmem:[%s3418 + $0xb90] sm:$0xff]
        %v3855 = vld [vmem:[%s3418 + $0xb98] sm:$0xff]
        %v3856 = vld [vmem:[%s3418 + $0xba0] sm:$0xff]
        %v3857 = vld [vmem:[%s3418 + $0xba8] sm:$0xff]
        %v3858 = vld [vmem:[%s3418 + $0xbb0] sm:$0xff]
        %v3859 = vld [vmem:[%s3418 + $0xbb8] sm:$0xff]
        %v3860 = vld [vmem:[%s3418 + $0xbc0] sm:$0xff]
        %v3861 = vld [vmem:[%s3418 + $0xbc8] sm:$0xff]
        %v3862 = vld [vmem:[%s3418 + $0xbd0] sm:$0xff]
        %v3863 = vld [vmem:[%s3418 + $0xbd8] sm:$0xff]
        %v3864 = vld [vmem:[%s3418 + $0xbe0] sm:$0xff]
        %v3865 = vld [vmem:[%s3418 + $0xbe8] sm:$0xff]
        %v3866 = vld [vmem:[%s3418 + $0xbf0] sm:$0xff]
        %v3867 = vld [vmem:[%s3418 + $0xbf8] sm:$0xff]
        %v3868 = vld [vmem:[%s3418 + $0xc00] sm:$0xff]
        %v3869 = vld [vmem:[%s3418 + $0xc08] sm:$0xff]
        %v3870 = vld [vmem:[%s3418 + $0xc10] sm:$0xff]
        %v3871 = vld [vmem:[%s3418 + $0xc18] sm:$0xff]
        %v3872 = vld [vmem:[%s3418 + $0xc20] sm:$0xff]
        %v3873 = vld [vmem:[%s3418 + $0xc28] sm:$0xff]
        %v3874 = vld [vmem:[%s3418 + $0xc30] sm:$0xff]
        %v3875 = vld [vmem:[%s3418 + $0xc38] sm:$0xff]
        %v3876 = vld [vmem:[%s3464] sm:$0x3]
        %v3878 = vperm.slane %v3876, 0
        %v3879 = vperm.slane %v3876, 1
        %3883 = vst [vmem:[#allocation1] ss:$9 sm:$0xff] %v3480
        %v3884 = vld [vmem:[#allocation1] sm:$0xff]
        %v3885 = vld [vmem:[#allocation1 + $0x9] sm:$0xff]
        %v3886 = vld [vmem:[#allocation1 + $0x12] sm:$0xff]
        %v3887 = vld [vmem:[#allocation1 + $0x1b] sm:$0xff]
        %v3888 = vld [vmem:[#allocation1 + $0x24] sm:$0xff]
        %v3889 = vld [vmem:[#allocation1 + $0x2d] sm:$0xff]
        %v3890 = vld [vmem:[#allocation1 + $0x36] sm:$0xff]
        %v3891 = vld [vmem:[#allocation1 + $0x3f] sm:$0xff]
        %3893 = vst [vmem:[#allocation1] ss:$9 sm:$0xff] %v3481
        %v3894 = vld [vmem:[#allocation1] sm:$0xff]
        %v3895 = vld [vmem:[#allocation1 + $0x9] sm:$0xff]
        %v3896 = vld [vmem:[#allocation1 + $0x12] sm:$0xff]
        %v3897 = vld [vmem:[#allocation1 + $0x1b] sm:$0xff]
        %v3898 = vld [vmem:[#allocation1 + $0x24] sm:$0xff]
        %v3899 = vld [vmem:[#allocation1 + $0x2d] sm:$0xff]
        %v3900 = vld [vmem:[#allocation1 + $0x36] sm:$0xff]
        %v3901 = vld [vmem:[#allocation1 + $0x3f] sm:$0xff]
        %3903 = vst [vmem:[#allocation1] ss:$9 sm:$0xff] %v3482
        %v3904 = vld [vmem:[#allocation1] sm:$0xff]
        %v3905 = vld [vmem:[#allocation1 + $0x9] sm:$0xff]
        %v3906 = vld [vmem:[#allocation1 + $0x12] sm:$0xff]
        %v3907 = vld [vmem:[#allocation1 + $0x1b] sm:$0xff]
        %v3908 = vld [vmem:[#allocation1 + $0x24] sm:$0xff]
        %v3909 = vld [vmem:[#allocation1 + $0x2d] sm:$0xff]
        %v3910 = vld [vmem:[#allocation1 + $0x36] sm:$0xff]
        %v3911 = vld [vmem:[#allocation1 + $0x3f] sm:$0xff]
        %3913 = vst [vmem:[#allocation1] ss:$9 sm:$0xff] %v3483
        %v3914 = vld [vmem:[#allocation1] sm:$0xff]
        %v4331 = vunpack.c.l.b16 %v3484
        %v4332 = vunpack.c.h.b16 %v3484
        %v4333 = vunpack.c.l.b16 %v3485
        %v4334 = vunpack.c.h.b16 %v3485
        %v4335 = vunpack.c.l.b16 %v3486
        %v4336 = vunpack.c.h.b16 %v3486
        %v4337 = vunpack.c.l.b16 %v3487
        %v4338 = vunpack.c.h.b16 %v3487
        %v4339 = vunpack.c.l.b16 %v3488
        %v4340 = vunpack.c.h.b16 %v3488
        %v4341 = vunpack.c.l.b16 %v3489
        %v4342 = vunpack.c.h.b16 %v3489
        %v4343 = vunpack.c.l.b16 %v3490
        %v4344 = vunpack.c.h.b16 %v3490
        %v4345 = vunpack.c.l.b16 %v3491
        %v4346 = vunpack.c.h.b16 %v3491
        %v4347 = vunpack.c.l.b16 %v3492
        %v4348 = vunpack.c.h.b16 %v3492
        %v4349 = vunpack.c.l.b16 %v3493
        %v4350 = vunpack.c.h.b16 %v3493
        %v4351 = vunpack.c.l.b16 %v3494
        %v4352 = vunpack.c.h.b16 %v3494
        %v4353 = vunpack.c.l.b16 %v3495
        %v4354 = vunpack.c.h.b16 %v3495
        %v4355 = vunpack.c.l.b16 %v3496
        %v4356 = vunpack.c.h.b16 %v3496
        %v4357 = vunpack.c.l.b16 %v3497
        %v4358 = vunpack.c.h.b16 %v3497
        %v4359 = vunpack.c.l.b16 %v3498
        %v4360 = vunpack.c.h.b16 %v3498
        %v4361 = vunpack.c.l.b16 %v3499
        %v4362 = vunpack.c.h.b16 %v3499
        %v4363 = vunpack.c.l.b16 %v3500
        %v4364 = vunpack.c.h.b16 %v3500
        %v4365 = vunpack.c.l.b16 %v3501
        %v4366 = vunpack.c.h.b16 %v3501
        %v4367 = vunpack.c.l.b16 %v3502
        %v4368 = vunpack.c.h.b16 %v3502
        %v4369 = vunpack.c.l.b16 %v3503
        %v4370 = vunpack.c.h.b16 %v3503
        %v4371 = vunpack.c.l.b16 %v3504
        %v4372 = vunpack.c.h.b16 %v3504
        %v4373 = vunpack.c.l.b16 %v3505
        %v4374 = vunpack.c.h.b16 %v3505
        %v4375 = vunpack.c.l.b16 %v3506
        %v4376 = vunpack.c.h.b16 %v3506
        %v4377 = vunpack.c.l.b16 %v3507
        %v4378 = vunpack.c.h.b16 %v3507
        %v4379 = vunpack.c.l.b16 %v3508
        %v4380 = vunpack.c.h.b16 %v3508
        %v4381 = vunpack.c.l.b16 %v3509
        %v4382 = vunpack.c.h.b16 %v3509
        %v4383 = vunpack.c.l.b16 %v3510
        %v4384 = vunpack.c.h.b16 %v3510
        %v4385 = vunpack.c.l.b16 %v3511
        %v4386 = vunpack.c.h.b16 %v3511
        %v4387 = vunpack.c.l.b16 %v3512
        %v4388 = vunpack.c.h.b16 %v3512
        %v4389 = vunpack.c.l.b16 %v3513
        %v4390 = vunpack.c.h.b16 %v3513
        %v4391 = vunpack.c.l.b16 %v3514
        %v4392 = vunpack.c.h.b16 %v3514
        %v4393 = vunpack.c.l.b16 %v3515
        %v4394 = vunpack.c.h.b16 %v3515
        %v4395 = vunpack.c.l.b16 %v3516
        %v4396 = vunpack.c.h.b16 %v3516
        %v4397 = vunpack.c.l.b16 %v3517
        %v4398 = vunpack.c.h.b16 %v3517
        %v4399 = vunpack.c.l.b16 %v3518
        %v4400 = vunpack.c.h.b16 %v3518
        %v4401 = vunpack.c.l.b16 %v3519
        %v4402 = vunpack.c.h.b16 %v3519
        %v4403 = vunpack.c.l.b16 %v3520
        %v4404 = vunpack.c.h.b16 %v3520
        %v4405 = vunpack.c.l.b16 %v3521
        %v4406 = vunpack.c.h.b16 %v3521
        %v4407 = vunpack.c.l.b16 %v3522
        %v4408 = vunpack.c.h.b16 %v3522
        %v4409 = vunpack.c.l.b16 %v3523
        %v4410 = vunpack.c.h.b16 %v3523
        %v4411 = vunpack.c.l.b16 %v3524
        %v4412 = vunpack.c.h.b16 %v3524
        %v4413 = vunpack.c.l.b16 %v3525
        %v4414 = vunpack.c.h.b16 %v3525
        %v4415 = vunpack.c.l.b16 %v3526
        %v4416 = vunpack.c.h.b16 %v3526
        %v4417 = vunpack.c.l.b16 %v3527
        %v4418 = vunpack.c.h.b16 %v3527
        %v4419 = vunpack.c.l.b16 %v3528
        %v4420 = vunpack.c.h.b16 %v3528
        %v4421 = vunpack.c.l.b16 %v3529
        %v4422 = vunpack.c.h.b16 %v3529
        %v4423 = vunpack.c.l.b16 %v3530
        %v4424 = vunpack.c.h.b16 %v3530
        %v4425 = vunpack.c.l.b16 %v3531
        %v4426 = vunpack.c.h.b16 %v3531
        %v4427 = vunpack.c.l.b16 %v3532
        %v4428 = vunpack.c.h.b16 %v3532
        %v4429 = vunpack.c.l.b16 %v3533
        %v4430 = vunpack.c.h.b16 %v3533
        %v4431 = vunpack.c.l.b16 %v3534
        %v4432 = vunpack.c.h.b16 %v3534
        %v4433 = vunpack.c.l.b16 %v3535
        %v4434 = vunpack.c.h.b16 %v3535
        %v4435 = vunpack.c.l.b16 %v3536
        %v4436 = vunpack.c.h.b16 %v3536
        %v4437 = vunpack.c.l.b16 %v3537
        %v4438 = vunpack.c.h.b16 %v3537
        %v4439 = vunpack.c.l.b16 %v3538
        %v4440 = vunpack.c.h.b16 %v3538
        %v4441 = vunpack.c.l.b16 %v3539
        %v4442 = vunpack.c.h.b16 %v3539
        %v4443 = vunpack.c.l.b16 %v3540
        %v4444 = vunpack.c.h.b16 %v3540
        %v4445 = vunpack.c.l.b16 %v3541
        %v4446 = vunpack.c.h.b16 %v3541
        %v4447 = vunpack.c.l.b16 %v3542
        %v4448 = vunpack.c.h.b16 %v3542
        %v4449 = vunpack.c.l.b16 %v3543
        %v4450 = vunpack.c.h.b16 %v3543
        %v4451 = vunpack.c.l.b16 %v3544
        %v4452 = vunpack.c.h.b16 %v3544
        %v4453 = vunpack.c.l.b16 %v3545
        %v4454 = vunpack.c.h.b16 %v3545
        %v4455 = vunpack.c.l.b16 %v3546
        %v4456 = vunpack.c.h.b16 %v3546
        %v4457 = vunpack.c.l.b16 %v3547
        %v4458 = vunpack.c.h.b16 %v3547
        %v4459 = vunpack.c.l.b16 %v3548
        %v4460 = vunpack.c.h.b16 %v3548
        %v4461 = vunpack.c.l.b16 %v3549
        %v4462 = vunpack.c.h.b16 %v3549
        %v4463 = vunpack.c.l.b16 %v3550
        %v4464 = vunpack.c.h.b16 %v3550
        %v4465 = vunpack.c.l.b16 %v3551
        %v4466 = vunpack.c.h.b16 %v3551
        %v4467 = vunpack.c.l.b16 %v3552
        %v4468 = vunpack.c.h.b16 %v3552
        %v4469 = vunpack.c.l.b16 %v3553
        %v4470 = vunpack.c.h.b16 %v3553
        %v4471 = vunpack.c.l.b16 %v3554
        %v4472 = vunpack.c.h.b16 %v3554
        %v4473 = vunpack.c.l.b16 %v3555
        %v4474 = vunpack.c.h.b16 %v3555
        %v4475 = vunpack.c.l.b16 %v3556
        %v4476 = vunpack.c.h.b16 %v3556
        %v4477 = vunpack.c.l.b16 %v3557
        %v4478 = vunpack.c.h.b16 %v3557
        %v4479 = vunpack.c.l.b16 %v3558
        %v4480 = vunpack.c.h.b16 %v3558
        %v4481 = vunpack.c.l.b16 %v3559
        %v4482 = vunpack.c.h.b16 %v3559
        %v4483 = vunpack.c.l.b16 %v3560
        %v4484 = vunpack.c.h.b16 %v3560
        %v4485 = vunpack.c.l.b16 %v3561
        %v4486 = vunpack.c.h.b16 %v3561
        %v4487 = vunpack.c.l.b16 %v3562
        %v4488 = vunpack.c.h.b16 %v3562
        %v4489 = vunpack.c.l.b16 %v3563
        %v4490 = vunpack.c.h.b16 %v3563
        %v4491 = vunpack.c.l.b16 %v3564
        %v4492 = vunpack.c.h.b16 %v3564
        %v4493 = vunpack.c.l.b16 %v3565
        %v4494 = vunpack.c.h.b16 %v3565
        %v4495 = vunpack.c.l.b16 %v3566
        %v4496 = vunpack.c.h.b16 %v3566
        %v4497 = vunpack.c.l.b16 %v3567
        %v4498 = vunpack.c.h.b16 %v3567
        %v4499 = vunpack.c.l.b16 %v3568
        %v4500 = vunpack.c.h.b16 %v3568
        %v4501 = vunpack.c.l.b16 %v3569
        %v4502 = vunpack.c.h.b16 %v3569
        %v4503 = vunpack.c.l.b16 %v3570
        %v4504 = vunpack.c.h.b16 %v3570
        %v4505 = vunpack.c.l.b16 %v3571
        %v4506 = vunpack.c.h.b16 %v3571
        %v4507 = vunpack.c.l.b16 %v3572
        %v4508 = vunpack.c.h.b16 %v3572
        %v4509 = vunpack.c.l.b16 %v3573
        %v4510 = vunpack.c.h.b16 %v3573
        %v4511 = vunpack.c.l.b16 %v3574
        %v4512 = vunpack.c.h.b16 %v3574
        %v4513 = vunpack.c.l.b16 %v3575
        %v4514 = vunpack.c.h.b16 %v3575
        %v4515 = vunpack.c.l.b16 %v3576
        %v4516 = vunpack.c.h.b16 %v3576
        %v4517 = vunpack.c.l.b16 %v3577
        %v4518 = vunpack.c.h.b16 %v3577
        %v4519 = vunpack.c.l.b16 %v3578
        %v4520 = vunpack.c.h.b16 %v3578
        %v4521 = vunpack.c.l.b16 %v3579
        %v4522 = vunpack.c.h.b16 %v3579
        %v4523 = vunpack.c.l.b16 %v3580
        %v4524 = vunpack.c.h.b16 %v3580
        %v4525 = vunpack.c.l.b16 %v3581
        %v4526 = vunpack.c.h.b16 %v3581
        %v4527 = vunpack.c.l.b16 %v3582
        %v4528 = vunpack.c.h.b16 %v3582
        %v4529 = vunpack.c.l.b16 %v3583
        %v4530 = vunpack.c.h.b16 %v3583
        %v4531 = vunpack.c.l.b16 %v3584
        %v4532 = vunpack.c.h.b16 %v3584
        %v4533 = vunpack.c.l.b16 %v3585
        %v4534 = vunpack.c.h.b16 %v3585
        %v4535 = vunpack.c.l.b16 %v3586
        %v4536 = vunpack.c.h.b16 %v3586
        %v4537 = vunpack.c.l.b16 %v3587
        %v4538 = vunpack.c.h.b16 %v3587
        %v4539 = vunpack.c.l.b16 %v3588
        %v4540 = vunpack.c.h.b16 %v3588
        %v4541 = vunpack.c.l.b16 %v3589
        %v4542 = vunpack.c.h.b16 %v3589
        %v4543 = vunpack.c.l.b16 %v3590
        %v4544 = vunpack.c.h.b16 %v3590
        %v4545 = vunpack.c.l.b16 %v3591
        %v4546 = vunpack.c.h.b16 %v3591
        %v4547 = vunpack.c.l.b16 %v3592
        %v4548 = vunpack.c.h.b16 %v3592
        %v4549 = vunpack.c.l.b16 %v3593
        %v4550 = vunpack.c.h.b16 %v3593
        %v4551 = vunpack.c.l.b16 %v3594
        %v4552 = vunpack.c.h.b16 %v3594
        %v4553 = vunpack.c.l.b16 %v3595
        %v4554 = vunpack.c.h.b16 %v3595
        %v4555 = vunpack.c.l.b16 %v3596
        %v4556 = vunpack.c.h.b16 %v3596
        %v4557 = vunpack.c.l.b16 %v3597
        %v4558 = vunpack.c.h.b16 %v3597
        %v4559 = vunpack.c.l.b16 %v3598
        %v4560 = vunpack.c.h.b16 %v3598
        %v4561 = vunpack.c.l.b16 %v3599
        %v4562 = vunpack.c.h.b16 %v3599
        %v4563 = vunpack.c.l.b16 %v3600
        %v4564 = vunpack.c.h.b16 %v3600
        %v4565 = vunpack.c.l.b16 %v3601
        %v4566 = vunpack.c.h.b16 %v3601
        %v4567 = vunpack.c.l.b16 %v3602
        %v4568 = vunpack.c.h.b16 %v3602
        %v4569 = vunpack.c.l.b16 %v3603
        %v4570 = vunpack.c.h.b16 %v3603
        %v4571 = vunpack.c.l.b16 %v3604
        %v4572 = vunpack.c.h.b16 %v3604
        %v4573 = vunpack.c.l.b16 %v3605
        %v4574 = vunpack.c.h.b16 %v3605
        %v4575 = vunpack.c.l.b16 %v3606
        %v4576 = vunpack.c.h.b16 %v3606
        %v4577 = vunpack.c.l.b16 %v3607
        %v4578 = vunpack.c.h.b16 %v3607
        %v4579 = vunpack.c.l.b16 %v3608
        %v4580 = vunpack.c.h.b16 %v3608
        %v4581 = vunpack.c.l.b16 %v3609
        %v4582 = vunpack.c.h.b16 %v3609
        %v4583 = vunpack.c.l.b16 %v3610
        %v4584 = vunpack.c.h.b16 %v3610
        %v4585 = vunpack.c.l.b16 %v3611
        %v4586 = vunpack.c.h.b16 %v3611
        %v4587 = vunpack.c.l.b16 %v3612
        %v4588 = vunpack.c.h.b16 %v3612
        %v4589 = vunpack.c.l.b16 %v3613
        %v4590 = vunpack.c.h.b16 %v3613
        %v4591 = vunpack.c.l.b16 %v3614
        %v4592 = vunpack.c.h.b16 %v3614
        %v4593 = vunpack.c.l.b16 %v3615
        %v4594 = vunpack.c.h.b16 %v3615
        %v4595 = vunpack.c.l.b16 %v3616
        %v4596 = vunpack.c.h.b16 %v3616
        %v4597 = vunpack.c.l.b16 %v3617
        %v4598 = vunpack.c.h.b16 %v3617
        %v4599 = vunpack.c.l.b16 %v3618
        %v4600 = vunpack.c.h.b16 %v3618
        %v4601 = vunpack.c.l.b16 %v3619
        %v4602 = vunpack.c.h.b16 %v3619
        %v4603 = vunpack.c.l.b16 %v3620
        %v4604 = vunpack.c.h.b16 %v3620
        %v4605 = vunpack.c.l.b16 %v3621
        %v4606 = vunpack.c.h.b16 %v3621
        %v4607 = vunpack.c.l.b16 %v3622
        %v4608 = vunpack.c.h.b16 %v3622
        %v4609 = vunpack.c.l.b16 %v3623
        %v4610 = vunpack.c.h.b16 %v3623
        %v4611 = vunpack.c.l.b16 %v3624
        %v4612 = vunpack.c.h.b16 %v3624
        %v4613 = vunpack.c.l.b16 %v3625
        %v4614 = vunpack.c.h.b16 %v3625
        %v4615 = vunpack.c.l.b16 %v3626
        %v4616 = vunpack.c.h.b16 %v3626
        %v4617 = vunpack.c.l.b16 %v3627
        %v4618 = vunpack.c.h.b16 %v3627
        %v4619 = vunpack.c.l.b16 %v3628
        %v4620 = vunpack.c.h.b16 %v3628
        %v4621 = vunpack.c.l.b16 %v3629
        %v4622 = vunpack.c.h.b16 %v3629
        %v4623 = vunpack.c.l.b16 %v3630
        %v4624 = vunpack.c.h.b16 %v3630
        %v4625 = vunpack.c.l.b16 %v3631
        %v4626 = vunpack.c.h.b16 %v3631
        %v4627 = vunpack.c.l.b16 %v3632
        %v4628 = vunpack.c.h.b16 %v3632
        %v4629 = vunpack.c.l.b16 %v3633
        %v4630 = vunpack.c.h.b16 %v3633
        %v4631 = vunpack.c.l.b16 %v3634
        %v4632 = vunpack.c.h.b16 %v3634
        %v4633 = vunpack.c.l.b16 %v3635
        %v4634 = vunpack.c.h.b16 %v3635
        %v4635 = vunpack.c.l.b16 %v3636
        %v4636 = vunpack.c.h.b16 %v3636
        %v4637 = vunpack.c.l.b16 %v3637
        %v4638 = vunpack.c.h.b16 %v3637
        %v4639 = vunpack.c.l.b16 %v3638
        %v4640 = vunpack.c.h.b16 %v3638
        %v4641 = vunpack.c.l.b16 %v3639
        %v4642 = vunpack.c.h.b16 %v3639
        %v4643 = vunpack.c.l.b16 %v3640
        %v4644 = vunpack.c.h.b16 %v3640
        %v4645 = vunpack.c.l.b16 %v3641
        %v4646 = vunpack.c.h.b16 %v3641
        %v4647 = vunpack.c.l.b16 %v3642
        %v4648 = vunpack.c.h.b16 %v3642
        %v4649 = vunpack.c.l.b16 %v3643
        %v4650 = vunpack.c.h.b16 %v3643
        %v4651 = vunpack.c.l.b16 %v3644
        %v4652 = vunpack.c.h.b16 %v3644
        %v4653 = vunpack.c.l.b16 %v3645
        %v4654 = vunpack.c.h.b16 %v3645
        %v4655 = vunpack.c.l.b16 %v3646
        %v4656 = vunpack.c.h.b16 %v3646
        %v4657 = vunpack.c.l.b16 %v3647
        %v4658 = vunpack.c.h.b16 %v3647
        %v4659 = vunpack.c.l.b16 %v3648
        %v4660 = vunpack.c.h.b16 %v3648
        %v4661 = vunpack.c.l.b16 %v3649
        %v4662 = vunpack.c.h.b16 %v3649
        %v4663 = vunpack.c.l.b16 %v3650
        %v4664 = vunpack.c.h.b16 %v3650
        %v4665 = vunpack.c.l.b16 %v3651
        %v4666 = vunpack.c.h.b16 %v3651
        %v4667 = vunpack.c.l.b16 %v3652
        %v4668 = vunpack.c.h.b16 %v3652
        %v4669 = vunpack.c.l.b16 %v3653
        %v4670 = vunpack.c.h.b16 %v3653
        %v4671 = vunpack.c.l.b16 %v3654
        %v4672 = vunpack.c.h.b16 %v3654
        %v4673 = vunpack.c.l.b16 %v3655
        %v4674 = vunpack.c.h.b16 %v3655
        %v4675 = vunpack.c.l.b16 %v3656
        %v4676 = vunpack.c.h.b16 %v3656
        %v4677 = vunpack.c.l.b16 %v3657
        %v4678 = vunpack.c.h.b16 %v3657
        %v4679 = vunpack.c.l.b16 %v3658
        %v4680 = vunpack.c.h.b16 %v3658
        %v4681 = vunpack.c.l.b16 %v3659
        %v4682 = vunpack.c.h.b16 %v3659
        %v4683 = vunpack.c.l.b16 %v3660
        %v4684 = vunpack.c.h.b16 %v3660
        %v4685 = vunpack.c.l.b16 %v3661
        %v4686 = vunpack.c.h.b16 %v3661
        %v4687 = vunpack.c.l.b16 %v3662
        %v4688 = vunpack.c.h.b16 %v3662
        %v4689 = vunpack.c.l.b16 %v3663
        %v4690 = vunpack.c.h.b16 %v3663
        %v4691 = vunpack.c.l.b16 %v3664
        %v4692 = vunpack.c.h.b16 %v3664
        %v4693 = vunpack.c.l.b16 %v3665
        %v4694 = vunpack.c.h.b16 %v3665
        %v4695 = vunpack.c.l.b16 %v3666
        %v4696 = vunpack.c.h.b16 %v3666
        %v4697 = vunpack.c.l.b16 %v3667
        %v4698 = vunpack.c.h.b16 %v3667
        %v4699 = vunpack.c.l.b16 %v3668
        %v4700 = vunpack.c.h.b16 %v3668
        %v4701 = vunpack.c.l.b16 %v3669
        %v4702 = vunpack.c.h.b16 %v3669
        %v4703 = vunpack.c.l.b16 %v3670
        %v4704 = vunpack.c.h.b16 %v3670
        %v4705 = vunpack.c.l.b16 %v3671
        %v4706 = vunpack.c.h.b16 %v3671
        %v4707 = vunpack.c.l.b16 %v3672
        %v4708 = vunpack.c.h.b16 %v3672
        %v4709 = vunpack.c.l.b16 %v3673
        %v4710 = vunpack.c.h.b16 %v3673
        %v4711 = vunpack.c.l.b16 %v3674
        %v4712 = vunpack.c.h.b16 %v3674
        %v4713 = vunpack.c.l.b16 %v3675
        %v4714 = vunpack.c.h.b16 %v3675
        %v4715 = vunpack.c.l.b16 %v3676
        %v4716 = vunpack.c.h.b16 %v3676
        %v4717 = vunpack.c.l.b16 %v3677
        %v4718 = vunpack.c.h.b16 %v3677
        %v4719 = vunpack.c.l.b16 %v3678
        %v4720 = vunpack.c.h.b16 %v3678
        %v4721 = vunpack.c.l.b16 %v3679
        %v4722 = vunpack.c.h.b16 %v3679
        %v4723 = vunpack.c.l.b16 %v3680
        %v4724 = vunpack.c.h.b16 %v3680
        %v4725 = vunpack.c.l.b16 %v3681
        %v4726 = vunpack.c.h.b16 %v3681
        %v4727 = vunpack.c.l.b16 %v3682
        %v4728 = vunpack.c.h.b16 %v3682
        %v4729 = vunpack.c.l.b16 %v3683
        %v4730 = vunpack.c.h.b16 %v3683
        %v4731 = vunpack.c.l.b16 %v3684
        %v4732 = vunpack.c.h.b16 %v3684
        %v4733 = vunpack.c.l.b16 %v3685
        %v4734 = vunpack.c.h.b16 %v3685
        %v4735 = vunpack.c.l.b16 %v3686
        %v4736 = vunpack.c.h.b16 %v3686
        %v4737 = vunpack.c.l.b16 %v3687
        %v4738 = vunpack.c.h.b16 %v3687
        %v4739 = vunpack.c.l.b16 %v3688
        %v4740 = vunpack.c.h.b16 %v3688
        %v4741 = vunpack.c.l.b16 %v3689
        %v4742 = vunpack.c.h.b16 %v3689
        %v4743 = vunpack.c.l.b16 %v3690
        %v4744 = vunpack.c.h.b16 %v3690
        %v4745 = vunpack.c.l.b16 %v3691
        %v4746 = vunpack.c.h.b16 %v3691
        %v4747 = vunpack.c.l.b16 %v3692
        %v4748 = vunpack.c.h.b16 %v3692
        %v4749 = vunpack.c.l.b16 %v3693
        %v4750 = vunpack.c.h.b16 %v3693
        %v4751 = vunpack.c.l.b16 %v3694
        %v4752 = vunpack.c.h.b16 %v3694
        %v4753 = vunpack.c.l.b16 %v3695
        %v4754 = vunpack.c.h.b16 %v3695
        %v4755 = vunpack.c.l.b16 %v3696
        %v4756 = vunpack.c.h.b16 %v3696
        %v4757 = vunpack.c.l.b16 %v3697
        %v4758 = vunpack.c.h.b16 %v3697
        %v4759 = vunpack.c.l.b16 %v3698
        %v4760 = vunpack.c.h.b16 %v3698
        %v4761 = vunpack.c.l.b16 %v3699
        %v4762 = vunpack.c.h.b16 %v3699
        %v4763 = vunpack.c.l.b16 %v3700
        %v4764 = vunpack.c.h.b16 %v3700
        %v4765 = vunpack.c.l.b16 %v3701
        %v4766 = vunpack.c.h.b16 %v3701
        %v4767 = vunpack.c.l.b16 %v3702
        %v4768 = vunpack.c.h.b16 %v3702
        %v4769 = vunpack.c.l.b16 %v3703
        %v4770 = vunpack.c.h.b16 %v3703
        %v4771 = vunpack.c.l.b16 %v3704
        %v4772 = vunpack.c.h.b16 %v3704
        %v4773 = vunpack.c.l.b16 %v3705
        %v4774 = vunpack.c.h.b16 %v3705
        %v4775 = vunpack.c.l.b16 %v3706
        %v4776 = vunpack.c.h.b16 %v3706
        %v4777 = vunpack.c.l.b16 %v3707
        %v4778 = vunpack.c.h.b16 %v3707
        %v4779 = vunpack.c.l.b16 %v3708
        %v4780 = vunpack.c.h.b16 %v3708
        %v4781 = vunpack.c.l.b16 %v3709
        %v4782 = vunpack.c.h.b16 %v3709
        %v4783 = vunpack.c.l.b16 %v3710
        %v4784 = vunpack.c.h.b16 %v3710
        %v4785 = vunpack.c.l.b16 %v3711
        %v4786 = vunpack.c.h.b16 %v3711
        %v4787 = vunpack.c.l.b16 %v3712
        %v4788 = vunpack.c.h.b16 %v3712
        %v4789 = vunpack.c.l.b16 %v3713
        %v4790 = vunpack.c.h.b16 %v3713
        %v4791 = vunpack.c.l.b16 %v3714
        %v4792 = vunpack.c.h.b16 %v3714
        %v4793 = vunpack.c.l.b16 %v3715
        %v4794 = vunpack.c.h.b16 %v3715
        %v4795 = vunpack.c.l.b16 %v3716
        %v4796 = vunpack.c.h.b16 %v3716
        %v4797 = vunpack.c.l.b16 %v3717
        %v4798 = vunpack.c.h.b16 %v3717
        %v4799 = vunpack.c.l.b16 %v3718
        %v4800 = vunpack.c.h.b16 %v3718
        %v4801 = vunpack.c.l.b16 %v3719
        %v4802 = vunpack.c.h.b16 %v3719
        %v4803 = vunpack.c.l.b16 %v3720
        %v4804 = vunpack.c.h.b16 %v3720
        %v4805 = vunpack.c.l.b16 %v3721
        %v4806 = vunpack.c.h.b16 %v3721
        %v4807 = vunpack.c.l.b16 %v3722
        %v4808 = vunpack.c.h.b16 %v3722
        %v4809 = vunpack.c.l.b16 %v3723
        %v4810 = vunpack.c.h.b16 %v3723
        %v4811 = vunpack.c.l.b16 %v3724
        %v4812 = vunpack.c.h.b16 %v3724
        %v4813 = vunpack.c.l.b16 %v3725
        %v4814 = vunpack.c.h.b16 %v3725
        %v4815 = vunpack.c.l.b16 %v3726
        %v4816 = vunpack.c.h.b16 %v3726
        %v4817 = vunpack.c.l.b16 %v3727
        %v4818 = vunpack.c.h.b16 %v3727
        %v4819 = vunpack.c.l.b16 %v3728
        %v4820 = vunpack.c.h.b16 %v3728
        %v4821 = vunpack.c.l.b16 %v3729
        %v4822 = vunpack.c.h.b16 %v3729
        %v4823 = vunpack.c.l.b16 %v3730
        %v4824 = vunpack.c.h.b16 %v3730
        %v4825 = vunpack.c.l.b16 %v3731
        %v4826 = vunpack.c.h.b16 %v3731
        %v4827 = vunpack.c.l.b16 %v3732
        %v4828 = vunpack.c.h.b16 %v3732
        %v4829 = vunpack.c.l.b16 %v3733
        %v4830 = vunpack.c.h.b16 %v3733
        %v4831 = vunpack.c.l.b16 %v3734
        %v4832 = vunpack.c.h.b16 %v3734
        %v4833 = vunpack.c.l.b16 %v3735
        %v4834 = vunpack.c.h.b16 %v3735
        %v4835 = vunpack.c.l.b16 %v3736
        %v4836 = vunpack.c.h.b16 %v3736
        %v4837 = vunpack.c.l.b16 %v3737
        %v4838 = vunpack.c.h.b16 %v3737
        %v4839 = vunpack.c.l.b16 %v3738
        %v4840 = vunpack.c.h.b16 %v3738
        %v4841 = vunpack.c.l.b16 %v3739
        %v4842 = vunpack.c.h.b16 %v3739
        %v4843 = vunpack.c.l.b16 %v3740
        %v4844 = vunpack.c.h.b16 %v3740
        %v4845 = vunpack.c.l.b16 %v3741
        %v4846 = vunpack.c.h.b16 %v3741
        %v4847 = vunpack.c.l.b16 %v3742
        %v4848 = vunpack.c.h.b16 %v3742
        %v4849 = vunpack.c.l.b16 %v3743
        %v4850 = vunpack.c.h.b16 %v3743
        %v4851 = vunpack.c.l.b16 %v3744
        %v4852 = vunpack.c.h.b16 %v3744
        %v4853 = vunpack.c.l.b16 %v3745
        %v4854 = vunpack.c.h.b16 %v3745
        %v4855 = vunpack.c.l.b16 %v3746
        %v4856 = vunpack.c.h.b16 %v3746
        %v4857 = vunpack.c.l.b16 %v3747
        %v4858 = vunpack.c.h.b16 %v3747
        %v4859 = vunpack.c.l.b16 %v3748
        %v4860 = vunpack.c.h.b16 %v3748
        %v4861 = vunpack.c.l.b16 %v3749
        %v4862 = vunpack.c.h.b16 %v3749
        %v4863 = vunpack.c.l.b16 %v3750
        %v4864 = vunpack.c.h.b16 %v3750
        %v4865 = vunpack.c.l.b16 %v3751
        %v4866 = vunpack.c.h.b16 %v3751
        %v4867 = vunpack.c.l.b16 %v3752
        %v4868 = vunpack.c.h.b16 %v3752
        %v4869 = vunpack.c.l.b16 %v3753
        %v4870 = vunpack.c.h.b16 %v3753
        %v4871 = vunpack.c.l.b16 %v3754
        %v4872 = vunpack.c.h.b16 %v3754
        %v4873 = vunpack.c.l.b16 %v3755
        %v4874 = vunpack.c.h.b16 %v3755
        %v4875 = vunpack.c.l.b16 %v3756
        %v4876 = vunpack.c.h.b16 %v3756
        %v4877 = vunpack.c.l.b16 %v3757
        %v4878 = vunpack.c.h.b16 %v3757
        %v4879 = vunpack.c.l.b16 %v3758
        %v4880 = vunpack.c.h.b16 %v3758
        %v4881 = vunpack.c.l.b16 %v3759
        %v4882 = vunpack.c.h.b16 %v3759
        %v4883 = vunpack.c.l.b16 %v3760
        %v4884 = vunpack.c.h.b16 %v3760
        %v4885 = vunpack.c.l.b16 %v3761
        %v4886 = vunpack.c.h.b16 %v3761
        %v4887 = vunpack.c.l.b16 %v3762
        %v4888 = vunpack.c.h.b16 %v3762
        %v4889 = vunpack.c.l.b16 %v3763
        %v4890 = vunpack.c.h.b16 %v3763
        %v4891 = vunpack.c.l.b16 %v3764
        %v4892 = vunpack.c.h.b16 %v3764
        %v4893 = vunpack.c.l.b16 %v3765
        %v4894 = vunpack.c.h.b16 %v3765
        %v4895 = vunpack.c.l.b16 %v3766
        %v4896 = vunpack.c.h.b16 %v3766
        %v4897 = vunpack.c.l.b16 %v3767
        %v4898 = vunpack.c.h.b16 %v3767
        %v4899 = vunpack.c.l.b16 %v3768
        %v4900 = vunpack.c.h.b16 %v3768
        %v4901 = vunpack.c.l.b16 %v3769
        %v4902 = vunpack.c.h.b16 %v3769
        %v4903 = vunpack.c.l.b16 %v3770
        %v4904 = vunpack.c.h.b16 %v3770
        %v4905 = vunpack.c.l.b16 %v3771
        %v4906 = vunpack.c.h.b16 %v3771
        %v4907 = vunpack.c.l.b16 %v3772
        %v4908 = vunpack.c.h.b16 %v3772
        %v4909 = vunpack.c.l.b16 %v3773
        %v4910 = vunpack.c.h.b16 %v3773
        %v4911 = vunpack.c.l.b16 %v3774
        %v4912 = vunpack.c.h.b16 %v3774
        %v4913 = vunpack.c.l.b16 %v3775
        %v4914 = vunpack.c.h.b16 %v3775
        %v4915 = vunpack.c.l.b16 %v3776
        %v4916 = vunpack.c.h.b16 %v3776
        %v4917 = vunpack.c.l.b16 %v3777
        %v4918 = vunpack.c.h.b16 %v3777
        %v4919 = vunpack.c.l.b16 %v3778
        %v4920 = vunpack.c.h.b16 %v3778
        %v4921 = vunpack.c.l.b16 %v3779
        %v4922 = vunpack.c.h.b16 %v3779
        %v4923 = vunpack.c.l.b16 %v3780
        %v4924 = vunpack.c.h.b16 %v3780
        %v4925 = vunpack.c.l.b16 %v3781
        %v4926 = vunpack.c.h.b16 %v3781
        %v4927 = vunpack.c.l.b16 %v3782
        %v4928 = vunpack.c.h.b16 %v3782
        %v4929 = vunpack.c.l.b16 %v3783
        %v4930 = vunpack.c.h.b16 %v3783
        %v4931 = vunpack.c.l.b16 %v3784
        %v4932 = vunpack.c.h.b16 %v3784
        %v4933 = vunpack.c.l.b16 %v3785
        %v4934 = vunpack.c.h.b16 %v3785
        %v4935 = vunpack.c.l.b16 %v3786
        %v4936 = vunpack.c.h.b16 %v3786
        %v4937 = vunpack.c.l.b16 %v3787
        %v4938 = vunpack.c.h.b16 %v3787
        %v4939 = vunpack.c.l.b16 %v3788
        %v4940 = vunpack.c.h.b16 %v3788
        %v4941 = vunpack.c.l.b16 %v3789
        %v4942 = vunpack.c.h.b16 %v3789
        %v4943 = vunpack.c.l.b16 %v3790
        %v4944 = vunpack.c.h.b16 %v3790
        %v4945 = vunpack.c.l.b16 %v3791
        %v4946 = vunpack.c.h.b16 %v3791
        %v4947 = vunpack.c.l.b16 %v3792
        %v4948 = vunpack.c.h.b16 %v3792
        %v4949 = vunpack.c.l.b16 %v3793
        %v4950 = vunpack.c.h.b16 %v3793
        %v4951 = vunpack.c.l.b16 %v3794
        %v4952 = vunpack.c.h.b16 %v3794
        %v4953 = vunpack.c.l.b16 %v3795
        %v4954 = vunpack.c.h.b16 %v3795
        %v4955 = vunpack.c.l.b16 %v3796
        %v4956 = vunpack.c.h.b16 %v3796
        %v4957 = vunpack.c.l.b16 %v3797
        %v4958 = vunpack.c.h.b16 %v3797
        %v4959 = vunpack.c.l.b16 %v3798
        %v4960 = vunpack.c.h.b16 %v3798
        %v4961 = vunpack.c.l.b16 %v3799
        %v4962 = vunpack.c.h.b16 %v3799
        %v4963 = vunpack.c.l.b16 %v3800
        %v4964 = vunpack.c.h.b16 %v3800
        %v4965 = vunpack.c.l.b16 %v3801
        %v4966 = vunpack.c.h.b16 %v3801
        %v4967 = vunpack.c.l.b16 %v3802
        %v4968 = vunpack.c.h.b16 %v3802
        %v4969 = vunpack.c.l.b16 %v3803
        %v4970 = vunpack.c.h.b16 %v3803
        %v4971 = vunpack.c.l.b16 %v3804
        %v4972 = vunpack.c.h.b16 %v3804
        %v4973 = vunpack.c.l.b16 %v3805
        %v4974 = vunpack.c.h.b16 %v3805
        %v4975 = vunpack.c.l.b16 %v3806
        %v4976 = vunpack.c.h.b16 %v3806
        %v4977 = vunpack.c.l.b16 %v3807
        %v4978 = vunpack.c.h.b16 %v3807
        %v4979 = vunpack.c.l.b16 %v3808
        %v4980 = vunpack.c.h.b16 %v3808
        %v4981 = vunpack.c.l.b16 %v3809
        %v4982 = vunpack.c.h.b16 %v3809
        %v4983 = vunpack.c.l.b16 %v3810
        %v4984 = vunpack.c.h.b16 %v3810
        %v4985 = vunpack.c.l.b16 %v3811
        %v4986 = vunpack.c.h.b16 %v3811
        %v4987 = vunpack.c.l.b16 %v3812
        %v4988 = vunpack.c.h.b16 %v3812
        %v4989 = vunpack.c.l.b16 %v3813
        %v4990 = vunpack.c.h.b16 %v3813
        %v4991 = vunpack.c.l.b16 %v3814
        %v4992 = vunpack.c.h.b16 %v3814
        %v4993 = vunpack.c.l.b16 %v3815
        %v4994 = vunpack.c.h.b16 %v3815
        %v4995 = vunpack.c.l.b16 %v3816
        %v4996 = vunpack.c.h.b16 %v3816
        %v4997 = vunpack.c.l.b16 %v3817
        %v4998 = vunpack.c.h.b16 %v3817
        %v4999 = vunpack.c.l.b16 %v3818
        %v5000 = vunpack.c.h.b16 %v3818
        %v5001 = vunpack.c.l.b16 %v3819
        %v5002 = vunpack.c.h.b16 %v3819
        %v5003 = vunpack.c.l.b16 %v3820
        %v5004 = vunpack.c.h.b16 %v3820
        %v5005 = vunpack.c.l.b16 %v3821
        %v5006 = vunpack.c.h.b16 %v3821
        %v5007 = vunpack.c.l.b16 %v3822
        %v5008 = vunpack.c.h.b16 %v3822
        %v5009 = vunpack.c.l.b16 %v3823
        %v5010 = vunpack.c.h.b16 %v3823
        %v5011 = vunpack.c.l.b16 %v3824
        %v5012 = vunpack.c.h.b16 %v3824
        %v5013 = vunpack.c.l.b16 %v3825
        %v5014 = vunpack.c.h.b16 %v3825
        %v5015 = vunpack.c.l.b16 %v3826
        %v5016 = vunpack.c.h.b16 %v3826
        %v5017 = vunpack.c.l.b16 %v3827
        %v5018 = vunpack.c.h.b16 %v3827
        %v5019 = vunpack.c.l.b16 %v3828
        %v5020 = vunpack.c.h.b16 %v3828
        %v5021 = vunpack.c.l.b16 %v3829
        %v5022 = vunpack.c.h.b16 %v3829
        %v5023 = vunpack.c.l.b16 %v3830
        %v5024 = vunpack.c.h.b16 %v3830
        %v5025 = vunpack.c.l.b16 %v3831
        %v5026 = vunpack.c.h.b16 %v3831
        %v5027 = vunpack.c.l.b16 %v3832
        %v5028 = vunpack.c.h.b16 %v3832
        %v5029 = vunpack.c.l.b16 %v3833
        %v5030 = vunpack.c.h.b16 %v3833
        %v5031 = vunpack.c.l.b16 %v3834
        %v5032 = vunpack.c.h.b16 %v3834
        %v5033 = vunpack.c.l.b16 %v3835
        %v5034 = vunpack.c.h.b16 %v3835
        %v5035 = vunpack.c.l.b16 %v3836
        %v5036 = vunpack.c.h.b16 %v3836
        %v5037 = vunpack.c.l.b16 %v3837
        %v5038 = vunpack.c.h.b16 %v3837
        %v5039 = vunpack.c.l.b16 %v3838
        %v5040 = vunpack.c.h.b16 %v3838
        %v5041 = vunpack.c.l.b16 %v3839
        %v5042 = vunpack.c.h.b16 %v3839
        %v5043 = vunpack.c.l.b16 %v3840
        %v5044 = vunpack.c.h.b16 %v3840
        %v5045 = vunpack.c.l.b16 %v3841
        %v5046 = vunpack.c.h.b16 %v3841
        %v5047 = vunpack.c.l.b16 %v3842
        %v5048 = vunpack.c.h.b16 %v3842
        %v5049 = vunpack.c.l.b16 %v3843
        %v5050 = vunpack.c.h.b16 %v3843
        %v5051 = vunpack.c.l.b16 %v3844
        %v5052 = vunpack.c.h.b16 %v3844
        %v5053 = vunpack.c.l.b16 %v3845
        %v5054 = vunpack.c.h.b16 %v3845
        %v5055 = vunpack.c.l.b16 %v3846
        %v5056 = vunpack.c.h.b16 %v3846
        %v5057 = vunpack.c.l.b16 %v3847
        %v5058 = vunpack.c.h.b16 %v3847
        %v5059 = vunpack.c.l.b16 %v3848
        %v5060 = vunpack.c.h.b16 %v3848
        %v5061 = vunpack.c.l.b16 %v3849
        %v5062 = vunpack.c.h.b16 %v3849
        %v5063 = vunpack.c.l.b16 %v3850
        %v5064 = vunpack.c.h.b16 %v3850
        %v5065 = vunpack.c.l.b16 %v3851
        %v5066 = vunpack.c.h.b16 %v3851
        %v5067 = vunpack.c.l.b16 %v3852
        %v5068 = vunpack.c.h.b16 %v3852
        %v5069 = vunpack.c.l.b16 %v3853
        %v5070 = vunpack.c.h.b16 %v3853
        %v5071 = vunpack.c.l.b16 %v3854
        %v5072 = vunpack.c.h.b16 %v3854
        %v5073 = vunpack.c.l.b16 %v3855
        %v5074 = vunpack.c.h.b16 %v3855
        %v5075 = vunpack.c.l.b16 %v3856
        %v5076 = vunpack.c.h.b16 %v3856
        %v5077 = vunpack.c.l.b16 %v3857
        %v5078 = vunpack.c.h.b16 %v3857
        %v5079 = vunpack.c.l.b16 %v3858
        %v5080 = vunpack.c.h.b16 %v3858
        %v5081 = vunpack.c.l.b16 %v3859
        %v5082 = vunpack.c.h.b16 %v3859
        %v5083 = vunpack.c.l.b16 %v3860
        %v5084 = vunpack.c.h.b16 %v3860
        %v5085 = vunpack.c.l.b16 %v3861
        %v5086 = vunpack.c.h.b16 %v3861
        %v5087 = vunpack.c.l.b16 %v3862
        %v5088 = vunpack.c.h.b16 %v3862
        %v5089 = vunpack.c.l.b16 %v3863
        %v5090 = vunpack.c.h.b16 %v3863
        %v5091 = vunpack.c.l.b16 %v3864
        %v5092 = vunpack.c.h.b16 %v3864
        %v5093 = vunpack.c.l.b16 %v3865
        %v5094 = vunpack.c.h.b16 %v3865
        %v5095 = vunpack.c.l.b16 %v3866
        %v5096 = vunpack.c.h.b16 %v3866
        %v5097 = vunpack.c.l.b16 %v3867
        %v5098 = vunpack.c.h.b16 %v3867
        %v5099 = vunpack.c.l.b16 %v3868
        %v5100 = vunpack.c.h.b16 %v3868
        %v5101 = vunpack.c.l.b16 %v3869
        %v5102 = vunpack.c.h.b16 %v3869
        %v5103 = vunpack.c.l.b16 %v3870
        %v5104 = vunpack.c.h.b16 %v3870
        %v5105 = vunpack.c.l.b16 %v3871
        %v5106 = vunpack.c.h.b16 %v3871
        %v5107 = vunpack.c.l.b16 %v3872
        %v5108 = vunpack.c.h.b16 %v3872
        %v5109 = vunpack.c.l.b16 %v3873
        %v5110 = vunpack.c.h.b16 %v3873
        %v5111 = vunpack.c.l.b16 %v3874
        %v5112 = vunpack.c.h.b16 %v3874
        %v5113 = vunpack.c.l.b16 %v3875
        %v5114 = vunpack.c.h.b16 %v3875
        %v5115 = vpack.c.b16 %v4333, %v4331
        %v5116 = vpack.c.b16 %v4334, %v4332
        %v5117 = vpack.c.b16 %v4337, %v4335
        %v5118 = vpack.c.b16 %v4338, %v4336
        %v5119 = vpack.c.b16 %v4341, %v4339
        %v5120 = vpack.c.b16 %v4342, %v4340
        %v5121 = vpack.c.b16 %v4345, %v4343
        %v5122 = vpack.c.b16 %v4346, %v4344
        %v5123 = vpack.c.b16 %v4349, %v4347
        %v5124 = vpack.c.b16 %v4350, %v4348
        %v5125 = vpack.c.b16 %v4353, %v4351
        %v5126 = vpack.c.b16 %v4354, %v4352
        %v5127 = vpack.c.b16 %v4357, %v4355
        %v5128 = vpack.c.b16 %v4358, %v4356
        %v5129 = vpack.c.b16 %v4361, %v4359
        %v5130 = vpack.c.b16 %v4362, %v4360
        %v5131 = vpack.c.b16 %v4365, %v4363
        %v5132 = vpack.c.b16 %v4366, %v4364
        %v5133 = vpack.c.b16 %v4369, %v4367
        %v5134 = vpack.c.b16 %v4370, %v4368
        %v5135 = vpack.c.b16 %v4373, %v4371
        %v5136 = vpack.c.b16 %v4374, %v4372
        %v5137 = vpack.c.b16 %v4377, %v4375
        %v5138 = vpack.c.b16 %v4378, %v4376
        %v5139 = vpack.c.b16 %v4381, %v4379
        %v5140 = vpack.c.b16 %v4382, %v4380
        %v5141 = vpack.c.b16 %v4385, %v4383
        %v5142 = vpack.c.b16 %v4386, %v4384
        %v5143 = vpack.c.b16 %v4389, %v4387
        %v5144 = vpack.c.b16 %v4390, %v4388
        %v5145 = vpack.c.b16 %v4393, %v4391
        %v5146 = vpack.c.b16 %v4394, %v4392
        %v5147 = vpack.c.b16 %v4397, %v4395
        %v5148 = vpack.c.b16 %v4398, %v4396
        %v5149 = vpack.c.b16 %v4401, %v4399
        %v5150 = vpack.c.b16 %v4402, %v4400
        %v5151 = vpack.c.b16 %v4405, %v4403
        %v5152 = vpack.c.b16 %v4406, %v4404
        %v5153 = vpack.c.b16 %v4409, %v4407
        %v5154 = vpack.c.b16 %v4410, %v4408
        %v5155 = vpack.c.b16 %v4413, %v4411
        %v5156 = vpack.c.b16 %v4414, %v4412
        %v5157 = vpack.c.b16 %v4417, %v4415
        %v5158 = vpack.c.b16 %v4418, %v4416
        %v5159 = vpack.c.b16 %v4421, %v4419
        %v5160 = vpack.c.b16 %v4422, %v4420
        %v5161 = vpack.c.b16 %v4425, %v4423
        %v5162 = vpack.c.b16 %v4426, %v4424
        %v5163 = vpack.c.b16 %v4429, %v4427
        %v5164 = vpack.c.b16 %v4430, %v4428
        %v5165 = vpack.c.b16 %v4433, %v4431
        %v5166 = vpack.c.b16 %v4434, %v4432
        %v5167 = vpack.c.b16 %v4437, %v4435
        %v5168 = vpack.c.b16 %v4438, %v4436
        %v5169 = vpack.c.b16 %v4441, %v4439
        %v5170 = vpack.c.b16 %v4442, %v4440
        %v5171 = vpack.c.b16 %v4445, %v4443
        %v5172 = vpack.c.b16 %v4446, %v4444
        %v5173 = vpack.c.b16 %v4449, %v4447
        %v5174 = vpack.c.b16 %v4450, %v4448
        %v5175 = vpack.c.b16 %v4453, %v4451
        %v5176 = vpack.c.b16 %v4454, %v4452
        %v5177 = vpack.c.b16 %v4457, %v4455
        %v5178 = vpack.c.b16 %v4458, %v4456
        %v5179 = vpack.c.b16 %v4461, %v4459
        %v5180 = vpack.c.b16 %v4462, %v4460
        %v5181 = vpack.c.b16 %v4465, %v4463
        %v5182 = vpack.c.b16 %v4466, %v4464
        %v5183 = vpack.c.b16 %v4469, %v4467
        %v5184 = vpack.c.b16 %v4470, %v4468
        %v5185 = vpack.c.b16 %v4473, %v4471
        %v5186 = vpack.c.b16 %v4474, %v4472
        %v5187 = vpack.c.b16 %v4477, %v4475
        %v5188 = vpack.c.b16 %v4478, %v4476
        %v5189 = vpack.c.b16 %v4481, %v4479
        %v5190 = vpack.c.b16 %v4482, %v4480
        %v5191 = vpack.c.b16 %v4485, %v4483
        %v5192 = vpack.c.b16 %v4486, %v4484
        %v5193 = vpack.c.b16 %v4489, %v4487
        %v5194 = vpack.c.b16 %v4490, %v4488
        %v5195 = vpack.c.b16 %v4493, %v4491
        %v5196 = vpack.c.b16 %v4494, %v4492
        %v5197 = vpack.c.b16 %v4497, %v4495
        %v5198 = vpack.c.b16 %v4498, %v4496
        %v5199 = vpack.c.b16 %v4501, %v4499
        %v5200 = vpack.c.b16 %v4502, %v4500
        %v5201 = vpack.c.b16 %v4505, %v4503
        %v5202 = vpack.c.b16 %v4506, %v4504
        %v5203 = vpack.c.b16 %v4509, %v4507
        %v5204 = vpack.c.b16 %v4510, %v4508
        %v5205 = vpack.c.b16 %v4513, %v4511
        %v5206 = vpack.c.b16 %v4514, %v4512
        %v5207 = vpack.c.b16 %v4517, %v4515
        %v5208 = vpack.c.b16 %v4518, %v4516
        %v5209 = vpack.c.b16 %v4521, %v4519
        %v5210 = vpack.c.b16 %v4522, %v4520
        %v5211 = vpack.c.b16 %v4525, %v4523
        %v5212 = vpack.c.b16 %v4526, %v4524
        %v5213 = vpack.c.b16 %v4529, %v4527
        %v5214 = vpack.c.b16 %v4530, %v4528
        %v5215 = vpack.c.b16 %v4533, %v4531
        %v5216 = vpack.c.b16 %v4534, %v4532
        %v5217 = vpack.c.b16 %v4537, %v4535
        %v5218 = vpack.c.b16 %v4538, %v4536
        %v5219 = vpack.c.b16 %v4541, %v4539
        %v5220 = vpack.c.b16 %v4542, %v4540
        %v5221 = vpack.c.b16 %v4545, %v4543
        %v5222 = vpack.c.b16 %v4546, %v4544
        %v5223 = vpack.c.b16 %v4549, %v4547
        %v5224 = vpack.c.b16 %v4550, %v4548
        %v5225 = vpack.c.b16 %v4553, %v4551
        %v5226 = vpack.c.b16 %v4554, %v4552
        %v5227 = vpack.c.b16 %v4557, %v4555
        %v5228 = vpack.c.b16 %v4558, %v4556
        %v5229 = vpack.c.b16 %v4561, %v4559
        %v5230 = vpack.c.b16 %v4562, %v4560
        %v5231 = vpack.c.b16 %v4565, %v4563
        %v5232 = vpack.c.b16 %v4566, %v4564
        %v5233 = vpack.c.b16 %v4569, %v4567
        %v5234 = vpack.c.b16 %v4570, %v4568
        %v5235 = vpack.c.b16 %v4573, %v4571
        %v5236 = vpack.c.b16 %v4574, %v4572
        %v5237 = vpack.c.b16 %v4577, %v4575
        %v5238 = vpack.c.b16 %v4578, %v4576
        %v5239 = vpack.c.b16 %v4581, %v4579
        %v5240 = vpack.c.b16 %v4582, %v4580
        %v5241 = vpack.c.b16 %v4585, %v4583
        %v5242 = vpack.c.b16 %v4586, %v4584
        %v5243 = vpack.c.b16 %v4589, %v4587
        %v5244 = vpack.c.b16 %v4590, %v4588
        %v5245 = vpack.c.b16 %v4593, %v4591
        %v5246 = vpack.c.b16 %v4594, %v4592
        %v5247 = vpack.c.b16 %v4597, %v4595
        %v5248 = vpack.c.b16 %v4598, %v4596
        %v5249 = vpack.c.b16 %v4601, %v4599
        %v5250 = vpack.c.b16 %v4602, %v4600
        %v5251 = vpack.c.b16 %v4605, %v4603
        %v5252 = vpack.c.b16 %v4606, %v4604
        %v5253 = vpack.c.b16 %v4609, %v4607
        %v5254 = vpack.c.b16 %v4610, %v4608
        %v5255 = vpack.c.b16 %v4613, %v4611
        %v5256 = vpack.c.b16 %v4614, %v4612
        %v5257 = vpack.c.b16 %v4617, %v4615
        %v5258 = vpack.c.b16 %v4618, %v4616
        %v5259 = vpack.c.b16 %v4621, %v4619
        %v5260 = vpack.c.b16 %v4622, %v4620
        %v5261 = vpack.c.b16 %v4625, %v4623
        %v5262 = vpack.c.b16 %v4626, %v4624
        %v5263 = vpack.c.b16 %v4629, %v4627
        %v5264 = vpack.c.b16 %v4630, %v4628
        %v5265 = vpack.c.b16 %v4633, %v4631
        %v5266 = vpack.c.b16 %v4634, %v4632
        %v5267 = vpack.c.b16 %v4637, %v4635
        %v5268 = vpack.c.b16 %v4638, %v4636
        %v5269 = vpack.c.b16 %v4641, %v4639
        %v5270 = vpack.c.b16 %v4642, %v4640
        %v5271 = vpack.c.b16 %v4645, %v4643
        %v5272 = vpack.c.b16 %v4646, %v4644
        %v5273 = vpack.c.b16 %v4649, %v4647
        %v5274 = vpack.c.b16 %v4650, %v4648
        %v5275 = vpack.c.b16 %v4653, %v4651
        %v5276 = vpack.c.b16 %v4654, %v4652
        %v5277 = vpack.c.b16 %v4657, %v4655
        %v5278 = vpack.c.b16 %v4658, %v4656
        %v5279 = vpack.c.b16 %v4661, %v4659
        %v5280 = vpack.c.b16 %v4662, %v4660
        %v5281 = vpack.c.b16 %v4665, %v4663
        %v5282 = vpack.c.b16 %v4666, %v4664
        %v5283 = vpack.c.b16 %v4669, %v4667
        %v5284 = vpack.c.b16 %v4670, %v4668
        %v5285 = vpack.c.b16 %v4673, %v4671
        %v5286 = vpack.c.b16 %v4674, %v4672
        %v5287 = vpack.c.b16 %v4677, %v4675
        %v5288 = vpack.c.b16 %v4678, %v4676
        %v5289 = vpack.c.b16 %v4681, %v4679
        %v5290 = vpack.c.b16 %v4682, %v4680
        %v5291 = vpack.c.b16 %v4685, %v4683
        %v5292 = vpack.c.b16 %v4686, %v4684
        %v5293 = vpack.c.b16 %v4689, %v4687
        %v5294 = vpack.c.b16 %v4690, %v4688
        %v5295 = vpack.c.b16 %v4693, %v4691
        %v5296 = vpack.c.b16 %v4694, %v4692
        %v5297 = vpack.c.b16 %v4697, %v4695
        %v5298 = vpack.c.b16 %v4698, %v4696
        %v5299 = vpack.c.b16 %v4701, %v4699
        %v5300 = vpack.c.b16 %v4702, %v4700
        %v5301 = vpack.c.b16 %v4705, %v4703
        %v5302 = vpack.c.b16 %v4706, %v4704
        %v5303 = vpack.c.b16 %v4709, %v4707
        %v5304 = vpack.c.b16 %v4710, %v4708
        %v5305 = vpack.c.b16 %v4713, %v4711
        %v5306 = vpack.c.b16 %v4714, %v4712
        %v5307 = vpack.c.b16 %v4717, %v4715
        %v5308 = vpack.c.b16 %v4718, %v4716
        %v5309 = vpack.c.b16 %v4721, %v4719
        %v5310 = vpack.c.b16 %v4722, %v4720
        %v5311 = vpack.c.b16 %v4725, %v4723
        %v5312 = vpack.c.b16 %v4726, %v4724
        %v5313 = vpack.c.b16 %v4729, %v4727
        %v5314 = vpack.c.b16 %v4730, %v4728
        %v5315 = vpack.c.b16 %v4733, %v4731
        %v5316 = vpack.c.b16 %v4734, %v4732
        %v5317 = vpack.c.b16 %v4737, %v4735
        %v5318 = vpack.c.b16 %v4738, %v4736
        %v5319 = vpack.c.b16 %v4741, %v4739
        %v5320 = vpack.c.b16 %v4742, %v4740
        %v5321 = vpack.c.b16 %v4745, %v4743
        %v5322 = vpack.c.b16 %v4746, %v4744
        %v5323 = vpack.c.b16 %v4749, %v4747
        %v5324 = vpack.c.b16 %v4750, %v4748
        %v5325 = vpack.c.b16 %v4753, %v4751
        %v5326 = vpack.c.b16 %v4754, %v4752
        %v5327 = vpack.c.b16 %v4757, %v4755
        %v5328 = vpack.c.b16 %v4758, %v4756
        %v5329 = vpack.c.b16 %v4761, %v4759
        %v5330 = vpack.c.b16 %v4762, %v4760
        %v5331 = vpack.c.b16 %v4765, %v4763
        %v5332 = vpack.c.b16 %v4766, %v4764
        %v5333 = vpack.c.b16 %v4769, %v4767
        %v5334 = vpack.c.b16 %v4770, %v4768
        %v5335 = vpack.c.b16 %v4773, %v4771
        %v5336 = vpack.c.b16 %v4774, %v4772
        %v5337 = vpack.c.b16 %v4777, %v4775
        %v5338 = vpack.c.b16 %v4778, %v4776
        %v5339 = vpack.c.b16 %v4781, %v4779
        %v5340 = vpack.c.b16 %v4782, %v4780
        %v5341 = vpack.c.b16 %v4785, %v4783
        %v5342 = vpack.c.b16 %v4786, %v4784
        %v5343 = vpack.c.b16 %v4789, %v4787
        %v5344 = vpack.c.b16 %v4790, %v4788
        %v5345 = vpack.c.b16 %v4793, %v4791
        %v5346 = vpack.c.b16 %v4794, %v4792
        %v5347 = vpack.c.b16 %v4797, %v4795
        %v5348 = vpack.c.b16 %v4798, %v4796
        %v5349 = vpack.c.b16 %v4801, %v4799
        %v5350 = vpack.c.b16 %v4802, %v4800
        %v5351 = vpack.c.b16 %v4805, %v4803
        %v5352 = vpack.c.b16 %v4806, %v4804
        %v5353 = vpack.c.b16 %v4809, %v4807
        %v5354 = vpack.c.b16 %v4810, %v4808
        %v5355 = vpack.c.b16 %v4813, %v4811
        %v5356 = vpack.c.b16 %v4814, %v4812
        %v5357 = vpack.c.b16 %v4817, %v4815
        %v5358 = vpack.c.b16 %v4818, %v4816
        %v5359 = vpack.c.b16 %v4821, %v4819
        %v5360 = vpack.c.b16 %v4822, %v4820
        %v5361 = vpack.c.b16 %v4825, %v4823
        %v5362 = vpack.c.b16 %v4826, %v4824
        %v5363 = vpack.c.b16 %v4829, %v4827
        %v5364 = vpack.c.b16 %v4830, %v4828
        %v5365 = vpack.c.b16 %v4833, %v4831
        %v5366 = vpack.c.b16 %v4834, %v4832
        %v5367 = vpack.c.b16 %v4837, %v4835
        %v5368 = vpack.c.b16 %v4838, %v4836
        %v5369 = vpack.c.b16 %v4841, %v4839
        %v5370 = vpack.c.b16 %v4842, %v4840
        %v5371 = vpack.c.b16 %v4845, %v4843
        %v5372 = vpack.c.b16 %v4846, %v4844
        %v5373 = vpack.c.b16 %v4849, %v4847
        %v5374 = vpack.c.b16 %v4850, %v4848
        %v5375 = vpack.c.b16 %v4853, %v4851
        %v5376 = vpack.c.b16 %v4854, %v4852
        %v5377 = vpack.c.b16 %v4857, %v4855
        %v5378 = vpack.c.b16 %v4858, %v4856
        %v5379 = vpack.c.b16 %v4861, %v4859
        %v5380 = vpack.c.b16 %v4862, %v4860
        %v5381 = vpack.c.b16 %v4865, %v4863
        %v5382 = vpack.c.b16 %v4866, %v4864
        %v5383 = vpack.c.b16 %v4869, %v4867
        %v5384 = vpack.c.b16 %v4870, %v4868
        %v5385 = vpack.c.b16 %v4873, %v4871
        %v5386 = vpack.c.b16 %v4874, %v4872
        %v5387 = vpack.c.b16 %v4877, %v4875
        %v5388 = vpack.c.b16 %v4878, %v4876
        %v5389 = vpack.c.b16 %v4881, %v4879
        %v5390 = vpack.c.b16 %v4882, %v4880
        %v5391 = vpack.c.b16 %v4885, %v4883
        %v5392 = vpack.c.b16 %v4886, %v4884
        %v5393 = vpack.c.b16 %v4889, %v4887
        %v5394 = vpack.c.b16 %v4890, %v4888
        %v5395 = vpack.c.b16 %v4893, %v4891
        %v5396 = vpack.c.b16 %v4894, %v4892
        %v5397 = vpack.c.b16 %v4897, %v4895
        %v5398 = vpack.c.b16 %v4898, %v4896
        %v5399 = vpack.c.b16 %v4901, %v4899
        %v5400 = vpack.c.b16 %v4902, %v4900
        %v5401 = vpack.c.b16 %v4905, %v4903
        %v5402 = vpack.c.b16 %v4906, %v4904
        %v5403 = vpack.c.b16 %v4909, %v4907
        %v5404 = vpack.c.b16 %v4910, %v4908
        %v5405 = vpack.c.b16 %v4913, %v4911
        %v5406 = vpack.c.b16 %v4914, %v4912
        %v5407 = vpack.c.b16 %v4917, %v4915
        %v5408 = vpack.c.b16 %v4918, %v4916
        %v5409 = vpack.c.b16 %v4921, %v4919
        %v5410 = vpack.c.b16 %v4922, %v4920
        %v5411 = vpack.c.b16 %v4925, %v4923
        %v5412 = vpack.c.b16 %v4926, %v4924
        %v5413 = vpack.c.b16 %v4929, %v4927
        %v5414 = vpack.c.b16 %v4930, %v4928
        %v5415 = vpack.c.b16 %v4933, %v4931
        %v5416 = vpack.c.b16 %v4934, %v4932
        %v5417 = vpack.c.b16 %v4937, %v4935
        %v5418 = vpack.c.b16 %v4938, %v4936
        %v5419 = vpack.c.b16 %v4941, %v4939
        %v5420 = vpack.c.b16 %v4942, %v4940
        %v5421 = vpack.c.b16 %v4945, %v4943
        %v5422 = vpack.c.b16 %v4946, %v4944
        %v5423 = vpack.c.b16 %v4949, %v4947
        %v5424 = vpack.c.b16 %v4950, %v4948
        %v5425 = vpack.c.b16 %v4953, %v4951
        %v5426 = vpack.c.b16 %v4954, %v4952
        %v5427 = vpack.c.b16 %v4957, %v4955
        %v5428 = vpack.c.b16 %v4958, %v4956
        %v5429 = vpack.c.b16 %v4961, %v4959
        %v5430 = vpack.c.b16 %v4962, %v4960
        %v5431 = vpack.c.b16 %v4965, %v4963
        %v5432 = vpack.c.b16 %v4966, %v4964
        %v5433 = vpack.c.b16 %v4969, %v4967
        %v5434 = vpack.c.b16 %v4970, %v4968
        %v5435 = vpack.c.b16 %v4973, %v4971
        %v5436 = vpack.c.b16 %v4974, %v4972
        %v5437 = vpack.c.b16 %v4977, %v4975
        %v5438 = vpack.c.b16 %v4978, %v4976
        %v5439 = vpack.c.b16 %v4981, %v4979
        %v5440 = vpack.c.b16 %v4982, %v4980
        %v5441 = vpack.c.b16 %v4985, %v4983
        %v5442 = vpack.c.b16 %v4986, %v4984
        %v5443 = vpack.c.b16 %v4989, %v4987
        %v5444 = vpack.c.b16 %v4990, %v4988
        %v5445 = vpack.c.b16 %v4993, %v4991
        %v5446 = vpack.c.b16 %v4994, %v4992
        %v5447 = vpack.c.b16 %v4997, %v4995
        %v5448 = vpack.c.b16 %v4998, %v4996
        %v5449 = vpack.c.b16 %v5001, %v4999
        %v5450 = vpack.c.b16 %v5002, %v5000
        %v5451 = vpack.c.b16 %v5005, %v5003
        %v5452 = vpack.c.b16 %v5006, %v5004
        %v5453 = vpack.c.b16 %v5009, %v5007
        %v5454 = vpack.c.b16 %v5010, %v5008
        %v5455 = vpack.c.b16 %v5013, %v5011
        %v5456 = vpack.c.b16 %v5014, %v5012
        %v5457 = vpack.c.b16 %v5017, %v5015
        %v5458 = vpack.c.b16 %v5018, %v5016
        %v5459 = vpack.c.b16 %v5021, %v5019
        %v5460 = vpack.c.b16 %v5022, %v5020
        %v5461 = vpack.c.b16 %v5025, %v5023
        %v5462 = vpack.c.b16 %v5026, %v5024
        %v5463 = vpack.c.b16 %v5029, %v5027
        %v5464 = vpack.c.b16 %v5030, %v5028
        %v5465 = vpack.c.b16 %v5033, %v5031
        %v5466 = vpack.c.b16 %v5034, %v5032
        %v5467 = vpack.c.b16 %v5037, %v5035
        %v5468 = vpack.c.b16 %v5038, %v5036
        %v5469 = vpack.c.b16 %v5041, %v5039
        %v5470 = vpack.c.b16 %v5042, %v5040
        %v5471 = vpack.c.b16 %v5045, %v5043
        %v5472 = vpack.c.b16 %v5046, %v5044
        %v5473 = vpack.c.b16 %v5049, %v5047
        %v5474 = vpack.c.b16 %v5050, %v5048
        %v5475 = vpack.c.b16 %v5053, %v5051
        %v5476 = vpack.c.b16 %v5054, %v5052
        %v5477 = vpack.c.b16 %v5057, %v5055
        %v5478 = vpack.c.b16 %v5058, %v5056
        %v5479 = vpack.c.b16 %v5061, %v5059
        %v5480 = vpack.c.b16 %v5062, %v5060
        %v5481 = vpack.c.b16 %v5065, %v5063
        %v5482 = vpack.c.b16 %v5066, %v5064
        %v5483 = vpack.c.b16 %v5069, %v5067
        %v5484 = vpack.c.b16 %v5070, %v5068
        %v5485 = vpack.c.b16 %v5073, %v5071
        %v5486 = vpack.c.b16 %v5074, %v5072
        %v5487 = vpack.c.b16 %v5077, %v5075
        %v5488 = vpack.c.b16 %v5078, %v5076
        %v5489 = vpack.c.b16 %v5081, %v5079
        %v5490 = vpack.c.b16 %v5082, %v5080
        %v5491 = vpack.c.b16 %v5085, %v5083
        %v5492 = vpack.c.b16 %v5086, %v5084
        %v5493 = vpack.c.b16 %v5089, %v5087
        %v5494 = vpack.c.b16 %v5090, %v5088
        %v5495 = vpack.c.b16 %v5093, %v5091
        %v5496 = vpack.c.b16 %v5094, %v5092
        %v5497 = vpack.c.b16 %v5097, %v5095
        %v5498 = vpack.c.b16 %v5098, %v5096
        %v5499 = vpack.c.b16 %v5101, %v5099
        %v5500 = vpack.c.b16 %v5102, %v5100
        %v5501 = vpack.c.b16 %v5105, %v5103
        %v5502 = vpack.c.b16 %v5106, %v5104
        %v5503 = vpack.c.b16 %v5109, %v5107
        %v5504 = vpack.c.b16 %v5110, %v5108
        %v5505 = vpack.c.b16 %v5113, %v5111
        %v5506 = vpack.c.b16 %v5114, %v5112
        %vm5899 = vcmask 523264
        %v5900 = vsel %vm5899, %v3914, 0
        %5902 = vmatpush.bf16.msra.mxu0 %v5129
        %5903 = vmatpush.bf16.msra.mxu0 %v5127
        %5904 = vmatpush.bf16.msra.mxu0 %v5125
        %5905 = vmatpush.bf16.msra.mxu0 %v5123
        %5906 = vmatpush.bf16.msra.mxu0 %v5121
        %5907 = vmatpush.bf16.msra.mxu0 %v5119
        %5908 = vmatpush.bf16.msra.mxu0 %v5117
        %5909 = vmatpush.bf16.msra.mxu0 %v5115
        %5910 = vmatmul.bf16.gmra.mxu0 %v3884
        %v5911 = vpop.f32.mrf.mxu0
        %v5912 = vadd.f32 %v3878, %v5911
        %v5913 = vpop.f32.mrf.mxu0
        %5914 = vdwg.mxu0
        %5915 = vmatpush.bf16.msra.mxu0 %v5145
        %5916 = vmatpush.bf16.msra.mxu0 %v5143
        %5917 = vmatpush.bf16.msra.mxu0 %v5141
        %5918 = vmatpush.bf16.msra.mxu0 %v5139
        %5919 = vmatpush.bf16.msra.mxu0 %v5137
        %5920 = vmatpush.bf16.msra.mxu0 %v5135
        %5921 = vmatpush.bf16.msra.mxu0 %v5133
        %5922 = vmatpush.bf16.msra.mxu0 %v5131
        %5923 = vmatmul.bf16.gmra.mxu0 %v3885
        %v5924 = vpop.f32.mrf.mxu0
        %v5925 = vadd.f32 %v5912, %v5924
        %v5926 = vpop.f32.mrf.mxu0
        %5927 = vdwg.mxu0
        %5928 = vmatpush.bf16.msra.mxu0 %v5161
        %5929 = vmatpush.bf16.msra.mxu0 %v5159
        %5930 = vmatpush.bf16.msra.mxu0 %v5157
        %5931 = vmatpush.bf16.msra.mxu0 %v5155
        %5932 = vmatpush.bf16.msra.mxu0 %v5153
        %5933 = vmatpush.bf16.msra.mxu0 %v5151
        %5934 = vmatpush.bf16.msra.mxu0 %v5149
        %5935 = vmatpush.bf16.msra.mxu0 %v5147
        %5936 = vmatmul.bf16.gmra.mxu0 %v3886
        %v5937 = vpop.f32.mrf.mxu0
        %v5938 = vadd.f32 %v5925, %v5937
        %v5939 = vpop.f32.mrf.mxu0
        %5940 = vdwg.mxu0
        %5941 = vmatpush.bf16.msra.mxu0 %v5177
        %5942 = vmatpush.bf16.msra.mxu0 %v5175
        %5943 = vmatpush.bf16.msra.mxu0 %v5173
        %5944 = vmatpush.bf16.msra.mxu0 %v5171
        %5945 = vmatpush.bf16.msra.mxu0 %v5169
        %5946 = vmatpush.bf16.msra.mxu0 %v5167
        %5947 = vmatpush.bf16.msra.mxu0 %v5165
        %5948 = vmatpush.bf16.msra.mxu0 %v5163
        %5949 = vmatmul.bf16.gmra.mxu0 %v3887
        %v5950 = vpop.f32.mrf.mxu0
        %v5951 = vadd.f32 %v5938, %v5950
        %v5952 = vpop.f32.mrf.mxu0
        %5953 = vdwg.mxu0
        %5954 = vmatpush.bf16.msra.mxu0 %v5193
        %5955 = vmatpush.bf16.msra.mxu0 %v5191
        %5956 = vmatpush.bf16.msra.mxu0 %v5189
        %5957 = vmatpush.bf16.msra.mxu0 %v5187
        %5958 = vmatpush.bf16.msra.mxu0 %v5185
        %5959 = vmatpush.bf16.msra.mxu0 %v5183
        %5960 = vmatpush.bf16.msra.mxu0 %v5181
        %5961 = vmatpush.bf16.msra.mxu0 %v5179
        %5962 = vmatmul.bf16.gmra.mxu0 %v3888
        %v5963 = vpop.f32.mrf.mxu0
        %v5964 = vadd.f32 %v5951, %v5963
        %v5965 = vpop.f32.mrf.mxu0
        %5966 = vdwg.mxu0
        %5967 = vmatpush.bf16.msra.mxu0 %v5209
        %5968 = vmatpush.bf16.msra.mxu0 %v5207
        %5969 = vmatpush.bf16.msra.mxu0 %v5205
        %5970 = vmatpush.bf16.msra.mxu0 %v5203
        %5971 = vmatpush.bf16.msra.mxu0 %v5201
        %5972 = vmatpush.bf16.msra.mxu0 %v5199
        %5973 = vmatpush.bf16.msra.mxu0 %v5197
        %5974 = vmatpush.bf16.msra.mxu0 %v5195
        %5975 = vmatmul.bf16.gmra.mxu0 %v3889
        %v5976 = vpop.f32.mrf.mxu0
        %v5977 = vadd.f32 %v5964, %v5976
        %v5978 = vpop.f32.mrf.mxu0
        %5979 = vdwg.mxu0
        %5980 = vmatpush.bf16.msra.mxu0 %v5225
        %5981 = vmatpush.bf16.msra.mxu0 %v5223
        %5982 = vmatpush.bf16.msra.mxu0 %v5221
        %5983 = vmatpush.bf16.msra.mxu0 %v5219
        %5984 = vmatpush.bf16.msra.mxu0 %v5217
        %5985 = vmatpush.bf16.msra.mxu0 %v5215
        %5986 = vmatpush.bf16.msra.mxu0 %v5213
        %5987 = vmatpush.bf16.msra.mxu0 %v5211
        %5988 = vmatmul.bf16.gmra.mxu0 %v3890
        %v5989 = vpop.f32.mrf.mxu0
        %v5990 = vadd.f32 %v5977, %v5989
        %v5991 = vpop.f32.mrf.mxu0
        %5992 = vdwg.mxu0
        %5993 = vmatpush.bf16.msra.mxu0 %v5241
        %5994 = vmatpush.bf16.msra.mxu0 %v5239
        %5995 = vmatpush.bf16.msra.mxu0 %v5237
        %5996 = vmatpush.bf16.msra.mxu0 %v5235
        %5997 = vmatpush.bf16.msra.mxu0 %v5233
        %5998 = vmatpush.bf16.msra.mxu0 %v5231
        %5999 = vmatpush.bf16.msra.mxu0 %v5229
        %6000 = vmatpush.bf16.msra.mxu0 %v5227
        %6001 = vmatmul.bf16.gmra.mxu0 %v3891
        %v6002 = vpop.f32.mrf.mxu0
        %v6003 = vadd.f32 %v5990, %v6002
        %v6004 = vpop.f32.mrf.mxu0
        %6005 = vdwg.mxu0
        %6006 = vmatpush.bf16.msra.mxu0 %v5257
        %6007 = vmatpush.bf16.msra.mxu0 %v5255
        %6008 = vmatpush.bf16.msra.mxu0 %v5253
        %6009 = vmatpush.bf16.msra.mxu0 %v5251
        %6010 = vmatpush.bf16.msra.mxu0 %v5249
        %6011 = vmatpush.bf16.msra.mxu0 %v5247
        %6012 = vmatpush.bf16.msra.mxu0 %v5245
        %6013 = vmatpush.bf16.msra.mxu0 %v5243
        %6014 = vmatmul.bf16.gmra.mxu0 %v3894
        %v6015 = vpop.f32.mrf.mxu0
        %v6016 = vadd.f32 %v6003, %v6015
        %v6017 = vpop.f32.mrf.mxu0
        %6018 = vdwg.mxu0
        %6019 = vmatpush.bf16.msra.mxu0 %v5273
        %6020 = vmatpush.bf16.msra.mxu0 %v5271
        %6021 = vmatpush.bf16.msra.mxu0 %v5269
        %6022 = vmatpush.bf16.msra.mxu0 %v5267
        %6023 = vmatpush.bf16.msra.mxu0 %v5265
        %6024 = vmatpush.bf16.msra.mxu0 %v5263
        %6025 = vmatpush.bf16.msra.mxu0 %v5261
        %6026 = vmatpush.bf16.msra.mxu0 %v5259
        %6027 = vmatmul.bf16.gmra.mxu0 %v3895
        %v6028 = vpop.f32.mrf.mxu0
        %v6029 = vadd.f32 %v6016, %v6028
        %v6030 = vpop.f32.mrf.mxu0
        %6031 = vdwg.mxu0
        %6032 = vmatpush.bf16.msra.mxu0 %v5289
        %6033 = vmatpush.bf16.msra.mxu0 %v5287
        %6034 = vmatpush.bf16.msra.mxu0 %v5285
        %6035 = vmatpush.bf16.msra.mxu0 %v5283
        %6036 = vmatpush.bf16.msra.mxu0 %v5281
        %6037 = vmatpush.bf16.msra.mxu0 %v5279
        %6038 = vmatpush.bf16.msra.mxu0 %v5277
        %6039 = vmatpush.bf16.msra.mxu0 %v5275
        %6040 = vmatmul.bf16.gmra.mxu0 %v3896
        %v6041 = vpop.f32.mrf.mxu0
        %v6042 = vadd.f32 %v6029, %v6041
        %v6043 = vpop.f32.mrf.mxu0
        %6044 = vdwg.mxu0
        %6045 = vmatpush.bf16.msra.mxu0 %v5305
        %6046 = vmatpush.bf16.msra.mxu0 %v5303
        %6047 = vmatpush.bf16.msra.mxu0 %v5301
        %6048 = vmatpush.bf16.msra.mxu0 %v5299
        %6049 = vmatpush.bf16.msra.mxu0 %v5297
        %6050 = vmatpush.bf16.msra.mxu0 %v5295
        %6051 = vmatpush.bf16.msra.mxu0 %v5293
        %6052 = vmatpush.bf16.msra.mxu0 %v5291
        %6053 = vmatmul.bf16.gmra.mxu0 %v3897
        %v6054 = vpop.f32.mrf.mxu0
        %v6055 = vadd.f32 %v6042, %v6054
        %v6056 = vpop.f32.mrf.mxu0
        %6057 = vdwg.mxu0
        %6058 = vmatpush.bf16.msra.mxu0 %v5321
        %6059 = vmatpush.bf16.msra.mxu0 %v5319
        %6060 = vmatpush.bf16.msra.mxu0 %v5317
        %6061 = vmatpush.bf16.msra.mxu0 %v5315
        %6062 = vmatpush.bf16.msra.mxu0 %v5313
        %6063 = vmatpush.bf16.msra.mxu0 %v5311
        %6064 = vmatpush.bf16.msra.mxu0 %v5309
        %6065 = vmatpush.bf16.msra.mxu0 %v5307
        %6066 = vmatmul.bf16.gmra.mxu0 %v3898
        %v6067 = vpop.f32.mrf.mxu0
        %v6068 = vadd.f32 %v6055, %v6067
        %v6069 = vpop.f32.mrf.mxu0
        %6070 = vdwg.mxu0
        %6071 = vmatpush.bf16.msra.mxu0 %v5337
        %6072 = vmatpush.bf16.msra.mxu0 %v5335
        %6073 = vmatpush.bf16.msra.mxu0 %v5333
        %6074 = vmatpush.bf16.msra.mxu0 %v5331
        %6075 = vmatpush.bf16.msra.mxu0 %v5329
        %6076 = vmatpush.bf16.msra.mxu0 %v5327
        %6077 = vmatpush.bf16.msra.mxu0 %v5325
        %6078 = vmatpush.bf16.msra.mxu0 %v5323
        %6079 = vmatmul.bf16.gmra.mxu0 %v3899
        %v6080 = vpop.f32.mrf.mxu0
        %v6081 = vadd.f32 %v6068, %v6080
        %v6082 = vpop.f32.mrf.mxu0
        %6083 = vdwg.mxu0
        %6084 = vmatpush.bf16.msra.mxu0 %v5353
        %6085 = vmatpush.bf16.msra.mxu0 %v5351
        %6086 = vmatpush.bf16.msra.mxu0 %v5349
        %6087 = vmatpush.bf16.msra.mxu0 %v5347
        %6088 = vmatpush.bf16.msra.mxu0 %v5345
        %6089 = vmatpush.bf16.msra.mxu0 %v5343
        %6090 = vmatpush.bf16.msra.mxu0 %v5341
        %6091 = vmatpush.bf16.msra.mxu0 %v5339
        %6092 = vmatmul.bf16.gmra.mxu0 %v3900
        %v6093 = vpop.f32.mrf.mxu0
        %v6094 = vadd.f32 %v6081, %v6093
        %v6095 = vpop.f32.mrf.mxu0
        %6096 = vdwg.mxu0
        %6097 = vmatpush.bf16.msra.mxu0 %v5369
        %6098 = vmatpush.bf16.msra.mxu0 %v5367
        %6099 = vmatpush.bf16.msra.mxu0 %v5365
        %6100 = vmatpush.bf16.msra.mxu0 %v5363
        %6101 = vmatpush.bf16.msra.mxu0 %v5361
        %6102 = vmatpush.bf16.msra.mxu0 %v5359
        %6103 = vmatpush.bf16.msra.mxu0 %v5357
        %6104 = vmatpush.bf16.msra.mxu0 %v5355
        %6105 = vmatmul.bf16.gmra.mxu0 %v3901
        %v6106 = vpop.f32.mrf.mxu0
        %v6107 = vadd.f32 %v6094, %v6106
        %v6108 = vpop.f32.mrf.mxu0
        %6109 = vdwg.mxu0
        %6110 = vmatpush.bf16.msra.mxu0 %v5385
        %6111 = vmatpush.bf16.msra.mxu0 %v5383
        %6112 = vmatpush.bf16.msra.mxu0 %v5381
        %6113 = vmatpush.bf16.msra.mxu0 %v5379
        %6114 = vmatpush.bf16.msra.mxu0 %v5377
        %6115 = vmatpush.bf16.msra.mxu0 %v5375
        %6116 = vmatpush.bf16.msra.mxu0 %v5373
        %6117 = vmatpush.bf16.msra.mxu0 %v5371
        %6118 = vmatmul.bf16.gmra.mxu0 %v3904
        %v6119 = vpop.f32.mrf.mxu0
        %v6120 = vadd.f32 %v6107, %v6119
        %v6121 = vpop.f32.mrf.mxu0
        %6122 = vdwg.mxu0
        %6123 = vmatpush.bf16.msra.mxu0 %v5401
        %6124 = vmatpush.bf16.msra.mxu0 %v5399
        %6125 = vmatpush.bf16.msra.mxu0 %v5397
        %6126 = vmatpush.bf16.msra.mxu0 %v5395
        %6127 = vmatpush.bf16.msra.mxu0 %v5393
        %6128 = vmatpush.bf16.msra.mxu0 %v5391
        %6129 = vmatpush.bf16.msra.mxu0 %v5389
        %6130 = vmatpush.bf16.msra.mxu0 %v5387
        %6131 = vmatmul.bf16.gmra.mxu0 %v3905
        %v6132 = vpop.f32.mrf.mxu0
        %v6133 = vadd.f32 %v6120, %v6132
        %v6134 = vpop.f32.mrf.mxu0
        %6135 = vdwg.mxu0
        %6136 = vmatpush.bf16.msra.mxu0 %v5417
        %6137 = vmatpush.bf16.msra.mxu0 %v5415
        %6138 = vmatpush.bf16.msra.mxu0 %v5413
        %6139 = vmatpush.bf16.msra.mxu0 %v5411
        %6140 = vmatpush.bf16.msra.mxu0 %v5409
        %6141 = vmatpush.bf16.msra.mxu0 %v5407
        %6142 = vmatpush.bf16.msra.mxu0 %v5405
        %6143 = vmatpush.bf16.msra.mxu0 %v5403
        %6144 = vmatmul.bf16.gmra.mxu0 %v3906
        %v6145 = vpop.f32.mrf.mxu0
        %v6146 = vadd.f32 %v6133, %v6145
        %v6147 = vpop.f32.mrf.mxu0
        %6148 = vdwg.mxu0
        %6149 = vmatpush.bf16.msra.mxu0 %v5433
        %6150 = vmatpush.bf16.msra.mxu0 %v5431
        %6151 = vmatpush.bf16.msra.mxu0 %v5429
        %6152 = vmatpush.bf16.msra.mxu0 %v5427
        %6153 = vmatpush.bf16.msra.mxu0 %v5425
        %6154 = vmatpush.bf16.msra.mxu0 %v5423
        %6155 = vmatpush.bf16.msra.mxu0 %v5421
        %6156 = vmatpush.bf16.msra.mxu0 %v5419
        %6157 = vmatmul.bf16.gmra.mxu0 %v3907
        %v6158 = vpop.f32.mrf.mxu0
        %v6159 = vadd.f32 %v6146, %v6158
        %v6160 = vpop.f32.mrf.mxu0
        %6161 = vdwg.mxu0
        %6162 = vmatpush.bf16.msra.mxu0 %v5449
        %6163 = vmatpush.bf16.msra.mxu0 %v5447
        %6164 = vmatpush.bf16.msra.mxu0 %v5445
        %6165 = vmatpush.bf16.msra.mxu0 %v5443
        %6166 = vmatpush.bf16.msra.mxu0 %v5441
        %6167 = vmatpush.bf16.msra.mxu0 %v5439
        %6168 = vmatpush.bf16.msra.mxu0 %v5437
        %6169 = vmatpush.bf16.msra.mxu0 %v5435
        %6170 = vmatmul.bf16.gmra.mxu0 %v3908
        %v6171 = vpop.f32.mrf.mxu0
        %v6172 = vadd.f32 %v6159, %v6171
        %v6173 = vpop.f32.mrf.mxu0
        %6174 = vdwg.mxu0
        %6175 = vmatpush.bf16.msra.mxu0 %v5465
        %6176 = vmatpush.bf16.msra.mxu0 %v5463
        %6177 = vmatpush.bf16.msra.mxu0 %v5461
        %6178 = vmatpush.bf16.msra.mxu0 %v5459
        %6179 = vmatpush.bf16.msra.mxu0 %v5457
        %6180 = vmatpush.bf16.msra.mxu0 %v5455
        %6181 = vmatpush.bf16.msra.mxu0 %v5453
        %6182 = vmatpush.bf16.msra.mxu0 %v5451
        %6183 = vmatmul.bf16.gmra.mxu0 %v3909
        %v6184 = vpop.f32.mrf.mxu0
        %v6185 = vadd.f32 %v6172, %v6184
        %v6186 = vpop.f32.mrf.mxu0
        %6187 = vdwg.mxu0
        %6188 = vmatpush.bf16.msra.mxu0 %v5481
        %6189 = vmatpush.bf16.msra.mxu0 %v5479
        %6190 = vmatpush.bf16.msra.mxu0 %v5477
        %6191 = vmatpush.bf16.msra.mxu0 %v5475
        %6192 = vmatpush.bf16.msra.mxu0 %v5473
        %6193 = vmatpush.bf16.msra.mxu0 %v5471
        %6194 = vmatpush.bf16.msra.mxu0 %v5469
        %6195 = vmatpush.bf16.msra.mxu0 %v5467
        %6196 = vmatmul.bf16.gmra.mxu0 %v3910
        %v6197 = vpop.f32.mrf.mxu0
        %v6198 = vadd.f32 %v6185, %v6197
        %v6199 = vpop.f32.mrf.mxu0
        %6200 = vdwg.mxu0
        %6201 = vmatpush.bf16.msra.mxu0 %v5497
        %6202 = vmatpush.bf16.msra.mxu0 %v5495
        %6203 = vmatpush.bf16.msra.mxu0 %v5493
        %6204 = vmatpush.bf16.msra.mxu0 %v5491
        %6205 = vmatpush.bf16.msra.mxu0 %v5489
        %6206 = vmatpush.bf16.msra.mxu0 %v5487
        %6207 = vmatpush.bf16.msra.mxu0 %v5485
        %6208 = vmatpush.bf16.msra.mxu0 %v5483
        %6209 = vmatmul.bf16.gmra.mxu0 %v3911
        %v6210 = vpop.f32.mrf.mxu0
        %v6211 = vadd.f32 %v6198, %v6210
        %v6212 = vpop.f32.mrf.mxu0
        %6213 = vdwg.mxu0
        %6214 = vmatpush.bf16.msra.mxu0 0
        %6215 = vmatpush.bf16.msra.mxu0 0
        %6216 = vmatpush.bf16.msra.mxu0 0
        %6217 = vmatpush.bf16.msra.mxu0 0
        %6218 = vmatpush.bf16.msra.mxu0 %v5505
        %6219 = vmatpush.bf16.msra.mxu0 %v5503
        %6220 = vmatpush.bf16.msra.mxu0 %v5501
        %6221 = vmatpush.bf16.msra.mxu0 %v5499
        %6222 = vmatmul.bf16.gmra.mxu0 %v5900
        %v6223 = vpop.f32.mrf.mxu0
        %v6224 = vadd.f32 %v6211, %v6223
        %v6225 = vpop.f32.mrf.mxu0
        %6226 = vdwg.mxu0
        %6227 = vmatpush.bf16.msra.mxu0 %v5130
        %6228 = vmatpush.bf16.msra.mxu0 %v5128
        %6229 = vmatpush.bf16.msra.mxu0 %v5126
        %6230 = vmatpush.bf16.msra.mxu0 %v5124
        %6231 = vmatpush.bf16.msra.mxu0 %v5122
        %6232 = vmatpush.bf16.msra.mxu0 %v5120
        %6233 = vmatpush.bf16.msra.mxu0 %v5118
        %6234 = vmatpush.bf16.msra.mxu0 %v5116
        %6235 = vmatmul.bf16.gmra.mxu0 %v3884
        %v6236 = vpop.f32.mrf.mxu0
        %v6237 = vadd.f32 %v3879, %v6236
        %v6238 = vpop.f32.mrf.mxu0
        %6239 = vdwg.mxu0
        %6240 = vmatpush.bf16.msra.mxu0 %v5146
        %6241 = vmatpush.bf16.msra.mxu0 %v5144
        %6242 = vmatpush.bf16.msra.mxu0 %v5142
        %6243 = vmatpush.bf16.msra.mxu0 %v5140
        %6244 = vmatpush.bf16.msra.mxu0 %v5138
        %6245 = vmatpush.bf16.msra.mxu0 %v5136
        %6246 = vmatpush.bf16.msra.mxu0 %v5134
        %6247 = vmatpush.bf16.msra.mxu0 %v5132
        %6248 = vmatmul.bf16.gmra.mxu0 %v3885
        %v6249 = vpop.f32.mrf.mxu0
        %v6250 = vadd.f32 %v6237, %v6249
        %v6251 = vpop.f32.mrf.mxu0
        %6252 = vdwg.mxu0
        %6253 = vmatpush.bf16.msra.mxu0 %v5162
        %6254 = vmatpush.bf16.msra.mxu0 %v5160
        %6255 = vmatpush.bf16.msra.mxu0 %v5158
        %6256 = vmatpush.bf16.msra.mxu0 %v5156
        %6257 = vmatpush.bf16.msra.mxu0 %v5154
        %6258 = vmatpush.bf16.msra.mxu0 %v5152
        %6259 = vmatpush.bf16.msra.mxu0 %v5150
        %6260 = vmatpush.bf16.msra.mxu0 %v5148
        %6261 = vmatmul.bf16.gmra.mxu0 %v3886
        %v6262 = vpop.f32.mrf.mxu0
        %v6263 = vadd.f32 %v6250, %v6262
        %v6264 = vpop.f32.mrf.mxu0
        %6265 = vdwg.mxu0
        %6266 = vmatpush.bf16.msra.mxu0 %v5178
        %6267 = vmatpush.bf16.msra.mxu0 %v5176
        %6268 = vmatpush.bf16.msra.mxu0 %v5174
        %6269 = vmatpush.bf16.msra.mxu0 %v5172
        %6270 = vmatpush.bf16.msra.mxu0 %v5170
        %6271 = vmatpush.bf16.msra.mxu0 %v5168
        %6272 = vmatpush.bf16.msra.mxu0 %v5166
        %6273 = vmatpush.bf16.msra.mxu0 %v5164
        %6274 = vmatmul.bf16.gmra.mxu0 %v3887
        %v6275 = vpop.f32.mrf.mxu0
        %v6276 = vadd.f32 %v6263, %v6275
        %v6277 = vpop.f32.mrf.mxu0
        %6278 = vdwg.mxu0
        %6279 = vmatpush.bf16.msra.mxu0 %v5194
        %6280 = vmatpush.bf16.msra.mxu0 %v5192
        %6281 = vmatpush.bf16.msra.mxu0 %v5190
        %6282 = vmatpush.bf16.msra.mxu0 %v5188
        %6283 = vmatpush.bf16.msra.mxu0 %v5186
        %6284 = vmatpush.bf16.msra.mxu0 %v5184
        %6285 = vmatpush.bf16.msra.mxu0 %v5182
        %6286 = vmatpush.bf16.msra.mxu0 %v5180
        %6287 = vmatmul.bf16.gmra.mxu0 %v3888
        %v6288 = vpop.f32.mrf.mxu0
        %v6289 = vadd.f32 %v6276, %v6288
        %v6290 = vpop.f32.mrf.mxu0
        %6291 = vdwg.mxu0
        %6292 = vmatpush.bf16.msra.mxu0 %v5210
        %6293 = vmatpush.bf16.msra.mxu0 %v5208
        %6294 = vmatpush.bf16.msra.mxu0 %v5206
        %6295 = vmatpush.bf16.msra.mxu0 %v5204
        %6296 = vmatpush.bf16.msra.mxu0 %v5202
        %6297 = vmatpush.bf16.msra.mxu0 %v5200
        %6298 = vmatpush.bf16.msra.mxu0 %v5198
        %6299 = vmatpush.bf16.msra.mxu0 %v5196
        %6300 = vmatmul.bf16.gmra.mxu0 %v3889
        %v6301 = vpop.f32.mrf.mxu0
        %v6302 = vadd.f32 %v6289, %v6301
        %v6303 = vpop.f32.mrf.mxu0
        %6304 = vdwg.mxu0
        %6305 = vmatpush.bf16.msra.mxu0 %v5226
        %6306 = vmatpush.bf16.msra.mxu0 %v5224
        %6307 = vmatpush.bf16.msra.mxu0 %v5222
        %6308 = vmatpush.bf16.msra.mxu0 %v5220
        %6309 = vmatpush.bf16.msra.mxu0 %v5218
        %6310 = vmatpush.bf16.msra.mxu0 %v5216
        %6311 = vmatpush.bf16.msra.mxu0 %v5214
        %6312 = vmatpush.bf16.msra.mxu0 %v5212
        %6313 = vmatmul.bf16.gmra.mxu0 %v3890
        %v6314 = vpop.f32.mrf.mxu0
        %v6315 = vadd.f32 %v6302, %v6314
        %v6316 = vpop.f32.mrf.mxu0
        %6317 = vdwg.mxu0
        %6318 = vmatpush.bf16.msra.mxu0 %v5242
        %6319 = vmatpush.bf16.msra.mxu0 %v5240
        %6320 = vmatpush.bf16.msra.mxu0 %v5238
        %6321 = vmatpush.bf16.msra.mxu0 %v5236
        %6322 = vmatpush.bf16.msra.mxu0 %v5234
        %6323 = vmatpush.bf16.msra.mxu0 %v5232
        %6324 = vmatpush.bf16.msra.mxu0 %v5230
        %6325 = vmatpush.bf16.msra.mxu0 %v5228
        %6326 = vmatmul.bf16.gmra.mxu0 %v3891
        %v6327 = vpop.f32.mrf.mxu0
        %v6328 = vadd.f32 %v6315, %v6327
        %v6329 = vpop.f32.mrf.mxu0
        %6330 = vdwg.mxu0
        %6331 = vmatpush.bf16.msra.mxu0 %v5258
        %6332 = vmatpush.bf16.msra.mxu0 %v5256
        %6333 = vmatpush.bf16.msra.mxu0 %v5254
        %6334 = vmatpush.bf16.msra.mxu0 %v5252
        %6335 = vmatpush.bf16.msra.mxu0 %v5250
        %6336 = vmatpush.bf16.msra.mxu0 %v5248
        %6337 = vmatpush.bf16.msra.mxu0 %v5246
        %6338 = vmatpush.bf16.msra.mxu0 %v5244
        %6339 = vmatmul.bf16.gmra.mxu0 %v3894
        %v6340 = vpop.f32.mrf.mxu0
        %v6341 = vadd.f32 %v6328, %v6340
        %v6342 = vpop.f32.mrf.mxu0
        %6343 = vdwg.mxu0
        %6344 = vmatpush.bf16.msra.mxu0 %v5274
        %6345 = vmatpush.bf16.msra.mxu0 %v5272
        %6346 = vmatpush.bf16.msra.mxu0 %v5270
        %6347 = vmatpush.bf16.msra.mxu0 %v5268
        %6348 = vmatpush.bf16.msra.mxu0 %v5266
        %6349 = vmatpush.bf16.msra.mxu0 %v5264
        %6350 = vmatpush.bf16.msra.mxu0 %v5262
        %6351 = vmatpush.bf16.msra.mxu0 %v5260
        %6352 = vmatmul.bf16.gmra.mxu0 %v3895
        %v6353 = vpop.f32.mrf.mxu0
        %v6354 = vadd.f32 %v6341, %v6353
        %v6355 = vpop.f32.mrf.mxu0
        %6356 = vdwg.mxu0
        %6357 = vmatpush.bf16.msra.mxu0 %v5290
        %6358 = vmatpush.bf16.msra.mxu0 %v5288
        %6359 = vmatpush.bf16.msra.mxu0 %v5286
        %6360 = vmatpush.bf16.msra.mxu0 %v5284
        %6361 = vmatpush.bf16.msra.mxu0 %v5282
        %6362 = vmatpush.bf16.msra.mxu0 %v5280
        %6363 = vmatpush.bf16.msra.mxu0 %v5278
        %6364 = vmatpush.bf16.msra.mxu0 %v5276
        %6365 = vmatmul.bf16.gmra.mxu0 %v3896
        %v6366 = vpop.f32.mrf.mxu0
        %v6367 = vadd.f32 %v6354, %v6366
        %v6368 = vpop.f32.mrf.mxu0
        %6369 = vdwg.mxu0
        %6370 = vmatpush.bf16.msra.mxu0 %v5306
        %6371 = vmatpush.bf16.msra.mxu0 %v5304
        %6372 = vmatpush.bf16.msra.mxu0 %v5302
        %6373 = vmatpush.bf16.msra.mxu0 %v5300
        %6374 = vmatpush.bf16.msra.mxu0 %v5298
        %6375 = vmatpush.bf16.msra.mxu0 %v5296
        %6376 = vmatpush.bf16.msra.mxu0 %v5294
        %6377 = vmatpush.bf16.msra.mxu0 %v5292
        %6378 = vmatmul.bf16.gmra.mxu0 %v3897
        %v6379 = vpop.f32.mrf.mxu0
        %v6380 = vadd.f32 %v6367, %v6379
        %v6381 = vpop.f32.mrf.mxu0
        %6382 = vdwg.mxu0
        %6383 = vmatpush.bf16.msra.mxu0 %v5322
        %6384 = vmatpush.bf16.msra.mxu0 %v5320
        %6385 = vmatpush.bf16.msra.mxu0 %v5318
        %6386 = vmatpush.bf16.msra.mxu0 %v5316
        %6387 = vmatpush.bf16.msra.mxu0 %v5314
        %6388 = vmatpush.bf16.msra.mxu0 %v5312
        %6389 = vmatpush.bf16.msra.mxu0 %v5310
        %6390 = vmatpush.bf16.msra.mxu0 %v5308
        %6391 = vmatmul.bf16.gmra.mxu0 %v3898
        %v6392 = vpop.f32.mrf.mxu0
        %v6393 = vadd.f32 %v6380, %v6392
        %v6394 = vpop.f32.mrf.mxu0
        %6395 = vdwg.mxu0
        %6396 = vmatpush.bf16.msra.mxu0 %v5338
        %6397 = vmatpush.bf16.msra.mxu0 %v5336
        %6398 = vmatpush.bf16.msra.mxu0 %v5334
        %6399 = vmatpush.bf16.msra.mxu0 %v5332
        %6400 = vmatpush.bf16.msra.mxu0 %v5330
        %6401 = vmatpush.bf16.msra.mxu0 %v5328
        %6402 = vmatpush.bf16.msra.mxu0 %v5326
        %6403 = vmatpush.bf16.msra.mxu0 %v5324
        %6404 = vmatmul.bf16.gmra.mxu0 %v3899
        %v6405 = vpop.f32.mrf.mxu0
        %v6406 = vadd.f32 %v6393, %v6405
        %v6407 = vpop.f32.mrf.mxu0
        %6408 = vdwg.mxu0
        %6409 = vmatpush.bf16.msra.mxu0 %v5354
        %6410 = vmatpush.bf16.msra.mxu0 %v5352
        %6411 = vmatpush.bf16.msra.mxu0 %v5350
        %6412 = vmatpush.bf16.msra.mxu0 %v5348
        %6413 = vmatpush.bf16.msra.mxu0 %v5346
        %6414 = vmatpush.bf16.msra.mxu0 %v5344
        %6415 = vmatpush.bf16.msra.mxu0 %v5342
        %6416 = vmatpush.bf16.msra.mxu0 %v5340
        %6417 = vmatmul.bf16.gmra.mxu0 %v3900
        %v6418 = vpop.f32.mrf.mxu0
        %v6419 = vadd.f32 %v6406, %v6418
        %v6420 = vpop.f32.mrf.mxu0
        %6421 = vdwg.mxu0
        %6422 = vmatpush.bf16.msra.mxu0 %v5370
        %6423 = vmatpush.bf16.msra.mxu0 %v5368
        %6424 = vmatpush.bf16.msra.mxu0 %v5366
        %6425 = vmatpush.bf16.msra.mxu0 %v5364
        %6426 = vmatpush.bf16.msra.mxu0 %v5362
        %6427 = vmatpush.bf16.msra.mxu0 %v5360
        %6428 = vmatpush.bf16.msra.mxu0 %v5358
        %6429 = vmatpush.bf16.msra.mxu0 %v5356
        %6430 = vmatmul.bf16.gmra.mxu0 %v3901
        %v6431 = vpop.f32.mrf.mxu0
        %v6432 = vadd.f32 %v6419, %v6431
        %v6433 = vpop.f32.mrf.mxu0
        %6434 = vdwg.mxu0
        %6435 = vmatpush.bf16.msra.mxu0 %v5386
        %6436 = vmatpush.bf16.msra.mxu0 %v5384
        %6437 = vmatpush.bf16.msra.mxu0 %v5382
        %6438 = vmatpush.bf16.msra.mxu0 %v5380
        %6439 = vmatpush.bf16.msra.mxu0 %v5378
        %6440 = vmatpush.bf16.msra.mxu0 %v5376
        %6441 = vmatpush.bf16.msra.mxu0 %v5374
        %6442 = vmatpush.bf16.msra.mxu0 %v5372
        %6443 = vmatmul.bf16.gmra.mxu0 %v3904
        %v6444 = vpop.f32.mrf.mxu0
        %v6445 = vadd.f32 %v6432, %v6444
        %v6446 = vpop.f32.mrf.mxu0
        %6447 = vdwg.mxu0
        %6448 = vmatpush.bf16.msra.mxu0 %v5402
        %6449 = vmatpush.bf16.msra.mxu0 %v5400
        %6450 = vmatpush.bf16.msra.mxu0 %v5398
        %6451 = vmatpush.bf16.msra.mxu0 %v5396
        %6452 = vmatpush.bf16.msra.mxu0 %v5394
        %6453 = vmatpush.bf16.msra.mxu0 %v5392
        %6454 = vmatpush.bf16.msra.mxu0 %v5390
        %6455 = vmatpush.bf16.msra.mxu0 %v5388
        %6456 = vmatmul.bf16.gmra.mxu0 %v3905
        %v6457 = vpop.f32.mrf.mxu0
        %v6458 = vadd.f32 %v6445, %v6457
        %v6459 = vpop.f32.mrf.mxu0
        %6460 = vdwg.mxu0
        %6461 = vmatpush.bf16.msra.mxu0 %v5418
        %6462 = vmatpush.bf16.msra.mxu0 %v5416
        %6463 = vmatpush.bf16.msra.mxu0 %v5414
        %6464 = vmatpush.bf16.msra.mxu0 %v5412
        %6465 = vmatpush.bf16.msra.mxu0 %v5410
        %6466 = vmatpush.bf16.msra.mxu0 %v5408
        %6467 = vmatpush.bf16.msra.mxu0 %v5406
        %6468 = vmatpush.bf16.msra.mxu0 %v5404
        %6469 = vmatmul.bf16.gmra.mxu0 %v3906
        %v6470 = vpop.f32.mrf.mxu0
        %v6471 = vadd.f32 %v6458, %v6470
        %v6472 = vpop.f32.mrf.mxu0
        %6473 = vdwg.mxu0
        %6474 = vmatpush.bf16.msra.mxu0 %v5434
        %6475 = vmatpush.bf16.msra.mxu0 %v5432
        %6476 = vmatpush.bf16.msra.mxu0 %v5430
        %6477 = vmatpush.bf16.msra.mxu0 %v5428
        %6478 = vmatpush.bf16.msra.mxu0 %v5426
        %6479 = vmatpush.bf16.msra.mxu0 %v5424
        %6480 = vmatpush.bf16.msra.mxu0 %v5422
        %6481 = vmatpush.bf16.msra.mxu0 %v5420
        %6482 = vmatmul.bf16.gmra.mxu0 %v3907
        %v6483 = vpop.f32.mrf.mxu0
        %v6484 = vadd.f32 %v6471, %v6483
        %v6485 = vpop.f32.mrf.mxu0
        %6486 = vdwg.mxu0
        %6487 = vmatpush.bf16.msra.mxu0 %v5450
        %6488 = vmatpush.bf16.msra.mxu0 %v5448
        %6489 = vmatpush.bf16.msra.mxu0 %v5446
        %6490 = vmatpush.bf16.msra.mxu0 %v5444
        %6491 = vmatpush.bf16.msra.mxu0 %v5442
        %6492 = vmatpush.bf16.msra.mxu0 %v5440
        %6493 = vmatpush.bf16.msra.mxu0 %v5438
        %6494 = vmatpush.bf16.msra.mxu0 %v5436
        %6495 = vmatmul.bf16.gmra.mxu0 %v3908
        %v6496 = vpop.f32.mrf.mxu0
        %v6497 = vadd.f32 %v6484, %v6496
        %v6498 = vpop.f32.mrf.mxu0
        %6499 = vdwg.mxu0
        %6500 = vmatpush.bf16.msra.mxu0 %v5466
        %6501 = vmatpush.bf16.msra.mxu0 %v5464
        %6502 = vmatpush.bf16.msra.mxu0 %v5462
        %6503 = vmatpush.bf16.msra.mxu0 %v5460
        %6504 = vmatpush.bf16.msra.mxu0 %v5458
        %6505 = vmatpush.bf16.msra.mxu0 %v5456
        %6506 = vmatpush.bf16.msra.mxu0 %v5454
        %6507 = vmatpush.bf16.msra.mxu0 %v5452
        %6508 = vmatmul.bf16.gmra.mxu0 %v3909
        %v6509 = vpop.f32.mrf.mxu0
        %v6510 = vadd.f32 %v6497, %v6509
        %v6511 = vpop.f32.mrf.mxu0
        %6512 = vdwg.mxu0
        %6513 = vmatpush.bf16.msra.mxu0 %v5482
        %6514 = vmatpush.bf16.msra.mxu0 %v5480
        %6515 = vmatpush.bf16.msra.mxu0 %v5478
        %6516 = vmatpush.bf16.msra.mxu0 %v5476
        %6517 = vmatpush.bf16.msra.mxu0 %v5474
        %6518 = vmatpush.bf16.msra.mxu0 %v5472
        %6519 = vmatpush.bf16.msra.mxu0 %v5470
        %6520 = vmatpush.bf16.msra.mxu0 %v5468
        %6521 = vmatmul.bf16.gmra.mxu0 %v3910
        %v6522 = vpop.f32.mrf.mxu0
        %v6523 = vadd.f32 %v6510, %v6522
        %v6524 = vpop.f32.mrf.mxu0
        %6525 = vdwg.mxu0
        %6526 = vmatpush.bf16.msra.mxu0 %v5498
        %6527 = vmatpush.bf16.msra.mxu0 %v5496
        %6528 = vmatpush.bf16.msra.mxu0 %v5494
        %6529 = vmatpush.bf16.msra.mxu0 %v5492
        %6530 = vmatpush.bf16.msra.mxu0 %v5490
        %6531 = vmatpush.bf16.msra.mxu0 %v5488
        %6532 = vmatpush.bf16.msra.mxu0 %v5486
        %6533 = vmatpush.bf16.msra.mxu0 %v5484
        %6534 = vmatmul.bf16.gmra.mxu0 %v3911
        %v6535 = vpop.f32.mrf.mxu0
        %v6536 = vadd.f32 %v6523, %v6535
        %v6537 = vpop.f32.mrf.mxu0
        %6538 = vdwg.mxu0
        %6539 = vmatpush.bf16.msra.mxu0 0
        %6540 = vmatpush.bf16.msra.mxu0 0
        %6541 = vmatpush.bf16.msra.mxu0 0
        %6542 = vmatpush.bf16.msra.mxu0 0
        %6543 = vmatpush.bf16.msra.mxu0 %v5506
        %6544 = vmatpush.bf16.msra.mxu0 %v5504
        %6545 = vmatpush.bf16.msra.mxu0 %v5502
        %6546 = vmatpush.bf16.msra.mxu0 %v5500
        %6547 = vmatmul.bf16.gmra.mxu0 %v5900
        %v6548 = vpop.f32.mrf.mxu0
        %v6549 = vadd.f32 %v6536, %v6548
        %v6550 = vpop.f32.mrf.mxu0
        %6551 = vdwg.mxu0
        %v6552 = vmax.f32 %v6224, 0.0
        %v6553 = vmax.f32 %v6549, 0.0
        %v6554 = vpack.c.bf16 %v6552, %v6552
        %v6555 = vpack.c.bf16 %v6553, %v6553
        %v6556 = vld [vmem:[%s3470] sm:$0xf]
        %v6557 = vld [vmem:[%s3470 + $0x4] sm:$0xf]
        %v6558 = vld [vmem:[%s3470 + $0x8] sm:$0xf]
        %v6559 = vld [vmem:[%s3470 + $0xc] sm:$0xf]
        %v6560 = vld [vmem:[%s3470 + $0x10] sm:$0xf]
        %v6561 = vld [vmem:[%s3470 + $0x14] sm:$0xf]
        %v6562 = vld [vmem:[%s3470 + $0x18] sm:$0xf]
        %v6563 = vld [vmem:[%s3470 + $0x1c] sm:$0xf]
        %v6564 = vld [vmem:[%s3470 + $0x20] sm:$0xf]
        %v6565 = vld [vmem:[%s3470 + $0x24] sm:$0xf]
        %v6566 = vld [vmem:[%s3470 + $0x28] sm:$0xf]
        %v6567 = vld [vmem:[%s3470 + $0x2c] sm:$0xf]
        %v6568 = vld [vmem:[%s3470 + $0x30] sm:$0xf]
        %v6569 = vld [vmem:[%s3470 + $0x34] sm:$0xf]
        %v6570 = vld [vmem:[%s3470 + $0x38] sm:$0xf]
        %v6571 = vld [vmem:[%s3470 + $0x3c] sm:$0xf]
        %v6572 = vld [vmem:[%s3470 + $0x40] sm:$0xf]
        %v6573 = vld [vmem:[%s3470 + $0x44] sm:$0xf]
        %v6574 = vld [vmem:[%s3470 + $0x48] sm:$0xf]
        %v6575 = vld [vmem:[%s3470 + $0x4c] sm:$0xf]
        %v6576 = vld [vmem:[%s3470 + $0x50] sm:$0xf]
        %v6577 = vld [vmem:[%s3470 + $0x54] sm:$0xf]
        %v6578 = vld [vmem:[%s3470 + $0x58] sm:$0xf]
        %v6579 = vld [vmem:[%s3470 + $0x5c] sm:$0xf]
        %v6580 = vld [vmem:[%s3470 + $0x60] sm:$0xf]
        %v6581 = vld [vmem:[%s3470 + $0x64] sm:$0xf]
        %v6582 = vld [vmem:[%s3470 + $0x68] sm:$0xf]
        %v6583 = vld [vmem:[%s3470 + $0x6c] sm:$0xf]
        %v6584 = vld [vmem:[%s3470 + $0x70] sm:$0xf]
        %v6585 = vld [vmem:[%s3470 + $0x74] sm:$0xf]
        %v6586 = vld [vmem:[%s3470 + $0x78] sm:$0xf]
        %v6587 = vld [vmem:[%s3470 + $0x7c] sm:$0xf]
        %v6620 = vunpack.c.l.b16 %v6556
        %v6621 = vunpack.c.l.b16 %v6557
        %v6622 = vunpack.c.l.b16 %v6558
        %v6623 = vunpack.c.l.b16 %v6559
        %v6624 = vunpack.c.l.b16 %v6560
        %v6625 = vunpack.c.l.b16 %v6561
        %v6626 = vunpack.c.l.b16 %v6562
        %v6627 = vunpack.c.l.b16 %v6563
        %v6628 = vunpack.c.l.b16 %v6564
        %v6629 = vunpack.c.l.b16 %v6565
        %v6630 = vunpack.c.l.b16 %v6566
        %v6631 = vunpack.c.l.b16 %v6567
        %v6632 = vunpack.c.l.b16 %v6568
        %v6633 = vunpack.c.l.b16 %v6569
        %v6634 = vunpack.c.l.b16 %v6570
        %v6635 = vunpack.c.l.b16 %v6571
        %v6636 = vunpack.c.l.b16 %v6572
        %v6637 = vunpack.c.l.b16 %v6573
        %v6638 = vunpack.c.l.b16 %v6574
        %v6639 = vunpack.c.l.b16 %v6575
        %v6640 = vunpack.c.l.b16 %v6576
        %v6641 = vunpack.c.l.b16 %v6577
        %v6642 = vunpack.c.l.b16 %v6578
        %v6643 = vunpack.c.l.b16 %v6579
        %v6644 = vunpack.c.l.b16 %v6580
        %v6645 = vunpack.c.l.b16 %v6581
        %v6646 = vunpack.c.l.b16 %v6582
        %v6647 = vunpack.c.l.b16 %v6583
        %v6648 = vunpack.c.l.b16 %v6584
        %v6649 = vunpack.c.l.b16 %v6585
        %v6650 = vunpack.c.l.b16 %v6586
        %v6651 = vunpack.c.l.b16 %v6587
        %v6652 = vpack.c.b16 %v6621, %v6620
        %v6653 = vpack.c.b16 %v6623, %v6622
        %v6654 = vpack.c.b16 %v6625, %v6624
        %v6655 = vpack.c.b16 %v6627, %v6626
        %v6656 = vpack.c.b16 %v6629, %v6628
        %v6657 = vpack.c.b16 %v6631, %v6630
        %v6658 = vpack.c.b16 %v6633, %v6632
        %v6659 = vpack.c.b16 %v6635, %v6634
        %v6660 = vpack.c.b16 %v6637, %v6636
        %v6661 = vpack.c.b16 %v6639, %v6638
        %v6662 = vpack.c.b16 %v6641, %v6640
        %v6663 = vpack.c.b16 %v6643, %v6642
        %v6664 = vpack.c.b16 %v6645, %v6644
        %v6665 = vpack.c.b16 %v6647, %v6646
        %v6666 = vpack.c.b16 %v6649, %v6648
        %v6667 = vpack.c.b16 %v6651, %v6650
        %6684 = vmatpush.bf16.msra.mxu0 %v6659
        %6685 = vmatpush.bf16.msra.mxu0 %v6658
        %6686 = vmatpush.bf16.msra.mxu0 %v6657
        %6687 = vmatpush.bf16.msra.mxu0 %v6656
        %6688 = vmatpush.bf16.msra.mxu0 %v6655
        %6689 = vmatpush.bf16.msra.mxu0 %v6654
        %6690 = vmatpush.bf16.msra.mxu0 %v6653
        %6691 = vmatpush.bf16.msra.mxu0 %v6652
        %6692 = vmatmul.bf16.gmra.mxu0 %v6554
        %v6693 = vpop.f32.mrf.mxu0
        %v6694 = vadd.f32 0.0, %v6693
        %v6695 = vpop.f32.mrf.mxu0
        %6696 = vdwg.mxu0
        %6697 = vmatpush.bf16.msra.mxu0 %v6667
        %6698 = vmatpush.bf16.msra.mxu0 %v6666
        %6699 = vmatpush.bf16.msra.mxu0 %v6665
        %6700 = vmatpush.bf16.msra.mxu0 %v6664
        %6701 = vmatpush.bf16.msra.mxu0 %v6663
        %6702 = vmatpush.bf16.msra.mxu0 %v6662
        %6703 = vmatpush.bf16.msra.mxu0 %v6661
        %6704 = vmatpush.bf16.msra.mxu0 %v6660
        %6705 = vmatmul.bf16.gmra.mxu0 %v6555
        %v6706 = vpop.f32.mrf.mxu0
        %v6707 = vadd.f32 %v6694, %v6706
        %v6708 = vpop.f32.mrf.mxu0
        %6709 = vdwg.mxu0
        %vm6710 = vcmask 25600
        %6711 = vst.msk [vmem:[%s3478] sm:$0x3] %vm6710, %v6707
        %p6712 = scmp.lt.s32.totalorder %s20, 3
        %s6713 = scalar_select %p6712, %s20, 3
        %p6714 = scmp.lt.s32.totalorder %s19, 0
        %s6715 = scalar_select %p6714, %s19, 0
        %s6716 = sadd.s32 %s6715, %s6713
        %s6717 = smul.addr %s6716, 2
        %s6718 = scalar_lea.vmem %s4, %s6717
        // Predicated region
        $region89: #{dueling_dqn_forward.7} parent=83 // pred_check
          %p6719 = pneg %p151
        $region90: #{dueling_dqn_forward.7} parent=83 // pred_check_branch
          %6721 = sbr.rel (%p6719) target = $region92
        $region91: #{dueling_dqn_forward.7} parent=83 // pred_region
          _
        $region92: #{dueling_dqn_forward.7} parent=83 // pred_fallthru
          _
      $region84: #{dueling_dqn_forward.7} parent=5 // pred_fallthru
        _
      %p6722 = scmp.le.s32.totalorder 2, %s10
      // Predicated region
      $region93: #{dueling_dqn_forward.7} parent=5 // pred_check
        %p6723 = pneg %p6722
      $region94: #{dueling_dqn_forward.7} parent=5 // pred_check_branch
        %6725 = sbr.rel (%p6723) target = $region96
      $region95: #{dueling_dqn_forward.7} parent=5 // pred_region
        %s6726 = ssub.s32 %s10, 2
        // Predicated region
        $region97: #{dueling_dqn_forward.7} parent=95 // pred_check
          %p6727 = pneg %p157
        $region98: #{dueling_dqn_forward.7} parent=95 // pred_check_branch
          %6729 = sbr.rel (%p6727) target = $region100
        $region99: #{dueling_dqn_forward.7} parent=95 // pred_region
          %p6730 = scmp.lt.s32.totalorder %s22, 3
          %s6731 = scalar_select %p6730, %s22, 3
          %p6732 = scmp.lt.s32.totalorder %s21, 0
          %s6733 = scalar_select %p6732, %s21, 0
          %s6734 = sadd.s32 %s6733, %s6731
          %s6735 = smul.addr %s6734, 2
          %s6736 = scalar_lea.vmem %s4, %s6735
        $region100: #{dueling_dqn_forward.7} parent=95 // pred_fallthru
          _
      $region96: #{dueling_dqn_forward.7} parent=5 // pred_fallthru
        _
    $region6: #{dueling_dqn_forward.7} parent=1 // loop_footer
      %s14 = sadd.s32 1, %s10
    $region7: #{dueling_dqn_forward.7} parent=1 // loop_footer_branch
      %9 = sbr.rel target = $region3
    $region8: #{dueling_dqn_forward.7} parent=1 // loop_exit
      _

</llo_original>
